<compile_context>
chip_gen: v5e
topology: v5e:2x2
jax: 0.10.0
libtpu: 0.0.40
codegen_flags: <defaults>
</compile_context>

<pallas_src>
import jax
import jax.numpy as jnp
import numpy as np
from jax.experimental import pallas as pl
from jax.experimental.pallas import tpu as pltpu


# ----------------------------------------------------------------------------
# Fused Pallas kernel
# ----------------------------------------------------------------------------
def cnn_kernel(xr_ref, cw1_ref, b1_ref, w2_ref, b2_ref, wl_ref, bl_ref, o_ref):
    """conv1+relu+pool1 -> conv2+relu+pool2 -> flatten -> linear, fused.

    xr_ref : (15, Bt, 320) bf16  row-gathered image; [si, b, a*64 + col],
                                 value = x[b, 4*si + a, col]
    cw1_ref: (320, 512)    bf16  conv1 weights (column gather + pool pos d
                                 folded in); lane = d*128 + oc*15 + sj
    b1_ref : (1, 128)      f32   conv1 bias on lanes oc*15+sj (60 valid)
    w2_ref : (15, 128, 512)bf16  conv2 weights per si; row k = ic*15 + sj,
                                 lane = d2*128 + oc2*9 + pi*3 + pj
    b2_ref : (1, 128)      f32   conv2 bias on lanes oc2*9+p (72 valid)
    wl_ref : (128, S)      bf16  linear weight transposed, rows >=72 zero
    bl_ref : (1, S)        f32
    o_ref  : (Bt, S)       f32
    """
    bt = xr_ref.shape[1]
    cw1 = cw1_ref[...]
    acc2 = jnp.zeros((bt, 512), jnp.float32)

    for si in range(15):                       # pooled1 row groups
        # conv1 for all (pool-pos d, out-channel, sj) in one MXU matmul.
        z1 = jnp.dot(xr_ref[si], cw1,
                     preferred_element_type=jnp.float32)          # (Bt, 512)
        # maxpool1 over the 4 aligned 128-lane pool-position blocks.
        m1 = jnp.maximum(jnp.maximum(z1[:, 0:128], z1[:, 128:256]),
                         jnp.maximum(z1[:, 256:384], z1[:, 384:512]))
        # bias + relu hoisted outside the pool max (both monotone).
        h1 = jnp.maximum(m1 + b1_ref[...], 0.0).astype(jnp.bfloat16)
        # conv2 contribution of this pooled1 row group (accumulated in f32).
        acc2 = acc2 + jnp.dot(h1, w2_ref[si],
                              preferred_element_type=jnp.float32)  # (Bt, 512)

    # maxpool2 over the 4 aligned pool-position blocks, bias + relu.
    m2 = jnp.maximum(jnp.maximum(acc2[:, 0:128], acc2[:, 128:256]),
                     jnp.maximum(acc2[:, 256:384], acc2[:, 384:512]))
    h2 = jnp.maximum(m2 + b2_ref[...], 0.0).astype(jnp.bfloat16)   # (Bt, 128)
    # flatten + linear
    o_ref[...] = (jnp.dot(h2, wl_ref[...],
                          preferred_element_type=jnp.float32) + bl_ref[...])


# ----------------------------------------------------------------------------
# One-time weight preprocessing (hoisted out of the per-call path)
# ----------------------------------------------------------------------------
def prepare_params(w1, b1, w2, b2, wl, bl):
    w1 = np.asarray(w1, np.float32)
    b1 = np.asarray(b1, np.float32)
    w2 = np.asarray(w2, np.float32)
    b2 = np.asarray(b2, np.float32)
    wl = np.asarray(wl, np.float32)
    bl = np.asarray(bl, np.float32)
    S = wl.shape[0]

    # conv1 -> (320, 512): row = a*64 + col, lane = d*128 + oc*15 + sj
    d, oc, ki, kj, sj = np.meshgrid(np.arange(4), np.arange(4), np.arange(3),
                                    np.arange(3), np.arange(15), indexing="ij")
    di, dj = d // 2, d % 2
    row = (2 * di + ki) * 64 + (4 * sj + 2 * dj + kj)
    col = d * 128 + oc * 15 + sj
    cw1 = np.zeros((320, 512), np.float32)
    cw1[row, col] = w1[oc, 0, ki, kj]

    # conv2 -> (15, 128, 512): [si, ic*15+sj, d2*128 + oc2*9 + pi*3 + pj]
    d2, ic, oc2, pi, pj, k2i, k2j = np.meshgrid(
        np.arange(4), np.arange(4), np.arange(8), np.arange(3), np.arange(3),
        np.arange(3), np.arange(3), indexing="ij")
    di2, dj2 = d2 // 2, d2 % 2
    si = 4 * pi + 2 * di2 + k2i
    sj2 = 4 * pj + 2 * dj2 + k2j
    w2big = np.zeros((15, 128, 512), np.float32)
    w2big[si, ic * 15 + sj2, d2 * 128 + oc2 * 9 + pi * 3 + pj] = w2[oc2, ic, k2i, k2j]

    b1row = np.zeros((1, 128), np.float32)
    b1row[0, :60] = np.repeat(b1, 15)           # lane = oc*15 + sj
    b2row = np.zeros((1, 128), np.float32)
    b2row[0, :72] = np.repeat(b2, 9)            # lane = oc2*9 + p
    wlt = np.zeros((128, S), np.float32)
    wlt[:72, :] = wl.T                          # torch flatten order matches
    blrow = bl.reshape(1, S)

    return (jnp.asarray(cw1, jnp.bfloat16),
            jnp.asarray(b1row, jnp.float32),
            jnp.asarray(w2big, jnp.bfloat16),
            jnp.asarray(b2row, jnp.float32),
            jnp.asarray(wlt, jnp.bfloat16),
            jnp.asarray(blrow, jnp.float32))


# ----------------------------------------------------------------------------
# Batch tiling
# ----------------------------------------------------------------------------
def _round_up(v, m):
    return (v + m - 1) // m * m


def _is_v6():
    try:
        return "v6" in jax.devices()[0].device_kind.lower()
    except Exception:
        return False


_IS_V6 = _is_v6()


def _plan_tiles(batch):
    """Returns (Bt, B_pad). Bt=128 default (v5e MXU fill, >=2 steps on v7x);
    256 only on v6e for large batches."""
    b8 = _round_up(batch, 8)
    if b8 <= 128:
        return b8, b8
    bt = 256 if (_IS_V6 and b8 >= 512) else 128
    return bt, _round_up(b8, bt)


# ----------------------------------------------------------------------------
# Forward pass
# ----------------------------------------------------------------------------
@jax.jit
def cnn_forward(x, params):
    cw1, b1row, w2big, b2row, wlt, blrow = params
    B = x.shape[0]
    S = wlt.shape[1]
    Bt, B_pad = _plan_tiles(B)
    steps = B_pad // Bt

    # Host-side row gather (bf16): xr[si, b, a*64 + col] = x[b, 4*si + a, col]
    xs = x[:, 0].astype(jnp.bfloat16)                     # (B, 64, 64)
    if B_pad != B:
        xs = jnp.pad(xs, ((0, B_pad - B), (0, 0), (0, 0)))
    rows = [xs[:, a:a + 57:4, :] for a in range(5)]       # each (B_pad, 15, 64)
    xr = (jnp.stack(rows, axis=2)                         # (B_pad, 15, 5, 64)
          .reshape(B_pad, 15, 320)
          .transpose(1, 0, 2))                            # (15, B_pad, 320)

    out = pl.pallas_call(
        cnn_kernel,
        out_shape=jax.ShapeDtypeStruct((B_pad, S), jnp.float32),
        grid=(steps,),
        in_specs=[
            pl.BlockSpec((15, Bt, 320), lambda i: (0, i, 0)),    # xr
            pl.BlockSpec((320, 512), lambda i: (0, 0)),          # cw1
            pl.BlockSpec((1, 128), lambda i: (0, 0)),            # b1row
            pl.BlockSpec((15, 128, 512), lambda i: (0, 0, 0)),   # w2big
            pl.BlockSpec((1, 128), lambda i: (0, 0)),            # b2row
            pl.BlockSpec((128, S), lambda i: (0, 0)),            # wlT (padded)
            pl.BlockSpec((1, S), lambda i: (0, 0)),              # bl
        ],
        out_specs=pl.BlockSpec((Bt, S), lambda i: (i, 0)),
        compiler_params=pltpu.CompilerParams(
            dimension_semantics=("parallel",),
            vmem_limit_bytes=32 * 1024 * 1024),
    )(xr, cw1, b1row, w2big, b2row, wlt, blrow)
    return out[:B]


# Pure-JAX reference (mirrors the PyTorch forward) for a correctness check.
def reference_forward(x, w1, b1, w2, b2, wl, bl):
    dn = ("NCHW", "OIHW", "NCHW")
    y = jax.lax.conv_general_dilated(x, w1, (2, 2), "VALID", dimension_numbers=dn)
    y = jax.nn.relu(y + b1[None, :, None, None])
    y = jax.lax.reduce_window(y, -jnp.inf, jax.lax.max,
                              (1, 1, 2, 2), (1, 1, 2, 2), "VALID")
    y = jax.lax.conv_general_dilated(y, w2, (2, 2), "VALID", dimension_numbers=dn)
    y = jax.nn.relu(y + b2[None, :, None, None])
    y = jax.lax.reduce_window(y, -jnp.inf, jax.lax.max,
                              (1, 1, 2, 2), (1, 1, 2, 2), "VALID")
    y = y.reshape(y.shape[0], -1)
    return y @ wl.T + bl


if __name__ == "__main__":
    STATE_DIM = 16
    key = jax.random.PRNGKey(0)
    k = jax.random.split(key, 7)
    w1 = jax.random.normal(k[1], (4, 1, 3, 3), jnp.float32) * 0.1
    b1 = jax.random.normal(k[2], (4,), jnp.float32) * 0.1
    w2 = jax.random.normal(k[3], (8, 4, 3, 3), jnp.float32) * 0.1
    b2 = jax.random.normal(k[4], (8,), jnp.float32) * 0.1
    wl = jax.random.normal(k[5], (STATE_DIM, 72), jnp.float32) * 0.1
    bl = jax.random.normal(k[6], (STATE_DIM,), jnp.float32) * 0.1

    params = prepare_params(w1, b1, w2, b2, wl, bl)   # built once (hoisted)

    # small batch (single tile) and a larger batch exercising the tiled path
    for B in (2, 130):
        x = jax.random.normal(k[0], (B, 1, 64, 64), jnp.float32)
        out = cnn_forward(x, params)
        jax.block_until_ready(out)
        ref = reference_forward(x, w1, b1, w2, b2, wl, bl)
        err = float(jnp.max(jnp.abs(out - ref)))
        assert out.shape == (B, STATE_DIM), out.shape
        assert err < 5e-2, f"B={B}: max abs err {err}"
    print("KERNEL_OK")
</pallas_src>

<mosaic_0001>
module attributes {stable_mosaic.version = 11 : i64} {
  func.func @cnn_kernel(%arg0: i32, %arg1: memref<15x8x320xbf16, #tpu.memory_space<vmem>>, %arg2: memref<320x512xbf16, #tpu.memory_space<vmem>>, %arg3: memref<1x128xf32, #tpu.memory_space<vmem>>, %arg4: memref<15x128x512xbf16, #tpu.memory_space<vmem>>, %arg5: memref<1x128xf32, #tpu.memory_space<vmem>>, %arg6: memref<128x16xbf16, #tpu.memory_space<vmem>>, %arg7: memref<1x16xf32, #tpu.memory_space<vmem>>, %arg8: memref<8x16xf32, #tpu.memory_space<vmem>>) attributes {dimension_semantics = [#tpu.dimension_semantics<parallel>], iteration_bounds = array<i64: 1>, scalar_prefetch = 0 : i64, scratch_operands = 0 : i64, tpu.core_type = #tpu.core_type<tc>, window_params = [{transform_indices = @transform_0, window_bounds = array<i64: 15, 8, 320>}, {pipeline_mode = #tpu.pipeline_mode<synchronous>, transform_indices = @transform_1, window_bounds = array<i64: 320, 512>}, {pipeline_mode = #tpu.pipeline_mode<synchronous>, transform_indices = @transform_2, window_bounds = array<i64: 1, 128>}, {pipeline_mode = #tpu.pipeline_mode<synchronous>, transform_indices = @transform_3, window_bounds = array<i64: 15, 128, 512>}, {pipeline_mode = #tpu.pipeline_mode<synchronous>, transform_indices = @transform_4, window_bounds = array<i64: 1, 128>}, {pipeline_mode = #tpu.pipeline_mode<synchronous>, transform_indices = @transform_5, window_bounds = array<i64: 128, 16>}, {pipeline_mode = #tpu.pipeline_mode<synchronous>, transform_indices = @transform_6, window_bounds = array<i64: 1, 16>}, {transform_indices = @transform_7, window_bounds = array<i64: 8, 16>}]} {
    %c0 = arith.constant 0 : index
    %c0_0 = arith.constant 0 : index
    %0 = vector.load %arg2[%c0, %c0_0] : memref<320x512xbf16, #tpu.memory_space<vmem>>, vector<320x512xbf16>
    %cst = arith.constant 0.000000e+00 : f32
    %1 = vector.broadcast %cst : f32 to vector<8x512xf32>
    %c0_1 = arith.constant 0 : index
    %c0_2 = arith.constant 0 : index
    %c0_3 = arith.constant 0 : index
    %2 = vector.load %arg1[%c0_1, %c0_2, %c0_3] : memref<15x8x320xbf16, #tpu.memory_space<vmem>>, vector<1x8x320xbf16>
    %3 = vector.shape_cast %2 : vector<1x8x320xbf16> to vector<8x320xbf16>
    %cst_4 = arith.constant dense<0.000000e+00> : vector<8x512xf32>
    %4 = tpu.matmul %3, %0, %cst_4 {dimension_numbers = #tpu.dot_dimension_numbers<[1], [0], [0], [1], [0, 0, 1, 1], [], []>} : vector<8x320xbf16>, vector<320x512xbf16>, vector<8x512xf32> -> vector<8x512xf32>
    %5 = vector.extract_strided_slice %4 {offsets = [0, 0], sizes = [8, 128], strides = [1, 1]} : vector<8x512xf32> to vector<8x128xf32>
    %6 = vector.extract_strided_slice %4 {offsets = [0, 128], sizes = [8, 128], strides = [1, 1]} : vector<8x512xf32> to vector<8x128xf32>
    %7 = arith.maximumf %5, %6 : vector<8x128xf32>
    %8 = vector.extract_strided_slice %4 {offsets = [0, 256], sizes = [8, 128], strides = [1, 1]} : vector<8x512xf32> to vector<8x128xf32>
    %9 = vector.extract_strided_slice %4 {offsets = [0, 384], sizes = [8, 128], strides = [1, 1]} : vector<8x512xf32> to vector<8x128xf32>
    %10 = arith.maximumf %8, %9 : vector<8x128xf32>
    %11 = arith.maximumf %7, %10 : vector<8x128xf32>
    %c0_5 = arith.constant 0 : index
    %c0_6 = arith.constant 0 : index
    %12 = vector.load %arg3[%c0_5, %c0_6] : memref<1x128xf32, #tpu.memory_space<vmem>>, vector<1x128xf32>
    %13 = vector.broadcast %12 : vector<1x128xf32> to vector<8x128xf32>
    %14 = arith.addf %11, %13 : vector<8x128xf32>
    %cst_7 = arith.constant 0.000000e+00 : f32
    %15 = vector.broadcast %cst_7 : f32 to vector<8x128xf32>
    %16 = arith.maximumf %14, %15 : vector<8x128xf32>
    %17 = arith.truncf %16 : vector<8x128xf32> to vector<8x128xbf16>
    %c0_8 = arith.constant 0 : index
    %c0_9 = arith.constant 0 : index
    %c0_10 = arith.constant 0 : index
    %18 = vector.load %arg4[%c0_8, %c0_9, %c0_10] : memref<15x128x512xbf16, #tpu.memory_space<vmem>>, vector<1x128x512xbf16>
    %19 = vector.shape_cast %18 : vector<1x128x512xbf16> to vector<128x512xbf16>
    %cst_11 = arith.constant dense<0.000000e+00> : vector<8x512xf32>
    %20 = tpu.matmul %17, %19, %cst_11 {dimension_numbers = #tpu.dot_dimension_numbers<[1], [0], [0], [1], [0, 0, 1, 1], [], []>} : vector<8x128xbf16>, vector<128x512xbf16>, vector<8x512xf32> -> vector<8x512xf32>
    %21 = arith.addf %1, %20 : vector<8x512xf32>
    %c1 = arith.constant 1 : index
    %c0_12 = arith.constant 0 : index
    %c0_13 = arith.constant 0 : index
    %22 = vector.load %arg1[%c1, %c0_12, %c0_13] : memref<15x8x320xbf16, #tpu.memory_space<vmem>>, vector<1x8x320xbf16>
    %23 = vector.shape_cast %22 : vector<1x8x320xbf16> to vector<8x320xbf16>
    %cst_14 = arith.constant dense<0.000000e+00> : vector<8x512xf32>
    %24 = tpu.matmul %23, %0, %cst_14 {dimension_numbers = #tpu.dot_dimension_numbers<[1], [0], [0], [1], [0, 0, 1, 1], [], []>} : vector<8x320xbf16>, vector<320x512xbf16>, vector<8x512xf32> -> vector<8x512xf32>
    %25 = vector.extract_strided_slice %24 {offsets = [0, 0], sizes = [8, 128], strides = [1, 1]} : vector<8x512xf32> to vector<8x128xf32>
    %26 = vector.extract_strided_slice %24 {offsets = [0, 128], sizes = [8, 128], strides = [1, 1]} : vector<8x512xf32> to vector<8x128xf32>
    %27 = arith.maximumf %25, %26 : vector<8x128xf32>
    %28 = vector.extract_strided_slice %24 {offsets = [0, 256], sizes = [8, 128], strides = [1, 1]} : vector<8x512xf32> to vector<8x128xf32>
    %29 = vector.extract_strided_slice %24 {offsets = [0, 384], sizes = [8, 128], strides = [1, 1]} : vector<8x512xf32> to vector<8x128xf32>
    %30 = arith.maximumf %28, %29 : vector<8x128xf32>
    %31 = arith.maximumf %27, %30 : vector<8x128xf32>
    %c0_15 = arith.constant 0 : index
    %c0_16 = arith.constant 0 : index
    %32 = vector.load %arg3[%c0_15, %c0_16] : memref<1x128xf32, #tpu.memory_space<vmem>>, vector<1x128xf32>
    %33 = vector.broadcast %32 : vector<1x128xf32> to vector<8x128xf32>
    %34 = arith.addf %31, %33 : vector<8x128xf32>
    %cst_17 = arith.constant 0.000000e+00 : f32
    %35 = vector.broadcast %cst_17 : f32 to vector<8x128xf32>
    %36 = arith.maximumf %34, %35 : vector<8x128xf32>
    %37 = arith.truncf %36 : vector<8x128xf32> to vector<8x128xbf16>
    %c1_18 = arith.constant 1 : index
    %c0_19 = arith.constant 0 : index
    %c0_20 = arith.constant 0 : index
    %38 = vector.load %arg4[%c1_18, %c0_19, %c0_20] : memref<15x128x512xbf16, #tpu.memory_space<vmem>>, vector<1x128x512xbf16>
    %39 = vector.shape_cast %38 : vector<1x128x512xbf16> to vector<128x512xbf16>
    %cst_21 = arith.constant dense<0.000000e+00> : vector<8x512xf32>
    %40 = tpu.matmul %37, %39, %cst_21 {dimension_numbers = #tpu.dot_dimension_numbers<[1], [0], [0], [1], [0, 0, 1, 1], [], []>} : vector<8x128xbf16>, vector<128x512xbf16>, vector<8x512xf32> -> vector<8x512xf32>
    %41 = arith.addf %21, %40 : vector<8x512xf32>
    %c2 = arith.constant 2 : index
    %c0_22 = arith.constant 0 : index
    %c0_23 = arith.constant 0 : index
    %42 = vector.load %arg1[%c2, %c0_22, %c0_23] : memref<15x8x320xbf16, #tpu.memory_space<vmem>>, vector<1x8x320xbf16>
    %43 = vector.shape_cast %42 : vector<1x8x320xbf16> to vector<8x320xbf16>
    %cst_24 = arith.constant dense<0.000000e+00> : vector<8x512xf32>
    %44 = tpu.matmul %43, %0, %cst_24 {dimension_numbers = #tpu.dot_dimension_numbers<[1], [0], [0], [1], [0, 0, 1, 1], [], []>} : vector<8x320xbf16>, vector<320x512xbf16>, vector<8x512xf32> -> vector<8x512xf32>
    %45 = vector.extract_strided_slice %44 {offsets = [0, 0], sizes = [8, 128], strides = [1, 1]} : vector<8x512xf32> to vector<8x128xf32>
    %46 = vector.extract_strided_slice %44 {offsets = [0, 128], sizes = [8, 128], strides = [1, 1]} : vector<8x512xf32> to vector<8x128xf32>
    %47 = arith.maximumf %45, %46 : vector<8x128xf32>
    %48 = vector.extract_strided_slice %44 {offsets = [0, 256], sizes = [8, 128], strides = [1, 1]} : vector<8x512xf32> to vector<8x128xf32>
    %49 = vector.extract_strided_slice %44 {offsets = [0, 384], sizes = [8, 128], strides = [1, 1]} : vector<8x512xf32> to vector<8x128xf32>
    %50 = arith.maximumf %48, %49 : vector<8x128xf32>
    %51 = arith.maximumf %47, %50 : vector<8x128xf32>
    %c0_25 = arith.constant 0 : index
    %c0_26 = arith.constant 0 : index
    %52 = vector.load %arg3[%c0_25, %c0_26] : memref<1x128xf32, #tpu.memory_space<vmem>>, vector<1x128xf32>
    %53 = vector.broadcast %52 : vector<1x128xf32> to vector<8x128xf32>
    %54 = arith.addf %51, %53 : vector<8x128xf32>
    %cst_27 = arith.constant 0.000000e+00 : f32
    %55 = vector.broadcast %cst_27 : f32 to vector<8x128xf32>
    %56 = arith.maximumf %54, %55 : vector<8x128xf32>
    %57 = arith.truncf %56 : vector<8x128xf32> to vector<8x128xbf16>
    %c2_28 = arith.constant 2 : index
    %c0_29 = arith.constant 0 : index
    %c0_30 = arith.constant 0 : index
    %58 = vector.load %arg4[%c2_28, %c0_29, %c0_30] : memref<15x128x512xbf16, #tpu.memory_space<vmem>>, vector<1x128x512xbf16>
    %59 = vector.shape_cast %58 : vector<1x128x512xbf16> to vector<128x512xbf16>
    %cst_31 = arith.constant dense<0.000000e+00> : vector<8x512xf32>
    %60 = tpu.matmul %57, %59, %cst_31 {dimension_numbers = #tpu.dot_dimension_numbers<[1], [0], [0], [1], [0, 0, 1, 1], [], []>} : vector<8x128xbf16>, vector<128x512xbf16>, vector<8x512xf32> -> vector<8x512xf32>
    %61 = arith.addf %41, %60 : vector<8x512xf32>
    %c3 = arith.constant 3 : index
    %c0_32 = arith.constant 0 : index
    %c0_33 = arith.constant 0 : index
    %62 = vector.load %arg1[%c3, %c0_32, %c0_33] : memref<15x8x320xbf16, #tpu.memory_space<vmem>>, vector<1x8x320xbf16>
    %63 = vector.shape_cast %62 : vector<1x8x320xbf16> to vector<8x320xbf16>
    %cst_34 = arith.constant dense<0.000000e+00> : vector<8x512xf32>
    %64 = tpu.matmul %63, %0, %cst_34 {dimension_numbers = #tpu.dot_dimension_numbers<[1], [0], [0], [1], [0, 0, 1, 1], [], []>} : vector<8x320xbf16>, vector<320x512xbf16>, vector<8x512xf32> -> vector<8x512xf32>
    %65 = vector.extract_strided_slice %64 {offsets = [0, 0], sizes = [8, 128], strides = [1, 1]} : vector<8x512xf32> to vector<8x128xf32>
    %66 = vector.extract_strided_slice %64 {offsets = [0, 128], sizes = [8, 128], strides = [1, 1]} : vector<8x512xf32> to vector<8x128xf32>
    %67 = arith.maximumf %65, %66 : vector<8x128xf32>
    %68 = vector.extract_strided_slice %64 {offsets = [0, 256], sizes = [8, 128], strides = [1, 1]} : vector<8x512xf32> to vector<8x128xf32>
    %69 = vector.extract_strided_slice %64 {offsets = [0, 384], sizes = [8, 128], strides = [1, 1]} : vector<8x512xf32> to vector<8x128xf32>
    %70 = arith.maximumf %68, %69 : vector<8x128xf32>
    %71 = arith.maximumf %67, %70 : vector<8x128xf32>
    %c0_35 = arith.constant 0 : index
    %c0_36 = arith.constant 0 : index
    %72 = vector.load %arg3[%c0_35, %c0_36] : memref<1x128xf32, #tpu.memory_space<vmem>>, vector<1x128xf32>
    %73 = vector.broadcast %72 : vector<1x128xf32> to vector<8x128xf32>
    %74 = arith.addf %71, %73 : vector<8x128xf32>
    %cst_37 = arith.constant 0.000000e+00 : f32
    %75 = vector.broadcast %cst_37 : f32 to vector<8x128xf32>
    %76 = arith.maximumf %74, %75 : vector<8x128xf32>
    %77 = arith.truncf %76 : vector<8x128xf32> to vector<8x128xbf16>
    %c3_38 = arith.constant 3 : index
    %c0_39 = arith.constant 0 : index
    %c0_40 = arith.constant 0 : index
    %78 = vector.load %arg4[%c3_38, %c0_39, %c0_40] : memref<15x128x512xbf16, #tpu.memory_space<vmem>>, vector<1x128x512xbf16>
    %79 = vector.shape_cast %78 : vector<1x128x512xbf16> to vector<128x512xbf16>
    %cst_41 = arith.constant dense<0.000000e+00> : vector<8x512xf32>
    %80 = tpu.matmul %77, %79, %cst_41 {dimension_numbers = #tpu.dot_dimension_numbers<[1], [0], [0], [1], [0, 0, 1, 1], [], []>} : vector<8x128xbf16>, vector<128x512xbf16>, vector<8x512xf32> -> vector<8x512xf32>
    %81 = arith.addf %61, %80 : vector<8x512xf32>
    %c4 = arith.constant 4 : index
    %c0_42 = arith.constant 0 : index
    %c0_43 = arith.constant 0 : index
    %82 = vector.load %arg1[%c4, %c0_42, %c0_43] : memref<15x8x320xbf16, #tpu.memory_space<vmem>>, vector<1x8x320xbf16>
    %83 = vector.shape_cast %82 : vector<1x8x320xbf16> to vector<8x320xbf16>
    %cst_44 = arith.constant dense<0.000000e+00> : vector<8x512xf32>
    %84 = tpu.matmul %83, %0, %cst_44 {dimension_numbers = #tpu.dot_dimension_numbers<[1], [0], [0], [1], [0, 0, 1, 1], [], []>} : vector<8x320xbf16>, vector<320x512xbf16>, vector<8x512xf32> -> vector<8x512xf32>
    %85 = vector.extract_strided_slice %84 {offsets = [0, 0], sizes = [8, 128], strides = [1, 1]} : vector<8x512xf32> to vector<8x128xf32>
    %86 = vector.extract_strided_slice %84 {offsets = [0, 128], sizes = [8, 128], strides = [1, 1]} : vector<8x512xf32> to vector<8x128xf32>
    %87 = arith.maximumf %85, %86 : vector<8x128xf32>
    %88 = vector.extract_strided_slice %84 {offsets = [0, 256], sizes = [8, 128], strides = [1, 1]} : vector<8x512xf32> to vector<8x128xf32>
    %89 = vector.extract_strided_slice %84 {offsets = [0, 384], sizes = [8, 128], strides = [1, 1]} : vector<8x512xf32> to vector<8x128xf32>
    %90 = arith.maximumf %88, %89 : vector<8x128xf32>
    %91 = arith.maximumf %87, %90 : vector<8x128xf32>
    %c0_45 = arith.constant 0 : index
    %c0_46 = arith.constant 0 : index
    %92 = vector.load %arg3[%c0_45, %c0_46] : memref<1x128xf32, #tpu.memory_space<vmem>>, vector<1x128xf32>
    %93 = vector.broadcast %92 : vector<1x128xf32> to vector<8x128xf32>
    %94 = arith.addf %91, %93 : vector<8x128xf32>
    %cst_47 = arith.constant 0.000000e+00 : f32
    %95 = vector.broadcast %cst_47 : f32 to vector<8x128xf32>
    %96 = arith.maximumf %94, %95 : vector<8x128xf32>
    %97 = arith.truncf %96 : vector<8x128xf32> to vector<8x128xbf16>
    %c4_48 = arith.constant 4 : index
    %c0_49 = arith.constant 0 : index
    %c0_50 = arith.constant 0 : index
    %98 = vector.load %arg4[%c4_48, %c0_49, %c0_50] : memref<15x128x512xbf16, #tpu.memory_space<vmem>>, vector<1x128x512xbf16>
    %99 = vector.shape_cast %98 : vector<1x128x512xbf16> to vector<128x512xbf16>
    %cst_51 = arith.constant dense<0.000000e+00> : vector<8x512xf32>
    %100 = tpu.matmul %97, %99, %cst_51 {dimension_numbers = #tpu.dot_dimension_numbers<[1], [0], [0], [1], [0, 0, 1, 1], [], []>} : vector<8x128xbf16>, vector<128x512xbf16>, vector<8x512xf32> -> vector<8x512xf32>
    %101 = arith.addf %81, %100 : vector<8x512xf32>
    %c5 = arith.constant 5 : index
    %c0_52 = arith.constant 0 : index
    %c0_53 = arith.constant 0 : index
    %102 = vector.load %arg1[%c5, %c0_52, %c0_53] : memref<15x8x320xbf16, #tpu.memory_space<vmem>>, vector<1x8x320xbf16>
    %103 = vector.shape_cast %102 : vector<1x8x320xbf16> to vector<8x320xbf16>
    %cst_54 = arith.constant dense<0.000000e+00> : vector<8x512xf32>
    %104 = tpu.matmul %103, %0, %cst_54 {dimension_numbers = #tpu.dot_dimension_numbers<[1], [0], [0], [1], [0, 0, 1, 1], [], []>} : vector<8x320xbf16>, vector<320x512xbf16>, vector<8x512xf32> -> vector<8x512xf32>
    %105 = vector.extract_strided_slice %104 {offsets = [0, 0], sizes = [8, 128], strides = [1, 1]} : vector<8x512xf32> to vector<8x128xf32>
    %106 = vector.extract_strided_slice %104 {offsets = [0, 128], sizes = [8, 128], strides = [1, 1]} : vector<8x512xf32> to vector<8x128xf32>
    %107 = arith.maximumf %105, %106 : vector<8x128xf32>
    %108 = vector.extract_strided_slice %104 {offsets = [0, 256], sizes = [8, 128], strides = [1, 1]} : vector<8x512xf32> to vector<8x128xf32>
    %109 = vector.extract_strided_slice %104 {offsets = [0, 384], sizes = [8, 128], strides = [1, 1]} : vector<8x512xf32> to vector<8x128xf32>
    %110 = arith.maximumf %108, %109 : vector<8x128xf32>
    %111 = arith.maximumf %107, %110 : vector<8x128xf32>
    %c0_55 = arith.constant 0 : index
    %c0_56 = arith.constant 0 : index
    %112 = vector.load %arg3[%c0_55, %c0_56] : memref<1x128xf32, #tpu.memory_space<vmem>>, vector<1x128xf32>
    %113 = vector.broadcast %112 : vector<1x128xf32> to vector<8x128xf32>
    %114 = arith.addf %111, %113 : vector<8x128xf32>
    %cst_57 = arith.constant 0.000000e+00 : f32
    %115 = vector.broadcast %cst_57 : f32 to vector<8x128xf32>
    %116 = arith.maximumf %114, %115 : vector<8x128xf32>
    %117 = arith.truncf %116 : vector<8x128xf32> to vector<8x128xbf16>
    %c5_58 = arith.constant 5 : index
    %c0_59 = arith.constant 0 : index
    %c0_60 = arith.constant 0 : index
    %118 = vector.load %arg4[%c5_58, %c0_59, %c0_60] : memref<15x128x512xbf16, #tpu.memory_space<vmem>>, vector<1x128x512xbf16>
    %119 = vector.shape_cast %118 : vector<1x128x512xbf16> to vector<128x512xbf16>
    %cst_61 = arith.constant dense<0.000000e+00> : vector<8x512xf32>
    %120 = tpu.matmul %117, %119, %cst_61 {dimension_numbers = #tpu.dot_dimension_numbers<[1], [0], [0], [1], [0, 0, 1, 1], [], []>} : vector<8x128xbf16>, vector<128x512xbf16>, vector<8x512xf32> -> vector<8x512xf32>
    %121 = arith.addf %101, %120 : vector<8x512xf32>
    %c6 = arith.constant 6 : index
    %c0_62 = arith.constant 0 : index
    %c0_63 = arith.constant 0 : index
    %122 = vector.load %arg1[%c6, %c0_62, %c0_63] : memref<15x8x320xbf16, #tpu.memory_space<vmem>>, vector<1x8x320xbf16>
    %123 = vector.shape_cast %122 : vector<1x8x320xbf16> to vector<8x320xbf16>
    %cst_64 = arith.constant dense<0.000000e+00> : vector<8x512xf32>
    %124 = tpu.matmul %123, %0, %cst_64 {dimension_numbers = #tpu.dot_dimension_numbers<[1], [0], [0], [1], [0, 0, 1, 1], [], []>} : vector<8x320xbf16>, vector<320x512xbf16>, vector<8x512xf32> -> vector<8x512xf32>
    %125 = vector.extract_strided_slice %124 {offsets = [0, 0], sizes = [8, 128], strides = [1, 1]} : vector<8x512xf32> to vector<8x128xf32>
    %126 = vector.extract_strided_slice %124 {offsets = [0, 128], sizes = [8, 128], strides = [1, 1]} : vector<8x512xf32> to vector<8x128xf32>
    %127 = arith.maximumf %125, %126 : vector<8x128xf32>
    %128 = vector.extract_strided_slice %124 {offsets = [0, 256], sizes = [8, 128], strides = [1, 1]} : vector<8x512xf32> to vector<8x128xf32>
    %129 = vector.extract_strided_slice %124 {offsets = [0, 384], sizes = [8, 128], strides = [1, 1]} : vector<8x512xf32> to vector<8x128xf32>
    %130 = arith.maximumf %128, %129 : vector<8x128xf32>
    %131 = arith.maximumf %127, %130 : vector<8x128xf32>
    %c0_65 = arith.constant 0 : index
    %c0_66 = arith.constant 0 : index
    %132 = vector.load %arg3[%c0_65, %c0_66] : memref<1x128xf32, #tpu.memory_space<vmem>>, vector<1x128xf32>
    %133 = vector.broadcast %132 : vector<1x128xf32> to vector<8x128xf32>
    %134 = arith.addf %131, %133 : vector<8x128xf32>
    %cst_67 = arith.constant 0.000000e+00 : f32
    %135 = vector.broadcast %cst_67 : f32 to vector<8x128xf32>
    %136 = arith.maximumf %134, %135 : vector<8x128xf32>
    %137 = arith.truncf %136 : vector<8x128xf32> to vector<8x128xbf16>
    %c6_68 = arith.constant 6 : index
    %c0_69 = arith.constant 0 : index
    %c0_70 = arith.constant 0 : index
    %138 = vector.load %arg4[%c6_68, %c0_69, %c0_70] : memref<15x128x512xbf16, #tpu.memory_space<vmem>>, vector<1x128x512xbf16>
    %139 = vector.shape_cast %138 : vector<1x128x512xbf16> to vector<128x512xbf16>
    %cst_71 = arith.constant dense<0.000000e+00> : vector<8x512xf32>
    %140 = tpu.matmul %137, %139, %cst_71 {dimension_numbers = #tpu.dot_dimension_numbers<[1], [0], [0], [1], [0, 0, 1, 1], [], []>} : vector<8x128xbf16>, vector<128x512xbf16>, vector<8x512xf32> -> vector<8x512xf32>
    %141 = arith.addf %121, %140 : vector<8x512xf32>
    %c7 = arith.constant 7 : index
    %c0_72 = arith.constant 0 : index
    %c0_73 = arith.constant 0 : index
    %142 = vector.load %arg1[%c7, %c0_72, %c0_73] : memref<15x8x320xbf16, #tpu.memory_space<vmem>>, vector<1x8x320xbf16>
    %143 = vector.shape_cast %142 : vector<1x8x320xbf16> to vector<8x320xbf16>
    %cst_74 = arith.constant dense<0.000000e+00> : vector<8x512xf32>
    %144 = tpu.matmul %143, %0, %cst_74 {dimension_numbers = #tpu.dot_dimension_numbers<[1], [0], [0], [1], [0, 0, 1, 1], [], []>} : vector<8x320xbf16>, vector<320x512xbf16>, vector<8x512xf32> -> vector<8x512xf32>
    %145 = vector.extract_strided_slice %144 {offsets = [0, 0], sizes = [8, 128], strides = [1, 1]} : vector<8x512xf32> to vector<8x128xf32>
    %146 = vector.extract_strided_slice %144 {offsets = [0, 128], sizes = [8, 128], strides = [1, 1]} : vector<8x512xf32> to vector<8x128xf32>
    %147 = arith.maximumf %145, %146 : vector<8x128xf32>
    %148 = vector.extract_strided_slice %144 {offsets = [0, 256], sizes = [8, 128], strides = [1, 1]} : vector<8x512xf32> to vector<8x128xf32>
    %149 = vector.extract_strided_slice %144 {offsets = [0, 384], sizes = [8, 128], strides = [1, 1]} : vector<8x512xf32> to vector<8x128xf32>
    %150 = arith.maximumf %148, %149 : vector<8x128xf32>
    %151 = arith.maximumf %147, %150 : vector<8x128xf32>
    %c0_75 = arith.constant 0 : index
    %c0_76 = arith.constant 0 : index
    %152 = vector.load %arg3[%c0_75, %c0_76] : memref<1x128xf32, #tpu.memory_space<vmem>>, vector<1x128xf32>
    %153 = vector.broadcast %152 : vector<1x128xf32> to vector<8x128xf32>
    %154 = arith.addf %151, %153 : vector<8x128xf32>
    %cst_77 = arith.constant 0.000000e+00 : f32
    %155 = vector.broadcast %cst_77 : f32 to vector<8x128xf32>
    %156 = arith.maximumf %154, %155 : vector<8x128xf32>
    %157 = arith.truncf %156 : vector<8x128xf32> to vector<8x128xbf16>
    %c7_78 = arith.constant 7 : index
    %c0_79 = arith.constant 0 : index
    %c0_80 = arith.constant 0 : index
    %158 = vector.load %arg4[%c7_78, %c0_79, %c0_80] : memref<15x128x512xbf16, #tpu.memory_space<vmem>>, vector<1x128x512xbf16>
    %159 = vector.shape_cast %158 : vector<1x128x512xbf16> to vector<128x512xbf16>
    %cst_81 = arith.constant dense<0.000000e+00> : vector<8x512xf32>
    %160 = tpu.matmul %157, %159, %cst_81 {dimension_numbers = #tpu.dot_dimension_numbers<[1], [0], [0], [1], [0, 0, 1, 1], [], []>} : vector<8x128xbf16>, vector<128x512xbf16>, vector<8x512xf32> -> vector<8x512xf32>
    %161 = arith.addf %141, %160 : vector<8x512xf32>
    %c8 = arith.constant 8 : index
    %c0_82 = arith.constant 0 : index
    %c0_83 = arith.constant 0 : index
    %162 = vector.load %arg1[%c8, %c0_82, %c0_83] : memref<15x8x320xbf16, #tpu.memory_space<vmem>>, vector<1x8x320xbf16>
    %163 = vector.shape_cast %162 : vector<1x8x320xbf16> to vector<8x320xbf16>
    %cst_84 = arith.constant dense<0.000000e+00> : vector<8x512xf32>
    %164 = tpu.matmul %163, %0, %cst_84 {dimension_numbers = #tpu.dot_dimension_numbers<[1], [0], [0], [1], [0, 0, 1, 1], [], []>} : vector<8x320xbf16>, vector<320x512xbf16>, vector<8x512xf32> -> vector<8x512xf32>
    %165 = vector.extract_strided_slice %164 {offsets = [0, 0], sizes = [8, 128], strides = [1, 1]} : vector<8x512xf32> to vector<8x128xf32>
    %166 = vector.extract_strided_slice %164 {offsets = [0, 128], sizes = [8, 128], strides = [1, 1]} : vector<8x512xf32> to vector<8x128xf32>
    %167 = arith.maximumf %165, %166 : vector<8x128xf32>
    %168 = vector.extract_strided_slice %164 {offsets = [0, 256], sizes = [8, 128], strides = [1, 1]} : vector<8x512xf32> to vector<8x128xf32>
    %169 = vector.extract_strided_slice %164 {offsets = [0, 384], sizes = [8, 128], strides = [1, 1]} : vector<8x512xf32> to vector<8x128xf32>
    %170 = arith.maximumf %168, %169 : vector<8x128xf32>
    %171 = arith.maximumf %167, %170 : vector<8x128xf32>
    %c0_85 = arith.constant 0 : index
    %c0_86 = arith.constant 0 : index
    %172 = vector.load %arg3[%c0_85, %c0_86] : memref<1x128xf32, #tpu.memory_space<vmem>>, vector<1x128xf32>
    %173 = vector.broadcast %172 : vector<1x128xf32> to vector<8x128xf32>
    %174 = arith.addf %171, %173 : vector<8x128xf32>
    %cst_87 = arith.constant 0.000000e+00 : f32
    %175 = vector.broadcast %cst_87 : f32 to vector<8x128xf32>
    %176 = arith.maximumf %174, %175 : vector<8x128xf32>
    %177 = arith.truncf %176 : vector<8x128xf32> to vector<8x128xbf16>
    %c8_88 = arith.constant 8 : index
    %c0_89 = arith.constant 0 : index
    %c0_90 = arith.constant 0 : index
    %178 = vector.load %arg4[%c8_88, %c0_89, %c0_90] : memref<15x128x512xbf16, #tpu.memory_space<vmem>>, vector<1x128x512xbf16>
    %179 = vector.shape_cast %178 : vector<1x128x512xbf16> to vector<128x512xbf16>
    %cst_91 = arith.constant dense<0.000000e+00> : vector<8x512xf32>
    %180 = tpu.matmul %177, %179, %cst_91 {dimension_numbers = #tpu.dot_dimension_numbers<[1], [0], [0], [1], [0, 0, 1, 1], [], []>} : vector<8x128xbf16>, vector<128x512xbf16>, vector<8x512xf32> -> vector<8x512xf32>
    %181 = arith.addf %161, %180 : vector<8x512xf32>
    %c9 = arith.constant 9 : index
    %c0_92 = arith.constant 0 : index
    %c0_93 = arith.constant 0 : index
    %182 = vector.load %arg1[%c9, %c0_92, %c0_93] : memref<15x8x320xbf16, #tpu.memory_space<vmem>>, vector<1x8x320xbf16>
    %183 = vector.shape_cast %182 : vector<1x8x320xbf16> to vector<8x320xbf16>
    %cst_94 = arith.constant dense<0.000000e+00> : vector<8x512xf32>
    %184 = tpu.matmul %183, %0, %cst_94 {dimension_numbers = #tpu.dot_dimension_numbers<[1], [0], [0], [1], [0, 0, 1, 1], [], []>} : vector<8x320xbf16>, vector<320x512xbf16>, vector<8x512xf32> -> vector<8x512xf32>
    %185 = vector.extract_strided_slice %184 {offsets = [0, 0], sizes = [8, 128], strides = [1, 1]} : vector<8x512xf32> to vector<8x128xf32>
    %186 = vector.extract_strided_slice %184 {offsets = [0, 128], sizes = [8, 128], strides = [1, 1]} : vector<8x512xf32> to vector<8x128xf32>
    %187 = arith.maximumf %185, %186 : vector<8x128xf32>
    %188 = vector.extract_strided_slice %184 {offsets = [0, 256], sizes = [8, 128], strides = [1, 1]} : vector<8x512xf32> to vector<8x128xf32>
    %189 = vector.extract_strided_slice %184 {offsets = [0, 384], sizes = [8, 128], strides = [1, 1]} : vector<8x512xf32> to vector<8x128xf32>
    %190 = arith.maximumf %188, %189 : vector<8x128xf32>
    %191 = arith.maximumf %187, %190 : vector<8x128xf32>
    %c0_95 = arith.constant 0 : index
    %c0_96 = arith.constant 0 : index
    %192 = vector.load %arg3[%c0_95, %c0_96] : memref<1x128xf32, #tpu.memory_space<vmem>>, vector<1x128xf32>
    %193 = vector.broadcast %192 : vector<1x128xf32> to vector<8x128xf32>
    %194 = arith.addf %191, %193 : vector<8x128xf32>
    %cst_97 = arith.constant 0.000000e+00 : f32
    %195 = vector.broadcast %cst_97 : f32 to vector<8x128xf32>
    %196 = arith.maximumf %194, %195 : vector<8x128xf32>
    %197 = arith.truncf %196 : vector<8x128xf32> to vector<8x128xbf16>
    %c9_98 = arith.constant 9 : index
    %c0_99 = arith.constant 0 : index
    %c0_100 = arith.constant 0 : index
    %198 = vector.load %arg4[%c9_98, %c0_99, %c0_100] : memref<15x128x512xbf16, #tpu.memory_space<vmem>>, vector<1x128x512xbf16>
    %199 = vector.shape_cast %198 : vector<1x128x512xbf16> to vector<128x512xbf16>
    %cst_101 = arith.constant dense<0.000000e+00> : vector<8x512xf32>
    %200 = tpu.matmul %197, %199, %cst_101 {dimension_numbers = #tpu.dot_dimension_numbers<[1], [0], [0], [1], [0, 0, 1, 1], [], []>} : vector<8x128xbf16>, vector<128x512xbf16>, vector<8x512xf32> -> vector<8x512xf32>
    %201 = arith.addf %181, %200 : vector<8x512xf32>
    %c10 = arith.constant 10 : index
    %c0_102 = arith.constant 0 : index
    %c0_103 = arith.constant 0 : index
    %202 = vector.load %arg1[%c10, %c0_102, %c0_103] : memref<15x8x320xbf16, #tpu.memory_space<vmem>>, vector<1x8x320xbf16>
    %203 = vector.shape_cast %202 : vector<1x8x320xbf16> to vector<8x320xbf16>
    %cst_104 = arith.constant dense<0.000000e+00> : vector<8x512xf32>
    %204 = tpu.matmul %203, %0, %cst_104 {dimension_numbers = #tpu.dot_dimension_numbers<[1], [0], [0], [1], [0, 0, 1, 1], [], []>} : vector<8x320xbf16>, vector<320x512xbf16>, vector<8x512xf32> -> vector<8x512xf32>
    %205 = vector.extract_strided_slice %204 {offsets = [0, 0], sizes = [8, 128], strides = [1, 1]} : vector<8x512xf32> to vector<8x128xf32>
    %206 = vector.extract_strided_slice %204 {offsets = [0, 128], sizes = [8, 128], strides = [1, 1]} : vector<8x512xf32> to vector<8x128xf32>
    %207 = arith.maximumf %205, %206 : vector<8x128xf32>
    %208 = vector.extract_strided_slice %204 {offsets = [0, 256], sizes = [8, 128], strides = [1, 1]} : vector<8x512xf32> to vector<8x128xf32>
    %209 = vector.extract_strided_slice %204 {offsets = [0, 384], sizes = [8, 128], strides = [1, 1]} : vector<8x512xf32> to vector<8x128xf32>
    %210 = arith.maximumf %208, %209 : vector<8x128xf32>
    %211 = arith.maximumf %207, %210 : vector<8x128xf32>
    %c0_105 = arith.constant 0 : index
    %c0_106 = arith.constant 0 : index
    %212 = vector.load %arg3[%c0_105, %c0_106] : memref<1x128xf32, #tpu.memory_space<vmem>>, vector<1x128xf32>
    %213 = vector.broadcast %212 : vector<1x128xf32> to vector<8x128xf32>
    %214 = arith.addf %211, %213 : vector<8x128xf32>
    %cst_107 = arith.constant 0.000000e+00 : f32
    %215 = vector.broadcast %cst_107 : f32 to vector<8x128xf32>
    %216 = arith.maximumf %214, %215 : vector<8x128xf32>
    %217 = arith.truncf %216 : vector<8x128xf32> to vector<8x128xbf16>
    %c10_108 = arith.constant 10 : index
    %c0_109 = arith.constant 0 : index
    %c0_110 = arith.constant 0 : index
    %218 = vector.load %arg4[%c10_108, %c0_109, %c0_110] : memref<15x128x512xbf16, #tpu.memory_space<vmem>>, vector<1x128x512xbf16>
    %219 = vector.shape_cast %218 : vector<1x128x512xbf16> to vector<128x512xbf16>
    %cst_111 = arith.constant dense<0.000000e+00> : vector<8x512xf32>
    %220 = tpu.matmul %217, %219, %cst_111 {dimension_numbers = #tpu.dot_dimension_numbers<[1], [0], [0], [1], [0, 0, 1, 1], [], []>} : vector<8x128xbf16>, vector<128x512xbf16>, vector<8x512xf32> -> vector<8x512xf32>
    %221 = arith.addf %201, %220 : vector<8x512xf32>
    %c11 = arith.constant 11 : index
    %c0_112 = arith.constant 0 : index
    %c0_113 = arith.constant 0 : index
    %222 = vector.load %arg1[%c11, %c0_112, %c0_113] : memref<15x8x320xbf16, #tpu.memory_space<vmem>>, vector<1x8x320xbf16>
    %223 = vector.shape_cast %222 : vector<1x8x320xbf16> to vector<8x320xbf16>
    %cst_114 = arith.constant dense<0.000000e+00> : vector<8x512xf32>
    %224 = tpu.matmul %223, %0, %cst_114 {dimension_numbers = #tpu.dot_dimension_numbers<[1], [0], [0], [1], [0, 0, 1, 1], [], []>} : vector<8x320xbf16>, vector<320x512xbf16>, vector<8x512xf32> -> vector<8x512xf32>
    %225 = vector.extract_strided_slice %224 {offsets = [0, 0], sizes = [8, 128], strides = [1, 1]} : vector<8x512xf32> to vector<8x128xf32>
    %226 = vector.extract_strided_slice %224 {offsets = [0, 128], sizes = [8, 128], strides = [1, 1]} : vector<8x512xf32> to vector<8x128xf32>
    %227 = arith.maximumf %225, %226 : vector<8x128xf32>
    %228 = vector.extract_strided_slice %224 {offsets = [0, 256], sizes = [8, 128], strides = [1, 1]} : vector<8x512xf32> to vector<8x128xf32>
    %229 = vector.extract_strided_slice %224 {offsets = [0, 384], sizes = [8, 128], strides = [1, 1]} : vector<8x512xf32> to vector<8x128xf32>
    %230 = arith.maximumf %228, %229 : vector<8x128xf32>
    %231 = arith.maximumf %227, %230 : vector<8x128xf32>
    %c0_115 = arith.constant 0 : index
    %c0_116 = arith.constant 0 : index
    %232 = vector.load %arg3[%c0_115, %c0_116] : memref<1x128xf32, #tpu.memory_space<vmem>>, vector<1x128xf32>
    %233 = vector.broadcast %232 : vector<1x128xf32> to vector<8x128xf32>
    %234 = arith.addf %231, %233 : vector<8x128xf32>
    %cst_117 = arith.constant 0.000000e+00 : f32
    %235 = vector.broadcast %cst_117 : f32 to vector<8x128xf32>
    %236 = arith.maximumf %234, %235 : vector<8x128xf32>
    %237 = arith.truncf %236 : vector<8x128xf32> to vector<8x128xbf16>
    %c11_118 = arith.constant 11 : index
    %c0_119 = arith.constant 0 : index
    %c0_120 = arith.constant 0 : index
    %238 = vector.load %arg4[%c11_118, %c0_119, %c0_120] : memref<15x128x512xbf16, #tpu.memory_space<vmem>>, vector<1x128x512xbf16>
    %239 = vector.shape_cast %238 : vector<1x128x512xbf16> to vector<128x512xbf16>
    %cst_121 = arith.constant dense<0.000000e+00> : vector<8x512xf32>
    %240 = tpu.matmul %237, %239, %cst_121 {dimension_numbers = #tpu.dot_dimension_numbers<[1], [0], [0], [1], [0, 0, 1, 1], [], []>} : vector<8x128xbf16>, vector<128x512xbf16>, vector<8x512xf32> -> vector<8x512xf32>
    %241 = arith.addf %221, %240 : vector<8x512xf32>
    %c12 = arith.constant 12 : index
    %c0_122 = arith.constant 0 : index
    %c0_123 = arith.constant 0 : index
    %242 = vector.load %arg1[%c12, %c0_122, %c0_123] : memref<15x8x320xbf16, #tpu.memory_space<vmem>>, vector<1x8x320xbf16>
    %243 = vector.shape_cast %242 : vector<1x8x320xbf16> to vector<8x320xbf16>
    %cst_124 = arith.constant dense<0.000000e+00> : vector<8x512xf32>
    %244 = tpu.matmul %243, %0, %cst_124 {dimension_numbers = #tpu.dot_dimension_numbers<[1], [0], [0], [1], [0, 0, 1, 1], [], []>} : vector<8x320xbf16>, vector<320x512xbf16>, vector<8x512xf32> -> vector<8x512xf32>
    %245 = vector.extract_strided_slice %244 {offsets = [0, 0], sizes = [8, 128], strides = [1, 1]} : vector<8x512xf32> to vector<8x128xf32>
    %246 = vector.extract_strided_slice %244 {offsets = [0, 128], sizes = [8, 128], strides = [1, 1]} : vector<8x512xf32> to vector<8x128xf32>
    %247 = arith.maximumf %245, %246 : vector<8x128xf32>
    %248 = vector.extract_strided_slice %244 {offsets = [0, 256], sizes = [8, 128], strides = [1, 1]} : vector<8x512xf32> to vector<8x128xf32>
    %249 = vector.extract_strided_slice %244 {offsets = [0, 384], sizes = [8, 128], strides = [1, 1]} : vector<8x512xf32> to vector<8x128xf32>
    %250 = arith.maximumf %248, %249 : vector<8x128xf32>
    %251 = arith.maximumf %247, %250 : vector<8x128xf32>
    %c0_125 = arith.constant 0 : index
    %c0_126 = arith.constant 0 : index
    %252 = vector.load %arg3[%c0_125, %c0_126] : memref<1x128xf32, #tpu.memory_space<vmem>>, vector<1x128xf32>
    %253 = vector.broadcast %252 : vector<1x128xf32> to vector<8x128xf32>
    %254 = arith.addf %251, %253 : vector<8x128xf32>
    %cst_127 = arith.constant 0.000000e+00 : f32
    %255 = vector.broadcast %cst_127 : f32 to vector<8x128xf32>
    %256 = arith.maximumf %254, %255 : vector<8x128xf32>
    %257 = arith.truncf %256 : vector<8x128xf32> to vector<8x128xbf16>
    %c12_128 = arith.constant 12 : index
    %c0_129 = arith.constant 0 : index
    %c0_130 = arith.constant 0 : index
    %258 = vector.load %arg4[%c12_128, %c0_129, %c0_130] : memref<15x128x512xbf16, #tpu.memory_space<vmem>>, vector<1x128x512xbf16>
    %259 = vector.shape_cast %258 : vector<1x128x512xbf16> to vector<128x512xbf16>
    %cst_131 = arith.constant dense<0.000000e+00> : vector<8x512xf32>
    %260 = tpu.matmul %257, %259, %cst_131 {dimension_numbers = #tpu.dot_dimension_numbers<[1], [0], [0], [1], [0, 0, 1, 1], [], []>} : vector<8x128xbf16>, vector<128x512xbf16>, vector<8x512xf32> -> vector<8x512xf32>
    %261 = arith.addf %241, %260 : vector<8x512xf32>
    %c13 = arith.constant 13 : index
    %c0_132 = arith.constant 0 : index
    %c0_133 = arith.constant 0 : index
    %262 = vector.load %arg1[%c13, %c0_132, %c0_133] : memref<15x8x320xbf16, #tpu.memory_space<vmem>>, vector<1x8x320xbf16>
    %263 = vector.shape_cast %262 : vector<1x8x320xbf16> to vector<8x320xbf16>
    %cst_134 = arith.constant dense<0.000000e+00> : vector<8x512xf32>
    %264 = tpu.matmul %263, %0, %cst_134 {dimension_numbers = #tpu.dot_dimension_numbers<[1], [0], [0], [1], [0, 0, 1, 1], [], []>} : vector<8x320xbf16>, vector<320x512xbf16>, vector<8x512xf32> -> vector<8x512xf32>
    %265 = vector.extract_strided_slice %264 {offsets = [0, 0], sizes = [8, 128], strides = [1, 1]} : vector<8x512xf32> to vector<8x128xf32>
    %266 = vector.extract_strided_slice %264 {offsets = [0, 128], sizes = [8, 128], strides = [1, 1]} : vector<8x512xf32> to vector<8x128xf32>
    %267 = arith.maximumf %265, %266 : vector<8x128xf32>
    %268 = vector.extract_strided_slice %264 {offsets = [0, 256], sizes = [8, 128], strides = [1, 1]} : vector<8x512xf32> to vector<8x128xf32>
    %269 = vector.extract_strided_slice %264 {offsets = [0, 384], sizes = [8, 128], strides = [1, 1]} : vector<8x512xf32> to vector<8x128xf32>
    %270 = arith.maximumf %268, %269 : vector<8x128xf32>
    %271 = arith.maximumf %267, %270 : vector<8x128xf32>
    %c0_135 = arith.constant 0 : index
    %c0_136 = arith.constant 0 : index
    %272 = vector.load %arg3[%c0_135, %c0_136] : memref<1x128xf32, #tpu.memory_space<vmem>>, vector<1x128xf32>
    %273 = vector.broadcast %272 : vector<1x128xf32> to vector<8x128xf32>
    %274 = arith.addf %271, %273 : vector<8x128xf32>
    %cst_137 = arith.constant 0.000000e+00 : f32
    %275 = vector.broadcast %cst_137 : f32 to vector<8x128xf32>
    %276 = arith.maximumf %274, %275 : vector<8x128xf32>
    %277 = arith.truncf %276 : vector<8x128xf32> to vector<8x128xbf16>
    %c13_138 = arith.constant 13 : index
    %c0_139 = arith.constant 0 : index
    %c0_140 = arith.constant 0 : index
    %278 = vector.load %arg4[%c13_138, %c0_139, %c0_140] : memref<15x128x512xbf16, #tpu.memory_space<vmem>>, vector<1x128x512xbf16>
    %279 = vector.shape_cast %278 : vector<1x128x512xbf16> to vector<128x512xbf16>
    %cst_141 = arith.constant dense<0.000000e+00> : vector<8x512xf32>
    %280 = tpu.matmul %277, %279, %cst_141 {dimension_numbers = #tpu.dot_dimension_numbers<[1], [0], [0], [1], [0, 0, 1, 1], [], []>} : vector<8x128xbf16>, vector<128x512xbf16>, vector<8x512xf32> -> vector<8x512xf32>
    %281 = arith.addf %261, %280 : vector<8x512xf32>
    %c14 = arith.constant 14 : index
    %c0_142 = arith.constant 0 : index
    %c0_143 = arith.constant 0 : index
    %282 = vector.load %arg1[%c14, %c0_142, %c0_143] : memref<15x8x320xbf16, #tpu.memory_space<vmem>>, vector<1x8x320xbf16>
    %283 = vector.shape_cast %282 : vector<1x8x320xbf16> to vector<8x320xbf16>
    %cst_144 = arith.constant dense<0.000000e+00> : vector<8x512xf32>
    %284 = tpu.matmul %283, %0, %cst_144 {dimension_numbers = #tpu.dot_dimension_numbers<[1], [0], [0], [1], [0, 0, 1, 1], [], []>} : vector<8x320xbf16>, vector<320x512xbf16>, vector<8x512xf32> -> vector<8x512xf32>
    %285 = vector.extract_strided_slice %284 {offsets = [0, 0], sizes = [8, 128], strides = [1, 1]} : vector<8x512xf32> to vector<8x128xf32>
    %286 = vector.extract_strided_slice %284 {offsets = [0, 128], sizes = [8, 128], strides = [1, 1]} : vector<8x512xf32> to vector<8x128xf32>
    %287 = arith.maximumf %285, %286 : vector<8x128xf32>
    %288 = vector.extract_strided_slice %284 {offsets = [0, 256], sizes = [8, 128], strides = [1, 1]} : vector<8x512xf32> to vector<8x128xf32>
    %289 = vector.extract_strided_slice %284 {offsets = [0, 384], sizes = [8, 128], strides = [1, 1]} : vector<8x512xf32> to vector<8x128xf32>
    %290 = arith.maximumf %288, %289 : vector<8x128xf32>
    %291 = arith.maximumf %287, %290 : vector<8x128xf32>
    %c0_145 = arith.constant 0 : index
    %c0_146 = arith.constant 0 : index
    %292 = vector.load %arg3[%c0_145, %c0_146] : memref<1x128xf32, #tpu.memory_space<vmem>>, vector<1x128xf32>
    %293 = vector.broadcast %292 : vector<1x128xf32> to vector<8x128xf32>
    %294 = arith.addf %291, %293 : vector<8x128xf32>
    %cst_147 = arith.constant 0.000000e+00 : f32
    %295 = vector.broadcast %cst_147 : f32 to vector<8x128xf32>
    %296 = arith.maximumf %294, %295 : vector<8x128xf32>
    %297 = arith.truncf %296 : vector<8x128xf32> to vector<8x128xbf16>
    %c14_148 = arith.constant 14 : index
    %c0_149 = arith.constant 0 : index
    %c0_150 = arith.constant 0 : index
    %298 = vector.load %arg4[%c14_148, %c0_149, %c0_150] : memref<15x128x512xbf16, #tpu.memory_space<vmem>>, vector<1x128x512xbf16>
    %299 = vector.shape_cast %298 : vector<1x128x512xbf16> to vector<128x512xbf16>
    %cst_151 = arith.constant dense<0.000000e+00> : vector<8x512xf32>
    %300 = tpu.matmul %297, %299, %cst_151 {dimension_numbers = #tpu.dot_dimension_numbers<[1], [0], [0], [1], [0, 0, 1, 1], [], []>} : vector<8x128xbf16>, vector<128x512xbf16>, vector<8x512xf32> -> vector<8x512xf32>
    %301 = arith.addf %281, %300 : vector<8x512xf32>
    %302 = vector.extract_strided_slice %301 {offsets = [0, 0], sizes = [8, 128], strides = [1, 1]} : vector<8x512xf32> to vector<8x128xf32>
    %303 = vector.extract_strided_slice %301 {offsets = [0, 128], sizes = [8, 128], strides = [1, 1]} : vector<8x512xf32> to vector<8x128xf32>
    %304 = arith.maximumf %302, %303 : vector<8x128xf32>
    %305 = vector.extract_strided_slice %301 {offsets = [0, 256], sizes = [8, 128], strides = [1, 1]} : vector<8x512xf32> to vector<8x128xf32>
    %306 = vector.extract_strided_slice %301 {offsets = [0, 384], sizes = [8, 128], strides = [1, 1]} : vector<8x512xf32> to vector<8x128xf32>
    %307 = arith.maximumf %305, %306 : vector<8x128xf32>
    %308 = arith.maximumf %304, %307 : vector<8x128xf32>
    %c0_152 = arith.constant 0 : index
    %c0_153 = arith.constant 0 : index
    %309 = vector.load %arg5[%c0_152, %c0_153] : memref<1x128xf32, #tpu.memory_space<vmem>>, vector<1x128xf32>
    %310 = vector.broadcast %309 : vector<1x128xf32> to vector<8x128xf32>
    %311 = arith.addf %308, %310 : vector<8x128xf32>
    %cst_154 = arith.constant 0.000000e+00 : f32
    %312 = vector.broadcast %cst_154 : f32 to vector<8x128xf32>
    %313 = arith.maximumf %311, %312 : vector<8x128xf32>
    %314 = arith.truncf %313 : vector<8x128xf32> to vector<8x128xbf16>
    %c0_155 = arith.constant 0 : index
    %c0_156 = arith.constant 0 : index
    %315 = vector.load %arg6[%c0_155, %c0_156] : memref<128x16xbf16, #tpu.memory_space<vmem>>, vector<128x16xbf16>
    %cst_157 = arith.constant dense<0.000000e+00> : vector<8x16xf32>
    %316 = tpu.matmul %314, %315, %cst_157 {dimension_numbers = #tpu.dot_dimension_numbers<[1], [0], [0], [1], [0, 0, 1, 1], [], []>} : vector<8x128xbf16>, vector<128x16xbf16>, vector<8x16xf32> -> vector<8x16xf32>
    %c0_158 = arith.constant 0 : index
    %c0_159 = arith.constant 0 : index
    %317 = vector.load %arg7[%c0_158, %c0_159] : memref<1x16xf32, #tpu.memory_space<vmem>>, vector<1x16xf32>
    %318 = vector.broadcast %317 : vector<1x16xf32> to vector<8x16xf32>
    %319 = arith.addf %316, %318 : vector<8x16xf32>
    %c0_160 = arith.constant 0 : index
    %c0_161 = arith.constant 0 : index
    %320 = vector.load %arg8[%c0_160, %c0_161] : memref<8x16xf32, #tpu.memory_space<vmem>>, vector<8x16xf32>
    tpu.vector_store %arg8[%c0_160, %c0_161], %319 {strides = array<i32>} : memref<8x16xf32, #tpu.memory_space<vmem>>, vector<8x16xf32>,
    return
  }
  func.func @transform_0(%arg0: i32) -> (i32, i32, i32) {
    %c0_i32 = arith.constant 0 : i32
    %c0_i32_0 = arith.constant 0 : i32
    %c0_i32_1 = arith.constant 0 : i32
    return %c0_i32, %arg0, %c0_i32_0 : i32, i32, i32
  }
  func.func @transform_1(%arg0: i32) -> (i32, i32) {
    %c0_i32 = arith.constant 0 : i32
    %c0_i32_0 = arith.constant 0 : i32
    %c0_i32_1 = arith.constant 0 : i32
    return %c0_i32, %c0_i32_0 : i32, i32
  }
  func.func @transform_2(%arg0: i32) -> (i32, i32) {
    %c0_i32 = arith.constant 0 : i32
    %c0_i32_0 = arith.constant 0 : i32
    %c0_i32_1 = arith.constant 0 : i32
    return %c0_i32, %c0_i32_0 : i32, i32
  }
  func.func @transform_3(%arg0: i32) -> (i32, i32, i32) {
    %c0_i32 = arith.constant 0 : i32
    %c0_i32_0 = arith.constant 0 : i32
    %c0_i32_1 = arith.constant 0 : i32
    %c0_i32_2 = arith.constant 0 : i32
    return %c0_i32, %c0_i32_0, %c0_i32_1 : i32, i32, i32
  }
  func.func @transform_4(%arg0: i32) -> (i32, i32) {
    %c0_i32 = arith.constant 0 : i32
    %c0_i32_0 = arith.constant 0 : i32
    %c0_i32_1 = arith.constant 0 : i32
    return %c0_i32, %c0_i32_0 : i32, i32
  }
  func.func @transform_5(%arg0: i32) -> (i32, i32) {
    %c0_i32 = arith.constant 0 : i32
    %c0_i32_0 = arith.constant 0 : i32
    %c0_i32_1 = arith.constant 0 : i32
    return %c0_i32, %c0_i32_0 : i32, i32
  }
  func.func @transform_6(%arg0: i32) -> (i32, i32) {
    %c0_i32 = arith.constant 0 : i32
    %c0_i32_0 = arith.constant 0 : i32
    %c0_i32_1 = arith.constant 0 : i32
    return %c0_i32, %c0_i32_0 : i32, i32
  }
  func.func @transform_7(%arg0: i32) -> (i32, i32) {
    %c0_i32 = arith.constant 0 : i32
    %c0_i32_0 = arith.constant 0 : i32
    return %arg0, %c0_i32 : i32, i32
  }
}

</mosaic_0001>

<llo_original>
// kernel: cnn_forward.1
$region0: #{cnn_forward.1}
  #allocation0 [shape = 'u32[]', space=smem, size = 0x4, offset = 0x4, fixed_abs, tag = 'smem constant byte address 0x4 - core index']
  #allocation1 [shape = 'u32[72,128]{1,0:T(1,128)}', space=vmem, size = 0x9000, scoped, tag = 'internal scratch']
  %s0 = inlined_call_operand.vmem [shape: bf16[15,8,320], index: 0, kind: input, shape index: {}]
  %s1 = inlined_call_operand.hbm [shape: bf16[320,512], index: 1, kind: input, shape index: {}]
  %s2 = inlined_call_operand.hbm [shape: f32[1,128], index: 2, kind: input, shape index: {}]
  %s3 = inlined_call_operand.hbm [shape: bf16[15,128,512], index: 3, kind: input, shape index: {}]
  %s4 = inlined_call_operand.hbm [shape: f32[1,128], index: 4, kind: input, shape index: {}]
  %s5 = inlined_call_operand.vmem [shape: bf16[128,16], index: 5, kind: input, shape index: {}]
  %s6 = inlined_call_operand.hbm [shape: f32[1,16], index: 6, kind: input, shape index: {}]
  %s7 = inlined_call_operand.vmem [shape: f32[8,16], index: 7, kind: output, shape index: {}]
  %s8 = sld [smem:[#allocation0]]
  $region58: #{cnn_forward.1} parent=0
    _
  %s10 = ssub.s32 1, %s8
  %s11 = scalar_select 0, %s10, %s8
  $region1: #{cnn_forward.1} parent=0
    #allocation2 [shape = 'u8[327680]{0}', space=vmem, size = 0x50000, scoped, tag = 'input window, operand 1, single buffered']
    #allocation3 [shape = 's32[1]{0}', space=sflag, size = 0x4, scoped, tag = 'scoped memory for cnn_forward.1']
    #allocation4 [shape = 'u8[512]{0}', space=vmem, size = 0x400, scoped, tag = 'input window, operand 2, single buffered']
    #allocation5 [shape = 's32[1]{0}', space=sflag, size = 0x4, scoped, tag = 'scoped memory for cnn_forward.1']
    #allocation6 [shape = 'u8[1966080]{0}', space=vmem, size = 0x1e0000, scoped, tag = 'input window, operand 3, single buffered']
    #allocation7 [shape = 'u8[512]{0}', space=vmem, size = 0x400, scoped, tag = 'input window, operand 4, single buffered']
    #allocation8 [shape = 's32[1]{0}', space=sflag, size = 0x4, scoped, tag = 'scoped memory for cnn_forward.1']
    #allocation9 [shape = 'u8[512]{0}', space=vmem, size = 0x400, scoped, tag = 'input window, operand 6, single buffered']
    %12 = vsyncpa [#allocation3], 0
    %13 = vsyncpa [#allocation5], 0
    %14 = vsyncpa [#allocation8], 0
    // Predicated region
    $region2: #{cnn_forward.1} parent=1 // pred_check
      _
    $region3: #{cnn_forward.1} parent=1 // pred_check_branch
      %16 = sbr.rel (0) target = $region5
    $region4: #{cnn_forward.1} parent=1 // pred_region
      _
    $region5: #{cnn_forward.1} parent=1 // pred_fallthru
      _
    // Predicated region
    $region6: #{cnn_forward.1} parent=1 // pred_check
      _
    $region7: #{cnn_forward.1} parent=1 // pred_check_branch
      %18 = sbr.rel (0) target = $region9
    $region8: #{cnn_forward.1} parent=1 // pred_region
      %20 = vsyncadd [#allocation3], 0
      %s21 = sshll.u32 %s1, 4
      %s22 = int_to_ptr.hbm [resolvable:$true] %s21
      %s23 = sshll.u32 [#allocation2], 4
      %s24 = int_to_ptr.vmem [resolvable:$true] %s23
      %29 = dma.hbm_to_vmem [thread:$0]  %s22, 10240, %s24, [#allocation3], 256, 256, 16
    $region9: #{cnn_forward.1} parent=1 // pred_fallthru
      _
    // Predicated region
    $region10: #{cnn_forward.1} parent=1 // pred_check
      _
    $region11: #{cnn_forward.1} parent=1 // pred_check_branch
      %31 = sbr.rel (0) target = $region13
    $region12: #{cnn_forward.1} parent=1 // pred_region
      %33 = vsyncadd [#allocation5], 0
      %s35 = sshll.u32 %s2, 4
      %s36 = int_to_ptr.hbm [resolvable:$true] %s35
      %s37 = sshll.u32 [#allocation4], 4
      %s38 = int_to_ptr.vmem [resolvable:$true] %s37
      %40 = dma.hbm_to_vmem [thread:$0]  %s36, 16, %s38, [#allocation5]
    $region13: #{cnn_forward.1} parent=1 // pred_fallthru
      _
    // Predicated region
    $region14: #{cnn_forward.1} parent=1 // pred_check
      _
    $region15: #{cnn_forward.1} parent=1 // pred_check_branch
      %42 = sbr.rel (0) target = $region17
    $region16: #{cnn_forward.1} parent=1 // pred_region
      %44 = vsyncadd [#allocation5], 0
      %s45 = sshll.u32 %s3, 4
      %s46 = int_to_ptr.hbm [resolvable:$true] %s45
      %s47 = sshll.u32 [#allocation6], 4
      %s48 = int_to_ptr.vmem [resolvable:$true] %s47
      %53 = dma.hbm_to_vmem [thread:$0]  %s46, 61440, %s48, [#allocation5], 256, 256, 16
    $region17: #{cnn_forward.1} parent=1 // pred_fallthru
      _
    // Predicated region
    $region18: #{cnn_forward.1} parent=1 // pred_check
      _
    $region19: #{cnn_forward.1} parent=1 // pred_check_branch
      %55 = sbr.rel (0) target = $region21
    $region20: #{cnn_forward.1} parent=1 // pred_region
      %57 = vsyncadd [#allocation8], 0
      %s59 = sshll.u32 %s4, 4
      %s60 = int_to_ptr.hbm [resolvable:$true] %s59
      %s61 = sshll.u32 [#allocation7], 4
      %s62 = int_to_ptr.vmem [resolvable:$true] %s61
      %64 = dma.hbm_to_vmem [thread:$0]  %s60, 16, %s62, [#allocation8]
    $region21: #{cnn_forward.1} parent=1 // pred_fallthru
      _
    // Predicated region
    $region22: #{cnn_forward.1} parent=1 // pred_check
      _
    $region23: #{cnn_forward.1} parent=1 // pred_check_branch
      %66 = sbr.rel (0) target = $region25
    $region24: #{cnn_forward.1} parent=1 // pred_region
      _
    $region25: #{cnn_forward.1} parent=1 // pred_fallthru
      _
    // Predicated region
    $region26: #{cnn_forward.1} parent=1 // pred_check
      _
    $region27: #{cnn_forward.1} parent=1 // pred_check_branch
      %68 = sbr.rel (0) target = $region29
    $region28: #{cnn_forward.1} parent=1 // pred_region
      %70 = vsyncadd [#allocation8], 0
      %s72 = sshll.u32 %s6, 4
      %s73 = int_to_ptr.hbm [resolvable:$true] %s72
      %s74 = sshll.u32 [#allocation9], 4
      %s75 = int_to_ptr.vmem [resolvable:$true] %s74
      %77 = dma.hbm_to_vmem [thread:$0]  %s73, 16, %s75, [#allocation8]
    $region29: #{cnn_forward.1} parent=1 // pred_fallthru
      _
    // Predicated region
    $region30: #{cnn_forward.1} parent=1 // pred_check
      _
    $region31: #{cnn_forward.1} parent=1 // pred_check_branch
      %79 = sbr.rel (0) target = $region33
    $region32: #{cnn_forward.1} parent=1 // pred_region
      %81 = dma.done [#allocation3], 10240
    $region33: #{cnn_forward.1} parent=1 // pred_fallthru
      _
    // Predicated region
    $region34: #{cnn_forward.1} parent=1 // pred_check
      _
    $region35: #{cnn_forward.1} parent=1 // pred_check_branch
      %83 = sbr.rel (0) target = $region37
    $region36: #{cnn_forward.1} parent=1 // pred_region
      %85 = dma.done [#allocation5], 16
    $region37: #{cnn_forward.1} parent=1 // pred_fallthru
      _
    // Predicated region
    $region38: #{cnn_forward.1} parent=1 // pred_check
      _
    $region39: #{cnn_forward.1} parent=1 // pred_check_branch
      %87 = sbr.rel (0) target = $region41
    $region40: #{cnn_forward.1} parent=1 // pred_region
      %89 = dma.done [#allocation5], 61440
    $region41: #{cnn_forward.1} parent=1 // pred_fallthru
      _
    // Predicated region
    $region42: #{cnn_forward.1} parent=1 // pred_check
      _
    $region43: #{cnn_forward.1} parent=1 // pred_check_branch
      %91 = sbr.rel (0) target = $region45
    $region44: #{cnn_forward.1} parent=1 // pred_region
      %93 = dma.done [#allocation8], 16
    $region45: #{cnn_forward.1} parent=1 // pred_fallthru
      _
    // Predicated region
    $region46: #{cnn_forward.1} parent=1 // pred_check
      _
    $region47: #{cnn_forward.1} parent=1 // pred_check_branch
      %95 = sbr.rel (0) target = $region49
    $region48: #{cnn_forward.1} parent=1 // pred_region
      %97 = dma.done [#allocation8], 16
    $region49: #{cnn_forward.1} parent=1 // pred_fallthru
      _
    %v99 = vld [vmem:[#allocation2] sm:$0xff]
    %v100 = vld [vmem:[#allocation2 + $0x8] sm:$0xff]
    %v101 = vld [vmem:[#allocation2 + $0x10] sm:$0xff]
    %v102 = vld [vmem:[#allocation2 + $0x18] sm:$0xff]
    %v103 = vld [vmem:[#allocation2 + $0x20] sm:$0xff]
    %v104 = vld [vmem:[#allocation2 + $0x28] sm:$0xff]
    %v105 = vld [vmem:[#allocation2 + $0x30] sm:$0xff]
    %v106 = vld [vmem:[#allocation2 + $0x38] sm:$0xff]
    %v107 = vld [vmem:[#allocation2 + $0x40] sm:$0xff]
    %v108 = vld [vmem:[#allocation2 + $0x48] sm:$0xff]
    %v109 = vld [vmem:[#allocation2 + $0x50] sm:$0xff]
    %v110 = vld [vmem:[#allocation2 + $0x58] sm:$0xff]
    %v111 = vld [vmem:[#allocation2 + $0x60] sm:$0xff]
    %v112 = vld [vmem:[#allocation2 + $0x68] sm:$0xff]
    %v113 = vld [vmem:[#allocation2 + $0x70] sm:$0xff]
    %v114 = vld [vmem:[#allocation2 + $0x78] sm:$0xff]
    %v115 = vld [vmem:[#allocation2 + $0x80] sm:$0xff]
    %v116 = vld [vmem:[#allocation2 + $0x88] sm:$0xff]
    %v117 = vld [vmem:[#allocation2 + $0x90] sm:$0xff]
    %v118 = vld [vmem:[#allocation2 + $0x98] sm:$0xff]
    %v119 = vld [vmem:[#allocation2 + $0xa0] sm:$0xff]
    %v120 = vld [vmem:[#allocation2 + $0xa8] sm:$0xff]
    %v121 = vld [vmem:[#allocation2 + $0xb0] sm:$0xff]
    %v122 = vld [vmem:[#allocation2 + $0xb8] sm:$0xff]
    %v123 = vld [vmem:[#allocation2 + $0xc0] sm:$0xff]
    %v124 = vld [vmem:[#allocation2 + $0xc8] sm:$0xff]
    %v125 = vld [vmem:[#allocation2 + $0xd0] sm:$0xff]
    %v126 = vld [vmem:[#allocation2 + $0xd8] sm:$0xff]
    %v127 = vld [vmem:[#allocation2 + $0xe0] sm:$0xff]
    %v128 = vld [vmem:[#allocation2 + $0xe8] sm:$0xff]
    %v129 = vld [vmem:[#allocation2 + $0xf0] sm:$0xff]
    %v130 = vld [vmem:[#allocation2 + $0xf8] sm:$0xff]
    %v131 = vld [vmem:[#allocation2 + $0x100] sm:$0xff]
    %v132 = vld [vmem:[#allocation2 + $0x108] sm:$0xff]
    %v133 = vld [vmem:[#allocation2 + $0x110] sm:$0xff]
    %v134 = vld [vmem:[#allocation2 + $0x118] sm:$0xff]
    %v135 = vld [vmem:[#allocation2 + $0x120] sm:$0xff]
    %v136 = vld [vmem:[#allocation2 + $0x128] sm:$0xff]
    %v137 = vld [vmem:[#allocation2 + $0x130] sm:$0xff]
    %v138 = vld [vmem:[#allocation2 + $0x138] sm:$0xff]
    %v139 = vld [vmem:[#allocation2 + $0x140] sm:$0xff]
    %v140 = vld [vmem:[#allocation2 + $0x148] sm:$0xff]
    %v141 = vld [vmem:[#allocation2 + $0x150] sm:$0xff]
    %v142 = vld [vmem:[#allocation2 + $0x158] sm:$0xff]
    %v143 = vld [vmem:[#allocation2 + $0x160] sm:$0xff]
    %v144 = vld [vmem:[#allocation2 + $0x168] sm:$0xff]
    %v145 = vld [vmem:[#allocation2 + $0x170] sm:$0xff]
    %v146 = vld [vmem:[#allocation2 + $0x178] sm:$0xff]
    %v147 = vld [vmem:[#allocation2 + $0x180] sm:$0xff]
    %v148 = vld [vmem:[#allocation2 + $0x188] sm:$0xff]
    %v149 = vld [vmem:[#allocation2 + $0x190] sm:$0xff]
    %v150 = vld [vmem:[#allocation2 + $0x198] sm:$0xff]
    %v151 = vld [vmem:[#allocation2 + $0x1a0] sm:$0xff]
    %v152 = vld [vmem:[#allocation2 + $0x1a8] sm:$0xff]
    %v153 = vld [vmem:[#allocation2 + $0x1b0] sm:$0xff]
    %v154 = vld [vmem:[#allocation2 + $0x1b8] sm:$0xff]
    %v155 = vld [vmem:[#allocation2 + $0x1c0] sm:$0xff]
    %v156 = vld [vmem:[#allocation2 + $0x1c8] sm:$0xff]
    %v157 = vld [vmem:[#allocation2 + $0x1d0] sm:$0xff]
    %v158 = vld [vmem:[#allocation2 + $0x1d8] sm:$0xff]
    %v159 = vld [vmem:[#allocation2 + $0x1e0] sm:$0xff]
    %v160 = vld [vmem:[#allocation2 + $0x1e8] sm:$0xff]
    %v161 = vld [vmem:[#allocation2 + $0x1f0] sm:$0xff]
    %v162 = vld [vmem:[#allocation2 + $0x1f8] sm:$0xff]
    %v163 = vld [vmem:[#allocation2 + $0x200] sm:$0xff]
    %v164 = vld [vmem:[#allocation2 + $0x208] sm:$0xff]
    %v165 = vld [vmem:[#allocation2 + $0x210] sm:$0xff]
    %v166 = vld [vmem:[#allocation2 + $0x218] sm:$0xff]
    %v167 = vld [vmem:[#allocation2 + $0x220] sm:$0xff]
    %v168 = vld [vmem:[#allocation2 + $0x228] sm:$0xff]
    %v169 = vld [vmem:[#allocation2 + $0x230] sm:$0xff]
    %v170 = vld [vmem:[#allocation2 + $0x238] sm:$0xff]
    %v171 = vld [vmem:[#allocation2 + $0x240] sm:$0xff]
    %v172 = vld [vmem:[#allocation2 + $0x248] sm:$0xff]
    %v173 = vld [vmem:[#allocation2 + $0x250] sm:$0xff]
    %v174 = vld [vmem:[#allocation2 + $0x258] sm:$0xff]
    %v175 = vld [vmem:[#allocation2 + $0x260] sm:$0xff]
    %v176 = vld [vmem:[#allocation2 + $0x268] sm:$0xff]
    %v177 = vld [vmem:[#allocation2 + $0x270] sm:$0xff]
    %v178 = vld [vmem:[#allocation2 + $0x278] sm:$0xff]
    %v179 = vld [vmem:[%s0] sm:$0xff]
    %v180 = vld [vmem:[%s0 + $0x8] sm:$0xf]
    %v183 = vunpack.c.l.b16 %v179
    %v184 = vunpack.c.h.b16 %v179
    %v185 = vunpack.c.l.b16 %v180
    %v186 = vpack.c.b16 %v183, %v183
    %v187 = vpack.c.b16 %v184, %v184
    %v188 = vpack.c.b16 %v185, %v185
    %v271 = vunpack.c.l.b16 %v99
    %v272 = vunpack.c.h.b16 %v99
    %v273 = vunpack.c.l.b16 %v100
    %v274 = vunpack.c.h.b16 %v100
    %v275 = vunpack.c.l.b16 %v101
    %v276 = vunpack.c.h.b16 %v101
    %v277 = vunpack.c.l.b16 %v102
    %v278 = vunpack.c.h.b16 %v102
    %v279 = vunpack.c.l.b16 %v103
    %v280 = vunpack.c.h.b16 %v103
    %v281 = vunpack.c.l.b16 %v104
    %v282 = vunpack.c.h.b16 %v104
    %v283 = vunpack.c.l.b16 %v105
    %v284 = vunpack.c.h.b16 %v105
    %v285 = vunpack.c.l.b16 %v106
    %v286 = vunpack.c.h.b16 %v106
    %v287 = vunpack.c.l.b16 %v107
    %v288 = vunpack.c.h.b16 %v107
    %v289 = vunpack.c.l.b16 %v108
    %v290 = vunpack.c.h.b16 %v108
    %v291 = vunpack.c.l.b16 %v109
    %v292 = vunpack.c.h.b16 %v109
    %v293 = vunpack.c.l.b16 %v110
    %v294 = vunpack.c.h.b16 %v110
    %v295 = vunpack.c.l.b16 %v111
    %v296 = vunpack.c.h.b16 %v111
    %v297 = vunpack.c.l.b16 %v112
    %v298 = vunpack.c.h.b16 %v112
    %v299 = vunpack.c.l.b16 %v113
    %v300 = vunpack.c.h.b16 %v113
    %v301 = vunpack.c.l.b16 %v114
    %v302 = vunpack.c.h.b16 %v114
    %v303 = vunpack.c.l.b16 %v115
    %v304 = vunpack.c.h.b16 %v115
    %v305 = vunpack.c.l.b16 %v116
    %v306 = vunpack.c.h.b16 %v116
    %v307 = vunpack.c.l.b16 %v117
    %v308 = vunpack.c.h.b16 %v117
    %v309 = vunpack.c.l.b16 %v118
    %v310 = vunpack.c.h.b16 %v118
    %v311 = vunpack.c.l.b16 %v119
    %v312 = vunpack.c.h.b16 %v119
    %v313 = vunpack.c.l.b16 %v120
    %v314 = vunpack.c.h.b16 %v120
    %v315 = vunpack.c.l.b16 %v121
    %v316 = vunpack.c.h.b16 %v121
    %v317 = vunpack.c.l.b16 %v122
    %v318 = vunpack.c.h.b16 %v122
    %v319 = vunpack.c.l.b16 %v123
    %v320 = vunpack.c.h.b16 %v123
    %v321 = vunpack.c.l.b16 %v124
    %v322 = vunpack.c.h.b16 %v124
    %v323 = vunpack.c.l.b16 %v125
    %v324 = vunpack.c.h.b16 %v125
    %v325 = vunpack.c.l.b16 %v126
    %v326 = vunpack.c.h.b16 %v126
    %v327 = vunpack.c.l.b16 %v127
    %v328 = vunpack.c.h.b16 %v127
    %v329 = vunpack.c.l.b16 %v128
    %v330 = vunpack.c.h.b16 %v128
    %v331 = vunpack.c.l.b16 %v129
    %v332 = vunpack.c.h.b16 %v129
    %v333 = vunpack.c.l.b16 %v130
    %v334 = vunpack.c.h.b16 %v130
    %v335 = vunpack.c.l.b16 %v131
    %v336 = vunpack.c.h.b16 %v131
    %v337 = vunpack.c.l.b16 %v132
    %v338 = vunpack.c.h.b16 %v132
    %v339 = vunpack.c.l.b16 %v133
    %v340 = vunpack.c.h.b16 %v133
    %v341 = vunpack.c.l.b16 %v134
    %v342 = vunpack.c.h.b16 %v134
    %v343 = vunpack.c.l.b16 %v135
    %v344 = vunpack.c.h.b16 %v135
    %v345 = vunpack.c.l.b16 %v136
    %v346 = vunpack.c.h.b16 %v136
    %v347 = vunpack.c.l.b16 %v137
    %v348 = vunpack.c.h.b16 %v137
    %v349 = vunpack.c.l.b16 %v138
    %v350 = vunpack.c.h.b16 %v138
    %v351 = vunpack.c.l.b16 %v139
    %v352 = vunpack.c.h.b16 %v139
    %v353 = vunpack.c.l.b16 %v140
    %v354 = vunpack.c.h.b16 %v140
    %v355 = vunpack.c.l.b16 %v141
    %v356 = vunpack.c.h.b16 %v141
    %v357 = vunpack.c.l.b16 %v142
    %v358 = vunpack.c.h.b16 %v142
    %v359 = vunpack.c.l.b16 %v143
    %v360 = vunpack.c.h.b16 %v143
    %v361 = vunpack.c.l.b16 %v144
    %v362 = vunpack.c.h.b16 %v144
    %v363 = vunpack.c.l.b16 %v145
    %v364 = vunpack.c.h.b16 %v145
    %v365 = vunpack.c.l.b16 %v146
    %v366 = vunpack.c.h.b16 %v146
    %v367 = vunpack.c.l.b16 %v147
    %v368 = vunpack.c.h.b16 %v147
    %v369 = vunpack.c.l.b16 %v148
    %v370 = vunpack.c.h.b16 %v148
    %v371 = vunpack.c.l.b16 %v149
    %v372 = vunpack.c.h.b16 %v149
    %v373 = vunpack.c.l.b16 %v150
    %v374 = vunpack.c.h.b16 %v150
    %v375 = vunpack.c.l.b16 %v151
    %v376 = vunpack.c.h.b16 %v151
    %v377 = vunpack.c.l.b16 %v152
    %v378 = vunpack.c.h.b16 %v152
    %v379 = vunpack.c.l.b16 %v153
    %v380 = vunpack.c.h.b16 %v153
    %v381 = vunpack.c.l.b16 %v154
    %v382 = vunpack.c.h.b16 %v154
    %v383 = vunpack.c.l.b16 %v155
    %v384 = vunpack.c.h.b16 %v155
    %v385 = vunpack.c.l.b16 %v156
    %v386 = vunpack.c.h.b16 %v156
    %v387 = vunpack.c.l.b16 %v157
    %v388 = vunpack.c.h.b16 %v157
    %v389 = vunpack.c.l.b16 %v158
    %v390 = vunpack.c.h.b16 %v158
    %v391 = vunpack.c.l.b16 %v159
    %v392 = vunpack.c.h.b16 %v159
    %v393 = vunpack.c.l.b16 %v160
    %v394 = vunpack.c.h.b16 %v160
    %v395 = vunpack.c.l.b16 %v161
    %v396 = vunpack.c.h.b16 %v161
    %v397 = vunpack.c.l.b16 %v162
    %v398 = vunpack.c.h.b16 %v162
    %v399 = vunpack.c.l.b16 %v163
    %v400 = vunpack.c.h.b16 %v163
    %v401 = vunpack.c.l.b16 %v164
    %v402 = vunpack.c.h.b16 %v164
    %v403 = vunpack.c.l.b16 %v165
    %v404 = vunpack.c.h.b16 %v165
    %v405 = vunpack.c.l.b16 %v166
    %v406 = vunpack.c.h.b16 %v166
    %v407 = vunpack.c.l.b16 %v167
    %v408 = vunpack.c.h.b16 %v167
    %v409 = vunpack.c.l.b16 %v168
    %v410 = vunpack.c.h.b16 %v168
    %v411 = vunpack.c.l.b16 %v169
    %v412 = vunpack.c.h.b16 %v169
    %v413 = vunpack.c.l.b16 %v170
    %v414 = vunpack.c.h.b16 %v170
    %v415 = vunpack.c.l.b16 %v171
    %v416 = vunpack.c.h.b16 %v171
    %v417 = vunpack.c.l.b16 %v172
    %v418 = vunpack.c.h.b16 %v172
    %v419 = vunpack.c.l.b16 %v173
    %v420 = vunpack.c.h.b16 %v173
    %v421 = vunpack.c.l.b16 %v174
    %v422 = vunpack.c.h.b16 %v174
    %v423 = vunpack.c.l.b16 %v175
    %v424 = vunpack.c.h.b16 %v175
    %v425 = vunpack.c.l.b16 %v176
    %v426 = vunpack.c.h.b16 %v176
    %v427 = vunpack.c.l.b16 %v177
    %v428 = vunpack.c.h.b16 %v177
    %v429 = vunpack.c.l.b16 %v178
    %v430 = vunpack.c.h.b16 %v178
    %v431 = vpack.c.b16 %v275, %v271
    %v432 = vpack.c.b16 %v276, %v272
    %v433 = vpack.c.b16 %v277, %v273
    %v434 = vpack.c.b16 %v278, %v274
    %v435 = vpack.c.b16 %v283, %v279
    %v436 = vpack.c.b16 %v284, %v280
    %v437 = vpack.c.b16 %v285, %v281
    %v438 = vpack.c.b16 %v286, %v282
    %v439 = vpack.c.b16 %v291, %v287
    %v440 = vpack.c.b16 %v292, %v288
    %v441 = vpack.c.b16 %v293, %v289
    %v442 = vpack.c.b16 %v294, %v290
    %v443 = vpack.c.b16 %v299, %v295
    %v444 = vpack.c.b16 %v300, %v296
    %v445 = vpack.c.b16 %v301, %v297
    %v446 = vpack.c.b16 %v302, %v298
    %v447 = vpack.c.b16 %v307, %v303
    %v448 = vpack.c.b16 %v308, %v304
    %v449 = vpack.c.b16 %v309, %v305
    %v450 = vpack.c.b16 %v310, %v306
    %v451 = vpack.c.b16 %v315, %v311
    %v452 = vpack.c.b16 %v316, %v312
    %v453 = vpack.c.b16 %v317, %v313
    %v454 = vpack.c.b16 %v318, %v314
    %v455 = vpack.c.b16 %v323, %v319
    %v456 = vpack.c.b16 %v324, %v320
    %v457 = vpack.c.b16 %v325, %v321
    %v458 = vpack.c.b16 %v326, %v322
    %v459 = vpack.c.b16 %v331, %v327
    %v460 = vpack.c.b16 %v332, %v328
    %v461 = vpack.c.b16 %v333, %v329
    %v462 = vpack.c.b16 %v334, %v330
    %v463 = vpack.c.b16 %v339, %v335
    %v464 = vpack.c.b16 %v340, %v336
    %v465 = vpack.c.b16 %v341, %v337
    %v466 = vpack.c.b16 %v342, %v338
    %v467 = vpack.c.b16 %v347, %v343
    %v468 = vpack.c.b16 %v348, %v344
    %v469 = vpack.c.b16 %v349, %v345
    %v470 = vpack.c.b16 %v350, %v346
    %v471 = vpack.c.b16 %v355, %v351
    %v472 = vpack.c.b16 %v356, %v352
    %v473 = vpack.c.b16 %v357, %v353
    %v474 = vpack.c.b16 %v358, %v354
    %v475 = vpack.c.b16 %v363, %v359
    %v476 = vpack.c.b16 %v364, %v360
    %v477 = vpack.c.b16 %v365, %v361
    %v478 = vpack.c.b16 %v366, %v362
    %v479 = vpack.c.b16 %v371, %v367
    %v480 = vpack.c.b16 %v372, %v368
    %v481 = vpack.c.b16 %v373, %v369
    %v482 = vpack.c.b16 %v374, %v370
    %v483 = vpack.c.b16 %v379, %v375
    %v484 = vpack.c.b16 %v380, %v376
    %v485 = vpack.c.b16 %v381, %v377
    %v486 = vpack.c.b16 %v382, %v378
    %v487 = vpack.c.b16 %v387, %v383
    %v488 = vpack.c.b16 %v388, %v384
    %v489 = vpack.c.b16 %v389, %v385
    %v490 = vpack.c.b16 %v390, %v386
    %v491 = vpack.c.b16 %v395, %v391
    %v492 = vpack.c.b16 %v396, %v392
    %v493 = vpack.c.b16 %v397, %v393
    %v494 = vpack.c.b16 %v398, %v394
    %v495 = vpack.c.b16 %v403, %v399
    %v496 = vpack.c.b16 %v404, %v400
    %v497 = vpack.c.b16 %v405, %v401
    %v498 = vpack.c.b16 %v406, %v402
    %v499 = vpack.c.b16 %v411, %v407
    %v500 = vpack.c.b16 %v412, %v408
    %v501 = vpack.c.b16 %v413, %v409
    %v502 = vpack.c.b16 %v414, %v410
    %v503 = vpack.c.b16 %v419, %v415
    %v504 = vpack.c.b16 %v420, %v416
    %v505 = vpack.c.b16 %v421, %v417
    %v506 = vpack.c.b16 %v422, %v418
    %v507 = vpack.c.b16 %v427, %v423
    %v508 = vpack.c.b16 %v428, %v424
    %v509 = vpack.c.b16 %v429, %v425
    %v510 = vpack.c.b16 %v430, %v426
    %vm591 = vcmask 523264
    %v593 = vsel %vm591, %v188, 0
    %595 = vmatpush.bf16.msra.mxu0 %v459
    %596 = vmatpush.bf16.msra.mxu0 %v455
    %597 = vmatpush.bf16.msra.mxu0 %v451
    %598 = vmatpush.bf16.msra.mxu0 %v447
    %599 = vmatpush.bf16.msra.mxu0 %v443
    %600 = vmatpush.bf16.msra.mxu0 %v439
    %601 = vmatpush.bf16.msra.mxu0 %v435
    %602 = vmatpush.bf16.msra.mxu0 %v431
    %603 = vmatmul.bf16.gmra.mxu0 %v186
    %v604 = vpop.f32.mrf.mxu0
    %v605 = vadd.f32 0.0, %v604
    %v606 = vpop.f32.mrf.mxu0
    %607 = vdwg.mxu0
    %608 = vmatpush.bf16.msra.mxu0 %v491
    %609 = vmatpush.bf16.msra.mxu0 %v487
    %610 = vmatpush.bf16.msra.mxu0 %v483
    %611 = vmatpush.bf16.msra.mxu0 %v479
    %612 = vmatpush.bf16.msra.mxu0 %v475
    %613 = vmatpush.bf16.msra.mxu0 %v471
    %614 = vmatpush.bf16.msra.mxu0 %v467
    %615 = vmatpush.bf16.msra.mxu0 %v463
    %616 = vmatmul.bf16.gmra.mxu0 %v187
    %v617 = vpop.f32.mrf.mxu0
    %v618 = vadd.f32 %v605, %v617
    %v619 = vpop.f32.mrf.mxu0
    %620 = vdwg.mxu0
    %621 = vmatpush.bf16.msra.mxu0 0
    %622 = vmatpush.bf16.msra.mxu0 0
    %623 = vmatpush.bf16.msra.mxu0 0
    %624 = vmatpush.bf16.msra.mxu0 0
    %625 = vmatpush.bf16.msra.mxu0 %v507
    %626 = vmatpush.bf16.msra.mxu0 %v503
    %627 = vmatpush.bf16.msra.mxu0 %v499
    %628 = vmatpush.bf16.msra.mxu0 %v495
    %629 = vmatmul.bf16.gmra.mxu0 %v593
    %v630 = vpop.f32.mrf.mxu0
    %v631 = vadd.f32 %v618, %v630
    %v632 = vpop.f32.mrf.mxu0
    %633 = vdwg.mxu0
    %634 = vmatpush.bf16.msra.mxu0 %v460
    %635 = vmatpush.bf16.msra.mxu0 %v456
    %636 = vmatpush.bf16.msra.mxu0 %v452
    %637 = vmatpush.bf16.msra.mxu0 %v448
    %638 = vmatpush.bf16.msra.mxu0 %v444
    %639 = vmatpush.bf16.msra.mxu0 %v440
    %640 = vmatpush.bf16.msra.mxu0 %v436
    %641 = vmatpush.bf16.msra.mxu0 %v432
    %642 = vmatmul.bf16.gmra.mxu0 %v186
    %v643 = vpop.f32.mrf.mxu0
    %v644 = vadd.f32 0.0, %v643
    %v645 = vpop.f32.mrf.mxu0
    %646 = vdwg.mxu0
    %647 = vmatpush.bf16.msra.mxu0 %v492
    %648 = vmatpush.bf16.msra.mxu0 %v488
    %649 = vmatpush.bf16.msra.mxu0 %v484
    %650 = vmatpush.bf16.msra.mxu0 %v480
    %651 = vmatpush.bf16.msra.mxu0 %v476
    %652 = vmatpush.bf16.msra.mxu0 %v472
    %653 = vmatpush.bf16.msra.mxu0 %v468
    %654 = vmatpush.bf16.msra.mxu0 %v464
    %655 = vmatmul.bf16.gmra.mxu0 %v187
    %v656 = vpop.f32.mrf.mxu0
    %v657 = vadd.f32 %v644, %v656
    %v658 = vpop.f32.mrf.mxu0
    %659 = vdwg.mxu0
    %660 = vmatpush.bf16.msra.mxu0 0
    %661 = vmatpush.bf16.msra.mxu0 0
    %662 = vmatpush.bf16.msra.mxu0 0
    %663 = vmatpush.bf16.msra.mxu0 0
    %664 = vmatpush.bf16.msra.mxu0 %v508
    %665 = vmatpush.bf16.msra.mxu0 %v504
    %666 = vmatpush.bf16.msra.mxu0 %v500
    %667 = vmatpush.bf16.msra.mxu0 %v496
    %668 = vmatmul.bf16.gmra.mxu0 %v593
    %v669 = vpop.f32.mrf.mxu0
    %v670 = vadd.f32 %v657, %v669
    %v671 = vpop.f32.mrf.mxu0
    %672 = vdwg.mxu0
    %673 = vmatpush.bf16.msra.mxu0 %v461
    %674 = vmatpush.bf16.msra.mxu0 %v457
    %675 = vmatpush.bf16.msra.mxu0 %v453
    %676 = vmatpush.bf16.msra.mxu0 %v449
    %677 = vmatpush.bf16.msra.mxu0 %v445
    %678 = vmatpush.bf16.msra.mxu0 %v441
    %679 = vmatpush.bf16.msra.mxu0 %v437
    %680 = vmatpush.bf16.msra.mxu0 %v433
    %681 = vmatmul.bf16.gmra.mxu0 %v186
    %v682 = vpop.f32.mrf.mxu0
    %v683 = vadd.f32 0.0, %v682
    %v684 = vpop.f32.mrf.mxu0
    %685 = vdwg.mxu0
    %686 = vmatpush.bf16.msra.mxu0 %v493
    %687 = vmatpush.bf16.msra.mxu0 %v489
    %688 = vmatpush.bf16.msra.mxu0 %v485
    %689 = vmatpush.bf16.msra.mxu0 %v481
    %690 = vmatpush.bf16.msra.mxu0 %v477
    %691 = vmatpush.bf16.msra.mxu0 %v473
    %692 = vmatpush.bf16.msra.mxu0 %v469
    %693 = vmatpush.bf16.msra.mxu0 %v465
    %694 = vmatmul.bf16.gmra.mxu0 %v187
    %v695 = vpop.f32.mrf.mxu0
    %v696 = vadd.f32 %v683, %v695
    %v697 = vpop.f32.mrf.mxu0
    %698 = vdwg.mxu0
    %699 = vmatpush.bf16.msra.mxu0 0
    %700 = vmatpush.bf16.msra.mxu0 0
    %701 = vmatpush.bf16.msra.mxu0 0
    %702 = vmatpush.bf16.msra.mxu0 0
    %703 = vmatpush.bf16.msra.mxu0 %v509
    %704 = vmatpush.bf16.msra.mxu0 %v505
    %705 = vmatpush.bf16.msra.mxu0 %v501
    %706 = vmatpush.bf16.msra.mxu0 %v497
    %707 = vmatmul.bf16.gmra.mxu0 %v593
    %v708 = vpop.f32.mrf.mxu0
    %v709 = vadd.f32 %v696, %v708
    %v710 = vpop.f32.mrf.mxu0
    %711 = vdwg.mxu0
    %712 = vmatpush.bf16.msra.mxu0 %v462
    %713 = vmatpush.bf16.msra.mxu0 %v458
    %714 = vmatpush.bf16.msra.mxu0 %v454
    %715 = vmatpush.bf16.msra.mxu0 %v450
    %716 = vmatpush.bf16.msra.mxu0 %v446
    %717 = vmatpush.bf16.msra.mxu0 %v442
    %718 = vmatpush.bf16.msra.mxu0 %v438
    %719 = vmatpush.bf16.msra.mxu0 %v434
    %720 = vmatmul.bf16.gmra.mxu0 %v186
    %v721 = vpop.f32.mrf.mxu0
    %v722 = vadd.f32 0.0, %v721
    %v723 = vpop.f32.mrf.mxu0
    %724 = vdwg.mxu0
    %725 = vmatpush.bf16.msra.mxu0 %v494
    %726 = vmatpush.bf16.msra.mxu0 %v490
    %727 = vmatpush.bf16.msra.mxu0 %v486
    %728 = vmatpush.bf16.msra.mxu0 %v482
    %729 = vmatpush.bf16.msra.mxu0 %v478
    %730 = vmatpush.bf16.msra.mxu0 %v474
    %731 = vmatpush.bf16.msra.mxu0 %v470
    %732 = vmatpush.bf16.msra.mxu0 %v466
    %733 = vmatmul.bf16.gmra.mxu0 %v187
    %v734 = vpop.f32.mrf.mxu0
    %v735 = vadd.f32 %v722, %v734
    %v736 = vpop.f32.mrf.mxu0
    %737 = vdwg.mxu0
    %738 = vmatpush.bf16.msra.mxu0 0
    %739 = vmatpush.bf16.msra.mxu0 0
    %740 = vmatpush.bf16.msra.mxu0 0
    %741 = vmatpush.bf16.msra.mxu0 0
    %742 = vmatpush.bf16.msra.mxu0 %v510
    %743 = vmatpush.bf16.msra.mxu0 %v506
    %744 = vmatpush.bf16.msra.mxu0 %v502
    %745 = vmatpush.bf16.msra.mxu0 %v498
    %746 = vmatmul.bf16.gmra.mxu0 %v593
    %v747 = vpop.f32.mrf.mxu0
    %v748 = vadd.f32 %v735, %v747
    %v749 = vpop.f32.mrf.mxu0
    %750 = vdwg.mxu0
    %v751 = vmax.f32 %v631, %v670
    %v752 = vmax.f32 %v709, %v748
    %v753 = vmax.f32 %v751, %v752
    %v754 = vld [vmem:[#allocation4] sm:$0x1]
    %v756 = vperm.slane %v754, 0
    %v758 = vadd.f32 %v753, %v756
    %v759 = vmax.f32 %v758, 0.0
    %v760 = vpack.c.bf16 %v759, %v759
    %v761 = vld [vmem:[#allocation6] sm:$0xff]
    %v762 = vld [vmem:[#allocation6 + $0x8] sm:$0xff]
    %v763 = vld [vmem:[#allocation6 + $0x10] sm:$0xff]
    %v764 = vld [vmem:[#allocation6 + $0x18] sm:$0xff]
    %v765 = vld [vmem:[#allocation6 + $0x20] sm:$0xff]
    %v766 = vld [vmem:[#allocation6 + $0x28] sm:$0xff]
    %v767 = vld [vmem:[#allocation6 + $0x30] sm:$0xff]
    %v768 = vld [vmem:[#allocation6 + $0x38] sm:$0xff]
    %v769 = vld [vmem:[#allocation6 + $0x40] sm:$0xff]
    %v770 = vld [vmem:[#allocation6 + $0x48] sm:$0xff]
    %v771 = vld [vmem:[#allocation6 + $0x50] sm:$0xff]
    %v772 = vld [vmem:[#allocation6 + $0x58] sm:$0xff]
    %v773 = vld [vmem:[#allocation6 + $0x60] sm:$0xff]
    %v774 = vld [vmem:[#allocation6 + $0x68] sm:$0xff]
    %v775 = vld [vmem:[#allocation6 + $0x70] sm:$0xff]
    %v776 = vld [vmem:[#allocation6 + $0x78] sm:$0xff]
    %v777 = vld [vmem:[#allocation6 + $0x80] sm:$0xff]
    %v778 = vld [vmem:[#allocation6 + $0x88] sm:$0xff]
    %v779 = vld [vmem:[#allocation6 + $0x90] sm:$0xff]
    %v780 = vld [vmem:[#allocation6 + $0x98] sm:$0xff]
    %v781 = vld [vmem:[#allocation6 + $0xa0] sm:$0xff]
    %v782 = vld [vmem:[#allocation6 + $0xa8] sm:$0xff]
    %v783 = vld [vmem:[#allocation6 + $0xb0] sm:$0xff]
    %v784 = vld [vmem:[#allocation6 + $0xb8] sm:$0xff]
    %v785 = vld [vmem:[#allocation6 + $0xc0] sm:$0xff]
    %v786 = vld [vmem:[#allocation6 + $0xc8] sm:$0xff]
    %v787 = vld [vmem:[#allocation6 + $0xd0] sm:$0xff]
    %v788 = vld [vmem:[#allocation6 + $0xd8] sm:$0xff]
    %v789 = vld [vmem:[#allocation6 + $0xe0] sm:$0xff]
    %v790 = vld [vmem:[#allocation6 + $0xe8] sm:$0xff]
    %v791 = vld [vmem:[#allocation6 + $0xf0] sm:$0xff]
    %v792 = vld [vmem:[#allocation6 + $0xf8] sm:$0xff]
    %s793 = scalar_lea.vmem %s0, 12
    %v794 = vld [vmem:[%s793] sm:$0xff]
    %v795 = vld [vmem:[%s793 + $0x8] sm:$0xf]
    %v798 = vunpack.c.l.b16 %v794
    %v799 = vunpack.c.h.b16 %v794
    %v800 = vunpack.c.l.b16 %v795
    %v801 = vpack.c.b16 %v798, %v798
    %v802 = vpack.c.b16 %v799, %v799
    %v803 = vpack.c.b16 %v800, %v800
    %v807 = vsel %vm591, %v803, 0
    %809 = vmatpush.bf16.msra.mxu0 %v459
    %810 = vmatpush.bf16.msra.mxu0 %v455
    %811 = vmatpush.bf16.msra.mxu0 %v451
    %812 = vmatpush.bf16.msra.mxu0 %v447
    %813 = vmatpush.bf16.msra.mxu0 %v443
    %814 = vmatpush.bf16.msra.mxu0 %v439
    %815 = vmatpush.bf16.msra.mxu0 %v435
    %816 = vmatpush.bf16.msra.mxu0 %v431
    %817 = vmatmul.bf16.gmra.mxu0 %v801
    %v818 = vpop.f32.mrf.mxu0
    %v819 = vadd.f32 0.0, %v818
    %v820 = vpop.f32.mrf.mxu0
    %821 = vdwg.mxu0
    %822 = vmatpush.bf16.msra.mxu0 %v491
    %823 = vmatpush.bf16.msra.mxu0 %v487
    %824 = vmatpush.bf16.msra.mxu0 %v483
    %825 = vmatpush.bf16.msra.mxu0 %v479
    %826 = vmatpush.bf16.msra.mxu0 %v475
    %827 = vmatpush.bf16.msra.mxu0 %v471
    %828 = vmatpush.bf16.msra.mxu0 %v467
    %829 = vmatpush.bf16.msra.mxu0 %v463
    %830 = vmatmul.bf16.gmra.mxu0 %v802
    %v831 = vpop.f32.mrf.mxu0
    %v832 = vadd.f32 %v819, %v831
    %v833 = vpop.f32.mrf.mxu0
    %834 = vdwg.mxu0
    %835 = vmatpush.bf16.msra.mxu0 0
    %836 = vmatpush.bf16.msra.mxu0 0
    %837 = vmatpush.bf16.msra.mxu0 0
    %838 = vmatpush.bf16.msra.mxu0 0
    %839 = vmatpush.bf16.msra.mxu0 %v507
    %840 = vmatpush.bf16.msra.mxu0 %v503
    %841 = vmatpush.bf16.msra.mxu0 %v499
    %842 = vmatpush.bf16.msra.mxu0 %v495
    %843 = vmatmul.bf16.gmra.mxu0 %v807
    %v844 = vpop.f32.mrf.mxu0
    %v845 = vadd.f32 %v832, %v844
    %v846 = vpop.f32.mrf.mxu0
    %847 = vdwg.mxu0
    %848 = vmatpush.bf16.msra.mxu0 %v460
    %849 = vmatpush.bf16.msra.mxu0 %v456
    %850 = vmatpush.bf16.msra.mxu0 %v452
    %851 = vmatpush.bf16.msra.mxu0 %v448
    %852 = vmatpush.bf16.msra.mxu0 %v444
    %853 = vmatpush.bf16.msra.mxu0 %v440
    %854 = vmatpush.bf16.msra.mxu0 %v436
    %855 = vmatpush.bf16.msra.mxu0 %v432
    %856 = vmatmul.bf16.gmra.mxu0 %v801
    %v857 = vpop.f32.mrf.mxu0
    %v858 = vadd.f32 0.0, %v857
    %v859 = vpop.f32.mrf.mxu0
    %860 = vdwg.mxu0
    %861 = vmatpush.bf16.msra.mxu0 %v492
    %862 = vmatpush.bf16.msra.mxu0 %v488
    %863 = vmatpush.bf16.msra.mxu0 %v484
    %864 = vmatpush.bf16.msra.mxu0 %v480
    %865 = vmatpush.bf16.msra.mxu0 %v476
    %866 = vmatpush.bf16.msra.mxu0 %v472
    %867 = vmatpush.bf16.msra.mxu0 %v468
    %868 = vmatpush.bf16.msra.mxu0 %v464
    %869 = vmatmul.bf16.gmra.mxu0 %v802
    %v870 = vpop.f32.mrf.mxu0
    %v871 = vadd.f32 %v858, %v870
    %v872 = vpop.f32.mrf.mxu0
    %873 = vdwg.mxu0
    %874 = vmatpush.bf16.msra.mxu0 0
    %875 = vmatpush.bf16.msra.mxu0 0
    %876 = vmatpush.bf16.msra.mxu0 0
    %877 = vmatpush.bf16.msra.mxu0 0
    %878 = vmatpush.bf16.msra.mxu0 %v508
    %879 = vmatpush.bf16.msra.mxu0 %v504
    %880 = vmatpush.bf16.msra.mxu0 %v500
    %881 = vmatpush.bf16.msra.mxu0 %v496
    %882 = vmatmul.bf16.gmra.mxu0 %v807
    %v883 = vpop.f32.mrf.mxu0
    %v884 = vadd.f32 %v871, %v883
    %v885 = vpop.f32.mrf.mxu0
    %886 = vdwg.mxu0
    %887 = vmatpush.bf16.msra.mxu0 %v461
    %888 = vmatpush.bf16.msra.mxu0 %v457
    %889 = vmatpush.bf16.msra.mxu0 %v453
    %890 = vmatpush.bf16.msra.mxu0 %v449
    %891 = vmatpush.bf16.msra.mxu0 %v445
    %892 = vmatpush.bf16.msra.mxu0 %v441
    %893 = vmatpush.bf16.msra.mxu0 %v437
    %894 = vmatpush.bf16.msra.mxu0 %v433
    %895 = vmatmul.bf16.gmra.mxu0 %v801
    %v896 = vpop.f32.mrf.mxu0
    %v897 = vadd.f32 0.0, %v896
    %v898 = vpop.f32.mrf.mxu0
    %899 = vdwg.mxu0
    %900 = vmatpush.bf16.msra.mxu0 %v493
    %901 = vmatpush.bf16.msra.mxu0 %v489
    %902 = vmatpush.bf16.msra.mxu0 %v485
    %903 = vmatpush.bf16.msra.mxu0 %v481
    %904 = vmatpush.bf16.msra.mxu0 %v477
    %905 = vmatpush.bf16.msra.mxu0 %v473
    %906 = vmatpush.bf16.msra.mxu0 %v469
    %907 = vmatpush.bf16.msra.mxu0 %v465
    %908 = vmatmul.bf16.gmra.mxu0 %v802
    %v909 = vpop.f32.mrf.mxu0
    %v910 = vadd.f32 %v897, %v909
    %v911 = vpop.f32.mrf.mxu0
    %912 = vdwg.mxu0
    %913 = vmatpush.bf16.msra.mxu0 0
    %914 = vmatpush.bf16.msra.mxu0 0
    %915 = vmatpush.bf16.msra.mxu0 0
    %916 = vmatpush.bf16.msra.mxu0 0
    %917 = vmatpush.bf16.msra.mxu0 %v509
    %918 = vmatpush.bf16.msra.mxu0 %v505
    %919 = vmatpush.bf16.msra.mxu0 %v501
    %920 = vmatpush.bf16.msra.mxu0 %v497
    %921 = vmatmul.bf16.gmra.mxu0 %v807
    %v922 = vpop.f32.mrf.mxu0
    %v923 = vadd.f32 %v910, %v922
    %v924 = vpop.f32.mrf.mxu0
    %925 = vdwg.mxu0
    %926 = vmatpush.bf16.msra.mxu0 %v462
    %927 = vmatpush.bf16.msra.mxu0 %v458
    %928 = vmatpush.bf16.msra.mxu0 %v454
    %929 = vmatpush.bf16.msra.mxu0 %v450
    %930 = vmatpush.bf16.msra.mxu0 %v446
    %931 = vmatpush.bf16.msra.mxu0 %v442
    %932 = vmatpush.bf16.msra.mxu0 %v438
    %933 = vmatpush.bf16.msra.mxu0 %v434
    %934 = vmatmul.bf16.gmra.mxu0 %v801
    %v935 = vpop.f32.mrf.mxu0
    %v936 = vadd.f32 0.0, %v935
    %v937 = vpop.f32.mrf.mxu0
    %938 = vdwg.mxu0
    %939 = vmatpush.bf16.msra.mxu0 %v494
    %940 = vmatpush.bf16.msra.mxu0 %v490
    %941 = vmatpush.bf16.msra.mxu0 %v486
    %942 = vmatpush.bf16.msra.mxu0 %v482
    %943 = vmatpush.bf16.msra.mxu0 %v478
    %944 = vmatpush.bf16.msra.mxu0 %v474
    %945 = vmatpush.bf16.msra.mxu0 %v470
    %946 = vmatpush.bf16.msra.mxu0 %v466
    %947 = vmatmul.bf16.gmra.mxu0 %v802
    %v948 = vpop.f32.mrf.mxu0
    %v949 = vadd.f32 %v936, %v948
    %v950 = vpop.f32.mrf.mxu0
    %951 = vdwg.mxu0
    %952 = vmatpush.bf16.msra.mxu0 0
    %953 = vmatpush.bf16.msra.mxu0 0
    %954 = vmatpush.bf16.msra.mxu0 0
    %955 = vmatpush.bf16.msra.mxu0 0
    %956 = vmatpush.bf16.msra.mxu0 %v510
    %957 = vmatpush.bf16.msra.mxu0 %v506
    %958 = vmatpush.bf16.msra.mxu0 %v502
    %959 = vmatpush.bf16.msra.mxu0 %v498
    %960 = vmatmul.bf16.gmra.mxu0 %v807
    %v961 = vpop.f32.mrf.mxu0
    %v962 = vadd.f32 %v949, %v961
    %v963 = vpop.f32.mrf.mxu0
    %964 = vdwg.mxu0
    %v965 = vmax.f32 %v845, %v884
    %v966 = vmax.f32 %v923, %v962
    %v967 = vmax.f32 %v965, %v966
    %v968 = vadd.f32 %v967, %v756
    %v969 = vmax.f32 %v968, 0.0
    %v970 = vpack.c.bf16 %v969, %v969
    %s971 = scalar_lea.vmem [#allocation6], 256
    %v972 = vld [vmem:[%s971] sm:$0xff]
    %v973 = vld [vmem:[%s971 + $0x8] sm:$0xff]
    %v974 = vld [vmem:[%s971 + $0x10] sm:$0xff]
    %v975 = vld [vmem:[%s971 + $0x18] sm:$0xff]
    %v976 = vld [vmem:[%s971 + $0x20] sm:$0xff]
    %v977 = vld [vmem:[%s971 + $0x28] sm:$0xff]
    %v978 = vld [vmem:[%s971 + $0x30] sm:$0xff]
    %v979 = vld [vmem:[%s971 + $0x38] sm:$0xff]
    %v980 = vld [vmem:[%s971 + $0x40] sm:$0xff]
    %v981 = vld [vmem:[%s971 + $0x48] sm:$0xff]
    %v982 = vld [vmem:[%s971 + $0x50] sm:$0xff]
    %v983 = vld [vmem:[%s971 + $0x58] sm:$0xff]
    %v984 = vld [vmem:[%s971 + $0x60] sm:$0xff]
    %v985 = vld [vmem:[%s971 + $0x68] sm:$0xff]
    %v986 = vld [vmem:[%s971 + $0x70] sm:$0xff]
    %v987 = vld [vmem:[%s971 + $0x78] sm:$0xff]
    %v988 = vld [vmem:[%s971 + $0x80] sm:$0xff]
    %v989 = vld [vmem:[%s971 + $0x88] sm:$0xff]
    %v990 = vld [vmem:[%s971 + $0x90] sm:$0xff]
    %v991 = vld [vmem:[%s971 + $0x98] sm:$0xff]
    %v992 = vld [vmem:[%s971 + $0xa0] sm:$0xff]
    %v993 = vld [vmem:[%s971 + $0xa8] sm:$0xff]
    %v994 = vld [vmem:[%s971 + $0xb0] sm:$0xff]
    %v995 = vld [vmem:[%s971 + $0xb8] sm:$0xff]
    %v996 = vld [vmem:[%s971 + $0xc0] sm:$0xff]
    %v997 = vld [vmem:[%s971 + $0xc8] sm:$0xff]
    %v998 = vld [vmem:[%s971 + $0xd0] sm:$0xff]
    %v999 = vld [vmem:[%s971 + $0xd8] sm:$0xff]
    %v1000 = vld [vmem:[%s971 + $0xe0] sm:$0xff]
    %v1001 = vld [vmem:[%s971 + $0xe8] sm:$0xff]
    %v1002 = vld [vmem:[%s971 + $0xf0] sm:$0xff]
    %v1003 = vld [vmem:[%s971 + $0xf8] sm:$0xff]
    %v1036 = vunpack.c.l.b16 %v972
    %v1037 = vunpack.c.h.b16 %v972
    %v1038 = vunpack.c.l.b16 %v973
    %v1039 = vunpack.c.h.b16 %v973
    %v1040 = vunpack.c.l.b16 %v974
    %v1041 = vunpack.c.h.b16 %v974
    %v1042 = vunpack.c.l.b16 %v975
    %v1043 = vunpack.c.h.b16 %v975
    %v1044 = vunpack.c.l.b16 %v976
    %v1045 = vunpack.c.h.b16 %v976
    %v1046 = vunpack.c.l.b16 %v977
    %v1047 = vunpack.c.h.b16 %v977
    %v1048 = vunpack.c.l.b16 %v978
    %v1049 = vunpack.c.h.b16 %v978
    %v1050 = vunpack.c.l.b16 %v979
    %v1051 = vunpack.c.h.b16 %v979
    %v1052 = vunpack.c.l.b16 %v980
    %v1053 = vunpack.c.h.b16 %v980
    %v1054 = vunpack.c.l.b16 %v981
    %v1055 = vunpack.c.h.b16 %v981
    %v1056 = vunpack.c.l.b16 %v982
    %v1057 = vunpack.c.h.b16 %v982
    %v1058 = vunpack.c.l.b16 %v983
    %v1059 = vunpack.c.h.b16 %v983
    %v1060 = vunpack.c.l.b16 %v984
    %v1061 = vunpack.c.h.b16 %v984
    %v1062 = vunpack.c.l.b16 %v985
    %v1063 = vunpack.c.h.b16 %v985
    %v1064 = vunpack.c.l.b16 %v986
    %v1065 = vunpack.c.h.b16 %v986
    %v1066 = vunpack.c.l.b16 %v987
    %v1067 = vunpack.c.h.b16 %v987
    %v1068 = vunpack.c.l.b16 %v988
    %v1069 = vunpack.c.h.b16 %v988
    %v1070 = vunpack.c.l.b16 %v989
    %v1071 = vunpack.c.h.b16 %v989
    %v1072 = vunpack.c.l.b16 %v990
    %v1073 = vunpack.c.h.b16 %v990
    %v1074 = vunpack.c.l.b16 %v991
    %v1075 = vunpack.c.h.b16 %v991
    %v1076 = vunpack.c.l.b16 %v992
    %v1077 = vunpack.c.h.b16 %v992
    %v1078 = vunpack.c.l.b16 %v993
    %v1079 = vunpack.c.h.b16 %v993
    %v1080 = vunpack.c.l.b16 %v994
    %v1081 = vunpack.c.h.b16 %v994
    %v1082 = vunpack.c.l.b16 %v995
    %v1083 = vunpack.c.h.b16 %v995
    %v1084 = vunpack.c.l.b16 %v996
    %v1085 = vunpack.c.h.b16 %v996
    %v1086 = vunpack.c.l.b16 %v997
    %v1087 = vunpack.c.h.b16 %v997
    %v1088 = vunpack.c.l.b16 %v998
    %v1089 = vunpack.c.h.b16 %v998
    %v1090 = vunpack.c.l.b16 %v999
    %v1091 = vunpack.c.h.b16 %v999
    %v1092 = vunpack.c.l.b16 %v1000
    %v1093 = vunpack.c.h.b16 %v1000
    %v1094 = vunpack.c.l.b16 %v1001
    %v1095 = vunpack.c.h.b16 %v1001
    %v1096 = vunpack.c.l.b16 %v1002
    %v1097 = vunpack.c.h.b16 %v1002
    %v1098 = vunpack.c.l.b16 %v1003
    %v1099 = vunpack.c.h.b16 %v1003
    %v1100 = vpack.c.b16 %v1040, %v1036
    %v1101 = vpack.c.b16 %v1041, %v1037
    %v1102 = vpack.c.b16 %v1042, %v1038
    %v1103 = vpack.c.b16 %v1043, %v1039
    %v1104 = vpack.c.b16 %v1048, %v1044
    %v1105 = vpack.c.b16 %v1049, %v1045
    %v1106 = vpack.c.b16 %v1050, %v1046
    %v1107 = vpack.c.b16 %v1051, %v1047
    %v1108 = vpack.c.b16 %v1056, %v1052
    %v1109 = vpack.c.b16 %v1057, %v1053
    %v1110 = vpack.c.b16 %v1058, %v1054
    %v1111 = vpack.c.b16 %v1059, %v1055
    %v1112 = vpack.c.b16 %v1064, %v1060
    %v1113 = vpack.c.b16 %v1065, %v1061
    %v1114 = vpack.c.b16 %v1066, %v1062
    %v1115 = vpack.c.b16 %v1067, %v1063
    %v1116 = vpack.c.b16 %v1072, %v1068
    %v1117 = vpack.c.b16 %v1073, %v1069
    %v1118 = vpack.c.b16 %v1074, %v1070
    %v1119 = vpack.c.b16 %v1075, %v1071
    %v1120 = vpack.c.b16 %v1080, %v1076
    %v1121 = vpack.c.b16 %v1081, %v1077
    %v1122 = vpack.c.b16 %v1082, %v1078
    %v1123 = vpack.c.b16 %v1083, %v1079
    %v1124 = vpack.c.b16 %v1088, %v1084
    %v1125 = vpack.c.b16 %v1089, %v1085
    %v1126 = vpack.c.b16 %v1090, %v1086
    %v1127 = vpack.c.b16 %v1091, %v1087
    %v1128 = vpack.c.b16 %v1096, %v1092
    %v1129 = vpack.c.b16 %v1097, %v1093
    %v1130 = vpack.c.b16 %v1098, %v1094
    %v1131 = vpack.c.b16 %v1099, %v1095
    %1164 = vmatpush.bf16.msra.mxu0 %v1128
    %1165 = vmatpush.bf16.msra.mxu0 %v1124
    %1166 = vmatpush.bf16.msra.mxu0 %v1120
    %1167 = vmatpush.bf16.msra.mxu0 %v1116
    %1168 = vmatpush.bf16.msra.mxu0 %v1112
    %1169 = vmatpush.bf16.msra.mxu0 %v1108
    %1170 = vmatpush.bf16.msra.mxu0 %v1104
    %1171 = vmatpush.bf16.msra.mxu0 %v1100
    %1172 = vmatmul.bf16.gmra.mxu0 %v970
    %v1173 = vpop.f32.mrf.mxu0
    %v1174 = vadd.f32 0.0, %v1173
    %v1175 = vpop.f32.mrf.mxu0
    %1176 = vdwg.mxu0
    %1177 = vmatpush.bf16.msra.mxu0 %v1129
    %1178 = vmatpush.bf16.msra.mxu0 %v1125
    %1179 = vmatpush.bf16.msra.mxu0 %v1121
    %1180 = vmatpush.bf16.msra.mxu0 %v1117
    %1181 = vmatpush.bf16.msra.mxu0 %v1113
    %1182 = vmatpush.bf16.msra.mxu0 %v1109
    %1183 = vmatpush.bf16.msra.mxu0 %v1105
    %1184 = vmatpush.bf16.msra.mxu0 %v1101
    %1185 = vmatmul.bf16.gmra.mxu0 %v970
    %v1186 = vpop.f32.mrf.mxu0
    %v1187 = vadd.f32 0.0, %v1186
    %v1188 = vpop.f32.mrf.mxu0
    %1189 = vdwg.mxu0
    %1190 = vmatpush.bf16.msra.mxu0 %v1130
    %1191 = vmatpush.bf16.msra.mxu0 %v1126
    %1192 = vmatpush.bf16.msra.mxu0 %v1122
    %1193 = vmatpush.bf16.msra.mxu0 %v1118
    %1194 = vmatpush.bf16.msra.mxu0 %v1114
    %1195 = vmatpush.bf16.msra.mxu0 %v1110
    %1196 = vmatpush.bf16.msra.mxu0 %v1106
    %1197 = vmatpush.bf16.msra.mxu0 %v1102
    %1198 = vmatmul.bf16.gmra.mxu0 %v970
    %v1199 = vpop.f32.mrf.mxu0
    %v1200 = vadd.f32 0.0, %v1199
    %v1201 = vpop.f32.mrf.mxu0
    %1202 = vdwg.mxu0
    %1203 = vmatpush.bf16.msra.mxu0 %v1131
    %1204 = vmatpush.bf16.msra.mxu0 %v1127
    %1205 = vmatpush.bf16.msra.mxu0 %v1123
    %1206 = vmatpush.bf16.msra.mxu0 %v1119
    %1207 = vmatpush.bf16.msra.mxu0 %v1115
    %1208 = vmatpush.bf16.msra.mxu0 %v1111
    %1209 = vmatpush.bf16.msra.mxu0 %v1107
    %1210 = vmatpush.bf16.msra.mxu0 %v1103
    %1211 = vmatmul.bf16.gmra.mxu0 %v970
    %v1212 = vpop.f32.mrf.mxu0
    %v1213 = vadd.f32 0.0, %v1212
    %v1214 = vpop.f32.mrf.mxu0
    %1215 = vdwg.mxu0
    %v1248 = vunpack.c.l.b16 %v761
    %v1249 = vunpack.c.h.b16 %v761
    %v1250 = vunpack.c.l.b16 %v762
    %v1251 = vunpack.c.h.b16 %v762
    %v1252 = vunpack.c.l.b16 %v763
    %v1253 = vunpack.c.h.b16 %v763
    %v1254 = vunpack.c.l.b16 %v764
    %v1255 = vunpack.c.h.b16 %v764
    %v1256 = vunpack.c.l.b16 %v765
    %v1257 = vunpack.c.h.b16 %v765
    %v1258 = vunpack.c.l.b16 %v766
    %v1259 = vunpack.c.h.b16 %v766
    %v1260 = vunpack.c.l.b16 %v767
    %v1261 = vunpack.c.h.b16 %v767
    %v1262 = vunpack.c.l.b16 %v768
    %v1263 = vunpack.c.h.b16 %v768
    %v1264 = vunpack.c.l.b16 %v769
    %v1265 = vunpack.c.h.b16 %v769
    %v1266 = vunpack.c.l.b16 %v770
    %v1267 = vunpack.c.h.b16 %v770
    %v1268 = vunpack.c.l.b16 %v771
    %v1269 = vunpack.c.h.b16 %v771
    %v1270 = vunpack.c.l.b16 %v772
    %v1271 = vunpack.c.h.b16 %v772
    %v1272 = vunpack.c.l.b16 %v773
    %v1273 = vunpack.c.h.b16 %v773
    %v1274 = vunpack.c.l.b16 %v774
    %v1275 = vunpack.c.h.b16 %v774
    %v1276 = vunpack.c.l.b16 %v775
    %v1277 = vunpack.c.h.b16 %v775
    %v1278 = vunpack.c.l.b16 %v776
    %v1279 = vunpack.c.h.b16 %v776
    %v1280 = vunpack.c.l.b16 %v777
    %v1281 = vunpack.c.h.b16 %v777
    %v1282 = vunpack.c.l.b16 %v778
    %v1283 = vunpack.c.h.b16 %v778
    %v1284 = vunpack.c.l.b16 %v779
    %v1285 = vunpack.c.h.b16 %v779
    %v1286 = vunpack.c.l.b16 %v780
    %v1287 = vunpack.c.h.b16 %v780
    %v1288 = vunpack.c.l.b16 %v781
    %v1289 = vunpack.c.h.b16 %v781
    %v1290 = vunpack.c.l.b16 %v782
    %v1291 = vunpack.c.h.b16 %v782
    %v1292 = vunpack.c.l.b16 %v783
    %v1293 = vunpack.c.h.b16 %v783
    %v1294 = vunpack.c.l.b16 %v784
    %v1295 = vunpack.c.h.b16 %v784
    %v1296 = vunpack.c.l.b16 %v785
    %v1297 = vunpack.c.h.b16 %v785
    %v1298 = vunpack.c.l.b16 %v786
    %v1299 = vunpack.c.h.b16 %v786
    %v1300 = vunpack.c.l.b16 %v787
    %v1301 = vunpack.c.h.b16 %v787
    %v1302 = vunpack.c.l.b16 %v788
    %v1303 = vunpack.c.h.b16 %v788
    %v1304 = vunpack.c.l.b16 %v789
    %v1305 = vunpack.c.h.b16 %v789
    %v1306 = vunpack.c.l.b16 %v790
    %v1307 = vunpack.c.h.b16 %v790
    %v1308 = vunpack.c.l.b16 %v791
    %v1309 = vunpack.c.h.b16 %v791
    %v1310 = vunpack.c.l.b16 %v792
    %v1311 = vunpack.c.h.b16 %v792
    %v1312 = vpack.c.b16 %v1252, %v1248
    %v1313 = vpack.c.b16 %v1253, %v1249
    %v1314 = vpack.c.b16 %v1254, %v1250
    %v1315 = vpack.c.b16 %v1255, %v1251
    %v1316 = vpack.c.b16 %v1260, %v1256
    %v1317 = vpack.c.b16 %v1261, %v1257
    %v1318 = vpack.c.b16 %v1262, %v1258
    %v1319 = vpack.c.b16 %v1263, %v1259
    %v1320 = vpack.c.b16 %v1268, %v1264
    %v1321 = vpack.c.b16 %v1269, %v1265
    %v1322 = vpack.c.b16 %v1270, %v1266
    %v1323 = vpack.c.b16 %v1271, %v1267
    %v1324 = vpack.c.b16 %v1276, %v1272
    %v1325 = vpack.c.b16 %v1277, %v1273
    %v1326 = vpack.c.b16 %v1278, %v1274
    %v1327 = vpack.c.b16 %v1279, %v1275
    %v1328 = vpack.c.b16 %v1284, %v1280
    %v1329 = vpack.c.b16 %v1285, %v1281
    %v1330 = vpack.c.b16 %v1286, %v1282
    %v1331 = vpack.c.b16 %v1287, %v1283
    %v1332 = vpack.c.b16 %v1292, %v1288
    %v1333 = vpack.c.b16 %v1293, %v1289
    %v1334 = vpack.c.b16 %v1294, %v1290
    %v1335 = vpack.c.b16 %v1295, %v1291
    %v1336 = vpack.c.b16 %v1300, %v1296
    %v1337 = vpack.c.b16 %v1301, %v1297
    %v1338 = vpack.c.b16 %v1302, %v1298
    %v1339 = vpack.c.b16 %v1303, %v1299
    %v1340 = vpack.c.b16 %v1308, %v1304
    %v1341 = vpack.c.b16 %v1309, %v1305
    %v1342 = vpack.c.b16 %v1310, %v1306
    %v1343 = vpack.c.b16 %v1311, %v1307
    %1376 = vmatpush.bf16.msra.mxu0 %v1340
    %1377 = vmatpush.bf16.msra.mxu0 %v1336
    %1378 = vmatpush.bf16.msra.mxu0 %v1332
    %1379 = vmatpush.bf16.msra.mxu0 %v1328
    %1380 = vmatpush.bf16.msra.mxu0 %v1324
    %1381 = vmatpush.bf16.msra.mxu0 %v1320
    %1382 = vmatpush.bf16.msra.mxu0 %v1316
    %1383 = vmatpush.bf16.msra.mxu0 %v1312
    %1384 = vmatmul.bf16.gmra.mxu0 %v760
    %v1385 = vpop.f32.mrf.mxu0
    %v1386 = vadd.f32 %v1174, %v1385
    %v1387 = vpop.f32.mrf.mxu0
    %1388 = vdwg.mxu0
    %1389 = vmatpush.bf16.msra.mxu0 %v1341
    %1390 = vmatpush.bf16.msra.mxu0 %v1337
    %1391 = vmatpush.bf16.msra.mxu0 %v1333
    %1392 = vmatpush.bf16.msra.mxu0 %v1329
    %1393 = vmatpush.bf16.msra.mxu0 %v1325
    %1394 = vmatpush.bf16.msra.mxu0 %v1321
    %1395 = vmatpush.bf16.msra.mxu0 %v1317
    %1396 = vmatpush.bf16.msra.mxu0 %v1313
    %1397 = vmatmul.bf16.gmra.mxu0 %v760
    %v1398 = vpop.f32.mrf.mxu0
    %v1399 = vadd.f32 %v1187, %v1398
    %v1400 = vpop.f32.mrf.mxu0
    %1401 = vdwg.mxu0
    %1402 = vmatpush.bf16.msra.mxu0 %v1342
    %1403 = vmatpush.bf16.msra.mxu0 %v1338
    %1404 = vmatpush.bf16.msra.mxu0 %v1334
    %1405 = vmatpush.bf16.msra.mxu0 %v1330
    %1406 = vmatpush.bf16.msra.mxu0 %v1326
    %1407 = vmatpush.bf16.msra.mxu0 %v1322
    %1408 = vmatpush.bf16.msra.mxu0 %v1318
    %1409 = vmatpush.bf16.msra.mxu0 %v1314
    %1410 = vmatmul.bf16.gmra.mxu0 %v760
    %v1411 = vpop.f32.mrf.mxu0
    %v1412 = vadd.f32 %v1200, %v1411
    %v1413 = vpop.f32.mrf.mxu0
    %1414 = vdwg.mxu0
    %1415 = vmatpush.bf16.msra.mxu0 %v1343
    %1416 = vmatpush.bf16.msra.mxu0 %v1339
    %1417 = vmatpush.bf16.msra.mxu0 %v1335
    %1418 = vmatpush.bf16.msra.mxu0 %v1331
    %1419 = vmatpush.bf16.msra.mxu0 %v1327
    %1420 = vmatpush.bf16.msra.mxu0 %v1323
    %1421 = vmatpush.bf16.msra.mxu0 %v1319
    %1422 = vmatpush.bf16.msra.mxu0 %v1315
    %1423 = vmatmul.bf16.gmra.mxu0 %v760
    %v1424 = vpop.f32.mrf.mxu0
    %v1425 = vadd.f32 %v1213, %v1424
    %v1426 = vpop.f32.mrf.mxu0
    %1427 = vdwg.mxu0
    %s1428 = scalar_lea.vmem %s0, 24
    %v1429 = vld [vmem:[%s1428] sm:$0xff]
    %v1430 = vld [vmem:[%s1428 + $0x8] sm:$0xf]
    %v1433 = vunpack.c.l.b16 %v1429
    %v1434 = vunpack.c.h.b16 %v1429
    %v1435 = vunpack.c.l.b16 %v1430
    %v1436 = vpack.c.b16 %v1433, %v1433
    %v1437 = vpack.c.b16 %v1434, %v1434
    %v1438 = vpack.c.b16 %v1435, %v1435
    %v1442 = vsel %vm591, %v1438, 0
    %1444 = vmatpush.bf16.msra.mxu0 %v459
    %1445 = vmatpush.bf16.msra.mxu0 %v455
    %1446 = vmatpush.bf16.msra.mxu0 %v451
    %1447 = vmatpush.bf16.msra.mxu0 %v447
    %1448 = vmatpush.bf16.msra.mxu0 %v443
    %1449 = vmatpush.bf16.msra.mxu0 %v439
    %1450 = vmatpush.bf16.msra.mxu0 %v435
    %1451 = vmatpush.bf16.msra.mxu0 %v431
    %1452 = vmatmul.bf16.gmra.mxu0 %v1436
    %v1453 = vpop.f32.mrf.mxu0
    %v1454 = vadd.f32 0.0, %v1453
    %v1455 = vpop.f32.mrf.mxu0
    %1456 = vdwg.mxu0
    %1457 = vmatpush.bf16.msra.mxu0 %v491
    %1458 = vmatpush.bf16.msra.mxu0 %v487
    %1459 = vmatpush.bf16.msra.mxu0 %v483
    %1460 = vmatpush.bf16.msra.mxu0 %v479
    %1461 = vmatpush.bf16.msra.mxu0 %v475
    %1462 = vmatpush.bf16.msra.mxu0 %v471
    %1463 = vmatpush.bf16.msra.mxu0 %v467
    %1464 = vmatpush.bf16.msra.mxu0 %v463
    %1465 = vmatmul.bf16.gmra.mxu0 %v1437
    %v1466 = vpop.f32.mrf.mxu0
    %v1467 = vadd.f32 %v1454, %v1466
    %v1468 = vpop.f32.mrf.mxu0
    %1469 = vdwg.mxu0
    %1470 = vmatpush.bf16.msra.mxu0 0
    %1471 = vmatpush.bf16.msra.mxu0 0
    %1472 = vmatpush.bf16.msra.mxu0 0
    %1473 = vmatpush.bf16.msra.mxu0 0
    %1474 = vmatpush.bf16.msra.mxu0 %v507
    %1475 = vmatpush.bf16.msra.mxu0 %v503
    %1476 = vmatpush.bf16.msra.mxu0 %v499
    %1477 = vmatpush.bf16.msra.mxu0 %v495
    %1478 = vmatmul.bf16.gmra.mxu0 %v1442
    %v1479 = vpop.f32.mrf.mxu0
    %v1480 = vadd.f32 %v1467, %v1479
    %v1481 = vpop.f32.mrf.mxu0
    %1482 = vdwg.mxu0
    %1483 = vmatpush.bf16.msra.mxu0 %v460
    %1484 = vmatpush.bf16.msra.mxu0 %v456
    %1485 = vmatpush.bf16.msra.mxu0 %v452
    %1486 = vmatpush.bf16.msra.mxu0 %v448
    %1487 = vmatpush.bf16.msra.mxu0 %v444
    %1488 = vmatpush.bf16.msra.mxu0 %v440
    %1489 = vmatpush.bf16.msra.mxu0 %v436
    %1490 = vmatpush.bf16.msra.mxu0 %v432
    %1491 = vmatmul.bf16.gmra.mxu0 %v1436
    %v1492 = vpop.f32.mrf.mxu0
    %v1493 = vadd.f32 0.0, %v1492
    %v1494 = vpop.f32.mrf.mxu0
    %1495 = vdwg.mxu0
    %1496 = vmatpush.bf16.msra.mxu0 %v492
    %1497 = vmatpush.bf16.msra.mxu0 %v488
    %1498 = vmatpush.bf16.msra.mxu0 %v484
    %1499 = vmatpush.bf16.msra.mxu0 %v480
    %1500 = vmatpush.bf16.msra.mxu0 %v476
    %1501 = vmatpush.bf16.msra.mxu0 %v472
    %1502 = vmatpush.bf16.msra.mxu0 %v468
    %1503 = vmatpush.bf16.msra.mxu0 %v464
    %1504 = vmatmul.bf16.gmra.mxu0 %v1437
    %v1505 = vpop.f32.mrf.mxu0
    %v1506 = vadd.f32 %v1493, %v1505
    %v1507 = vpop.f32.mrf.mxu0
    %1508 = vdwg.mxu0
    %1509 = vmatpush.bf16.msra.mxu0 0
    %1510 = vmatpush.bf16.msra.mxu0 0
    %1511 = vmatpush.bf16.msra.mxu0 0
    %1512 = vmatpush.bf16.msra.mxu0 0
    %1513 = vmatpush.bf16.msra.mxu0 %v508
    %1514 = vmatpush.bf16.msra.mxu0 %v504
    %1515 = vmatpush.bf16.msra.mxu0 %v500
    %1516 = vmatpush.bf16.msra.mxu0 %v496
    %1517 = vmatmul.bf16.gmra.mxu0 %v1442
    %v1518 = vpop.f32.mrf.mxu0
    %v1519 = vadd.f32 %v1506, %v1518
    %v1520 = vpop.f32.mrf.mxu0
    %1521 = vdwg.mxu0
    %1522 = vmatpush.bf16.msra.mxu0 %v461
    %1523 = vmatpush.bf16.msra.mxu0 %v457
    %1524 = vmatpush.bf16.msra.mxu0 %v453
    %1525 = vmatpush.bf16.msra.mxu0 %v449
    %1526 = vmatpush.bf16.msra.mxu0 %v445
    %1527 = vmatpush.bf16.msra.mxu0 %v441
    %1528 = vmatpush.bf16.msra.mxu0 %v437
    %1529 = vmatpush.bf16.msra.mxu0 %v433
    %1530 = vmatmul.bf16.gmra.mxu0 %v1436
    %v1531 = vpop.f32.mrf.mxu0
    %v1532 = vadd.f32 0.0, %v1531
    %v1533 = vpop.f32.mrf.mxu0
    %1534 = vdwg.mxu0
    %1535 = vmatpush.bf16.msra.mxu0 %v493
    %1536 = vmatpush.bf16.msra.mxu0 %v489
    %1537 = vmatpush.bf16.msra.mxu0 %v485
    %1538 = vmatpush.bf16.msra.mxu0 %v481
    %1539 = vmatpush.bf16.msra.mxu0 %v477
    %1540 = vmatpush.bf16.msra.mxu0 %v473
    %1541 = vmatpush.bf16.msra.mxu0 %v469
    %1542 = vmatpush.bf16.msra.mxu0 %v465
    %1543 = vmatmul.bf16.gmra.mxu0 %v1437
    %v1544 = vpop.f32.mrf.mxu0
    %v1545 = vadd.f32 %v1532, %v1544
    %v1546 = vpop.f32.mrf.mxu0
    %1547 = vdwg.mxu0
    %1548 = vmatpush.bf16.msra.mxu0 0
    %1549 = vmatpush.bf16.msra.mxu0 0
    %1550 = vmatpush.bf16.msra.mxu0 0
    %1551 = vmatpush.bf16.msra.mxu0 0
    %1552 = vmatpush.bf16.msra.mxu0 %v509
    %1553 = vmatpush.bf16.msra.mxu0 %v505
    %1554 = vmatpush.bf16.msra.mxu0 %v501
    %1555 = vmatpush.bf16.msra.mxu0 %v497
    %1556 = vmatmul.bf16.gmra.mxu0 %v1442
    %v1557 = vpop.f32.mrf.mxu0
    %v1558 = vadd.f32 %v1545, %v1557
    %v1559 = vpop.f32.mrf.mxu0
    %1560 = vdwg.mxu0
    %1561 = vmatpush.bf16.msra.mxu0 %v462
    %1562 = vmatpush.bf16.msra.mxu0 %v458
    %1563 = vmatpush.bf16.msra.mxu0 %v454
    %1564 = vmatpush.bf16.msra.mxu0 %v450
    %1565 = vmatpush.bf16.msra.mxu0 %v446
    %1566 = vmatpush.bf16.msra.mxu0 %v442
    %1567 = vmatpush.bf16.msra.mxu0 %v438
    %1568 = vmatpush.bf16.msra.mxu0 %v434
    %1569 = vmatmul.bf16.gmra.mxu0 %v1436
    %v1570 = vpop.f32.mrf.mxu0
    %v1571 = vadd.f32 0.0, %v1570
    %v1572 = vpop.f32.mrf.mxu0
    %1573 = vdwg.mxu0
    %1574 = vmatpush.bf16.msra.mxu0 %v494
    %1575 = vmatpush.bf16.msra.mxu0 %v490
    %1576 = vmatpush.bf16.msra.mxu0 %v486
    %1577 = vmatpush.bf16.msra.mxu0 %v482
    %1578 = vmatpush.bf16.msra.mxu0 %v478
    %1579 = vmatpush.bf16.msra.mxu0 %v474
    %1580 = vmatpush.bf16.msra.mxu0 %v470
    %1581 = vmatpush.bf16.msra.mxu0 %v466
    %1582 = vmatmul.bf16.gmra.mxu0 %v1437
    %v1583 = vpop.f32.mrf.mxu0
    %v1584 = vadd.f32 %v1571, %v1583
    %v1585 = vpop.f32.mrf.mxu0
    %1586 = vdwg.mxu0
    %1587 = vmatpush.bf16.msra.mxu0 0
    %1588 = vmatpush.bf16.msra.mxu0 0
    %1589 = vmatpush.bf16.msra.mxu0 0
    %1590 = vmatpush.bf16.msra.mxu0 0
    %1591 = vmatpush.bf16.msra.mxu0 %v510
    %1592 = vmatpush.bf16.msra.mxu0 %v506
    %1593 = vmatpush.bf16.msra.mxu0 %v502
    %1594 = vmatpush.bf16.msra.mxu0 %v498
    %1595 = vmatmul.bf16.gmra.mxu0 %v1442
    %v1596 = vpop.f32.mrf.mxu0
    %v1597 = vadd.f32 %v1584, %v1596
    %v1598 = vpop.f32.mrf.mxu0
    %1599 = vdwg.mxu0
    %v1600 = vmax.f32 %v1480, %v1519
    %v1601 = vmax.f32 %v1558, %v1597
    %v1602 = vmax.f32 %v1600, %v1601
    %v1603 = vadd.f32 %v1602, %v756
    %v1604 = vmax.f32 %v1603, 0.0
    %v1605 = vpack.c.bf16 %v1604, %v1604
    %s1606 = scalar_lea.vmem [#allocation6], 512
    %v1607 = vld [vmem:[%s1606] sm:$0xff]
    %v1608 = vld [vmem:[%s1606 + $0x8] sm:$0xff]
    %v1609 = vld [vmem:[%s1606 + $0x10] sm:$0xff]
    %v1610 = vld [vmem:[%s1606 + $0x18] sm:$0xff]
    %v1611 = vld [vmem:[%s1606 + $0x20] sm:$0xff]
    %v1612 = vld [vmem:[%s1606 + $0x28] sm:$0xff]
    %v1613 = vld [vmem:[%s1606 + $0x30] sm:$0xff]
    %v1614 = vld [vmem:[%s1606 + $0x38] sm:$0xff]
    %v1615 = vld [vmem:[%s1606 + $0x40] sm:$0xff]
    %v1616 = vld [vmem:[%s1606 + $0x48] sm:$0xff]
    %v1617 = vld [vmem:[%s1606 + $0x50] sm:$0xff]
    %v1618 = vld [vmem:[%s1606 + $0x58] sm:$0xff]
    %v1619 = vld [vmem:[%s1606 + $0x60] sm:$0xff]
    %v1620 = vld [vmem:[%s1606 + $0x68] sm:$0xff]
    %v1621 = vld [vmem:[%s1606 + $0x70] sm:$0xff]
    %v1622 = vld [vmem:[%s1606 + $0x78] sm:$0xff]
    %v1623 = vld [vmem:[%s1606 + $0x80] sm:$0xff]
    %v1624 = vld [vmem:[%s1606 + $0x88] sm:$0xff]
    %v1625 = vld [vmem:[%s1606 + $0x90] sm:$0xff]
    %v1626 = vld [vmem:[%s1606 + $0x98] sm:$0xff]
    %v1627 = vld [vmem:[%s1606 + $0xa0] sm:$0xff]
    %v1628 = vld [vmem:[%s1606 + $0xa8] sm:$0xff]
    %v1629 = vld [vmem:[%s1606 + $0xb0] sm:$0xff]
    %v1630 = vld [vmem:[%s1606 + $0xb8] sm:$0xff]
    %v1631 = vld [vmem:[%s1606 + $0xc0] sm:$0xff]
    %v1632 = vld [vmem:[%s1606 + $0xc8] sm:$0xff]
    %v1633 = vld [vmem:[%s1606 + $0xd0] sm:$0xff]
    %v1634 = vld [vmem:[%s1606 + $0xd8] sm:$0xff]
    %v1635 = vld [vmem:[%s1606 + $0xe0] sm:$0xff]
    %v1636 = vld [vmem:[%s1606 + $0xe8] sm:$0xff]
    %v1637 = vld [vmem:[%s1606 + $0xf0] sm:$0xff]
    %v1638 = vld [vmem:[%s1606 + $0xf8] sm:$0xff]
    %v1671 = vunpack.c.l.b16 %v1607
    %v1672 = vunpack.c.h.b16 %v1607
    %v1673 = vunpack.c.l.b16 %v1608
    %v1674 = vunpack.c.h.b16 %v1608
    %v1675 = vunpack.c.l.b16 %v1609
    %v1676 = vunpack.c.h.b16 %v1609
    %v1677 = vunpack.c.l.b16 %v1610
    %v1678 = vunpack.c.h.b16 %v1610
    %v1679 = vunpack.c.l.b16 %v1611
    %v1680 = vunpack.c.h.b16 %v1611
    %v1681 = vunpack.c.l.b16 %v1612
    %v1682 = vunpack.c.h.b16 %v1612
    %v1683 = vunpack.c.l.b16 %v1613
    %v1684 = vunpack.c.h.b16 %v1613
    %v1685 = vunpack.c.l.b16 %v1614
    %v1686 = vunpack.c.h.b16 %v1614
    %v1687 = vunpack.c.l.b16 %v1615
    %v1688 = vunpack.c.h.b16 %v1615
    %v1689 = vunpack.c.l.b16 %v1616
    %v1690 = vunpack.c.h.b16 %v1616
    %v1691 = vunpack.c.l.b16 %v1617
    %v1692 = vunpack.c.h.b16 %v1617
    %v1693 = vunpack.c.l.b16 %v1618
    %v1694 = vunpack.c.h.b16 %v1618
    %v1695 = vunpack.c.l.b16 %v1619
    %v1696 = vunpack.c.h.b16 %v1619
    %v1697 = vunpack.c.l.b16 %v1620
    %v1698 = vunpack.c.h.b16 %v1620
    %v1699 = vunpack.c.l.b16 %v1621
    %v1700 = vunpack.c.h.b16 %v1621
    %v1701 = vunpack.c.l.b16 %v1622
    %v1702 = vunpack.c.h.b16 %v1622
    %v1703 = vunpack.c.l.b16 %v1623
    %v1704 = vunpack.c.h.b16 %v1623
    %v1705 = vunpack.c.l.b16 %v1624
    %v1706 = vunpack.c.h.b16 %v1624
    %v1707 = vunpack.c.l.b16 %v1625
    %v1708 = vunpack.c.h.b16 %v1625
    %v1709 = vunpack.c.l.b16 %v1626
    %v1710 = vunpack.c.h.b16 %v1626
    %v1711 = vunpack.c.l.b16 %v1627
    %v1712 = vunpack.c.h.b16 %v1627
    %v1713 = vunpack.c.l.b16 %v1628
    %v1714 = vunpack.c.h.b16 %v1628
    %v1715 = vunpack.c.l.b16 %v1629
    %v1716 = vunpack.c.h.b16 %v1629
    %v1717 = vunpack.c.l.b16 %v1630
    %v1718 = vunpack.c.h.b16 %v1630
    %v1719 = vunpack.c.l.b16 %v1631
    %v1720 = vunpack.c.h.b16 %v1631
    %v1721 = vunpack.c.l.b16 %v1632
    %v1722 = vunpack.c.h.b16 %v1632
    %v1723 = vunpack.c.l.b16 %v1633
    %v1724 = vunpack.c.h.b16 %v1633
    %v1725 = vunpack.c.l.b16 %v1634
    %v1726 = vunpack.c.h.b16 %v1634
    %v1727 = vunpack.c.l.b16 %v1635
    %v1728 = vunpack.c.h.b16 %v1635
    %v1729 = vunpack.c.l.b16 %v1636
    %v1730 = vunpack.c.h.b16 %v1636
    %v1731 = vunpack.c.l.b16 %v1637
    %v1732 = vunpack.c.h.b16 %v1637
    %v1733 = vunpack.c.l.b16 %v1638
    %v1734 = vunpack.c.h.b16 %v1638
    %v1735 = vpack.c.b16 %v1675, %v1671
    %v1736 = vpack.c.b16 %v1676, %v1672
    %v1737 = vpack.c.b16 %v1677, %v1673
    %v1738 = vpack.c.b16 %v1678, %v1674
    %v1739 = vpack.c.b16 %v1683, %v1679
    %v1740 = vpack.c.b16 %v1684, %v1680
    %v1741 = vpack.c.b16 %v1685, %v1681
    %v1742 = vpack.c.b16 %v1686, %v1682
    %v1743 = vpack.c.b16 %v1691, %v1687
    %v1744 = vpack.c.b16 %v1692, %v1688
    %v1745 = vpack.c.b16 %v1693, %v1689
    %v1746 = vpack.c.b16 %v1694, %v1690
    %v1747 = vpack.c.b16 %v1699, %v1695
    %v1748 = vpack.c.b16 %v1700, %v1696
    %v1749 = vpack.c.b16 %v1701, %v1697
    %v1750 = vpack.c.b16 %v1702, %v1698
    %v1751 = vpack.c.b16 %v1707, %v1703
    %v1752 = vpack.c.b16 %v1708, %v1704
    %v1753 = vpack.c.b16 %v1709, %v1705
    %v1754 = vpack.c.b16 %v1710, %v1706
    %v1755 = vpack.c.b16 %v1715, %v1711
    %v1756 = vpack.c.b16 %v1716, %v1712
    %v1757 = vpack.c.b16 %v1717, %v1713
    %v1758 = vpack.c.b16 %v1718, %v1714
    %v1759 = vpack.c.b16 %v1723, %v1719
    %v1760 = vpack.c.b16 %v1724, %v1720
    %v1761 = vpack.c.b16 %v1725, %v1721
    %v1762 = vpack.c.b16 %v1726, %v1722
    %v1763 = vpack.c.b16 %v1731, %v1727
    %v1764 = vpack.c.b16 %v1732, %v1728
    %v1765 = vpack.c.b16 %v1733, %v1729
    %v1766 = vpack.c.b16 %v1734, %v1730
    %1799 = vmatpush.bf16.msra.mxu0 %v1763
    %1800 = vmatpush.bf16.msra.mxu0 %v1759
    %1801 = vmatpush.bf16.msra.mxu0 %v1755
    %1802 = vmatpush.bf16.msra.mxu0 %v1751
    %1803 = vmatpush.bf16.msra.mxu0 %v1747
    %1804 = vmatpush.bf16.msra.mxu0 %v1743
    %1805 = vmatpush.bf16.msra.mxu0 %v1739
    %1806 = vmatpush.bf16.msra.mxu0 %v1735
    %1807 = vmatmul.bf16.gmra.mxu0 %v1605
    %v1808 = vpop.f32.mrf.mxu0
    %v1809 = vadd.f32 0.0, %v1808
    %v1810 = vpop.f32.mrf.mxu0
    %1811 = vdwg.mxu0
    %1812 = vmatpush.bf16.msra.mxu0 %v1764
    %1813 = vmatpush.bf16.msra.mxu0 %v1760
    %1814 = vmatpush.bf16.msra.mxu0 %v1756
    %1815 = vmatpush.bf16.msra.mxu0 %v1752
    %1816 = vmatpush.bf16.msra.mxu0 %v1748
    %1817 = vmatpush.bf16.msra.mxu0 %v1744
    %1818 = vmatpush.bf16.msra.mxu0 %v1740
    %1819 = vmatpush.bf16.msra.mxu0 %v1736
    %1820 = vmatmul.bf16.gmra.mxu0 %v1605
    %v1821 = vpop.f32.mrf.mxu0
    %v1822 = vadd.f32 0.0, %v1821
    %v1823 = vpop.f32.mrf.mxu0
    %1824 = vdwg.mxu0
    %1825 = vmatpush.bf16.msra.mxu0 %v1765
    %1826 = vmatpush.bf16.msra.mxu0 %v1761
    %1827 = vmatpush.bf16.msra.mxu0 %v1757
    %1828 = vmatpush.bf16.msra.mxu0 %v1753
    %1829 = vmatpush.bf16.msra.mxu0 %v1749
    %1830 = vmatpush.bf16.msra.mxu0 %v1745
    %1831 = vmatpush.bf16.msra.mxu0 %v1741
    %1832 = vmatpush.bf16.msra.mxu0 %v1737
    %1833 = vmatmul.bf16.gmra.mxu0 %v1605
    %v1834 = vpop.f32.mrf.mxu0
    %v1835 = vadd.f32 0.0, %v1834
    %v1836 = vpop.f32.mrf.mxu0
    %1837 = vdwg.mxu0
    %1838 = vmatpush.bf16.msra.mxu0 %v1766
    %1839 = vmatpush.bf16.msra.mxu0 %v1762
    %1840 = vmatpush.bf16.msra.mxu0 %v1758
    %1841 = vmatpush.bf16.msra.mxu0 %v1754
    %1842 = vmatpush.bf16.msra.mxu0 %v1750
    %1843 = vmatpush.bf16.msra.mxu0 %v1746
    %1844 = vmatpush.bf16.msra.mxu0 %v1742
    %1845 = vmatpush.bf16.msra.mxu0 %v1738
    %1846 = vmatmul.bf16.gmra.mxu0 %v1605
    %v1847 = vpop.f32.mrf.mxu0
    %v1848 = vadd.f32 0.0, %v1847
    %v1849 = vpop.f32.mrf.mxu0
    %1850 = vdwg.mxu0
    %v1851 = vadd.f32 %v1386, %v1809
    %v1852 = vadd.f32 %v1399, %v1822
    %v1853 = vadd.f32 %v1412, %v1835
    %v1854 = vadd.f32 %v1425, %v1848
    %s1855 = scalar_lea.vmem %s0, 36
    %v1856 = vld [vmem:[%s1855] sm:$0xff]
    %v1857 = vld [vmem:[%s1855 + $0x8] sm:$0xf]
    %v1860 = vunpack.c.l.b16 %v1856
    %v1861 = vunpack.c.h.b16 %v1856
    %v1862 = vunpack.c.l.b16 %v1857
    %v1863 = vpack.c.b16 %v1860, %v1860
    %v1864 = vpack.c.b16 %v1861, %v1861
    %v1865 = vpack.c.b16 %v1862, %v1862
    %v1869 = vsel %vm591, %v1865, 0
    %1871 = vmatpush.bf16.msra.mxu0 %v459
    %1872 = vmatpush.bf16.msra.mxu0 %v455
    %1873 = vmatpush.bf16.msra.mxu0 %v451
    %1874 = vmatpush.bf16.msra.mxu0 %v447
    %1875 = vmatpush.bf16.msra.mxu0 %v443
    %1876 = vmatpush.bf16.msra.mxu0 %v439
    %1877 = vmatpush.bf16.msra.mxu0 %v435
    %1878 = vmatpush.bf16.msra.mxu0 %v431
    %1879 = vmatmul.bf16.gmra.mxu0 %v1863
    %v1880 = vpop.f32.mrf.mxu0
    %v1881 = vadd.f32 0.0, %v1880
    %v1882 = vpop.f32.mrf.mxu0
    %1883 = vdwg.mxu0
    %1884 = vmatpush.bf16.msra.mxu0 %v491
    %1885 = vmatpush.bf16.msra.mxu0 %v487
    %1886 = vmatpush.bf16.msra.mxu0 %v483
    %1887 = vmatpush.bf16.msra.mxu0 %v479
    %1888 = vmatpush.bf16.msra.mxu0 %v475
    %1889 = vmatpush.bf16.msra.mxu0 %v471
    %1890 = vmatpush.bf16.msra.mxu0 %v467
    %1891 = vmatpush.bf16.msra.mxu0 %v463
    %1892 = vmatmul.bf16.gmra.mxu0 %v1864
    %v1893 = vpop.f32.mrf.mxu0
    %v1894 = vadd.f32 %v1881, %v1893
    %v1895 = vpop.f32.mrf.mxu0
    %1896 = vdwg.mxu0
    %1897 = vmatpush.bf16.msra.mxu0 0
    %1898 = vmatpush.bf16.msra.mxu0 0
    %1899 = vmatpush.bf16.msra.mxu0 0
    %1900 = vmatpush.bf16.msra.mxu0 0
    %1901 = vmatpush.bf16.msra.mxu0 %v507
    %1902 = vmatpush.bf16.msra.mxu0 %v503
    %1903 = vmatpush.bf16.msra.mxu0 %v499
    %1904 = vmatpush.bf16.msra.mxu0 %v495
    %1905 = vmatmul.bf16.gmra.mxu0 %v1869
    %v1906 = vpop.f32.mrf.mxu0
    %v1907 = vadd.f32 %v1894, %v1906
    %v1908 = vpop.f32.mrf.mxu0
    %1909 = vdwg.mxu0
    %1910 = vmatpush.bf16.msra.mxu0 %v460
    %1911 = vmatpush.bf16.msra.mxu0 %v456
    %1912 = vmatpush.bf16.msra.mxu0 %v452
    %1913 = vmatpush.bf16.msra.mxu0 %v448
    %1914 = vmatpush.bf16.msra.mxu0 %v444
    %1915 = vmatpush.bf16.msra.mxu0 %v440
    %1916 = vmatpush.bf16.msra.mxu0 %v436
    %1917 = vmatpush.bf16.msra.mxu0 %v432
    %1918 = vmatmul.bf16.gmra.mxu0 %v1863
    %v1919 = vpop.f32.mrf.mxu0
    %v1920 = vadd.f32 0.0, %v1919
    %v1921 = vpop.f32.mrf.mxu0
    %1922 = vdwg.mxu0
    %1923 = vmatpush.bf16.msra.mxu0 %v492
    %1924 = vmatpush.bf16.msra.mxu0 %v488
    %1925 = vmatpush.bf16.msra.mxu0 %v484
    %1926 = vmatpush.bf16.msra.mxu0 %v480
    %1927 = vmatpush.bf16.msra.mxu0 %v476
    %1928 = vmatpush.bf16.msra.mxu0 %v472
    %1929 = vmatpush.bf16.msra.mxu0 %v468
    %1930 = vmatpush.bf16.msra.mxu0 %v464
    %1931 = vmatmul.bf16.gmra.mxu0 %v1864
    %v1932 = vpop.f32.mrf.mxu0
    %v1933 = vadd.f32 %v1920, %v1932
    %v1934 = vpop.f32.mrf.mxu0
    %1935 = vdwg.mxu0
    %1936 = vmatpush.bf16.msra.mxu0 0
    %1937 = vmatpush.bf16.msra.mxu0 0
    %1938 = vmatpush.bf16.msra.mxu0 0
    %1939 = vmatpush.bf16.msra.mxu0 0
    %1940 = vmatpush.bf16.msra.mxu0 %v508
    %1941 = vmatpush.bf16.msra.mxu0 %v504
    %1942 = vmatpush.bf16.msra.mxu0 %v500
    %1943 = vmatpush.bf16.msra.mxu0 %v496
    %1944 = vmatmul.bf16.gmra.mxu0 %v1869
    %v1945 = vpop.f32.mrf.mxu0
    %v1946 = vadd.f32 %v1933, %v1945
    %v1947 = vpop.f32.mrf.mxu0
    %1948 = vdwg.mxu0
    %1949 = vmatpush.bf16.msra.mxu0 %v461
    %1950 = vmatpush.bf16.msra.mxu0 %v457
    %1951 = vmatpush.bf16.msra.mxu0 %v453
    %1952 = vmatpush.bf16.msra.mxu0 %v449
    %1953 = vmatpush.bf16.msra.mxu0 %v445
    %1954 = vmatpush.bf16.msra.mxu0 %v441
    %1955 = vmatpush.bf16.msra.mxu0 %v437
    %1956 = vmatpush.bf16.msra.mxu0 %v433
    %1957 = vmatmul.bf16.gmra.mxu0 %v1863
    %v1958 = vpop.f32.mrf.mxu0
    %v1959 = vadd.f32 0.0, %v1958
    %v1960 = vpop.f32.mrf.mxu0
    %1961 = vdwg.mxu0
    %1962 = vmatpush.bf16.msra.mxu0 %v493
    %1963 = vmatpush.bf16.msra.mxu0 %v489
    %1964 = vmatpush.bf16.msra.mxu0 %v485
    %1965 = vmatpush.bf16.msra.mxu0 %v481
    %1966 = vmatpush.bf16.msra.mxu0 %v477
    %1967 = vmatpush.bf16.msra.mxu0 %v473
    %1968 = vmatpush.bf16.msra.mxu0 %v469
    %1969 = vmatpush.bf16.msra.mxu0 %v465
    %1970 = vmatmul.bf16.gmra.mxu0 %v1864
    %v1971 = vpop.f32.mrf.mxu0
    %v1972 = vadd.f32 %v1959, %v1971
    %v1973 = vpop.f32.mrf.mxu0
    %1974 = vdwg.mxu0
    %1975 = vmatpush.bf16.msra.mxu0 0
    %1976 = vmatpush.bf16.msra.mxu0 0
    %1977 = vmatpush.bf16.msra.mxu0 0
    %1978 = vmatpush.bf16.msra.mxu0 0
    %1979 = vmatpush.bf16.msra.mxu0 %v509
    %1980 = vmatpush.bf16.msra.mxu0 %v505
    %1981 = vmatpush.bf16.msra.mxu0 %v501
    %1982 = vmatpush.bf16.msra.mxu0 %v497
    %1983 = vmatmul.bf16.gmra.mxu0 %v1869
    %v1984 = vpop.f32.mrf.mxu0
    %v1985 = vadd.f32 %v1972, %v1984
    %v1986 = vpop.f32.mrf.mxu0
    %1987 = vdwg.mxu0
    %1988 = vmatpush.bf16.msra.mxu0 %v462
    %1989 = vmatpush.bf16.msra.mxu0 %v458
    %1990 = vmatpush.bf16.msra.mxu0 %v454
    %1991 = vmatpush.bf16.msra.mxu0 %v450
    %1992 = vmatpush.bf16.msra.mxu0 %v446
    %1993 = vmatpush.bf16.msra.mxu0 %v442
    %1994 = vmatpush.bf16.msra.mxu0 %v438
    %1995 = vmatpush.bf16.msra.mxu0 %v434
    %1996 = vmatmul.bf16.gmra.mxu0 %v1863
    %v1997 = vpop.f32.mrf.mxu0
    %v1998 = vadd.f32 0.0, %v1997
    %v1999 = vpop.f32.mrf.mxu0
    %2000 = vdwg.mxu0
    %2001 = vmatpush.bf16.msra.mxu0 %v494
    %2002 = vmatpush.bf16.msra.mxu0 %v490
    %2003 = vmatpush.bf16.msra.mxu0 %v486
    %2004 = vmatpush.bf16.msra.mxu0 %v482
    %2005 = vmatpush.bf16.msra.mxu0 %v478
    %2006 = vmatpush.bf16.msra.mxu0 %v474
    %2007 = vmatpush.bf16.msra.mxu0 %v470
    %2008 = vmatpush.bf16.msra.mxu0 %v466
    %2009 = vmatmul.bf16.gmra.mxu0 %v1864
    %v2010 = vpop.f32.mrf.mxu0
    %v2011 = vadd.f32 %v1998, %v2010
    %v2012 = vpop.f32.mrf.mxu0
    %2013 = vdwg.mxu0
    %2014 = vmatpush.bf16.msra.mxu0 0
    %2015 = vmatpush.bf16.msra.mxu0 0
    %2016 = vmatpush.bf16.msra.mxu0 0
    %2017 = vmatpush.bf16.msra.mxu0 0
    %2018 = vmatpush.bf16.msra.mxu0 %v510
    %2019 = vmatpush.bf16.msra.mxu0 %v506
    %2020 = vmatpush.bf16.msra.mxu0 %v502
    %2021 = vmatpush.bf16.msra.mxu0 %v498
    %2022 = vmatmul.bf16.gmra.mxu0 %v1869
    %v2023 = vpop.f32.mrf.mxu0
    %v2024 = vadd.f32 %v2011, %v2023
    %v2025 = vpop.f32.mrf.mxu0
    %2026 = vdwg.mxu0
    %v2027 = vmax.f32 %v1907, %v1946
    %v2028 = vmax.f32 %v1985, %v2024
    %v2029 = vmax.f32 %v2027, %v2028
    %v2030 = vadd.f32 %v2029, %v756
    %v2031 = vmax.f32 %v2030, 0.0
    %v2032 = vpack.c.bf16 %v2031, %v2031
    %s2033 = scalar_lea.vmem [#allocation6], 768
    %v2034 = vld [vmem:[%s2033] sm:$0xff]
    %v2035 = vld [vmem:[%s2033 + $0x8] sm:$0xff]
    %v2036 = vld [vmem:[%s2033 + $0x10] sm:$0xff]
    %v2037 = vld [vmem:[%s2033 + $0x18] sm:$0xff]
    %v2038 = vld [vmem:[%s2033 + $0x20] sm:$0xff]
    %v2039 = vld [vmem:[%s2033 + $0x28] sm:$0xff]
    %v2040 = vld [vmem:[%s2033 + $0x30] sm:$0xff]
    %v2041 = vld [vmem:[%s2033 + $0x38] sm:$0xff]
    %v2042 = vld [vmem:[%s2033 + $0x40] sm:$0xff]
    %v2043 = vld [vmem:[%s2033 + $0x48] sm:$0xff]
    %v2044 = vld [vmem:[%s2033 + $0x50] sm:$0xff]
    %v2045 = vld [vmem:[%s2033 + $0x58] sm:$0xff]
    %v2046 = vld [vmem:[%s2033 + $0x60] sm:$0xff]
    %v2047 = vld [vmem:[%s2033 + $0x68] sm:$0xff]
    %v2048 = vld [vmem:[%s2033 + $0x70] sm:$0xff]
    %v2049 = vld [vmem:[%s2033 + $0x78] sm:$0xff]
    %v2050 = vld [vmem:[%s2033 + $0x80] sm:$0xff]
    %v2051 = vld [vmem:[%s2033 + $0x88] sm:$0xff]
    %v2052 = vld [vmem:[%s2033 + $0x90] sm:$0xff]
    %v2053 = vld [vmem:[%s2033 + $0x98] sm:$0xff]
    %v2054 = vld [vmem:[%s2033 + $0xa0] sm:$0xff]
    %v2055 = vld [vmem:[%s2033 + $0xa8] sm:$0xff]
    %v2056 = vld [vmem:[%s2033 + $0xb0] sm:$0xff]
    %v2057 = vld [vmem:[%s2033 + $0xb8] sm:$0xff]
    %v2058 = vld [vmem:[%s2033 + $0xc0] sm:$0xff]
    %v2059 = vld [vmem:[%s2033 + $0xc8] sm:$0xff]
    %v2060 = vld [vmem:[%s2033 + $0xd0] sm:$0xff]
    %v2061 = vld [vmem:[%s2033 + $0xd8] sm:$0xff]
    %v2062 = vld [vmem:[%s2033 + $0xe0] sm:$0xff]
    %v2063 = vld [vmem:[%s2033 + $0xe8] sm:$0xff]
    %v2064 = vld [vmem:[%s2033 + $0xf0] sm:$0xff]
    %v2065 = vld [vmem:[%s2033 + $0xf8] sm:$0xff]
    %v2098 = vunpack.c.l.b16 %v2034
    %v2099 = vunpack.c.h.b16 %v2034
    %v2100 = vunpack.c.l.b16 %v2035
    %v2101 = vunpack.c.h.b16 %v2035
    %v2102 = vunpack.c.l.b16 %v2036
    %v2103 = vunpack.c.h.b16 %v2036
    %v2104 = vunpack.c.l.b16 %v2037
    %v2105 = vunpack.c.h.b16 %v2037
    %v2106 = vunpack.c.l.b16 %v2038
    %v2107 = vunpack.c.h.b16 %v2038
    %v2108 = vunpack.c.l.b16 %v2039
    %v2109 = vunpack.c.h.b16 %v2039
    %v2110 = vunpack.c.l.b16 %v2040
    %v2111 = vunpack.c.h.b16 %v2040
    %v2112 = vunpack.c.l.b16 %v2041
    %v2113 = vunpack.c.h.b16 %v2041
    %v2114 = vunpack.c.l.b16 %v2042
    %v2115 = vunpack.c.h.b16 %v2042
    %v2116 = vunpack.c.l.b16 %v2043
    %v2117 = vunpack.c.h.b16 %v2043
    %v2118 = vunpack.c.l.b16 %v2044
    %v2119 = vunpack.c.h.b16 %v2044
    %v2120 = vunpack.c.l.b16 %v2045
    %v2121 = vunpack.c.h.b16 %v2045
    %v2122 = vunpack.c.l.b16 %v2046
    %v2123 = vunpack.c.h.b16 %v2046
    %v2124 = vunpack.c.l.b16 %v2047
    %v2125 = vunpack.c.h.b16 %v2047
    %v2126 = vunpack.c.l.b16 %v2048
    %v2127 = vunpack.c.h.b16 %v2048
    %v2128 = vunpack.c.l.b16 %v2049
    %v2129 = vunpack.c.h.b16 %v2049
    %v2130 = vunpack.c.l.b16 %v2050
    %v2131 = vunpack.c.h.b16 %v2050
    %v2132 = vunpack.c.l.b16 %v2051
    %v2133 = vunpack.c.h.b16 %v2051
    %v2134 = vunpack.c.l.b16 %v2052
    %v2135 = vunpack.c.h.b16 %v2052
    %v2136 = vunpack.c.l.b16 %v2053
    %v2137 = vunpack.c.h.b16 %v2053
    %v2138 = vunpack.c.l.b16 %v2054
    %v2139 = vunpack.c.h.b16 %v2054
    %v2140 = vunpack.c.l.b16 %v2055
    %v2141 = vunpack.c.h.b16 %v2055
    %v2142 = vunpack.c.l.b16 %v2056
    %v2143 = vunpack.c.h.b16 %v2056
    %v2144 = vunpack.c.l.b16 %v2057
    %v2145 = vunpack.c.h.b16 %v2057
    %v2146 = vunpack.c.l.b16 %v2058
    %v2147 = vunpack.c.h.b16 %v2058
    %v2148 = vunpack.c.l.b16 %v2059
    %v2149 = vunpack.c.h.b16 %v2059
    %v2150 = vunpack.c.l.b16 %v2060
    %v2151 = vunpack.c.h.b16 %v2060
    %v2152 = vunpack.c.l.b16 %v2061
    %v2153 = vunpack.c.h.b16 %v2061
    %v2154 = vunpack.c.l.b16 %v2062
    %v2155 = vunpack.c.h.b16 %v2062
    %v2156 = vunpack.c.l.b16 %v2063
    %v2157 = vunpack.c.h.b16 %v2063
    %v2158 = vunpack.c.l.b16 %v2064
    %v2159 = vunpack.c.h.b16 %v2064
    %v2160 = vunpack.c.l.b16 %v2065
    %v2161 = vunpack.c.h.b16 %v2065
    %v2162 = vpack.c.b16 %v2102, %v2098
    %v2163 = vpack.c.b16 %v2103, %v2099
    %v2164 = vpack.c.b16 %v2104, %v2100
    %v2165 = vpack.c.b16 %v2105, %v2101
    %v2166 = vpack.c.b16 %v2110, %v2106
    %v2167 = vpack.c.b16 %v2111, %v2107
    %v2168 = vpack.c.b16 %v2112, %v2108
    %v2169 = vpack.c.b16 %v2113, %v2109
    %v2170 = vpack.c.b16 %v2118, %v2114
    %v2171 = vpack.c.b16 %v2119, %v2115
    %v2172 = vpack.c.b16 %v2120, %v2116
    %v2173 = vpack.c.b16 %v2121, %v2117
    %v2174 = vpack.c.b16 %v2126, %v2122
    %v2175 = vpack.c.b16 %v2127, %v2123
    %v2176 = vpack.c.b16 %v2128, %v2124
    %v2177 = vpack.c.b16 %v2129, %v2125
    %v2178 = vpack.c.b16 %v2134, %v2130
    %v2179 = vpack.c.b16 %v2135, %v2131
    %v2180 = vpack.c.b16 %v2136, %v2132
    %v2181 = vpack.c.b16 %v2137, %v2133
    %v2182 = vpack.c.b16 %v2142, %v2138
    %v2183 = vpack.c.b16 %v2143, %v2139
    %v2184 = vpack.c.b16 %v2144, %v2140
    %v2185 = vpack.c.b16 %v2145, %v2141
    %v2186 = vpack.c.b16 %v2150, %v2146
    %v2187 = vpack.c.b16 %v2151, %v2147
    %v2188 = vpack.c.b16 %v2152, %v2148
    %v2189 = vpack.c.b16 %v2153, %v2149
    %v2190 = vpack.c.b16 %v2158, %v2154
    %v2191 = vpack.c.b16 %v2159, %v2155
    %v2192 = vpack.c.b16 %v2160, %v2156
    %v2193 = vpack.c.b16 %v2161, %v2157
    %2226 = vmatpush.bf16.msra.mxu0 %v2190
    %2227 = vmatpush.bf16.msra.mxu0 %v2186
    %2228 = vmatpush.bf16.msra.mxu0 %v2182
    %2229 = vmatpush.bf16.msra.mxu0 %v2178
    %2230 = vmatpush.bf16.msra.mxu0 %v2174
    %2231 = vmatpush.bf16.msra.mxu0 %v2170
    %2232 = vmatpush.bf16.msra.mxu0 %v2166
    %2233 = vmatpush.bf16.msra.mxu0 %v2162
    %2234 = vmatmul.bf16.gmra.mxu0 %v2032
    %v2235 = vpop.f32.mrf.mxu0
    %v2236 = vadd.f32 0.0, %v2235
    %v2237 = vpop.f32.mrf.mxu0
    %2238 = vdwg.mxu0
    %2239 = vmatpush.bf16.msra.mxu0 %v2191
    %2240 = vmatpush.bf16.msra.mxu0 %v2187
    %2241 = vmatpush.bf16.msra.mxu0 %v2183
    %2242 = vmatpush.bf16.msra.mxu0 %v2179
    %2243 = vmatpush.bf16.msra.mxu0 %v2175
    %2244 = vmatpush.bf16.msra.mxu0 %v2171
    %2245 = vmatpush.bf16.msra.mxu0 %v2167
    %2246 = vmatpush.bf16.msra.mxu0 %v2163
    %2247 = vmatmul.bf16.gmra.mxu0 %v2032
    %v2248 = vpop.f32.mrf.mxu0
    %v2249 = vadd.f32 0.0, %v2248
    %v2250 = vpop.f32.mrf.mxu0
    %2251 = vdwg.mxu0
    %2252 = vmatpush.bf16.msra.mxu0 %v2192
    %2253 = vmatpush.bf16.msra.mxu0 %v2188
    %2254 = vmatpush.bf16.msra.mxu0 %v2184
    %2255 = vmatpush.bf16.msra.mxu0 %v2180
    %2256 = vmatpush.bf16.msra.mxu0 %v2176
    %2257 = vmatpush.bf16.msra.mxu0 %v2172
    %2258 = vmatpush.bf16.msra.mxu0 %v2168
    %2259 = vmatpush.bf16.msra.mxu0 %v2164
    %2260 = vmatmul.bf16.gmra.mxu0 %v2032
    %v2261 = vpop.f32.mrf.mxu0
    %v2262 = vadd.f32 0.0, %v2261
    %v2263 = vpop.f32.mrf.mxu0
    %2264 = vdwg.mxu0
    %2265 = vmatpush.bf16.msra.mxu0 %v2193
    %2266 = vmatpush.bf16.msra.mxu0 %v2189
    %2267 = vmatpush.bf16.msra.mxu0 %v2185
    %2268 = vmatpush.bf16.msra.mxu0 %v2181
    %2269 = vmatpush.bf16.msra.mxu0 %v2177
    %2270 = vmatpush.bf16.msra.mxu0 %v2173
    %2271 = vmatpush.bf16.msra.mxu0 %v2169
    %2272 = vmatpush.bf16.msra.mxu0 %v2165
    %2273 = vmatmul.bf16.gmra.mxu0 %v2032
    %v2274 = vpop.f32.mrf.mxu0
    %v2275 = vadd.f32 0.0, %v2274
    %v2276 = vpop.f32.mrf.mxu0
    %2277 = vdwg.mxu0
    %v2278 = vadd.f32 %v1851, %v2236
    %v2279 = vadd.f32 %v1852, %v2249
    %v2280 = vadd.f32 %v1853, %v2262
    %v2281 = vadd.f32 %v1854, %v2275
    %s2282 = scalar_lea.vmem %s0, 48
    %v2283 = vld [vmem:[%s2282] sm:$0xff]
    %v2284 = vld [vmem:[%s2282 + $0x8] sm:$0xf]
    %v2287 = vunpack.c.l.b16 %v2283
    %v2288 = vunpack.c.h.b16 %v2283
    %v2289 = vunpack.c.l.b16 %v2284
    %v2290 = vpack.c.b16 %v2287, %v2287
    %v2291 = vpack.c.b16 %v2288, %v2288
    %v2292 = vpack.c.b16 %v2289, %v2289
    %v2296 = vsel %vm591, %v2292, 0
    %2298 = vmatpush.bf16.msra.mxu0 %v459
    %2299 = vmatpush.bf16.msra.mxu0 %v455
    %2300 = vmatpush.bf16.msra.mxu0 %v451
    %2301 = vmatpush.bf16.msra.mxu0 %v447
    %2302 = vmatpush.bf16.msra.mxu0 %v443
    %2303 = vmatpush.bf16.msra.mxu0 %v439
    %2304 = vmatpush.bf16.msra.mxu0 %v435
    %2305 = vmatpush.bf16.msra.mxu0 %v431
    %2306 = vmatmul.bf16.gmra.mxu0 %v2290
    %v2307 = vpop.f32.mrf.mxu0
    %v2308 = vadd.f32 0.0, %v2307
    %v2309 = vpop.f32.mrf.mxu0
    %2310 = vdwg.mxu0
    %2311 = vmatpush.bf16.msra.mxu0 %v491
    %2312 = vmatpush.bf16.msra.mxu0 %v487
    %2313 = vmatpush.bf16.msra.mxu0 %v483
    %2314 = vmatpush.bf16.msra.mxu0 %v479
    %2315 = vmatpush.bf16.msra.mxu0 %v475
    %2316 = vmatpush.bf16.msra.mxu0 %v471
    %2317 = vmatpush.bf16.msra.mxu0 %v467
    %2318 = vmatpush.bf16.msra.mxu0 %v463
    %2319 = vmatmul.bf16.gmra.mxu0 %v2291
    %v2320 = vpop.f32.mrf.mxu0
    %v2321 = vadd.f32 %v2308, %v2320
    %v2322 = vpop.f32.mrf.mxu0
    %2323 = vdwg.mxu0
    %2324 = vmatpush.bf16.msra.mxu0 0
    %2325 = vmatpush.bf16.msra.mxu0 0
    %2326 = vmatpush.bf16.msra.mxu0 0
    %2327 = vmatpush.bf16.msra.mxu0 0
    %2328 = vmatpush.bf16.msra.mxu0 %v507
    %2329 = vmatpush.bf16.msra.mxu0 %v503
    %2330 = vmatpush.bf16.msra.mxu0 %v499
    %2331 = vmatpush.bf16.msra.mxu0 %v495
    %2332 = vmatmul.bf16.gmra.mxu0 %v2296
    %v2333 = vpop.f32.mrf.mxu0
    %v2334 = vadd.f32 %v2321, %v2333
    %v2335 = vpop.f32.mrf.mxu0
    %2336 = vdwg.mxu0
    %2337 = vmatpush.bf16.msra.mxu0 %v460
    %2338 = vmatpush.bf16.msra.mxu0 %v456
    %2339 = vmatpush.bf16.msra.mxu0 %v452
    %2340 = vmatpush.bf16.msra.mxu0 %v448
    %2341 = vmatpush.bf16.msra.mxu0 %v444
    %2342 = vmatpush.bf16.msra.mxu0 %v440
    %2343 = vmatpush.bf16.msra.mxu0 %v436
    %2344 = vmatpush.bf16.msra.mxu0 %v432
    %2345 = vmatmul.bf16.gmra.mxu0 %v2290
    %v2346 = vpop.f32.mrf.mxu0
    %v2347 = vadd.f32 0.0, %v2346
    %v2348 = vpop.f32.mrf.mxu0
    %2349 = vdwg.mxu0
    %2350 = vmatpush.bf16.msra.mxu0 %v492
    %2351 = vmatpush.bf16.msra.mxu0 %v488
    %2352 = vmatpush.bf16.msra.mxu0 %v484
    %2353 = vmatpush.bf16.msra.mxu0 %v480
    %2354 = vmatpush.bf16.msra.mxu0 %v476
    %2355 = vmatpush.bf16.msra.mxu0 %v472
    %2356 = vmatpush.bf16.msra.mxu0 %v468
    %2357 = vmatpush.bf16.msra.mxu0 %v464
    %2358 = vmatmul.bf16.gmra.mxu0 %v2291
    %v2359 = vpop.f32.mrf.mxu0
    %v2360 = vadd.f32 %v2347, %v2359
    %v2361 = vpop.f32.mrf.mxu0
    %2362 = vdwg.mxu0
    %2363 = vmatpush.bf16.msra.mxu0 0
    %2364 = vmatpush.bf16.msra.mxu0 0
    %2365 = vmatpush.bf16.msra.mxu0 0
    %2366 = vmatpush.bf16.msra.mxu0 0
    %2367 = vmatpush.bf16.msra.mxu0 %v508
    %2368 = vmatpush.bf16.msra.mxu0 %v504
    %2369 = vmatpush.bf16.msra.mxu0 %v500
    %2370 = vmatpush.bf16.msra.mxu0 %v496
    %2371 = vmatmul.bf16.gmra.mxu0 %v2296
    %v2372 = vpop.f32.mrf.mxu0
    %v2373 = vadd.f32 %v2360, %v2372
    %v2374 = vpop.f32.mrf.mxu0
    %2375 = vdwg.mxu0
    %2376 = vmatpush.bf16.msra.mxu0 %v461
    %2377 = vmatpush.bf16.msra.mxu0 %v457
    %2378 = vmatpush.bf16.msra.mxu0 %v453
    %2379 = vmatpush.bf16.msra.mxu0 %v449
    %2380 = vmatpush.bf16.msra.mxu0 %v445
    %2381 = vmatpush.bf16.msra.mxu0 %v441
    %2382 = vmatpush.bf16.msra.mxu0 %v437
    %2383 = vmatpush.bf16.msra.mxu0 %v433
    %2384 = vmatmul.bf16.gmra.mxu0 %v2290
    %v2385 = vpop.f32.mrf.mxu0
    %v2386 = vadd.f32 0.0, %v2385
    %v2387 = vpop.f32.mrf.mxu0
    %2388 = vdwg.mxu0
    %2389 = vmatpush.bf16.msra.mxu0 %v493
    %2390 = vmatpush.bf16.msra.mxu0 %v489
    %2391 = vmatpush.bf16.msra.mxu0 %v485
    %2392 = vmatpush.bf16.msra.mxu0 %v481
    %2393 = vmatpush.bf16.msra.mxu0 %v477
    %2394 = vmatpush.bf16.msra.mxu0 %v473
    %2395 = vmatpush.bf16.msra.mxu0 %v469
    %2396 = vmatpush.bf16.msra.mxu0 %v465
    %2397 = vmatmul.bf16.gmra.mxu0 %v2291
    %v2398 = vpop.f32.mrf.mxu0
    %v2399 = vadd.f32 %v2386, %v2398
    %v2400 = vpop.f32.mrf.mxu0
    %2401 = vdwg.mxu0
    %2402 = vmatpush.bf16.msra.mxu0 0
    %2403 = vmatpush.bf16.msra.mxu0 0
    %2404 = vmatpush.bf16.msra.mxu0 0
    %2405 = vmatpush.bf16.msra.mxu0 0
    %2406 = vmatpush.bf16.msra.mxu0 %v509
    %2407 = vmatpush.bf16.msra.mxu0 %v505
    %2408 = vmatpush.bf16.msra.mxu0 %v501
    %2409 = vmatpush.bf16.msra.mxu0 %v497
    %2410 = vmatmul.bf16.gmra.mxu0 %v2296
    %v2411 = vpop.f32.mrf.mxu0
    %v2412 = vadd.f32 %v2399, %v2411
    %v2413 = vpop.f32.mrf.mxu0
    %2414 = vdwg.mxu0
    %2415 = vmatpush.bf16.msra.mxu0 %v462
    %2416 = vmatpush.bf16.msra.mxu0 %v458
    %2417 = vmatpush.bf16.msra.mxu0 %v454
    %2418 = vmatpush.bf16.msra.mxu0 %v450
    %2419 = vmatpush.bf16.msra.mxu0 %v446
    %2420 = vmatpush.bf16.msra.mxu0 %v442
    %2421 = vmatpush.bf16.msra.mxu0 %v438
    %2422 = vmatpush.bf16.msra.mxu0 %v434
    %2423 = vmatmul.bf16.gmra.mxu0 %v2290
    %v2424 = vpop.f32.mrf.mxu0
    %v2425 = vadd.f32 0.0, %v2424
    %v2426 = vpop.f32.mrf.mxu0
    %2427 = vdwg.mxu0
    %2428 = vmatpush.bf16.msra.mxu0 %v494
    %2429 = vmatpush.bf16.msra.mxu0 %v490
    %2430 = vmatpush.bf16.msra.mxu0 %v486
    %2431 = vmatpush.bf16.msra.mxu0 %v482
    %2432 = vmatpush.bf16.msra.mxu0 %v478
    %2433 = vmatpush.bf16.msra.mxu0 %v474
    %2434 = vmatpush.bf16.msra.mxu0 %v470
    %2435 = vmatpush.bf16.msra.mxu0 %v466
    %2436 = vmatmul.bf16.gmra.mxu0 %v2291
    %v2437 = vpop.f32.mrf.mxu0
    %v2438 = vadd.f32 %v2425, %v2437
    %v2439 = vpop.f32.mrf.mxu0
    %2440 = vdwg.mxu0
    %2441 = vmatpush.bf16.msra.mxu0 0
    %2442 = vmatpush.bf16.msra.mxu0 0
    %2443 = vmatpush.bf16.msra.mxu0 0
    %2444 = vmatpush.bf16.msra.mxu0 0
    %2445 = vmatpush.bf16.msra.mxu0 %v510
    %2446 = vmatpush.bf16.msra.mxu0 %v506
    %2447 = vmatpush.bf16.msra.mxu0 %v502
    %2448 = vmatpush.bf16.msra.mxu0 %v498
    %2449 = vmatmul.bf16.gmra.mxu0 %v2296
    %v2450 = vpop.f32.mrf.mxu0
    %v2451 = vadd.f32 %v2438, %v2450
    %v2452 = vpop.f32.mrf.mxu0
    %2453 = vdwg.mxu0
    %v2454 = vmax.f32 %v2334, %v2373
    %v2455 = vmax.f32 %v2412, %v2451
    %v2456 = vmax.f32 %v2454, %v2455
    %v2457 = vadd.f32 %v2456, %v756
    %v2458 = vmax.f32 %v2457, 0.0
    %v2459 = vpack.c.bf16 %v2458, %v2458
    %s2460 = scalar_lea.vmem [#allocation6], 1024
    %v2461 = vld [vmem:[%s2460] sm:$0xff]
    %v2462 = vld [vmem:[%s2460 + $0x8] sm:$0xff]
    %v2463 = vld [vmem:[%s2460 + $0x10] sm:$0xff]
    %v2464 = vld [vmem:[%s2460 + $0x18] sm:$0xff]
    %v2465 = vld [vmem:[%s2460 + $0x20] sm:$0xff]
    %v2466 = vld [vmem:[%s2460 + $0x28] sm:$0xff]
    %v2467 = vld [vmem:[%s2460 + $0x30] sm:$0xff]
    %v2468 = vld [vmem:[%s2460 + $0x38] sm:$0xff]
    %v2469 = vld [vmem:[%s2460 + $0x40] sm:$0xff]
    %v2470 = vld [vmem:[%s2460 + $0x48] sm:$0xff]
    %v2471 = vld [vmem:[%s2460 + $0x50] sm:$0xff]
    %v2472 = vld [vmem:[%s2460 + $0x58] sm:$0xff]
    %v2473 = vld [vmem:[%s2460 + $0x60] sm:$0xff]
    %v2474 = vld [vmem:[%s2460 + $0x68] sm:$0xff]
    %v2475 = vld [vmem:[%s2460 + $0x70] sm:$0xff]
    %v2476 = vld [vmem:[%s2460 + $0x78] sm:$0xff]
    %v2477 = vld [vmem:[%s2460 + $0x80] sm:$0xff]
    %v2478 = vld [vmem:[%s2460 + $0x88] sm:$0xff]
    %v2479 = vld [vmem:[%s2460 + $0x90] sm:$0xff]
    %v2480 = vld [vmem:[%s2460 + $0x98] sm:$0xff]
    %v2481 = vld [vmem:[%s2460 + $0xa0] sm:$0xff]
    %v2482 = vld [vmem:[%s2460 + $0xa8] sm:$0xff]
    %v2483 = vld [vmem:[%s2460 + $0xb0] sm:$0xff]
    %v2484 = vld [vmem:[%s2460 + $0xb8] sm:$0xff]
    %v2485 = vld [vmem:[%s2460 + $0xc0] sm:$0xff]
    %v2486 = vld [vmem:[%s2460 + $0xc8] sm:$0xff]
    %v2487 = vld [vmem:[%s2460 + $0xd0] sm:$0xff]
    %v2488 = vld [vmem:[%s2460 + $0xd8] sm:$0xff]
    %v2489 = vld [vmem:[%s2460 + $0xe0] sm:$0xff]
    %v2490 = vld [vmem:[%s2460 + $0xe8] sm:$0xff]
    %v2491 = vld [vmem:[%s2460 + $0xf0] sm:$0xff]
    %v2492 = vld [vmem:[%s2460 + $0xf8] sm:$0xff]
    %v2525 = vunpack.c.l.b16 %v2461
    %v2526 = vunpack.c.h.b16 %v2461
    %v2527 = vunpack.c.l.b16 %v2462
    %v2528 = vunpack.c.h.b16 %v2462
    %v2529 = vunpack.c.l.b16 %v2463
    %v2530 = vunpack.c.h.b16 %v2463
    %v2531 = vunpack.c.l.b16 %v2464
    %v2532 = vunpack.c.h.b16 %v2464
    %v2533 = vunpack.c.l.b16 %v2465
    %v2534 = vunpack.c.h.b16 %v2465
    %v2535 = vunpack.c.l.b16 %v2466
    %v2536 = vunpack.c.h.b16 %v2466
    %v2537 = vunpack.c.l.b16 %v2467
    %v2538 = vunpack.c.h.b16 %v2467
    %v2539 = vunpack.c.l.b16 %v2468
    %v2540 = vunpack.c.h.b16 %v2468
    %v2541 = vunpack.c.l.b16 %v2469
    %v2542 = vunpack.c.h.b16 %v2469
    %v2543 = vunpack.c.l.b16 %v2470
    %v2544 = vunpack.c.h.b16 %v2470
    %v2545 = vunpack.c.l.b16 %v2471
    %v2546 = vunpack.c.h.b16 %v2471
    %v2547 = vunpack.c.l.b16 %v2472
    %v2548 = vunpack.c.h.b16 %v2472
    %v2549 = vunpack.c.l.b16 %v2473
    %v2550 = vunpack.c.h.b16 %v2473
    %v2551 = vunpack.c.l.b16 %v2474
    %v2552 = vunpack.c.h.b16 %v2474
    %v2553 = vunpack.c.l.b16 %v2475
    %v2554 = vunpack.c.h.b16 %v2475
    %v2555 = vunpack.c.l.b16 %v2476
    %v2556 = vunpack.c.h.b16 %v2476
    %v2557 = vunpack.c.l.b16 %v2477
    %v2558 = vunpack.c.h.b16 %v2477
    %v2559 = vunpack.c.l.b16 %v2478
    %v2560 = vunpack.c.h.b16 %v2478
    %v2561 = vunpack.c.l.b16 %v2479
    %v2562 = vunpack.c.h.b16 %v2479
    %v2563 = vunpack.c.l.b16 %v2480
    %v2564 = vunpack.c.h.b16 %v2480
    %v2565 = vunpack.c.l.b16 %v2481
    %v2566 = vunpack.c.h.b16 %v2481
    %v2567 = vunpack.c.l.b16 %v2482
    %v2568 = vunpack.c.h.b16 %v2482
    %v2569 = vunpack.c.l.b16 %v2483
    %v2570 = vunpack.c.h.b16 %v2483
    %v2571 = vunpack.c.l.b16 %v2484
    %v2572 = vunpack.c.h.b16 %v2484
    %v2573 = vunpack.c.l.b16 %v2485
    %v2574 = vunpack.c.h.b16 %v2485
    %v2575 = vunpack.c.l.b16 %v2486
    %v2576 = vunpack.c.h.b16 %v2486
    %v2577 = vunpack.c.l.b16 %v2487
    %v2578 = vunpack.c.h.b16 %v2487
    %v2579 = vunpack.c.l.b16 %v2488
    %v2580 = vunpack.c.h.b16 %v2488
    %v2581 = vunpack.c.l.b16 %v2489
    %v2582 = vunpack.c.h.b16 %v2489
    %v2583 = vunpack.c.l.b16 %v2490
    %v2584 = vunpack.c.h.b16 %v2490
    %v2585 = vunpack.c.l.b16 %v2491
    %v2586 = vunpack.c.h.b16 %v2491
    %v2587 = vunpack.c.l.b16 %v2492
    %v2588 = vunpack.c.h.b16 %v2492
    %v2589 = vpack.c.b16 %v2529, %v2525
    %v2590 = vpack.c.b16 %v2530, %v2526
    %v2591 = vpack.c.b16 %v2531, %v2527
    %v2592 = vpack.c.b16 %v2532, %v2528
    %v2593 = vpack.c.b16 %v2537, %v2533
    %v2594 = vpack.c.b16 %v2538, %v2534
    %v2595 = vpack.c.b16 %v2539, %v2535
    %v2596 = vpack.c.b16 %v2540, %v2536
    %v2597 = vpack.c.b16 %v2545, %v2541
    %v2598 = vpack.c.b16 %v2546, %v2542
    %v2599 = vpack.c.b16 %v2547, %v2543
    %v2600 = vpack.c.b16 %v2548, %v2544
    %v2601 = vpack.c.b16 %v2553, %v2549
    %v2602 = vpack.c.b16 %v2554, %v2550
    %v2603 = vpack.c.b16 %v2555, %v2551
    %v2604 = vpack.c.b16 %v2556, %v2552
    %v2605 = vpack.c.b16 %v2561, %v2557
    %v2606 = vpack.c.b16 %v2562, %v2558
    %v2607 = vpack.c.b16 %v2563, %v2559
    %v2608 = vpack.c.b16 %v2564, %v2560
    %v2609 = vpack.c.b16 %v2569, %v2565
    %v2610 = vpack.c.b16 %v2570, %v2566
    %v2611 = vpack.c.b16 %v2571, %v2567
    %v2612 = vpack.c.b16 %v2572, %v2568
    %v2613 = vpack.c.b16 %v2577, %v2573
    %v2614 = vpack.c.b16 %v2578, %v2574
    %v2615 = vpack.c.b16 %v2579, %v2575
    %v2616 = vpack.c.b16 %v2580, %v2576
    %v2617 = vpack.c.b16 %v2585, %v2581
    %v2618 = vpack.c.b16 %v2586, %v2582
    %v2619 = vpack.c.b16 %v2587, %v2583
    %v2620 = vpack.c.b16 %v2588, %v2584
    %2653 = vmatpush.bf16.msra.mxu0 %v2617
    %2654 = vmatpush.bf16.msra.mxu0 %v2613
    %2655 = vmatpush.bf16.msra.mxu0 %v2609
    %2656 = vmatpush.bf16.msra.mxu0 %v2605
    %2657 = vmatpush.bf16.msra.mxu0 %v2601
    %2658 = vmatpush.bf16.msra.mxu0 %v2597
    %2659 = vmatpush.bf16.msra.mxu0 %v2593
    %2660 = vmatpush.bf16.msra.mxu0 %v2589
    %2661 = vmatmul.bf16.gmra.mxu0 %v2459
    %v2662 = vpop.f32.mrf.mxu0
    %v2663 = vadd.f32 0.0, %v2662
    %v2664 = vpop.f32.mrf.mxu0
    %2665 = vdwg.mxu0
    %2666 = vmatpush.bf16.msra.mxu0 %v2618
    %2667 = vmatpush.bf16.msra.mxu0 %v2614
    %2668 = vmatpush.bf16.msra.mxu0 %v2610
    %2669 = vmatpush.bf16.msra.mxu0 %v2606
    %2670 = vmatpush.bf16.msra.mxu0 %v2602
    %2671 = vmatpush.bf16.msra.mxu0 %v2598
    %2672 = vmatpush.bf16.msra.mxu0 %v2594
    %2673 = vmatpush.bf16.msra.mxu0 %v2590
    %2674 = vmatmul.bf16.gmra.mxu0 %v2459
    %v2675 = vpop.f32.mrf.mxu0
    %v2676 = vadd.f32 0.0, %v2675
    %v2677 = vpop.f32.mrf.mxu0
    %2678 = vdwg.mxu0
    %2679 = vmatpush.bf16.msra.mxu0 %v2619
    %2680 = vmatpush.bf16.msra.mxu0 %v2615
    %2681 = vmatpush.bf16.msra.mxu0 %v2611
    %2682 = vmatpush.bf16.msra.mxu0 %v2607
    %2683 = vmatpush.bf16.msra.mxu0 %v2603
    %2684 = vmatpush.bf16.msra.mxu0 %v2599
    %2685 = vmatpush.bf16.msra.mxu0 %v2595
    %2686 = vmatpush.bf16.msra.mxu0 %v2591
    %2687 = vmatmul.bf16.gmra.mxu0 %v2459
    %v2688 = vpop.f32.mrf.mxu0
    %v2689 = vadd.f32 0.0, %v2688
    %v2690 = vpop.f32.mrf.mxu0
    %2691 = vdwg.mxu0
    %2692 = vmatpush.bf16.msra.mxu0 %v2620
    %2693 = vmatpush.bf16.msra.mxu0 %v2616
    %2694 = vmatpush.bf16.msra.mxu0 %v2612
    %2695 = vmatpush.bf16.msra.mxu0 %v2608
    %2696 = vmatpush.bf16.msra.mxu0 %v2604
    %2697 = vmatpush.bf16.msra.mxu0 %v2600
    %2698 = vmatpush.bf16.msra.mxu0 %v2596
    %2699 = vmatpush.bf16.msra.mxu0 %v2592
    %2700 = vmatmul.bf16.gmra.mxu0 %v2459
    %v2701 = vpop.f32.mrf.mxu0
    %v2702 = vadd.f32 0.0, %v2701
    %v2703 = vpop.f32.mrf.mxu0
    %2704 = vdwg.mxu0
    %v2705 = vadd.f32 %v2278, %v2663
    %v2706 = vadd.f32 %v2279, %v2676
    %v2707 = vadd.f32 %v2280, %v2689
    %v2708 = vadd.f32 %v2281, %v2702
    %s2709 = scalar_lea.vmem %s0, 60
    %v2710 = vld [vmem:[%s2709] sm:$0xff]
    %v2711 = vld [vmem:[%s2709 + $0x8] sm:$0xf]
    %v2714 = vunpack.c.l.b16 %v2710
    %v2715 = vunpack.c.h.b16 %v2710
    %v2716 = vunpack.c.l.b16 %v2711
    %v2717 = vpack.c.b16 %v2714, %v2714
    %v2718 = vpack.c.b16 %v2715, %v2715
    %v2719 = vpack.c.b16 %v2716, %v2716
    %v2723 = vsel %vm591, %v2719, 0
    %2725 = vmatpush.bf16.msra.mxu0 %v459
    %2726 = vmatpush.bf16.msra.mxu0 %v455
    %2727 = vmatpush.bf16.msra.mxu0 %v451
    %2728 = vmatpush.bf16.msra.mxu0 %v447
    %2729 = vmatpush.bf16.msra.mxu0 %v443
    %2730 = vmatpush.bf16.msra.mxu0 %v439
    %2731 = vmatpush.bf16.msra.mxu0 %v435
    %2732 = vmatpush.bf16.msra.mxu0 %v431
    %2733 = vmatmul.bf16.gmra.mxu0 %v2717
    %v2734 = vpop.f32.mrf.mxu0
    %v2735 = vadd.f32 0.0, %v2734
    %v2736 = vpop.f32.mrf.mxu0
    %2737 = vdwg.mxu0
    %2738 = vmatpush.bf16.msra.mxu0 %v491
    %2739 = vmatpush.bf16.msra.mxu0 %v487
    %2740 = vmatpush.bf16.msra.mxu0 %v483
    %2741 = vmatpush.bf16.msra.mxu0 %v479
    %2742 = vmatpush.bf16.msra.mxu0 %v475
    %2743 = vmatpush.bf16.msra.mxu0 %v471
    %2744 = vmatpush.bf16.msra.mxu0 %v467
    %2745 = vmatpush.bf16.msra.mxu0 %v463
    %2746 = vmatmul.bf16.gmra.mxu0 %v2718
    %v2747 = vpop.f32.mrf.mxu0
    %v2748 = vadd.f32 %v2735, %v2747
    %v2749 = vpop.f32.mrf.mxu0
    %2750 = vdwg.mxu0
    %2751 = vmatpush.bf16.msra.mxu0 0
    %2752 = vmatpush.bf16.msra.mxu0 0
    %2753 = vmatpush.bf16.msra.mxu0 0
    %2754 = vmatpush.bf16.msra.mxu0 0
    %2755 = vmatpush.bf16.msra.mxu0 %v507
    %2756 = vmatpush.bf16.msra.mxu0 %v503
    %2757 = vmatpush.bf16.msra.mxu0 %v499
    %2758 = vmatpush.bf16.msra.mxu0 %v495
    %2759 = vmatmul.bf16.gmra.mxu0 %v2723
    %v2760 = vpop.f32.mrf.mxu0
    %v2761 = vadd.f32 %v2748, %v2760
    %v2762 = vpop.f32.mrf.mxu0
    %2763 = vdwg.mxu0
    %2764 = vmatpush.bf16.msra.mxu0 %v460
    %2765 = vmatpush.bf16.msra.mxu0 %v456
    %2766 = vmatpush.bf16.msra.mxu0 %v452
    %2767 = vmatpush.bf16.msra.mxu0 %v448
    %2768 = vmatpush.bf16.msra.mxu0 %v444
    %2769 = vmatpush.bf16.msra.mxu0 %v440
    %2770 = vmatpush.bf16.msra.mxu0 %v436
    %2771 = vmatpush.bf16.msra.mxu0 %v432
    %2772 = vmatmul.bf16.gmra.mxu0 %v2717
    %v2773 = vpop.f32.mrf.mxu0
    %v2774 = vadd.f32 0.0, %v2773
    %v2775 = vpop.f32.mrf.mxu0
    %2776 = vdwg.mxu0
    %2777 = vmatpush.bf16.msra.mxu0 %v492
    %2778 = vmatpush.bf16.msra.mxu0 %v488
    %2779 = vmatpush.bf16.msra.mxu0 %v484
    %2780 = vmatpush.bf16.msra.mxu0 %v480
    %2781 = vmatpush.bf16.msra.mxu0 %v476
    %2782 = vmatpush.bf16.msra.mxu0 %v472
    %2783 = vmatpush.bf16.msra.mxu0 %v468
    %2784 = vmatpush.bf16.msra.mxu0 %v464
    %2785 = vmatmul.bf16.gmra.mxu0 %v2718
    %v2786 = vpop.f32.mrf.mxu0
    %v2787 = vadd.f32 %v2774, %v2786
    %v2788 = vpop.f32.mrf.mxu0
    %2789 = vdwg.mxu0
    %2790 = vmatpush.bf16.msra.mxu0 0
    %2791 = vmatpush.bf16.msra.mxu0 0
    %2792 = vmatpush.bf16.msra.mxu0 0
    %2793 = vmatpush.bf16.msra.mxu0 0
    %2794 = vmatpush.bf16.msra.mxu0 %v508
    %2795 = vmatpush.bf16.msra.mxu0 %v504
    %2796 = vmatpush.bf16.msra.mxu0 %v500
    %2797 = vmatpush.bf16.msra.mxu0 %v496
    %2798 = vmatmul.bf16.gmra.mxu0 %v2723
    %v2799 = vpop.f32.mrf.mxu0
    %v2800 = vadd.f32 %v2787, %v2799
    %v2801 = vpop.f32.mrf.mxu0
    %2802 = vdwg.mxu0
    %2803 = vmatpush.bf16.msra.mxu0 %v461
    %2804 = vmatpush.bf16.msra.mxu0 %v457
    %2805 = vmatpush.bf16.msra.mxu0 %v453
    %2806 = vmatpush.bf16.msra.mxu0 %v449
    %2807 = vmatpush.bf16.msra.mxu0 %v445
    %2808 = vmatpush.bf16.msra.mxu0 %v441
    %2809 = vmatpush.bf16.msra.mxu0 %v437
    %2810 = vmatpush.bf16.msra.mxu0 %v433
    %2811 = vmatmul.bf16.gmra.mxu0 %v2717
    %v2812 = vpop.f32.mrf.mxu0
    %v2813 = vadd.f32 0.0, %v2812
    %v2814 = vpop.f32.mrf.mxu0
    %2815 = vdwg.mxu0
    %2816 = vmatpush.bf16.msra.mxu0 %v493
    %2817 = vmatpush.bf16.msra.mxu0 %v489
    %2818 = vmatpush.bf16.msra.mxu0 %v485
    %2819 = vmatpush.bf16.msra.mxu0 %v481
    %2820 = vmatpush.bf16.msra.mxu0 %v477
    %2821 = vmatpush.bf16.msra.mxu0 %v473
    %2822 = vmatpush.bf16.msra.mxu0 %v469
    %2823 = vmatpush.bf16.msra.mxu0 %v465
    %2824 = vmatmul.bf16.gmra.mxu0 %v2718
    %v2825 = vpop.f32.mrf.mxu0
    %v2826 = vadd.f32 %v2813, %v2825
    %v2827 = vpop.f32.mrf.mxu0
    %2828 = vdwg.mxu0
    %2829 = vmatpush.bf16.msra.mxu0 0
    %2830 = vmatpush.bf16.msra.mxu0 0
    %2831 = vmatpush.bf16.msra.mxu0 0
    %2832 = vmatpush.bf16.msra.mxu0 0
    %2833 = vmatpush.bf16.msra.mxu0 %v509
    %2834 = vmatpush.bf16.msra.mxu0 %v505
    %2835 = vmatpush.bf16.msra.mxu0 %v501
    %2836 = vmatpush.bf16.msra.mxu0 %v497
    %2837 = vmatmul.bf16.gmra.mxu0 %v2723
    %v2838 = vpop.f32.mrf.mxu0
    %v2839 = vadd.f32 %v2826, %v2838
    %v2840 = vpop.f32.mrf.mxu0
    %2841 = vdwg.mxu0
    %2842 = vmatpush.bf16.msra.mxu0 %v462
    %2843 = vmatpush.bf16.msra.mxu0 %v458
    %2844 = vmatpush.bf16.msra.mxu0 %v454
    %2845 = vmatpush.bf16.msra.mxu0 %v450
    %2846 = vmatpush.bf16.msra.mxu0 %v446
    %2847 = vmatpush.bf16.msra.mxu0 %v442
    %2848 = vmatpush.bf16.msra.mxu0 %v438
    %2849 = vmatpush.bf16.msra.mxu0 %v434
    %2850 = vmatmul.bf16.gmra.mxu0 %v2717
    %v2851 = vpop.f32.mrf.mxu0
    %v2852 = vadd.f32 0.0, %v2851
    %v2853 = vpop.f32.mrf.mxu0
    %2854 = vdwg.mxu0
    %2855 = vmatpush.bf16.msra.mxu0 %v494
    %2856 = vmatpush.bf16.msra.mxu0 %v490
    %2857 = vmatpush.bf16.msra.mxu0 %v486
    %2858 = vmatpush.bf16.msra.mxu0 %v482
    %2859 = vmatpush.bf16.msra.mxu0 %v478
    %2860 = vmatpush.bf16.msra.mxu0 %v474
    %2861 = vmatpush.bf16.msra.mxu0 %v470
    %2862 = vmatpush.bf16.msra.mxu0 %v466
    %2863 = vmatmul.bf16.gmra.mxu0 %v2718
    %v2864 = vpop.f32.mrf.mxu0
    %v2865 = vadd.f32 %v2852, %v2864
    %v2866 = vpop.f32.mrf.mxu0
    %2867 = vdwg.mxu0
    %2868 = vmatpush.bf16.msra.mxu0 0
    %2869 = vmatpush.bf16.msra.mxu0 0
    %2870 = vmatpush.bf16.msra.mxu0 0
    %2871 = vmatpush.bf16.msra.mxu0 0
    %2872 = vmatpush.bf16.msra.mxu0 %v510
    %2873 = vmatpush.bf16.msra.mxu0 %v506
    %2874 = vmatpush.bf16.msra.mxu0 %v502
    %2875 = vmatpush.bf16.msra.mxu0 %v498
    %2876 = vmatmul.bf16.gmra.mxu0 %v2723
    %v2877 = vpop.f32.mrf.mxu0
    %v2878 = vadd.f32 %v2865, %v2877
    %v2879 = vpop.f32.mrf.mxu0
    %2880 = vdwg.mxu0
    %v2881 = vmax.f32 %v2761, %v2800
    %v2882 = vmax.f32 %v2839, %v2878
    %v2883 = vmax.f32 %v2881, %v2882
    %v2884 = vadd.f32 %v2883, %v756
    %v2885 = vmax.f32 %v2884, 0.0
    %v2886 = vpack.c.bf16 %v2885, %v2885
    %s2887 = scalar_lea.vmem [#allocation6], 1280
    %v2888 = vld [vmem:[%s2887] sm:$0xff]
    %v2889 = vld [vmem:[%s2887 + $0x8] sm:$0xff]
    %v2890 = vld [vmem:[%s2887 + $0x10] sm:$0xff]
    %v2891 = vld [vmem:[%s2887 + $0x18] sm:$0xff]
    %v2892 = vld [vmem:[%s2887 + $0x20] sm:$0xff]
    %v2893 = vld [vmem:[%s2887 + $0x28] sm:$0xff]
    %v2894 = vld [vmem:[%s2887 + $0x30] sm:$0xff]
    %v2895 = vld [vmem:[%s2887 + $0x38] sm:$0xff]
    %v2896 = vld [vmem:[%s2887 + $0x40] sm:$0xff]
    %v2897 = vld [vmem:[%s2887 + $0x48] sm:$0xff]
    %v2898 = vld [vmem:[%s2887 + $0x50] sm:$0xff]
    %v2899 = vld [vmem:[%s2887 + $0x58] sm:$0xff]
    %v2900 = vld [vmem:[%s2887 + $0x60] sm:$0xff]
    %v2901 = vld [vmem:[%s2887 + $0x68] sm:$0xff]
    %v2902 = vld [vmem:[%s2887 + $0x70] sm:$0xff]
    %v2903 = vld [vmem:[%s2887 + $0x78] sm:$0xff]
    %v2904 = vld [vmem:[%s2887 + $0x80] sm:$0xff]
    %v2905 = vld [vmem:[%s2887 + $0x88] sm:$0xff]
    %v2906 = vld [vmem:[%s2887 + $0x90] sm:$0xff]
    %v2907 = vld [vmem:[%s2887 + $0x98] sm:$0xff]
    %v2908 = vld [vmem:[%s2887 + $0xa0] sm:$0xff]
    %v2909 = vld [vmem:[%s2887 + $0xa8] sm:$0xff]
    %v2910 = vld [vmem:[%s2887 + $0xb0] sm:$0xff]
    %v2911 = vld [vmem:[%s2887 + $0xb8] sm:$0xff]
    %v2912 = vld [vmem:[%s2887 + $0xc0] sm:$0xff]
    %v2913 = vld [vmem:[%s2887 + $0xc8] sm:$0xff]
    %v2914 = vld [vmem:[%s2887 + $0xd0] sm:$0xff]
    %v2915 = vld [vmem:[%s2887 + $0xd8] sm:$0xff]
    %v2916 = vld [vmem:[%s2887 + $0xe0] sm:$0xff]
    %v2917 = vld [vmem:[%s2887 + $0xe8] sm:$0xff]
    %v2918 = vld [vmem:[%s2887 + $0xf0] sm:$0xff]
    %v2919 = vld [vmem:[%s2887 + $0xf8] sm:$0xff]
    %v2952 = vunpack.c.l.b16 %v2888
    %v2953 = vunpack.c.h.b16 %v2888
    %v2954 = vunpack.c.l.b16 %v2889
    %v2955 = vunpack.c.h.b16 %v2889
    %v2956 = vunpack.c.l.b16 %v2890
    %v2957 = vunpack.c.h.b16 %v2890
    %v2958 = vunpack.c.l.b16 %v2891
    %v2959 = vunpack.c.h.b16 %v2891
    %v2960 = vunpack.c.l.b16 %v2892
    %v2961 = vunpack.c.h.b16 %v2892
    %v2962 = vunpack.c.l.b16 %v2893
    %v2963 = vunpack.c.h.b16 %v2893
    %v2964 = vunpack.c.l.b16 %v2894
    %v2965 = vunpack.c.h.b16 %v2894
    %v2966 = vunpack.c.l.b16 %v2895
    %v2967 = vunpack.c.h.b16 %v2895
    %v2968 = vunpack.c.l.b16 %v2896
    %v2969 = vunpack.c.h.b16 %v2896
    %v2970 = vunpack.c.l.b16 %v2897
    %v2971 = vunpack.c.h.b16 %v2897
    %v2972 = vunpack.c.l.b16 %v2898
    %v2973 = vunpack.c.h.b16 %v2898
    %v2974 = vunpack.c.l.b16 %v2899
    %v2975 = vunpack.c.h.b16 %v2899
    %v2976 = vunpack.c.l.b16 %v2900
    %v2977 = vunpack.c.h.b16 %v2900
    %v2978 = vunpack.c.l.b16 %v2901
    %v2979 = vunpack.c.h.b16 %v2901
    %v2980 = vunpack.c.l.b16 %v2902
    %v2981 = vunpack.c.h.b16 %v2902
    %v2982 = vunpack.c.l.b16 %v2903
    %v2983 = vunpack.c.h.b16 %v2903
    %v2984 = vunpack.c.l.b16 %v2904
    %v2985 = vunpack.c.h.b16 %v2904
    %v2986 = vunpack.c.l.b16 %v2905
    %v2987 = vunpack.c.h.b16 %v2905
    %v2988 = vunpack.c.l.b16 %v2906
    %v2989 = vunpack.c.h.b16 %v2906
    %v2990 = vunpack.c.l.b16 %v2907
    %v2991 = vunpack.c.h.b16 %v2907
    %v2992 = vunpack.c.l.b16 %v2908
    %v2993 = vunpack.c.h.b16 %v2908
    %v2994 = vunpack.c.l.b16 %v2909
    %v2995 = vunpack.c.h.b16 %v2909
    %v2996 = vunpack.c.l.b16 %v2910
    %v2997 = vunpack.c.h.b16 %v2910
    %v2998 = vunpack.c.l.b16 %v2911
    %v2999 = vunpack.c.h.b16 %v2911
    %v3000 = vunpack.c.l.b16 %v2912
    %v3001 = vunpack.c.h.b16 %v2912
    %v3002 = vunpack.c.l.b16 %v2913
    %v3003 = vunpack.c.h.b16 %v2913
    %v3004 = vunpack.c.l.b16 %v2914
    %v3005 = vunpack.c.h.b16 %v2914
    %v3006 = vunpack.c.l.b16 %v2915
    %v3007 = vunpack.c.h.b16 %v2915
    %v3008 = vunpack.c.l.b16 %v2916
    %v3009 = vunpack.c.h.b16 %v2916
    %v3010 = vunpack.c.l.b16 %v2917
    %v3011 = vunpack.c.h.b16 %v2917
    %v3012 = vunpack.c.l.b16 %v2918
    %v3013 = vunpack.c.h.b16 %v2918
    %v3014 = vunpack.c.l.b16 %v2919
    %v3015 = vunpack.c.h.b16 %v2919
    %v3016 = vpack.c.b16 %v2956, %v2952
    %v3017 = vpack.c.b16 %v2957, %v2953
    %v3018 = vpack.c.b16 %v2958, %v2954
    %v3019 = vpack.c.b16 %v2959, %v2955
    %v3020 = vpack.c.b16 %v2964, %v2960
    %v3021 = vpack.c.b16 %v2965, %v2961
    %v3022 = vpack.c.b16 %v2966, %v2962
    %v3023 = vpack.c.b16 %v2967, %v2963
    %v3024 = vpack.c.b16 %v2972, %v2968
    %v3025 = vpack.c.b16 %v2973, %v2969
    %v3026 = vpack.c.b16 %v2974, %v2970
    %v3027 = vpack.c.b16 %v2975, %v2971
    %v3028 = vpack.c.b16 %v2980, %v2976
    %v3029 = vpack.c.b16 %v2981, %v2977
    %v3030 = vpack.c.b16 %v2982, %v2978
    %v3031 = vpack.c.b16 %v2983, %v2979
    %v3032 = vpack.c.b16 %v2988, %v2984
    %v3033 = vpack.c.b16 %v2989, %v2985
    %v3034 = vpack.c.b16 %v2990, %v2986
    %v3035 = vpack.c.b16 %v2991, %v2987
    %v3036 = vpack.c.b16 %v2996, %v2992
    %v3037 = vpack.c.b16 %v2997, %v2993
    %v3038 = vpack.c.b16 %v2998, %v2994
    %v3039 = vpack.c.b16 %v2999, %v2995
    %v3040 = vpack.c.b16 %v3004, %v3000
    %v3041 = vpack.c.b16 %v3005, %v3001
    %v3042 = vpack.c.b16 %v3006, %v3002
    %v3043 = vpack.c.b16 %v3007, %v3003
    %v3044 = vpack.c.b16 %v3012, %v3008
    %v3045 = vpack.c.b16 %v3013, %v3009
    %v3046 = vpack.c.b16 %v3014, %v3010
    %v3047 = vpack.c.b16 %v3015, %v3011
    %3080 = vmatpush.bf16.msra.mxu0 %v3044
    %3081 = vmatpush.bf16.msra.mxu0 %v3040
    %3082 = vmatpush.bf16.msra.mxu0 %v3036
    %3083 = vmatpush.bf16.msra.mxu0 %v3032
    %3084 = vmatpush.bf16.msra.mxu0 %v3028
    %3085 = vmatpush.bf16.msra.mxu0 %v3024
    %3086 = vmatpush.bf16.msra.mxu0 %v3020
    %3087 = vmatpush.bf16.msra.mxu0 %v3016
    %3088 = vmatmul.bf16.gmra.mxu0 %v2886
    %v3089 = vpop.f32.mrf.mxu0
    %v3090 = vadd.f32 0.0, %v3089
    %v3091 = vpop.f32.mrf.mxu0
    %3092 = vdwg.mxu0
    %3093 = vmatpush.bf16.msra.mxu0 %v3045
    %3094 = vmatpush.bf16.msra.mxu0 %v3041
    %3095 = vmatpush.bf16.msra.mxu0 %v3037
    %3096 = vmatpush.bf16.msra.mxu0 %v3033
    %3097 = vmatpush.bf16.msra.mxu0 %v3029
    %3098 = vmatpush.bf16.msra.mxu0 %v3025
    %3099 = vmatpush.bf16.msra.mxu0 %v3021
    %3100 = vmatpush.bf16.msra.mxu0 %v3017
    %3101 = vmatmul.bf16.gmra.mxu0 %v2886
    %v3102 = vpop.f32.mrf.mxu0
    %v3103 = vadd.f32 0.0, %v3102
    %v3104 = vpop.f32.mrf.mxu0
    %3105 = vdwg.mxu0
    %3106 = vmatpush.bf16.msra.mxu0 %v3046
    %3107 = vmatpush.bf16.msra.mxu0 %v3042
    %3108 = vmatpush.bf16.msra.mxu0 %v3038
    %3109 = vmatpush.bf16.msra.mxu0 %v3034
    %3110 = vmatpush.bf16.msra.mxu0 %v3030
    %3111 = vmatpush.bf16.msra.mxu0 %v3026
    %3112 = vmatpush.bf16.msra.mxu0 %v3022
    %3113 = vmatpush.bf16.msra.mxu0 %v3018
    %3114 = vmatmul.bf16.gmra.mxu0 %v2886
    %v3115 = vpop.f32.mrf.mxu0
    %v3116 = vadd.f32 0.0, %v3115
    %v3117 = vpop.f32.mrf.mxu0
    %3118 = vdwg.mxu0
    %3119 = vmatpush.bf16.msra.mxu0 %v3047
    %3120 = vmatpush.bf16.msra.mxu0 %v3043
    %3121 = vmatpush.bf16.msra.mxu0 %v3039
    %3122 = vmatpush.bf16.msra.mxu0 %v3035
    %3123 = vmatpush.bf16.msra.mxu0 %v3031
    %3124 = vmatpush.bf16.msra.mxu0 %v3027
    %3125 = vmatpush.bf16.msra.mxu0 %v3023
    %3126 = vmatpush.bf16.msra.mxu0 %v3019
    %3127 = vmatmul.bf16.gmra.mxu0 %v2886
    %v3128 = vpop.f32.mrf.mxu0
    %v3129 = vadd.f32 0.0, %v3128
    %v3130 = vpop.f32.mrf.mxu0
    %3131 = vdwg.mxu0
    %v3132 = vadd.f32 %v2705, %v3090
    %v3133 = vadd.f32 %v2706, %v3103
    %v3134 = vadd.f32 %v2707, %v3116
    %v3135 = vadd.f32 %v2708, %v3129
    %s3136 = scalar_lea.vmem %s0, 72
    %v3137 = vld [vmem:[%s3136] sm:$0xff]
    %v3138 = vld [vmem:[%s3136 + $0x8] sm:$0xf]
    %v3141 = vunpack.c.l.b16 %v3137
    %v3142 = vunpack.c.h.b16 %v3137
    %v3143 = vunpack.c.l.b16 %v3138
    %v3144 = vpack.c.b16 %v3141, %v3141
    %v3145 = vpack.c.b16 %v3142, %v3142
    %v3146 = vpack.c.b16 %v3143, %v3143
    %v3150 = vsel %vm591, %v3146, 0
    %3152 = vmatpush.bf16.msra.mxu0 %v459
    %3153 = vmatpush.bf16.msra.mxu0 %v455
    %3154 = vmatpush.bf16.msra.mxu0 %v451
    %3155 = vmatpush.bf16.msra.mxu0 %v447
    %3156 = vmatpush.bf16.msra.mxu0 %v443
    %3157 = vmatpush.bf16.msra.mxu0 %v439
    %3158 = vmatpush.bf16.msra.mxu0 %v435
    %3159 = vmatpush.bf16.msra.mxu0 %v431
    %3160 = vmatmul.bf16.gmra.mxu0 %v3144
    %v3161 = vpop.f32.mrf.mxu0
    %v3162 = vadd.f32 0.0, %v3161
    %v3163 = vpop.f32.mrf.mxu0
    %3164 = vdwg.mxu0
    %3165 = vmatpush.bf16.msra.mxu0 %v491
    %3166 = vmatpush.bf16.msra.mxu0 %v487
    %3167 = vmatpush.bf16.msra.mxu0 %v483
    %3168 = vmatpush.bf16.msra.mxu0 %v479
    %3169 = vmatpush.bf16.msra.mxu0 %v475
    %3170 = vmatpush.bf16.msra.mxu0 %v471
    %3171 = vmatpush.bf16.msra.mxu0 %v467
    %3172 = vmatpush.bf16.msra.mxu0 %v463
    %3173 = vmatmul.bf16.gmra.mxu0 %v3145
    %v3174 = vpop.f32.mrf.mxu0
    %v3175 = vadd.f32 %v3162, %v3174
    %v3176 = vpop.f32.mrf.mxu0
    %3177 = vdwg.mxu0
    %3178 = vmatpush.bf16.msra.mxu0 0
    %3179 = vmatpush.bf16.msra.mxu0 0
    %3180 = vmatpush.bf16.msra.mxu0 0
    %3181 = vmatpush.bf16.msra.mxu0 0
    %3182 = vmatpush.bf16.msra.mxu0 %v507
    %3183 = vmatpush.bf16.msra.mxu0 %v503
    %3184 = vmatpush.bf16.msra.mxu0 %v499
    %3185 = vmatpush.bf16.msra.mxu0 %v495
    %3186 = vmatmul.bf16.gmra.mxu0 %v3150
    %v3187 = vpop.f32.mrf.mxu0
    %v3188 = vadd.f32 %v3175, %v3187
    %v3189 = vpop.f32.mrf.mxu0
    %3190 = vdwg.mxu0
    %3191 = vmatpush.bf16.msra.mxu0 %v460
    %3192 = vmatpush.bf16.msra.mxu0 %v456
    %3193 = vmatpush.bf16.msra.mxu0 %v452
    %3194 = vmatpush.bf16.msra.mxu0 %v448
    %3195 = vmatpush.bf16.msra.mxu0 %v444
    %3196 = vmatpush.bf16.msra.mxu0 %v440
    %3197 = vmatpush.bf16.msra.mxu0 %v436
    %3198 = vmatpush.bf16.msra.mxu0 %v432
    %3199 = vmatmul.bf16.gmra.mxu0 %v3144
    %v3200 = vpop.f32.mrf.mxu0
    %v3201 = vadd.f32 0.0, %v3200
    %v3202 = vpop.f32.mrf.mxu0
    %3203 = vdwg.mxu0
    %3204 = vmatpush.bf16.msra.mxu0 %v492
    %3205 = vmatpush.bf16.msra.mxu0 %v488
    %3206 = vmatpush.bf16.msra.mxu0 %v484
    %3207 = vmatpush.bf16.msra.mxu0 %v480
    %3208 = vmatpush.bf16.msra.mxu0 %v476
    %3209 = vmatpush.bf16.msra.mxu0 %v472
    %3210 = vmatpush.bf16.msra.mxu0 %v468
    %3211 = vmatpush.bf16.msra.mxu0 %v464
    %3212 = vmatmul.bf16.gmra.mxu0 %v3145
    %v3213 = vpop.f32.mrf.mxu0
    %v3214 = vadd.f32 %v3201, %v3213
    %v3215 = vpop.f32.mrf.mxu0
    %3216 = vdwg.mxu0
    %3217 = vmatpush.bf16.msra.mxu0 0
    %3218 = vmatpush.bf16.msra.mxu0 0
    %3219 = vmatpush.bf16.msra.mxu0 0
    %3220 = vmatpush.bf16.msra.mxu0 0
    %3221 = vmatpush.bf16.msra.mxu0 %v508
    %3222 = vmatpush.bf16.msra.mxu0 %v504
    %3223 = vmatpush.bf16.msra.mxu0 %v500
    %3224 = vmatpush.bf16.msra.mxu0 %v496
    %3225 = vmatmul.bf16.gmra.mxu0 %v3150
    %v3226 = vpop.f32.mrf.mxu0
    %v3227 = vadd.f32 %v3214, %v3226
    %v3228 = vpop.f32.mrf.mxu0
    %3229 = vdwg.mxu0
    %3230 = vmatpush.bf16.msra.mxu0 %v461
    %3231 = vmatpush.bf16.msra.mxu0 %v457
    %3232 = vmatpush.bf16.msra.mxu0 %v453
    %3233 = vmatpush.bf16.msra.mxu0 %v449
    %3234 = vmatpush.bf16.msra.mxu0 %v445
    %3235 = vmatpush.bf16.msra.mxu0 %v441
    %3236 = vmatpush.bf16.msra.mxu0 %v437
    %3237 = vmatpush.bf16.msra.mxu0 %v433
    %3238 = vmatmul.bf16.gmra.mxu0 %v3144
    %v3239 = vpop.f32.mrf.mxu0
    %v3240 = vadd.f32 0.0, %v3239
    %v3241 = vpop.f32.mrf.mxu0
    %3242 = vdwg.mxu0
    %3243 = vmatpush.bf16.msra.mxu0 %v493
    %3244 = vmatpush.bf16.msra.mxu0 %v489
    %3245 = vmatpush.bf16.msra.mxu0 %v485
    %3246 = vmatpush.bf16.msra.mxu0 %v481
    %3247 = vmatpush.bf16.msra.mxu0 %v477
    %3248 = vmatpush.bf16.msra.mxu0 %v473
    %3249 = vmatpush.bf16.msra.mxu0 %v469
    %3250 = vmatpush.bf16.msra.mxu0 %v465
    %3251 = vmatmul.bf16.gmra.mxu0 %v3145
    %v3252 = vpop.f32.mrf.mxu0
    %v3253 = vadd.f32 %v3240, %v3252
    %v3254 = vpop.f32.mrf.mxu0
    %3255 = vdwg.mxu0
    %3256 = vmatpush.bf16.msra.mxu0 0
    %3257 = vmatpush.bf16.msra.mxu0 0
    %3258 = vmatpush.bf16.msra.mxu0 0
    %3259 = vmatpush.bf16.msra.mxu0 0
    %3260 = vmatpush.bf16.msra.mxu0 %v509
    %3261 = vmatpush.bf16.msra.mxu0 %v505
    %3262 = vmatpush.bf16.msra.mxu0 %v501
    %3263 = vmatpush.bf16.msra.mxu0 %v497
    %3264 = vmatmul.bf16.gmra.mxu0 %v3150
    %v3265 = vpop.f32.mrf.mxu0
    %v3266 = vadd.f32 %v3253, %v3265
    %v3267 = vpop.f32.mrf.mxu0
    %3268 = vdwg.mxu0
    %3269 = vmatpush.bf16.msra.mxu0 %v462
    %3270 = vmatpush.bf16.msra.mxu0 %v458
    %3271 = vmatpush.bf16.msra.mxu0 %v454
    %3272 = vmatpush.bf16.msra.mxu0 %v450
    %3273 = vmatpush.bf16.msra.mxu0 %v446
    %3274 = vmatpush.bf16.msra.mxu0 %v442
    %3275 = vmatpush.bf16.msra.mxu0 %v438
    %3276 = vmatpush.bf16.msra.mxu0 %v434
    %3277 = vmatmul.bf16.gmra.mxu0 %v3144
    %v3278 = vpop.f32.mrf.mxu0
    %v3279 = vadd.f32 0.0, %v3278
    %v3280 = vpop.f32.mrf.mxu0
    %3281 = vdwg.mxu0
    %3282 = vmatpush.bf16.msra.mxu0 %v494
    %3283 = vmatpush.bf16.msra.mxu0 %v490
    %3284 = vmatpush.bf16.msra.mxu0 %v486
    %3285 = vmatpush.bf16.msra.mxu0 %v482
    %3286 = vmatpush.bf16.msra.mxu0 %v478
    %3287 = vmatpush.bf16.msra.mxu0 %v474
    %3288 = vmatpush.bf16.msra.mxu0 %v470
    %3289 = vmatpush.bf16.msra.mxu0 %v466
    %3290 = vmatmul.bf16.gmra.mxu0 %v3145
    %v3291 = vpop.f32.mrf.mxu0
    %v3292 = vadd.f32 %v3279, %v3291
    %v3293 = vpop.f32.mrf.mxu0
    %3294 = vdwg.mxu0
    %3295 = vmatpush.bf16.msra.mxu0 0
    %3296 = vmatpush.bf16.msra.mxu0 0
    %3297 = vmatpush.bf16.msra.mxu0 0
    %3298 = vmatpush.bf16.msra.mxu0 0
    %3299 = vmatpush.bf16.msra.mxu0 %v510
    %3300 = vmatpush.bf16.msra.mxu0 %v506
    %3301 = vmatpush.bf16.msra.mxu0 %v502
    %3302 = vmatpush.bf16.msra.mxu0 %v498
    %3303 = vmatmul.bf16.gmra.mxu0 %v3150
    %v3304 = vpop.f32.mrf.mxu0
    %v3305 = vadd.f32 %v3292, %v3304
    %v3306 = vpop.f32.mrf.mxu0
    %3307 = vdwg.mxu0
    %v3308 = vmax.f32 %v3188, %v3227
    %v3309 = vmax.f32 %v3266, %v3305
    %v3310 = vmax.f32 %v3308, %v3309
    %v3311 = vadd.f32 %v3310, %v756
    %v3312 = vmax.f32 %v3311, 0.0
    %v3313 = vpack.c.bf16 %v3312, %v3312
    %s3314 = scalar_lea.vmem [#allocation6], 1536
    %v3315 = vld [vmem:[%s3314] sm:$0xff]
    %v3316 = vld [vmem:[%s3314 + $0x8] sm:$0xff]
    %v3317 = vld [vmem:[%s3314 + $0x10] sm:$0xff]
    %v3318 = vld [vmem:[%s3314 + $0x18] sm:$0xff]
    %v3319 = vld [vmem:[%s3314 + $0x20] sm:$0xff]
    %v3320 = vld [vmem:[%s3314 + $0x28] sm:$0xff]
    %v3321 = vld [vmem:[%s3314 + $0x30] sm:$0xff]
    %v3322 = vld [vmem:[%s3314 + $0x38] sm:$0xff]
    %v3323 = vld [vmem:[%s3314 + $0x40] sm:$0xff]
    %v3324 = vld [vmem:[%s3314 + $0x48] sm:$0xff]
    %v3325 = vld [vmem:[%s3314 + $0x50] sm:$0xff]
    %v3326 = vld [vmem:[%s3314 + $0x58] sm:$0xff]
    %v3327 = vld [vmem:[%s3314 + $0x60] sm:$0xff]
    %v3328 = vld [vmem:[%s3314 + $0x68] sm:$0xff]
    %v3329 = vld [vmem:[%s3314 + $0x70] sm:$0xff]
    %v3330 = vld [vmem:[%s3314 + $0x78] sm:$0xff]
    %v3331 = vld [vmem:[%s3314 + $0x80] sm:$0xff]
    %v3332 = vld [vmem:[%s3314 + $0x88] sm:$0xff]
    %v3333 = vld [vmem:[%s3314 + $0x90] sm:$0xff]
    %v3334 = vld [vmem:[%s3314 + $0x98] sm:$0xff]
    %v3335 = vld [vmem:[%s3314 + $0xa0] sm:$0xff]
    %v3336 = vld [vmem:[%s3314 + $0xa8] sm:$0xff]
    %v3337 = vld [vmem:[%s3314 + $0xb0] sm:$0xff]
    %v3338 = vld [vmem:[%s3314 + $0xb8] sm:$0xff]
    %v3339 = vld [vmem:[%s3314 + $0xc0] sm:$0xff]
    %v3340 = vld [vmem:[%s3314 + $0xc8] sm:$0xff]
    %v3341 = vld [vmem:[%s3314 + $0xd0] sm:$0xff]
    %v3342 = vld [vmem:[%s3314 + $0xd8] sm:$0xff]
    %v3343 = vld [vmem:[%s3314 + $0xe0] sm:$0xff]
    %v3344 = vld [vmem:[%s3314 + $0xe8] sm:$0xff]
    %v3345 = vld [vmem:[%s3314 + $0xf0] sm:$0xff]
    %v3346 = vld [vmem:[%s3314 + $0xf8] sm:$0xff]
    %v3379 = vunpack.c.l.b16 %v3315
    %v3380 = vunpack.c.h.b16 %v3315
    %v3381 = vunpack.c.l.b16 %v3316
    %v3382 = vunpack.c.h.b16 %v3316
    %v3383 = vunpack.c.l.b16 %v3317
    %v3384 = vunpack.c.h.b16 %v3317
    %v3385 = vunpack.c.l.b16 %v3318
    %v3386 = vunpack.c.h.b16 %v3318
    %v3387 = vunpack.c.l.b16 %v3319
    %v3388 = vunpack.c.h.b16 %v3319
    %v3389 = vunpack.c.l.b16 %v3320
    %v3390 = vunpack.c.h.b16 %v3320
    %v3391 = vunpack.c.l.b16 %v3321
    %v3392 = vunpack.c.h.b16 %v3321
    %v3393 = vunpack.c.l.b16 %v3322
    %v3394 = vunpack.c.h.b16 %v3322
    %v3395 = vunpack.c.l.b16 %v3323
    %v3396 = vunpack.c.h.b16 %v3323
    %v3397 = vunpack.c.l.b16 %v3324
    %v3398 = vunpack.c.h.b16 %v3324
    %v3399 = vunpack.c.l.b16 %v3325
    %v3400 = vunpack.c.h.b16 %v3325
    %v3401 = vunpack.c.l.b16 %v3326
    %v3402 = vunpack.c.h.b16 %v3326
    %v3403 = vunpack.c.l.b16 %v3327
    %v3404 = vunpack.c.h.b16 %v3327
    %v3405 = vunpack.c.l.b16 %v3328
    %v3406 = vunpack.c.h.b16 %v3328
    %v3407 = vunpack.c.l.b16 %v3329
    %v3408 = vunpack.c.h.b16 %v3329
    %v3409 = vunpack.c.l.b16 %v3330
    %v3410 = vunpack.c.h.b16 %v3330
    %v3411 = vunpack.c.l.b16 %v3331
    %v3412 = vunpack.c.h.b16 %v3331
    %v3413 = vunpack.c.l.b16 %v3332
    %v3414 = vunpack.c.h.b16 %v3332
    %v3415 = vunpack.c.l.b16 %v3333
    %v3416 = vunpack.c.h.b16 %v3333
    %v3417 = vunpack.c.l.b16 %v3334
    %v3418 = vunpack.c.h.b16 %v3334
    %v3419 = vunpack.c.l.b16 %v3335
    %v3420 = vunpack.c.h.b16 %v3335
    %v3421 = vunpack.c.l.b16 %v3336
    %v3422 = vunpack.c.h.b16 %v3336
    %v3423 = vunpack.c.l.b16 %v3337
    %v3424 = vunpack.c.h.b16 %v3337
    %v3425 = vunpack.c.l.b16 %v3338
    %v3426 = vunpack.c.h.b16 %v3338
    %v3427 = vunpack.c.l.b16 %v3339
    %v3428 = vunpack.c.h.b16 %v3339
    %v3429 = vunpack.c.l.b16 %v3340
    %v3430 = vunpack.c.h.b16 %v3340
    %v3431 = vunpack.c.l.b16 %v3341
    %v3432 = vunpack.c.h.b16 %v3341
    %v3433 = vunpack.c.l.b16 %v3342
    %v3434 = vunpack.c.h.b16 %v3342
    %v3435 = vunpack.c.l.b16 %v3343
    %v3436 = vunpack.c.h.b16 %v3343
    %v3437 = vunpack.c.l.b16 %v3344
    %v3438 = vunpack.c.h.b16 %v3344
    %v3439 = vunpack.c.l.b16 %v3345
    %v3440 = vunpack.c.h.b16 %v3345
    %v3441 = vunpack.c.l.b16 %v3346
    %v3442 = vunpack.c.h.b16 %v3346
    %v3443 = vpack.c.b16 %v3383, %v3379
    %v3444 = vpack.c.b16 %v3384, %v3380
    %v3445 = vpack.c.b16 %v3385, %v3381
    %v3446 = vpack.c.b16 %v3386, %v3382
    %v3447 = vpack.c.b16 %v3391, %v3387
    %v3448 = vpack.c.b16 %v3392, %v3388
    %v3449 = vpack.c.b16 %v3393, %v3389
    %v3450 = vpack.c.b16 %v3394, %v3390
    %v3451 = vpack.c.b16 %v3399, %v3395
    %v3452 = vpack.c.b16 %v3400, %v3396
    %v3453 = vpack.c.b16 %v3401, %v3397
    %v3454 = vpack.c.b16 %v3402, %v3398
    %v3455 = vpack.c.b16 %v3407, %v3403
    %v3456 = vpack.c.b16 %v3408, %v3404
    %v3457 = vpack.c.b16 %v3409, %v3405
    %v3458 = vpack.c.b16 %v3410, %v3406
    %v3459 = vpack.c.b16 %v3415, %v3411
    %v3460 = vpack.c.b16 %v3416, %v3412
    %v3461 = vpack.c.b16 %v3417, %v3413
    %v3462 = vpack.c.b16 %v3418, %v3414
    %v3463 = vpack.c.b16 %v3423, %v3419
    %v3464 = vpack.c.b16 %v3424, %v3420
    %v3465 = vpack.c.b16 %v3425, %v3421
    %v3466 = vpack.c.b16 %v3426, %v3422
    %v3467 = vpack.c.b16 %v3431, %v3427
    %v3468 = vpack.c.b16 %v3432, %v3428
    %v3469 = vpack.c.b16 %v3433, %v3429
    %v3470 = vpack.c.b16 %v3434, %v3430
    %v3471 = vpack.c.b16 %v3439, %v3435
    %v3472 = vpack.c.b16 %v3440, %v3436
    %v3473 = vpack.c.b16 %v3441, %v3437
    %v3474 = vpack.c.b16 %v3442, %v3438
    %3507 = vmatpush.bf16.msra.mxu0 %v3471
    %3508 = vmatpush.bf16.msra.mxu0 %v3467
    %3509 = vmatpush.bf16.msra.mxu0 %v3463
    %3510 = vmatpush.bf16.msra.mxu0 %v3459
    %3511 = vmatpush.bf16.msra.mxu0 %v3455
    %3512 = vmatpush.bf16.msra.mxu0 %v3451
    %3513 = vmatpush.bf16.msra.mxu0 %v3447
    %3514 = vmatpush.bf16.msra.mxu0 %v3443
    %3515 = vmatmul.bf16.gmra.mxu0 %v3313
    %v3516 = vpop.f32.mrf.mxu0
    %v3517 = vadd.f32 0.0, %v3516
    %v3518 = vpop.f32.mrf.mxu0
    %3519 = vdwg.mxu0
    %3520 = vmatpush.bf16.msra.mxu0 %v3472
    %3521 = vmatpush.bf16.msra.mxu0 %v3468
    %3522 = vmatpush.bf16.msra.mxu0 %v3464
    %3523 = vmatpush.bf16.msra.mxu0 %v3460
    %3524 = vmatpush.bf16.msra.mxu0 %v3456
    %3525 = vmatpush.bf16.msra.mxu0 %v3452
    %3526 = vmatpush.bf16.msra.mxu0 %v3448
    %3527 = vmatpush.bf16.msra.mxu0 %v3444
    %3528 = vmatmul.bf16.gmra.mxu0 %v3313
    %v3529 = vpop.f32.mrf.mxu0
    %v3530 = vadd.f32 0.0, %v3529
    %v3531 = vpop.f32.mrf.mxu0
    %3532 = vdwg.mxu0
    %3533 = vmatpush.bf16.msra.mxu0 %v3473
    %3534 = vmatpush.bf16.msra.mxu0 %v3469
    %3535 = vmatpush.bf16.msra.mxu0 %v3465
    %3536 = vmatpush.bf16.msra.mxu0 %v3461
    %3537 = vmatpush.bf16.msra.mxu0 %v3457
    %3538 = vmatpush.bf16.msra.mxu0 %v3453
    %3539 = vmatpush.bf16.msra.mxu0 %v3449
    %3540 = vmatpush.bf16.msra.mxu0 %v3445
    %3541 = vmatmul.bf16.gmra.mxu0 %v3313
    %v3542 = vpop.f32.mrf.mxu0
    %v3543 = vadd.f32 0.0, %v3542
    %v3544 = vpop.f32.mrf.mxu0
    %3545 = vdwg.mxu0
    %3546 = vmatpush.bf16.msra.mxu0 %v3474
    %3547 = vmatpush.bf16.msra.mxu0 %v3470
    %3548 = vmatpush.bf16.msra.mxu0 %v3466
    %3549 = vmatpush.bf16.msra.mxu0 %v3462
    %3550 = vmatpush.bf16.msra.mxu0 %v3458
    %3551 = vmatpush.bf16.msra.mxu0 %v3454
    %3552 = vmatpush.bf16.msra.mxu0 %v3450
    %3553 = vmatpush.bf16.msra.mxu0 %v3446
    %3554 = vmatmul.bf16.gmra.mxu0 %v3313
    %v3555 = vpop.f32.mrf.mxu0
    %v3556 = vadd.f32 0.0, %v3555
    %v3557 = vpop.f32.mrf.mxu0
    %3558 = vdwg.mxu0
    %v3559 = vadd.f32 %v3132, %v3517
    %v3560 = vadd.f32 %v3133, %v3530
    %v3561 = vadd.f32 %v3134, %v3543
    %v3562 = vadd.f32 %v3135, %v3556
    %s3563 = scalar_lea.vmem %s0, 84
    %v3564 = vld [vmem:[%s3563] sm:$0xff]
    %v3565 = vld [vmem:[%s3563 + $0x8] sm:$0xf]
    %v3568 = vunpack.c.l.b16 %v3564
    %v3569 = vunpack.c.h.b16 %v3564
    %v3570 = vunpack.c.l.b16 %v3565
    %v3571 = vpack.c.b16 %v3568, %v3568
    %v3572 = vpack.c.b16 %v3569, %v3569
    %v3573 = vpack.c.b16 %v3570, %v3570
    %v3577 = vsel %vm591, %v3573, 0
    %3579 = vmatpush.bf16.msra.mxu0 %v459
    %3580 = vmatpush.bf16.msra.mxu0 %v455
    %3581 = vmatpush.bf16.msra.mxu0 %v451
    %3582 = vmatpush.bf16.msra.mxu0 %v447
    %3583 = vmatpush.bf16.msra.mxu0 %v443
    %3584 = vmatpush.bf16.msra.mxu0 %v439
    %3585 = vmatpush.bf16.msra.mxu0 %v435
    %3586 = vmatpush.bf16.msra.mxu0 %v431
    %3587 = vmatmul.bf16.gmra.mxu0 %v3571
    %v3588 = vpop.f32.mrf.mxu0
    %v3589 = vadd.f32 0.0, %v3588
    %v3590 = vpop.f32.mrf.mxu0
    %3591 = vdwg.mxu0
    %3592 = vmatpush.bf16.msra.mxu0 %v491
    %3593 = vmatpush.bf16.msra.mxu0 %v487
    %3594 = vmatpush.bf16.msra.mxu0 %v483
    %3595 = vmatpush.bf16.msra.mxu0 %v479
    %3596 = vmatpush.bf16.msra.mxu0 %v475
    %3597 = vmatpush.bf16.msra.mxu0 %v471
    %3598 = vmatpush.bf16.msra.mxu0 %v467
    %3599 = vmatpush.bf16.msra.mxu0 %v463
    %3600 = vmatmul.bf16.gmra.mxu0 %v3572
    %v3601 = vpop.f32.mrf.mxu0
    %v3602 = vadd.f32 %v3589, %v3601
    %v3603 = vpop.f32.mrf.mxu0
    %3604 = vdwg.mxu0
    %3605 = vmatpush.bf16.msra.mxu0 0
    %3606 = vmatpush.bf16.msra.mxu0 0
    %3607 = vmatpush.bf16.msra.mxu0 0
    %3608 = vmatpush.bf16.msra.mxu0 0
    %3609 = vmatpush.bf16.msra.mxu0 %v507
    %3610 = vmatpush.bf16.msra.mxu0 %v503
    %3611 = vmatpush.bf16.msra.mxu0 %v499
    %3612 = vmatpush.bf16.msra.mxu0 %v495
    %3613 = vmatmul.bf16.gmra.mxu0 %v3577
    %v3614 = vpop.f32.mrf.mxu0
    %v3615 = vadd.f32 %v3602, %v3614
    %v3616 = vpop.f32.mrf.mxu0
    %3617 = vdwg.mxu0
    %3618 = vmatpush.bf16.msra.mxu0 %v460
    %3619 = vmatpush.bf16.msra.mxu0 %v456
    %3620 = vmatpush.bf16.msra.mxu0 %v452
    %3621 = vmatpush.bf16.msra.mxu0 %v448
    %3622 = vmatpush.bf16.msra.mxu0 %v444
    %3623 = vmatpush.bf16.msra.mxu0 %v440
    %3624 = vmatpush.bf16.msra.mxu0 %v436
    %3625 = vmatpush.bf16.msra.mxu0 %v432
    %3626 = vmatmul.bf16.gmra.mxu0 %v3571
    %v3627 = vpop.f32.mrf.mxu0
    %v3628 = vadd.f32 0.0, %v3627
    %v3629 = vpop.f32.mrf.mxu0
    %3630 = vdwg.mxu0
    %3631 = vmatpush.bf16.msra.mxu0 %v492
    %3632 = vmatpush.bf16.msra.mxu0 %v488
    %3633 = vmatpush.bf16.msra.mxu0 %v484
    %3634 = vmatpush.bf16.msra.mxu0 %v480
    %3635 = vmatpush.bf16.msra.mxu0 %v476
    %3636 = vmatpush.bf16.msra.mxu0 %v472
    %3637 = vmatpush.bf16.msra.mxu0 %v468
    %3638 = vmatpush.bf16.msra.mxu0 %v464
    %3639 = vmatmul.bf16.gmra.mxu0 %v3572
    %v3640 = vpop.f32.mrf.mxu0
    %v3641 = vadd.f32 %v3628, %v3640
    %v3642 = vpop.f32.mrf.mxu0
    %3643 = vdwg.mxu0
    %3644 = vmatpush.bf16.msra.mxu0 0
    %3645 = vmatpush.bf16.msra.mxu0 0
    %3646 = vmatpush.bf16.msra.mxu0 0
    %3647 = vmatpush.bf16.msra.mxu0 0
    %3648 = vmatpush.bf16.msra.mxu0 %v508
    %3649 = vmatpush.bf16.msra.mxu0 %v504
    %3650 = vmatpush.bf16.msra.mxu0 %v500
    %3651 = vmatpush.bf16.msra.mxu0 %v496
    %3652 = vmatmul.bf16.gmra.mxu0 %v3577
    %v3653 = vpop.f32.mrf.mxu0
    %v3654 = vadd.f32 %v3641, %v3653
    %v3655 = vpop.f32.mrf.mxu0
    %3656 = vdwg.mxu0
    %3657 = vmatpush.bf16.msra.mxu0 %v461
    %3658 = vmatpush.bf16.msra.mxu0 %v457
    %3659 = vmatpush.bf16.msra.mxu0 %v453
    %3660 = vmatpush.bf16.msra.mxu0 %v449
    %3661 = vmatpush.bf16.msra.mxu0 %v445
    %3662 = vmatpush.bf16.msra.mxu0 %v441
    %3663 = vmatpush.bf16.msra.mxu0 %v437
    %3664 = vmatpush.bf16.msra.mxu0 %v433
    %3665 = vmatmul.bf16.gmra.mxu0 %v3571
    %v3666 = vpop.f32.mrf.mxu0
    %v3667 = vadd.f32 0.0, %v3666
    %v3668 = vpop.f32.mrf.mxu0
    %3669 = vdwg.mxu0
    %3670 = vmatpush.bf16.msra.mxu0 %v493
    %3671 = vmatpush.bf16.msra.mxu0 %v489
    %3672 = vmatpush.bf16.msra.mxu0 %v485
    %3673 = vmatpush.bf16.msra.mxu0 %v481
    %3674 = vmatpush.bf16.msra.mxu0 %v477
    %3675 = vmatpush.bf16.msra.mxu0 %v473
    %3676 = vmatpush.bf16.msra.mxu0 %v469
    %3677 = vmatpush.bf16.msra.mxu0 %v465
    %3678 = vmatmul.bf16.gmra.mxu0 %v3572
    %v3679 = vpop.f32.mrf.mxu0
    %v3680 = vadd.f32 %v3667, %v3679
    %v3681 = vpop.f32.mrf.mxu0
    %3682 = vdwg.mxu0
    %3683 = vmatpush.bf16.msra.mxu0 0
    %3684 = vmatpush.bf16.msra.mxu0 0
    %3685 = vmatpush.bf16.msra.mxu0 0
    %3686 = vmatpush.bf16.msra.mxu0 0
    %3687 = vmatpush.bf16.msra.mxu0 %v509
    %3688 = vmatpush.bf16.msra.mxu0 %v505
    %3689 = vmatpush.bf16.msra.mxu0 %v501
    %3690 = vmatpush.bf16.msra.mxu0 %v497
    %3691 = vmatmul.bf16.gmra.mxu0 %v3577
    %v3692 = vpop.f32.mrf.mxu0
    %v3693 = vadd.f32 %v3680, %v3692
    %v3694 = vpop.f32.mrf.mxu0
    %3695 = vdwg.mxu0
    %3696 = vmatpush.bf16.msra.mxu0 %v462
    %3697 = vmatpush.bf16.msra.mxu0 %v458
    %3698 = vmatpush.bf16.msra.mxu0 %v454
    %3699 = vmatpush.bf16.msra.mxu0 %v450
    %3700 = vmatpush.bf16.msra.mxu0 %v446
    %3701 = vmatpush.bf16.msra.mxu0 %v442
    %3702 = vmatpush.bf16.msra.mxu0 %v438
    %3703 = vmatpush.bf16.msra.mxu0 %v434
    %3704 = vmatmul.bf16.gmra.mxu0 %v3571
    %v3705 = vpop.f32.mrf.mxu0
    %v3706 = vadd.f32 0.0, %v3705
    %v3707 = vpop.f32.mrf.mxu0
    %3708 = vdwg.mxu0
    %3709 = vmatpush.bf16.msra.mxu0 %v494
    %3710 = vmatpush.bf16.msra.mxu0 %v490
    %3711 = vmatpush.bf16.msra.mxu0 %v486
    %3712 = vmatpush.bf16.msra.mxu0 %v482
    %3713 = vmatpush.bf16.msra.mxu0 %v478
    %3714 = vmatpush.bf16.msra.mxu0 %v474
    %3715 = vmatpush.bf16.msra.mxu0 %v470
    %3716 = vmatpush.bf16.msra.mxu0 %v466
    %3717 = vmatmul.bf16.gmra.mxu0 %v3572
    %v3718 = vpop.f32.mrf.mxu0
    %v3719 = vadd.f32 %v3706, %v3718
    %v3720 = vpop.f32.mrf.mxu0
    %3721 = vdwg.mxu0
    %3722 = vmatpush.bf16.msra.mxu0 0
    %3723 = vmatpush.bf16.msra.mxu0 0
    %3724 = vmatpush.bf16.msra.mxu0 0
    %3725 = vmatpush.bf16.msra.mxu0 0
    %3726 = vmatpush.bf16.msra.mxu0 %v510
    %3727 = vmatpush.bf16.msra.mxu0 %v506
    %3728 = vmatpush.bf16.msra.mxu0 %v502
    %3729 = vmatpush.bf16.msra.mxu0 %v498
    %3730 = vmatmul.bf16.gmra.mxu0 %v3577
    %v3731 = vpop.f32.mrf.mxu0
    %v3732 = vadd.f32 %v3719, %v3731
    %v3733 = vpop.f32.mrf.mxu0
    %3734 = vdwg.mxu0
    %v3735 = vmax.f32 %v3615, %v3654
    %v3736 = vmax.f32 %v3693, %v3732
    %v3737 = vmax.f32 %v3735, %v3736
    %v3738 = vadd.f32 %v3737, %v756
    %v3739 = vmax.f32 %v3738, 0.0
    %v3740 = vpack.c.bf16 %v3739, %v3739
    %s3741 = scalar_lea.vmem [#allocation6], 1792
    %v3742 = vld [vmem:[%s3741] sm:$0xff]
    %v3743 = vld [vmem:[%s3741 + $0x8] sm:$0xff]
    %v3744 = vld [vmem:[%s3741 + $0x10] sm:$0xff]
    %v3745 = vld [vmem:[%s3741 + $0x18] sm:$0xff]
    %v3746 = vld [vmem:[%s3741 + $0x20] sm:$0xff]
    %v3747 = vld [vmem:[%s3741 + $0x28] sm:$0xff]
    %v3748 = vld [vmem:[%s3741 + $0x30] sm:$0xff]
    %v3749 = vld [vmem:[%s3741 + $0x38] sm:$0xff]
    %v3750 = vld [vmem:[%s3741 + $0x40] sm:$0xff]
    %v3751 = vld [vmem:[%s3741 + $0x48] sm:$0xff]
    %v3752 = vld [vmem:[%s3741 + $0x50] sm:$0xff]
    %v3753 = vld [vmem:[%s3741 + $0x58] sm:$0xff]
    %v3754 = vld [vmem:[%s3741 + $0x60] sm:$0xff]
    %v3755 = vld [vmem:[%s3741 + $0x68] sm:$0xff]
    %v3756 = vld [vmem:[%s3741 + $0x70] sm:$0xff]
    %v3757 = vld [vmem:[%s3741 + $0x78] sm:$0xff]
    %v3758 = vld [vmem:[%s3741 + $0x80] sm:$0xff]
    %v3759 = vld [vmem:[%s3741 + $0x88] sm:$0xff]
    %v3760 = vld [vmem:[%s3741 + $0x90] sm:$0xff]
    %v3761 = vld [vmem:[%s3741 + $0x98] sm:$0xff]
    %v3762 = vld [vmem:[%s3741 + $0xa0] sm:$0xff]
    %v3763 = vld [vmem:[%s3741 + $0xa8] sm:$0xff]
    %v3764 = vld [vmem:[%s3741 + $0xb0] sm:$0xff]
    %v3765 = vld [vmem:[%s3741 + $0xb8] sm:$0xff]
    %v3766 = vld [vmem:[%s3741 + $0xc0] sm:$0xff]
    %v3767 = vld [vmem:[%s3741 + $0xc8] sm:$0xff]
    %v3768 = vld [vmem:[%s3741 + $0xd0] sm:$0xff]
    %v3769 = vld [vmem:[%s3741 + $0xd8] sm:$0xff]
    %v3770 = vld [vmem:[%s3741 + $0xe0] sm:$0xff]
    %v3771 = vld [vmem:[%s3741 + $0xe8] sm:$0xff]
    %v3772 = vld [vmem:[%s3741 + $0xf0] sm:$0xff]
    %v3773 = vld [vmem:[%s3741 + $0xf8] sm:$0xff]
    %v3806 = vunpack.c.l.b16 %v3742
    %v3807 = vunpack.c.h.b16 %v3742
    %v3808 = vunpack.c.l.b16 %v3743
    %v3809 = vunpack.c.h.b16 %v3743
    %v3810 = vunpack.c.l.b16 %v3744
    %v3811 = vunpack.c.h.b16 %v3744
    %v3812 = vunpack.c.l.b16 %v3745
    %v3813 = vunpack.c.h.b16 %v3745
    %v3814 = vunpack.c.l.b16 %v3746
    %v3815 = vunpack.c.h.b16 %v3746
    %v3816 = vunpack.c.l.b16 %v3747
    %v3817 = vunpack.c.h.b16 %v3747
    %v3818 = vunpack.c.l.b16 %v3748
    %v3819 = vunpack.c.h.b16 %v3748
    %v3820 = vunpack.c.l.b16 %v3749
    %v3821 = vunpack.c.h.b16 %v3749
    %v3822 = vunpack.c.l.b16 %v3750
    %v3823 = vunpack.c.h.b16 %v3750
    %v3824 = vunpack.c.l.b16 %v3751
    %v3825 = vunpack.c.h.b16 %v3751
    %v3826 = vunpack.c.l.b16 %v3752
    %v3827 = vunpack.c.h.b16 %v3752
    %v3828 = vunpack.c.l.b16 %v3753
    %v3829 = vunpack.c.h.b16 %v3753
    %v3830 = vunpack.c.l.b16 %v3754
    %v3831 = vunpack.c.h.b16 %v3754
    %v3832 = vunpack.c.l.b16 %v3755
    %v3833 = vunpack.c.h.b16 %v3755
    %v3834 = vunpack.c.l.b16 %v3756
    %v3835 = vunpack.c.h.b16 %v3756
    %v3836 = vunpack.c.l.b16 %v3757
    %v3837 = vunpack.c.h.b16 %v3757
    %v3838 = vunpack.c.l.b16 %v3758
    %v3839 = vunpack.c.h.b16 %v3758
    %v3840 = vunpack.c.l.b16 %v3759
    %v3841 = vunpack.c.h.b16 %v3759
    %v3842 = vunpack.c.l.b16 %v3760
    %v3843 = vunpack.c.h.b16 %v3760
    %v3844 = vunpack.c.l.b16 %v3761
    %v3845 = vunpack.c.h.b16 %v3761
    %v3846 = vunpack.c.l.b16 %v3762
    %v3847 = vunpack.c.h.b16 %v3762
    %v3848 = vunpack.c.l.b16 %v3763
    %v3849 = vunpack.c.h.b16 %v3763
    %v3850 = vunpack.c.l.b16 %v3764
    %v3851 = vunpack.c.h.b16 %v3764
    %v3852 = vunpack.c.l.b16 %v3765
    %v3853 = vunpack.c.h.b16 %v3765
    %v3854 = vunpack.c.l.b16 %v3766
    %v3855 = vunpack.c.h.b16 %v3766
    %v3856 = vunpack.c.l.b16 %v3767
    %v3857 = vunpack.c.h.b16 %v3767
    %v3858 = vunpack.c.l.b16 %v3768
    %v3859 = vunpack.c.h.b16 %v3768
    %v3860 = vunpack.c.l.b16 %v3769
    %v3861 = vunpack.c.h.b16 %v3769
    %v3862 = vunpack.c.l.b16 %v3770
    %v3863 = vunpack.c.h.b16 %v3770
    %v3864 = vunpack.c.l.b16 %v3771
    %v3865 = vunpack.c.h.b16 %v3771
    %v3866 = vunpack.c.l.b16 %v3772
    %v3867 = vunpack.c.h.b16 %v3772
    %v3868 = vunpack.c.l.b16 %v3773
    %v3869 = vunpack.c.h.b16 %v3773
    %v3870 = vpack.c.b16 %v3810, %v3806
    %v3871 = vpack.c.b16 %v3811, %v3807
    %v3872 = vpack.c.b16 %v3812, %v3808
    %v3873 = vpack.c.b16 %v3813, %v3809
    %v3874 = vpack.c.b16 %v3818, %v3814
    %v3875 = vpack.c.b16 %v3819, %v3815
    %v3876 = vpack.c.b16 %v3820, %v3816
    %v3877 = vpack.c.b16 %v3821, %v3817
    %v3878 = vpack.c.b16 %v3826, %v3822
    %v3879 = vpack.c.b16 %v3827, %v3823
    %v3880 = vpack.c.b16 %v3828, %v3824
    %v3881 = vpack.c.b16 %v3829, %v3825
    %v3882 = vpack.c.b16 %v3834, %v3830
    %v3883 = vpack.c.b16 %v3835, %v3831
    %v3884 = vpack.c.b16 %v3836, %v3832
    %v3885 = vpack.c.b16 %v3837, %v3833
    %v3886 = vpack.c.b16 %v3842, %v3838
    %v3887 = vpack.c.b16 %v3843, %v3839
    %v3888 = vpack.c.b16 %v3844, %v3840
    %v3889 = vpack.c.b16 %v3845, %v3841
    %v3890 = vpack.c.b16 %v3850, %v3846
    %v3891 = vpack.c.b16 %v3851, %v3847
    %v3892 = vpack.c.b16 %v3852, %v3848
    %v3893 = vpack.c.b16 %v3853, %v3849
    %v3894 = vpack.c.b16 %v3858, %v3854
    %v3895 = vpack.c.b16 %v3859, %v3855
    %v3896 = vpack.c.b16 %v3860, %v3856
    %v3897 = vpack.c.b16 %v3861, %v3857
    %v3898 = vpack.c.b16 %v3866, %v3862
    %v3899 = vpack.c.b16 %v3867, %v3863
    %v3900 = vpack.c.b16 %v3868, %v3864
    %v3901 = vpack.c.b16 %v3869, %v3865
    %3934 = vmatpush.bf16.msra.mxu0 %v3898
    %3935 = vmatpush.bf16.msra.mxu0 %v3894
    %3936 = vmatpush.bf16.msra.mxu0 %v3890
    %3937 = vmatpush.bf16.msra.mxu0 %v3886
    %3938 = vmatpush.bf16.msra.mxu0 %v3882
    %3939 = vmatpush.bf16.msra.mxu0 %v3878
    %3940 = vmatpush.bf16.msra.mxu0 %v3874
    %3941 = vmatpush.bf16.msra.mxu0 %v3870
    %3942 = vmatmul.bf16.gmra.mxu0 %v3740
    %v3943 = vpop.f32.mrf.mxu0
    %v3944 = vadd.f32 0.0, %v3943
    %v3945 = vpop.f32.mrf.mxu0
    %3946 = vdwg.mxu0
    %3947 = vmatpush.bf16.msra.mxu0 %v3899
    %3948 = vmatpush.bf16.msra.mxu0 %v3895
    %3949 = vmatpush.bf16.msra.mxu0 %v3891
    %3950 = vmatpush.bf16.msra.mxu0 %v3887
    %3951 = vmatpush.bf16.msra.mxu0 %v3883
    %3952 = vmatpush.bf16.msra.mxu0 %v3879
    %3953 = vmatpush.bf16.msra.mxu0 %v3875
    %3954 = vmatpush.bf16.msra.mxu0 %v3871
    %3955 = vmatmul.bf16.gmra.mxu0 %v3740
    %v3956 = vpop.f32.mrf.mxu0
    %v3957 = vadd.f32 0.0, %v3956
    %v3958 = vpop.f32.mrf.mxu0
    %3959 = vdwg.mxu0
    %3960 = vmatpush.bf16.msra.mxu0 %v3900
    %3961 = vmatpush.bf16.msra.mxu0 %v3896
    %3962 = vmatpush.bf16.msra.mxu0 %v3892
    %3963 = vmatpush.bf16.msra.mxu0 %v3888
    %3964 = vmatpush.bf16.msra.mxu0 %v3884
    %3965 = vmatpush.bf16.msra.mxu0 %v3880
    %3966 = vmatpush.bf16.msra.mxu0 %v3876
    %3967 = vmatpush.bf16.msra.mxu0 %v3872
    %3968 = vmatmul.bf16.gmra.mxu0 %v3740
    %v3969 = vpop.f32.mrf.mxu0
    %v3970 = vadd.f32 0.0, %v3969
    %v3971 = vpop.f32.mrf.mxu0
    %3972 = vdwg.mxu0
    %3973 = vmatpush.bf16.msra.mxu0 %v3901
    %3974 = vmatpush.bf16.msra.mxu0 %v3897
    %3975 = vmatpush.bf16.msra.mxu0 %v3893
    %3976 = vmatpush.bf16.msra.mxu0 %v3889
    %3977 = vmatpush.bf16.msra.mxu0 %v3885
    %3978 = vmatpush.bf16.msra.mxu0 %v3881
    %3979 = vmatpush.bf16.msra.mxu0 %v3877
    %3980 = vmatpush.bf16.msra.mxu0 %v3873
    %3981 = vmatmul.bf16.gmra.mxu0 %v3740
    %v3982 = vpop.f32.mrf.mxu0
    %v3983 = vadd.f32 0.0, %v3982
    %v3984 = vpop.f32.mrf.mxu0
    %3985 = vdwg.mxu0
    %v3986 = vadd.f32 %v3559, %v3944
    %v3987 = vadd.f32 %v3560, %v3957
    %v3988 = vadd.f32 %v3561, %v3970
    %v3989 = vadd.f32 %v3562, %v3983
    %s3990 = scalar_lea.vmem %s0, 96
    %v3991 = vld [vmem:[%s3990] sm:$0xff]
    %v3992 = vld [vmem:[%s3990 + $0x8] sm:$0xf]
    %v3995 = vunpack.c.l.b16 %v3991
    %v3996 = vunpack.c.h.b16 %v3991
    %v3997 = vunpack.c.l.b16 %v3992
    %v3998 = vpack.c.b16 %v3995, %v3995
    %v3999 = vpack.c.b16 %v3996, %v3996
    %v4000 = vpack.c.b16 %v3997, %v3997
    %v4004 = vsel %vm591, %v4000, 0
    %4006 = vmatpush.bf16.msra.mxu0 %v459
    %4007 = vmatpush.bf16.msra.mxu0 %v455
    %4008 = vmatpush.bf16.msra.mxu0 %v451
    %4009 = vmatpush.bf16.msra.mxu0 %v447
    %4010 = vmatpush.bf16.msra.mxu0 %v443
    %4011 = vmatpush.bf16.msra.mxu0 %v439
    %4012 = vmatpush.bf16.msra.mxu0 %v435
    %4013 = vmatpush.bf16.msra.mxu0 %v431
    %4014 = vmatmul.bf16.gmra.mxu0 %v3998
    %v4015 = vpop.f32.mrf.mxu0
    %v4016 = vadd.f32 0.0, %v4015
    %v4017 = vpop.f32.mrf.mxu0
    %4018 = vdwg.mxu0
    %4019 = vmatpush.bf16.msra.mxu0 %v491
    %4020 = vmatpush.bf16.msra.mxu0 %v487
    %4021 = vmatpush.bf16.msra.mxu0 %v483
    %4022 = vmatpush.bf16.msra.mxu0 %v479
    %4023 = vmatpush.bf16.msra.mxu0 %v475
    %4024 = vmatpush.bf16.msra.mxu0 %v471
    %4025 = vmatpush.bf16.msra.mxu0 %v467
    %4026 = vmatpush.bf16.msra.mxu0 %v463
    %4027 = vmatmul.bf16.gmra.mxu0 %v3999
    %v4028 = vpop.f32.mrf.mxu0
    %v4029 = vadd.f32 %v4016, %v4028
    %v4030 = vpop.f32.mrf.mxu0
    %4031 = vdwg.mxu0
    %4032 = vmatpush.bf16.msra.mxu0 0
    %4033 = vmatpush.bf16.msra.mxu0 0
    %4034 = vmatpush.bf16.msra.mxu0 0
    %4035 = vmatpush.bf16.msra.mxu0 0
    %4036 = vmatpush.bf16.msra.mxu0 %v507
    %4037 = vmatpush.bf16.msra.mxu0 %v503
    %4038 = vmatpush.bf16.msra.mxu0 %v499
    %4039 = vmatpush.bf16.msra.mxu0 %v495
    %4040 = vmatmul.bf16.gmra.mxu0 %v4004
    %v4041 = vpop.f32.mrf.mxu0
    %v4042 = vadd.f32 %v4029, %v4041
    %v4043 = vpop.f32.mrf.mxu0
    %4044 = vdwg.mxu0
    %4045 = vmatpush.bf16.msra.mxu0 %v460
    %4046 = vmatpush.bf16.msra.mxu0 %v456
    %4047 = vmatpush.bf16.msra.mxu0 %v452
    %4048 = vmatpush.bf16.msra.mxu0 %v448
    %4049 = vmatpush.bf16.msra.mxu0 %v444
    %4050 = vmatpush.bf16.msra.mxu0 %v440
    %4051 = vmatpush.bf16.msra.mxu0 %v436
    %4052 = vmatpush.bf16.msra.mxu0 %v432
    %4053 = vmatmul.bf16.gmra.mxu0 %v3998
    %v4054 = vpop.f32.mrf.mxu0
    %v4055 = vadd.f32 0.0, %v4054
    %v4056 = vpop.f32.mrf.mxu0
    %4057 = vdwg.mxu0
    %4058 = vmatpush.bf16.msra.mxu0 %v492
    %4059 = vmatpush.bf16.msra.mxu0 %v488
    %4060 = vmatpush.bf16.msra.mxu0 %v484
    %4061 = vmatpush.bf16.msra.mxu0 %v480
    %4062 = vmatpush.bf16.msra.mxu0 %v476
    %4063 = vmatpush.bf16.msra.mxu0 %v472
    %4064 = vmatpush.bf16.msra.mxu0 %v468
    %4065 = vmatpush.bf16.msra.mxu0 %v464
    %4066 = vmatmul.bf16.gmra.mxu0 %v3999
    %v4067 = vpop.f32.mrf.mxu0
    %v4068 = vadd.f32 %v4055, %v4067
    %v4069 = vpop.f32.mrf.mxu0
    %4070 = vdwg.mxu0
    %4071 = vmatpush.bf16.msra.mxu0 0
    %4072 = vmatpush.bf16.msra.mxu0 0
    %4073 = vmatpush.bf16.msra.mxu0 0
    %4074 = vmatpush.bf16.msra.mxu0 0
    %4075 = vmatpush.bf16.msra.mxu0 %v508
    %4076 = vmatpush.bf16.msra.mxu0 %v504
    %4077 = vmatpush.bf16.msra.mxu0 %v500
    %4078 = vmatpush.bf16.msra.mxu0 %v496
    %4079 = vmatmul.bf16.gmra.mxu0 %v4004
    %v4080 = vpop.f32.mrf.mxu0
    %v4081 = vadd.f32 %v4068, %v4080
    %v4082 = vpop.f32.mrf.mxu0
    %4083 = vdwg.mxu0
    %4084 = vmatpush.bf16.msra.mxu0 %v461
    %4085 = vmatpush.bf16.msra.mxu0 %v457
    %4086 = vmatpush.bf16.msra.mxu0 %v453
    %4087 = vmatpush.bf16.msra.mxu0 %v449
    %4088 = vmatpush.bf16.msra.mxu0 %v445
    %4089 = vmatpush.bf16.msra.mxu0 %v441
    %4090 = vmatpush.bf16.msra.mxu0 %v437
    %4091 = vmatpush.bf16.msra.mxu0 %v433
    %4092 = vmatmul.bf16.gmra.mxu0 %v3998
    %v4093 = vpop.f32.mrf.mxu0
    %v4094 = vadd.f32 0.0, %v4093
    %v4095 = vpop.f32.mrf.mxu0
    %4096 = vdwg.mxu0
    %4097 = vmatpush.bf16.msra.mxu0 %v493
    %4098 = vmatpush.bf16.msra.mxu0 %v489
    %4099 = vmatpush.bf16.msra.mxu0 %v485
    %4100 = vmatpush.bf16.msra.mxu0 %v481
    %4101 = vmatpush.bf16.msra.mxu0 %v477
    %4102 = vmatpush.bf16.msra.mxu0 %v473
    %4103 = vmatpush.bf16.msra.mxu0 %v469
    %4104 = vmatpush.bf16.msra.mxu0 %v465
    %4105 = vmatmul.bf16.gmra.mxu0 %v3999
    %v4106 = vpop.f32.mrf.mxu0
    %v4107 = vadd.f32 %v4094, %v4106
    %v4108 = vpop.f32.mrf.mxu0
    %4109 = vdwg.mxu0
    %4110 = vmatpush.bf16.msra.mxu0 0
    %4111 = vmatpush.bf16.msra.mxu0 0
    %4112 = vmatpush.bf16.msra.mxu0 0
    %4113 = vmatpush.bf16.msra.mxu0 0
    %4114 = vmatpush.bf16.msra.mxu0 %v509
    %4115 = vmatpush.bf16.msra.mxu0 %v505
    %4116 = vmatpush.bf16.msra.mxu0 %v501
    %4117 = vmatpush.bf16.msra.mxu0 %v497
    %4118 = vmatmul.bf16.gmra.mxu0 %v4004
    %v4119 = vpop.f32.mrf.mxu0
    %v4120 = vadd.f32 %v4107, %v4119
    %v4121 = vpop.f32.mrf.mxu0
    %4122 = vdwg.mxu0
    %4123 = vmatpush.bf16.msra.mxu0 %v462
    %4124 = vmatpush.bf16.msra.mxu0 %v458
    %4125 = vmatpush.bf16.msra.mxu0 %v454
    %4126 = vmatpush.bf16.msra.mxu0 %v450
    %4127 = vmatpush.bf16.msra.mxu0 %v446
    %4128 = vmatpush.bf16.msra.mxu0 %v442
    %4129 = vmatpush.bf16.msra.mxu0 %v438
    %4130 = vmatpush.bf16.msra.mxu0 %v434
    %4131 = vmatmul.bf16.gmra.mxu0 %v3998
    %v4132 = vpop.f32.mrf.mxu0
    %v4133 = vadd.f32 0.0, %v4132
    %v4134 = vpop.f32.mrf.mxu0
    %4135 = vdwg.mxu0
    %4136 = vmatpush.bf16.msra.mxu0 %v494
    %4137 = vmatpush.bf16.msra.mxu0 %v490
    %4138 = vmatpush.bf16.msra.mxu0 %v486
    %4139 = vmatpush.bf16.msra.mxu0 %v482
    %4140 = vmatpush.bf16.msra.mxu0 %v478
    %4141 = vmatpush.bf16.msra.mxu0 %v474
    %4142 = vmatpush.bf16.msra.mxu0 %v470
    %4143 = vmatpush.bf16.msra.mxu0 %v466
    %4144 = vmatmul.bf16.gmra.mxu0 %v3999
    %v4145 = vpop.f32.mrf.mxu0
    %v4146 = vadd.f32 %v4133, %v4145
    %v4147 = vpop.f32.mrf.mxu0
    %4148 = vdwg.mxu0
    %4149 = vmatpush.bf16.msra.mxu0 0
    %4150 = vmatpush.bf16.msra.mxu0 0
    %4151 = vmatpush.bf16.msra.mxu0 0
    %4152 = vmatpush.bf16.msra.mxu0 0
    %4153 = vmatpush.bf16.msra.mxu0 %v510
    %4154 = vmatpush.bf16.msra.mxu0 %v506
    %4155 = vmatpush.bf16.msra.mxu0 %v502
    %4156 = vmatpush.bf16.msra.mxu0 %v498
    %4157 = vmatmul.bf16.gmra.mxu0 %v4004
    %v4158 = vpop.f32.mrf.mxu0
    %v4159 = vadd.f32 %v4146, %v4158
    %v4160 = vpop.f32.mrf.mxu0
    %4161 = vdwg.mxu0
    %v4162 = vmax.f32 %v4042, %v4081
    %v4163 = vmax.f32 %v4120, %v4159
    %v4164 = vmax.f32 %v4162, %v4163
    %v4165 = vadd.f32 %v4164, %v756
    %v4166 = vmax.f32 %v4165, 0.0
    %v4167 = vpack.c.bf16 %v4166, %v4166
    %s4168 = scalar_lea.vmem [#allocation6], 2048
    %v4169 = vld [vmem:[%s4168] sm:$0xff]
    %v4170 = vld [vmem:[%s4168 + $0x8] sm:$0xff]
    %v4171 = vld [vmem:[%s4168 + $0x10] sm:$0xff]
    %v4172 = vld [vmem:[%s4168 + $0x18] sm:$0xff]
    %v4173 = vld [vmem:[%s4168 + $0x20] sm:$0xff]
    %v4174 = vld [vmem:[%s4168 + $0x28] sm:$0xff]
    %v4175 = vld [vmem:[%s4168 + $0x30] sm:$0xff]
    %v4176 = vld [vmem:[%s4168 + $0x38] sm:$0xff]
    %v4177 = vld [vmem:[%s4168 + $0x40] sm:$0xff]
    %v4178 = vld [vmem:[%s4168 + $0x48] sm:$0xff]
    %v4179 = vld [vmem:[%s4168 + $0x50] sm:$0xff]
    %v4180 = vld [vmem:[%s4168 + $0x58] sm:$0xff]
    %v4181 = vld [vmem:[%s4168 + $0x60] sm:$0xff]
    %v4182 = vld [vmem:[%s4168 + $0x68] sm:$0xff]
    %v4183 = vld [vmem:[%s4168 + $0x70] sm:$0xff]
    %v4184 = vld [vmem:[%s4168 + $0x78] sm:$0xff]
    %v4185 = vld [vmem:[%s4168 + $0x80] sm:$0xff]
    %v4186 = vld [vmem:[%s4168 + $0x88] sm:$0xff]
    %v4187 = vld [vmem:[%s4168 + $0x90] sm:$0xff]
    %v4188 = vld [vmem:[%s4168 + $0x98] sm:$0xff]
    %v4189 = vld [vmem:[%s4168 + $0xa0] sm:$0xff]
    %v4190 = vld [vmem:[%s4168 + $0xa8] sm:$0xff]
    %v4191 = vld [vmem:[%s4168 + $0xb0] sm:$0xff]
    %v4192 = vld [vmem:[%s4168 + $0xb8] sm:$0xff]
    %v4193 = vld [vmem:[%s4168 + $0xc0] sm:$0xff]
    %v4194 = vld [vmem:[%s4168 + $0xc8] sm:$0xff]
    %v4195 = vld [vmem:[%s4168 + $0xd0] sm:$0xff]
    %v4196 = vld [vmem:[%s4168 + $0xd8] sm:$0xff]
    %v4197 = vld [vmem:[%s4168 + $0xe0] sm:$0xff]
    %v4198 = vld [vmem:[%s4168 + $0xe8] sm:$0xff]
    %v4199 = vld [vmem:[%s4168 + $0xf0] sm:$0xff]
    %v4200 = vld [vmem:[%s4168 + $0xf8] sm:$0xff]
    %v4233 = vunpack.c.l.b16 %v4169
    %v4234 = vunpack.c.h.b16 %v4169
    %v4235 = vunpack.c.l.b16 %v4170
    %v4236 = vunpack.c.h.b16 %v4170
    %v4237 = vunpack.c.l.b16 %v4171
    %v4238 = vunpack.c.h.b16 %v4171
    %v4239 = vunpack.c.l.b16 %v4172
    %v4240 = vunpack.c.h.b16 %v4172
    %v4241 = vunpack.c.l.b16 %v4173
    %v4242 = vunpack.c.h.b16 %v4173
    %v4243 = vunpack.c.l.b16 %v4174
    %v4244 = vunpack.c.h.b16 %v4174
    %v4245 = vunpack.c.l.b16 %v4175
    %v4246 = vunpack.c.h.b16 %v4175
    %v4247 = vunpack.c.l.b16 %v4176
    %v4248 = vunpack.c.h.b16 %v4176
    %v4249 = vunpack.c.l.b16 %v4177
    %v4250 = vunpack.c.h.b16 %v4177
    %v4251 = vunpack.c.l.b16 %v4178
    %v4252 = vunpack.c.h.b16 %v4178
    %v4253 = vunpack.c.l.b16 %v4179
    %v4254 = vunpack.c.h.b16 %v4179
    %v4255 = vunpack.c.l.b16 %v4180
    %v4256 = vunpack.c.h.b16 %v4180
    %v4257 = vunpack.c.l.b16 %v4181
    %v4258 = vunpack.c.h.b16 %v4181
    %v4259 = vunpack.c.l.b16 %v4182
    %v4260 = vunpack.c.h.b16 %v4182
    %v4261 = vunpack.c.l.b16 %v4183
    %v4262 = vunpack.c.h.b16 %v4183
    %v4263 = vunpack.c.l.b16 %v4184
    %v4264 = vunpack.c.h.b16 %v4184
    %v4265 = vunpack.c.l.b16 %v4185
    %v4266 = vunpack.c.h.b16 %v4185
    %v4267 = vunpack.c.l.b16 %v4186
    %v4268 = vunpack.c.h.b16 %v4186
    %v4269 = vunpack.c.l.b16 %v4187
    %v4270 = vunpack.c.h.b16 %v4187
    %v4271 = vunpack.c.l.b16 %v4188
    %v4272 = vunpack.c.h.b16 %v4188
    %v4273 = vunpack.c.l.b16 %v4189
    %v4274 = vunpack.c.h.b16 %v4189
    %v4275 = vunpack.c.l.b16 %v4190
    %v4276 = vunpack.c.h.b16 %v4190
    %v4277 = vunpack.c.l.b16 %v4191
    %v4278 = vunpack.c.h.b16 %v4191
    %v4279 = vunpack.c.l.b16 %v4192
    %v4280 = vunpack.c.h.b16 %v4192
    %v4281 = vunpack.c.l.b16 %v4193
    %v4282 = vunpack.c.h.b16 %v4193
    %v4283 = vunpack.c.l.b16 %v4194
    %v4284 = vunpack.c.h.b16 %v4194
    %v4285 = vunpack.c.l.b16 %v4195
    %v4286 = vunpack.c.h.b16 %v4195
    %v4287 = vunpack.c.l.b16 %v4196
    %v4288 = vunpack.c.h.b16 %v4196
    %v4289 = vunpack.c.l.b16 %v4197
    %v4290 = vunpack.c.h.b16 %v4197
    %v4291 = vunpack.c.l.b16 %v4198
    %v4292 = vunpack.c.h.b16 %v4198
    %v4293 = vunpack.c.l.b16 %v4199
    %v4294 = vunpack.c.h.b16 %v4199
    %v4295 = vunpack.c.l.b16 %v4200
    %v4296 = vunpack.c.h.b16 %v4200
    %v4297 = vpack.c.b16 %v4237, %v4233
    %v4298 = vpack.c.b16 %v4238, %v4234
    %v4299 = vpack.c.b16 %v4239, %v4235
    %v4300 = vpack.c.b16 %v4240, %v4236
    %v4301 = vpack.c.b16 %v4245, %v4241
    %v4302 = vpack.c.b16 %v4246, %v4242
    %v4303 = vpack.c.b16 %v4247, %v4243
    %v4304 = vpack.c.b16 %v4248, %v4244
    %v4305 = vpack.c.b16 %v4253, %v4249
    %v4306 = vpack.c.b16 %v4254, %v4250
    %v4307 = vpack.c.b16 %v4255, %v4251
    %v4308 = vpack.c.b16 %v4256, %v4252
    %v4309 = vpack.c.b16 %v4261, %v4257
    %v4310 = vpack.c.b16 %v4262, %v4258
    %v4311 = vpack.c.b16 %v4263, %v4259
    %v4312 = vpack.c.b16 %v4264, %v4260
    %v4313 = vpack.c.b16 %v4269, %v4265
    %v4314 = vpack.c.b16 %v4270, %v4266
    %v4315 = vpack.c.b16 %v4271, %v4267
    %v4316 = vpack.c.b16 %v4272, %v4268
    %v4317 = vpack.c.b16 %v4277, %v4273
    %v4318 = vpack.c.b16 %v4278, %v4274
    %v4319 = vpack.c.b16 %v4279, %v4275
    %v4320 = vpack.c.b16 %v4280, %v4276
    %v4321 = vpack.c.b16 %v4285, %v4281
    %v4322 = vpack.c.b16 %v4286, %v4282
    %v4323 = vpack.c.b16 %v4287, %v4283
    %v4324 = vpack.c.b16 %v4288, %v4284
    %v4325 = vpack.c.b16 %v4293, %v4289
    %v4326 = vpack.c.b16 %v4294, %v4290
    %v4327 = vpack.c.b16 %v4295, %v4291
    %v4328 = vpack.c.b16 %v4296, %v4292
    %4361 = vmatpush.bf16.msra.mxu0 %v4325
    %4362 = vmatpush.bf16.msra.mxu0 %v4321
    %4363 = vmatpush.bf16.msra.mxu0 %v4317
    %4364 = vmatpush.bf16.msra.mxu0 %v4313
    %4365 = vmatpush.bf16.msra.mxu0 %v4309
    %4366 = vmatpush.bf16.msra.mxu0 %v4305
    %4367 = vmatpush.bf16.msra.mxu0 %v4301
    %4368 = vmatpush.bf16.msra.mxu0 %v4297
    %4369 = vmatmul.bf16.gmra.mxu0 %v4167
    %v4370 = vpop.f32.mrf.mxu0
    %v4371 = vadd.f32 0.0, %v4370
    %v4372 = vpop.f32.mrf.mxu0
    %4373 = vdwg.mxu0
    %4374 = vmatpush.bf16.msra.mxu0 %v4326
    %4375 = vmatpush.bf16.msra.mxu0 %v4322
    %4376 = vmatpush.bf16.msra.mxu0 %v4318
    %4377 = vmatpush.bf16.msra.mxu0 %v4314
    %4378 = vmatpush.bf16.msra.mxu0 %v4310
    %4379 = vmatpush.bf16.msra.mxu0 %v4306
    %4380 = vmatpush.bf16.msra.mxu0 %v4302
    %4381 = vmatpush.bf16.msra.mxu0 %v4298
    %4382 = vmatmul.bf16.gmra.mxu0 %v4167
    %v4383 = vpop.f32.mrf.mxu0
    %v4384 = vadd.f32 0.0, %v4383
    %v4385 = vpop.f32.mrf.mxu0
    %4386 = vdwg.mxu0
    %4387 = vmatpush.bf16.msra.mxu0 %v4327
    %4388 = vmatpush.bf16.msra.mxu0 %v4323
    %4389 = vmatpush.bf16.msra.mxu0 %v4319
    %4390 = vmatpush.bf16.msra.mxu0 %v4315
    %4391 = vmatpush.bf16.msra.mxu0 %v4311
    %4392 = vmatpush.bf16.msra.mxu0 %v4307
    %4393 = vmatpush.bf16.msra.mxu0 %v4303
    %4394 = vmatpush.bf16.msra.mxu0 %v4299
    %4395 = vmatmul.bf16.gmra.mxu0 %v4167
    %v4396 = vpop.f32.mrf.mxu0
    %v4397 = vadd.f32 0.0, %v4396
    %v4398 = vpop.f32.mrf.mxu0
    %4399 = vdwg.mxu0
    %4400 = vmatpush.bf16.msra.mxu0 %v4328
    %4401 = vmatpush.bf16.msra.mxu0 %v4324
    %4402 = vmatpush.bf16.msra.mxu0 %v4320
    %4403 = vmatpush.bf16.msra.mxu0 %v4316
    %4404 = vmatpush.bf16.msra.mxu0 %v4312
    %4405 = vmatpush.bf16.msra.mxu0 %v4308
    %4406 = vmatpush.bf16.msra.mxu0 %v4304
    %4407 = vmatpush.bf16.msra.mxu0 %v4300
    %4408 = vmatmul.bf16.gmra.mxu0 %v4167
    %v4409 = vpop.f32.mrf.mxu0
    %v4410 = vadd.f32 0.0, %v4409
    %v4411 = vpop.f32.mrf.mxu0
    %4412 = vdwg.mxu0
    %v4413 = vadd.f32 %v3986, %v4371
    %v4414 = vadd.f32 %v3987, %v4384
    %v4415 = vadd.f32 %v3988, %v4397
    %v4416 = vadd.f32 %v3989, %v4410
    %s4417 = scalar_lea.vmem %s0, 108
    %v4418 = vld [vmem:[%s4417] sm:$0xff]
    %v4419 = vld [vmem:[%s4417 + $0x8] sm:$0xf]
    %v4422 = vunpack.c.l.b16 %v4418
    %v4423 = vunpack.c.h.b16 %v4418
    %v4424 = vunpack.c.l.b16 %v4419
    %v4425 = vpack.c.b16 %v4422, %v4422
    %v4426 = vpack.c.b16 %v4423, %v4423
    %v4427 = vpack.c.b16 %v4424, %v4424
    %v4431 = vsel %vm591, %v4427, 0
    %4433 = vmatpush.bf16.msra.mxu0 %v459
    %4434 = vmatpush.bf16.msra.mxu0 %v455
    %4435 = vmatpush.bf16.msra.mxu0 %v451
    %4436 = vmatpush.bf16.msra.mxu0 %v447
    %4437 = vmatpush.bf16.msra.mxu0 %v443
    %4438 = vmatpush.bf16.msra.mxu0 %v439
    %4439 = vmatpush.bf16.msra.mxu0 %v435
    %4440 = vmatpush.bf16.msra.mxu0 %v431
    %4441 = vmatmul.bf16.gmra.mxu0 %v4425
    %v4442 = vpop.f32.mrf.mxu0
    %v4443 = vadd.f32 0.0, %v4442
    %v4444 = vpop.f32.mrf.mxu0
    %4445 = vdwg.mxu0
    %4446 = vmatpush.bf16.msra.mxu0 %v491
    %4447 = vmatpush.bf16.msra.mxu0 %v487
    %4448 = vmatpush.bf16.msra.mxu0 %v483
    %4449 = vmatpush.bf16.msra.mxu0 %v479
    %4450 = vmatpush.bf16.msra.mxu0 %v475
    %4451 = vmatpush.bf16.msra.mxu0 %v471
    %4452 = vmatpush.bf16.msra.mxu0 %v467
    %4453 = vmatpush.bf16.msra.mxu0 %v463
    %4454 = vmatmul.bf16.gmra.mxu0 %v4426
    %v4455 = vpop.f32.mrf.mxu0
    %v4456 = vadd.f32 %v4443, %v4455
    %v4457 = vpop.f32.mrf.mxu0
    %4458 = vdwg.mxu0
    %4459 = vmatpush.bf16.msra.mxu0 0
    %4460 = vmatpush.bf16.msra.mxu0 0
    %4461 = vmatpush.bf16.msra.mxu0 0
    %4462 = vmatpush.bf16.msra.mxu0 0
    %4463 = vmatpush.bf16.msra.mxu0 %v507
    %4464 = vmatpush.bf16.msra.mxu0 %v503
    %4465 = vmatpush.bf16.msra.mxu0 %v499
    %4466 = vmatpush.bf16.msra.mxu0 %v495
    %4467 = vmatmul.bf16.gmra.mxu0 %v4431
    %v4468 = vpop.f32.mrf.mxu0
    %v4469 = vadd.f32 %v4456, %v4468
    %v4470 = vpop.f32.mrf.mxu0
    %4471 = vdwg.mxu0
    %4472 = vmatpush.bf16.msra.mxu0 %v460
    %4473 = vmatpush.bf16.msra.mxu0 %v456
    %4474 = vmatpush.bf16.msra.mxu0 %v452
    %4475 = vmatpush.bf16.msra.mxu0 %v448
    %4476 = vmatpush.bf16.msra.mxu0 %v444
    %4477 = vmatpush.bf16.msra.mxu0 %v440
    %4478 = vmatpush.bf16.msra.mxu0 %v436
    %4479 = vmatpush.bf16.msra.mxu0 %v432
    %4480 = vmatmul.bf16.gmra.mxu0 %v4425
    %v4481 = vpop.f32.mrf.mxu0
    %v4482 = vadd.f32 0.0, %v4481
    %v4483 = vpop.f32.mrf.mxu0
    %4484 = vdwg.mxu0
    %4485 = vmatpush.bf16.msra.mxu0 %v492
    %4486 = vmatpush.bf16.msra.mxu0 %v488
    %4487 = vmatpush.bf16.msra.mxu0 %v484
    %4488 = vmatpush.bf16.msra.mxu0 %v480
    %4489 = vmatpush.bf16.msra.mxu0 %v476
    %4490 = vmatpush.bf16.msra.mxu0 %v472
    %4491 = vmatpush.bf16.msra.mxu0 %v468
    %4492 = vmatpush.bf16.msra.mxu0 %v464
    %4493 = vmatmul.bf16.gmra.mxu0 %v4426
    %v4494 = vpop.f32.mrf.mxu0
    %v4495 = vadd.f32 %v4482, %v4494
    %v4496 = vpop.f32.mrf.mxu0
    %4497 = vdwg.mxu0
    %4498 = vmatpush.bf16.msra.mxu0 0
    %4499 = vmatpush.bf16.msra.mxu0 0
    %4500 = vmatpush.bf16.msra.mxu0 0
    %4501 = vmatpush.bf16.msra.mxu0 0
    %4502 = vmatpush.bf16.msra.mxu0 %v508
    %4503 = vmatpush.bf16.msra.mxu0 %v504
    %4504 = vmatpush.bf16.msra.mxu0 %v500
    %4505 = vmatpush.bf16.msra.mxu0 %v496
    %4506 = vmatmul.bf16.gmra.mxu0 %v4431
    %v4507 = vpop.f32.mrf.mxu0
    %v4508 = vadd.f32 %v4495, %v4507
    %v4509 = vpop.f32.mrf.mxu0
    %4510 = vdwg.mxu0
    %4511 = vmatpush.bf16.msra.mxu0 %v461
    %4512 = vmatpush.bf16.msra.mxu0 %v457
    %4513 = vmatpush.bf16.msra.mxu0 %v453
    %4514 = vmatpush.bf16.msra.mxu0 %v449
    %4515 = vmatpush.bf16.msra.mxu0 %v445
    %4516 = vmatpush.bf16.msra.mxu0 %v441
    %4517 = vmatpush.bf16.msra.mxu0 %v437
    %4518 = vmatpush.bf16.msra.mxu0 %v433
    %4519 = vmatmul.bf16.gmra.mxu0 %v4425
    %v4520 = vpop.f32.mrf.mxu0
    %v4521 = vadd.f32 0.0, %v4520
    %v4522 = vpop.f32.mrf.mxu0
    %4523 = vdwg.mxu0
    %4524 = vmatpush.bf16.msra.mxu0 %v493
    %4525 = vmatpush.bf16.msra.mxu0 %v489
    %4526 = vmatpush.bf16.msra.mxu0 %v485
    %4527 = vmatpush.bf16.msra.mxu0 %v481
    %4528 = vmatpush.bf16.msra.mxu0 %v477
    %4529 = vmatpush.bf16.msra.mxu0 %v473
    %4530 = vmatpush.bf16.msra.mxu0 %v469
    %4531 = vmatpush.bf16.msra.mxu0 %v465
    %4532 = vmatmul.bf16.gmra.mxu0 %v4426
    %v4533 = vpop.f32.mrf.mxu0
    %v4534 = vadd.f32 %v4521, %v4533
    %v4535 = vpop.f32.mrf.mxu0
    %4536 = vdwg.mxu0
    %4537 = vmatpush.bf16.msra.mxu0 0
    %4538 = vmatpush.bf16.msra.mxu0 0
    %4539 = vmatpush.bf16.msra.mxu0 0
    %4540 = vmatpush.bf16.msra.mxu0 0
    %4541 = vmatpush.bf16.msra.mxu0 %v509
    %4542 = vmatpush.bf16.msra.mxu0 %v505
    %4543 = vmatpush.bf16.msra.mxu0 %v501
    %4544 = vmatpush.bf16.msra.mxu0 %v497
    %4545 = vmatmul.bf16.gmra.mxu0 %v4431
    %v4546 = vpop.f32.mrf.mxu0
    %v4547 = vadd.f32 %v4534, %v4546
    %v4548 = vpop.f32.mrf.mxu0
    %4549 = vdwg.mxu0
    %4550 = vmatpush.bf16.msra.mxu0 %v462
    %4551 = vmatpush.bf16.msra.mxu0 %v458
    %4552 = vmatpush.bf16.msra.mxu0 %v454
    %4553 = vmatpush.bf16.msra.mxu0 %v450
    %4554 = vmatpush.bf16.msra.mxu0 %v446
    %4555 = vmatpush.bf16.msra.mxu0 %v442
    %4556 = vmatpush.bf16.msra.mxu0 %v438
    %4557 = vmatpush.bf16.msra.mxu0 %v434
    %4558 = vmatmul.bf16.gmra.mxu0 %v4425
    %v4559 = vpop.f32.mrf.mxu0
    %v4560 = vadd.f32 0.0, %v4559
    %v4561 = vpop.f32.mrf.mxu0
    %4562 = vdwg.mxu0
    %4563 = vmatpush.bf16.msra.mxu0 %v494
    %4564 = vmatpush.bf16.msra.mxu0 %v490
    %4565 = vmatpush.bf16.msra.mxu0 %v486
    %4566 = vmatpush.bf16.msra.mxu0 %v482
    %4567 = vmatpush.bf16.msra.mxu0 %v478
    %4568 = vmatpush.bf16.msra.mxu0 %v474
    %4569 = vmatpush.bf16.msra.mxu0 %v470
    %4570 = vmatpush.bf16.msra.mxu0 %v466
    %4571 = vmatmul.bf16.gmra.mxu0 %v4426
    %v4572 = vpop.f32.mrf.mxu0
    %v4573 = vadd.f32 %v4560, %v4572
    %v4574 = vpop.f32.mrf.mxu0
    %4575 = vdwg.mxu0
    %4576 = vmatpush.bf16.msra.mxu0 0
    %4577 = vmatpush.bf16.msra.mxu0 0
    %4578 = vmatpush.bf16.msra.mxu0 0
    %4579 = vmatpush.bf16.msra.mxu0 0
    %4580 = vmatpush.bf16.msra.mxu0 %v510
    %4581 = vmatpush.bf16.msra.mxu0 %v506
    %4582 = vmatpush.bf16.msra.mxu0 %v502
    %4583 = vmatpush.bf16.msra.mxu0 %v498
    %4584 = vmatmul.bf16.gmra.mxu0 %v4431
    %v4585 = vpop.f32.mrf.mxu0
    %v4586 = vadd.f32 %v4573, %v4585
    %v4587 = vpop.f32.mrf.mxu0
    %4588 = vdwg.mxu0
    %v4589 = vmax.f32 %v4469, %v4508
    %v4590 = vmax.f32 %v4547, %v4586
    %v4591 = vmax.f32 %v4589, %v4590
    %v4592 = vadd.f32 %v4591, %v756
    %v4593 = vmax.f32 %v4592, 0.0
    %v4594 = vpack.c.bf16 %v4593, %v4593
    %s4595 = scalar_lea.vmem [#allocation6], 2304
    %v4596 = vld [vmem:[%s4595] sm:$0xff]
    %v4597 = vld [vmem:[%s4595 + $0x8] sm:$0xff]
    %v4598 = vld [vmem:[%s4595 + $0x10] sm:$0xff]
    %v4599 = vld [vmem:[%s4595 + $0x18] sm:$0xff]
    %v4600 = vld [vmem:[%s4595 + $0x20] sm:$0xff]
    %v4601 = vld [vmem:[%s4595 + $0x28] sm:$0xff]
    %v4602 = vld [vmem:[%s4595 + $0x30] sm:$0xff]
    %v4603 = vld [vmem:[%s4595 + $0x38] sm:$0xff]
    %v4604 = vld [vmem:[%s4595 + $0x40] sm:$0xff]
    %v4605 = vld [vmem:[%s4595 + $0x48] sm:$0xff]
    %v4606 = vld [vmem:[%s4595 + $0x50] sm:$0xff]
    %v4607 = vld [vmem:[%s4595 + $0x58] sm:$0xff]
    %v4608 = vld [vmem:[%s4595 + $0x60] sm:$0xff]
    %v4609 = vld [vmem:[%s4595 + $0x68] sm:$0xff]
    %v4610 = vld [vmem:[%s4595 + $0x70] sm:$0xff]
    %v4611 = vld [vmem:[%s4595 + $0x78] sm:$0xff]
    %v4612 = vld [vmem:[%s4595 + $0x80] sm:$0xff]
    %v4613 = vld [vmem:[%s4595 + $0x88] sm:$0xff]
    %v4614 = vld [vmem:[%s4595 + $0x90] sm:$0xff]
    %v4615 = vld [vmem:[%s4595 + $0x98] sm:$0xff]
    %v4616 = vld [vmem:[%s4595 + $0xa0] sm:$0xff]
    %v4617 = vld [vmem:[%s4595 + $0xa8] sm:$0xff]
    %v4618 = vld [vmem:[%s4595 + $0xb0] sm:$0xff]
    %v4619 = vld [vmem:[%s4595 + $0xb8] sm:$0xff]
    %v4620 = vld [vmem:[%s4595 + $0xc0] sm:$0xff]
    %v4621 = vld [vmem:[%s4595 + $0xc8] sm:$0xff]
    %v4622 = vld [vmem:[%s4595 + $0xd0] sm:$0xff]
    %v4623 = vld [vmem:[%s4595 + $0xd8] sm:$0xff]
    %v4624 = vld [vmem:[%s4595 + $0xe0] sm:$0xff]
    %v4625 = vld [vmem:[%s4595 + $0xe8] sm:$0xff]
    %v4626 = vld [vmem:[%s4595 + $0xf0] sm:$0xff]
    %v4627 = vld [vmem:[%s4595 + $0xf8] sm:$0xff]
    %v4660 = vunpack.c.l.b16 %v4596
    %v4661 = vunpack.c.h.b16 %v4596
    %v4662 = vunpack.c.l.b16 %v4597
    %v4663 = vunpack.c.h.b16 %v4597
    %v4664 = vunpack.c.l.b16 %v4598
    %v4665 = vunpack.c.h.b16 %v4598
    %v4666 = vunpack.c.l.b16 %v4599
    %v4667 = vunpack.c.h.b16 %v4599
    %v4668 = vunpack.c.l.b16 %v4600
    %v4669 = vunpack.c.h.b16 %v4600
    %v4670 = vunpack.c.l.b16 %v4601
    %v4671 = vunpack.c.h.b16 %v4601
    %v4672 = vunpack.c.l.b16 %v4602
    %v4673 = vunpack.c.h.b16 %v4602
    %v4674 = vunpack.c.l.b16 %v4603
    %v4675 = vunpack.c.h.b16 %v4603
    %v4676 = vunpack.c.l.b16 %v4604
    %v4677 = vunpack.c.h.b16 %v4604
    %v4678 = vunpack.c.l.b16 %v4605
    %v4679 = vunpack.c.h.b16 %v4605
    %v4680 = vunpack.c.l.b16 %v4606
    %v4681 = vunpack.c.h.b16 %v4606
    %v4682 = vunpack.c.l.b16 %v4607
    %v4683 = vunpack.c.h.b16 %v4607
    %v4684 = vunpack.c.l.b16 %v4608
    %v4685 = vunpack.c.h.b16 %v4608
    %v4686 = vunpack.c.l.b16 %v4609
    %v4687 = vunpack.c.h.b16 %v4609
    %v4688 = vunpack.c.l.b16 %v4610
    %v4689 = vunpack.c.h.b16 %v4610
    %v4690 = vunpack.c.l.b16 %v4611
    %v4691 = vunpack.c.h.b16 %v4611
    %v4692 = vunpack.c.l.b16 %v4612
    %v4693 = vunpack.c.h.b16 %v4612
    %v4694 = vunpack.c.l.b16 %v4613
    %v4695 = vunpack.c.h.b16 %v4613
    %v4696 = vunpack.c.l.b16 %v4614
    %v4697 = vunpack.c.h.b16 %v4614
    %v4698 = vunpack.c.l.b16 %v4615
    %v4699 = vunpack.c.h.b16 %v4615
    %v4700 = vunpack.c.l.b16 %v4616
    %v4701 = vunpack.c.h.b16 %v4616
    %v4702 = vunpack.c.l.b16 %v4617
    %v4703 = vunpack.c.h.b16 %v4617
    %v4704 = vunpack.c.l.b16 %v4618
    %v4705 = vunpack.c.h.b16 %v4618
    %v4706 = vunpack.c.l.b16 %v4619
    %v4707 = vunpack.c.h.b16 %v4619
    %v4708 = vunpack.c.l.b16 %v4620
    %v4709 = vunpack.c.h.b16 %v4620
    %v4710 = vunpack.c.l.b16 %v4621
    %v4711 = vunpack.c.h.b16 %v4621
    %v4712 = vunpack.c.l.b16 %v4622
    %v4713 = vunpack.c.h.b16 %v4622
    %v4714 = vunpack.c.l.b16 %v4623
    %v4715 = vunpack.c.h.b16 %v4623
    %v4716 = vunpack.c.l.b16 %v4624
    %v4717 = vunpack.c.h.b16 %v4624
    %v4718 = vunpack.c.l.b16 %v4625
    %v4719 = vunpack.c.h.b16 %v4625
    %v4720 = vunpack.c.l.b16 %v4626
    %v4721 = vunpack.c.h.b16 %v4626
    %v4722 = vunpack.c.l.b16 %v4627
    %v4723 = vunpack.c.h.b16 %v4627
    %v4724 = vpack.c.b16 %v4664, %v4660
    %v4725 = vpack.c.b16 %v4665, %v4661
    %v4726 = vpack.c.b16 %v4666, %v4662
    %v4727 = vpack.c.b16 %v4667, %v4663
    %v4728 = vpack.c.b16 %v4672, %v4668
    %v4729 = vpack.c.b16 %v4673, %v4669
    %v4730 = vpack.c.b16 %v4674, %v4670
    %v4731 = vpack.c.b16 %v4675, %v4671
    %v4732 = vpack.c.b16 %v4680, %v4676
    %v4733 = vpack.c.b16 %v4681, %v4677
    %v4734 = vpack.c.b16 %v4682, %v4678
    %v4735 = vpack.c.b16 %v4683, %v4679
    %v4736 = vpack.c.b16 %v4688, %v4684
    %v4737 = vpack.c.b16 %v4689, %v4685
    %v4738 = vpack.c.b16 %v4690, %v4686
    %v4739 = vpack.c.b16 %v4691, %v4687
    %v4740 = vpack.c.b16 %v4696, %v4692
    %v4741 = vpack.c.b16 %v4697, %v4693
    %v4742 = vpack.c.b16 %v4698, %v4694
    %v4743 = vpack.c.b16 %v4699, %v4695
    %v4744 = vpack.c.b16 %v4704, %v4700
    %v4745 = vpack.c.b16 %v4705, %v4701
    %v4746 = vpack.c.b16 %v4706, %v4702
    %v4747 = vpack.c.b16 %v4707, %v4703
    %v4748 = vpack.c.b16 %v4712, %v4708
    %v4749 = vpack.c.b16 %v4713, %v4709
    %v4750 = vpack.c.b16 %v4714, %v4710
    %v4751 = vpack.c.b16 %v4715, %v4711
    %v4752 = vpack.c.b16 %v4720, %v4716
    %v4753 = vpack.c.b16 %v4721, %v4717
    %v4754 = vpack.c.b16 %v4722, %v4718
    %v4755 = vpack.c.b16 %v4723, %v4719
    %4788 = vmatpush.bf16.msra.mxu0 %v4752
    %4789 = vmatpush.bf16.msra.mxu0 %v4748
    %4790 = vmatpush.bf16.msra.mxu0 %v4744
    %4791 = vmatpush.bf16.msra.mxu0 %v4740
    %4792 = vmatpush.bf16.msra.mxu0 %v4736
    %4793 = vmatpush.bf16.msra.mxu0 %v4732
    %4794 = vmatpush.bf16.msra.mxu0 %v4728
    %4795 = vmatpush.bf16.msra.mxu0 %v4724
    %4796 = vmatmul.bf16.gmra.mxu0 %v4594
    %v4797 = vpop.f32.mrf.mxu0
    %v4798 = vadd.f32 0.0, %v4797
    %v4799 = vpop.f32.mrf.mxu0
    %4800 = vdwg.mxu0
    %4801 = vmatpush.bf16.msra.mxu0 %v4753
    %4802 = vmatpush.bf16.msra.mxu0 %v4749
    %4803 = vmatpush.bf16.msra.mxu0 %v4745
    %4804 = vmatpush.bf16.msra.mxu0 %v4741
    %4805 = vmatpush.bf16.msra.mxu0 %v4737
    %4806 = vmatpush.bf16.msra.mxu0 %v4733
    %4807 = vmatpush.bf16.msra.mxu0 %v4729
    %4808 = vmatpush.bf16.msra.mxu0 %v4725
    %4809 = vmatmul.bf16.gmra.mxu0 %v4594
    %v4810 = vpop.f32.mrf.mxu0
    %v4811 = vadd.f32 0.0, %v4810
    %v4812 = vpop.f32.mrf.mxu0
    %4813 = vdwg.mxu0
    %4814 = vmatpush.bf16.msra.mxu0 %v4754
    %4815 = vmatpush.bf16.msra.mxu0 %v4750
    %4816 = vmatpush.bf16.msra.mxu0 %v4746
    %4817 = vmatpush.bf16.msra.mxu0 %v4742
    %4818 = vmatpush.bf16.msra.mxu0 %v4738
    %4819 = vmatpush.bf16.msra.mxu0 %v4734
    %4820 = vmatpush.bf16.msra.mxu0 %v4730
    %4821 = vmatpush.bf16.msra.mxu0 %v4726
    %4822 = vmatmul.bf16.gmra.mxu0 %v4594
    %v4823 = vpop.f32.mrf.mxu0
    %v4824 = vadd.f32 0.0, %v4823
    %v4825 = vpop.f32.mrf.mxu0
    %4826 = vdwg.mxu0
    %4827 = vmatpush.bf16.msra.mxu0 %v4755
    %4828 = vmatpush.bf16.msra.mxu0 %v4751
    %4829 = vmatpush.bf16.msra.mxu0 %v4747
    %4830 = vmatpush.bf16.msra.mxu0 %v4743
    %4831 = vmatpush.bf16.msra.mxu0 %v4739
    %4832 = vmatpush.bf16.msra.mxu0 %v4735
    %4833 = vmatpush.bf16.msra.mxu0 %v4731
    %4834 = vmatpush.bf16.msra.mxu0 %v4727
    %4835 = vmatmul.bf16.gmra.mxu0 %v4594
    %v4836 = vpop.f32.mrf.mxu0
    %v4837 = vadd.f32 0.0, %v4836
    %v4838 = vpop.f32.mrf.mxu0
    %4839 = vdwg.mxu0
    %v4840 = vadd.f32 %v4413, %v4798
    %v4841 = vadd.f32 %v4414, %v4811
    %v4842 = vadd.f32 %v4415, %v4824
    %v4843 = vadd.f32 %v4416, %v4837
    %s4844 = scalar_lea.vmem %s0, 120
    %v4845 = vld [vmem:[%s4844] sm:$0xff]
    %v4846 = vld [vmem:[%s4844 + $0x8] sm:$0xf]
    %v4849 = vunpack.c.l.b16 %v4845
    %v4850 = vunpack.c.h.b16 %v4845
    %v4851 = vunpack.c.l.b16 %v4846
    %v4852 = vpack.c.b16 %v4849, %v4849
    %v4853 = vpack.c.b16 %v4850, %v4850
    %v4854 = vpack.c.b16 %v4851, %v4851
    %v4858 = vsel %vm591, %v4854, 0
    %4860 = vmatpush.bf16.msra.mxu0 %v459
    %4861 = vmatpush.bf16.msra.mxu0 %v455
    %4862 = vmatpush.bf16.msra.mxu0 %v451
    %4863 = vmatpush.bf16.msra.mxu0 %v447
    %4864 = vmatpush.bf16.msra.mxu0 %v443
    %4865 = vmatpush.bf16.msra.mxu0 %v439
    %4866 = vmatpush.bf16.msra.mxu0 %v435
    %4867 = vmatpush.bf16.msra.mxu0 %v431
    %4868 = vmatmul.bf16.gmra.mxu0 %v4852
    %v4869 = vpop.f32.mrf.mxu0
    %v4870 = vadd.f32 0.0, %v4869
    %v4871 = vpop.f32.mrf.mxu0
    %4872 = vdwg.mxu0
    %4873 = vmatpush.bf16.msra.mxu0 %v491
    %4874 = vmatpush.bf16.msra.mxu0 %v487
    %4875 = vmatpush.bf16.msra.mxu0 %v483
    %4876 = vmatpush.bf16.msra.mxu0 %v479
    %4877 = vmatpush.bf16.msra.mxu0 %v475
    %4878 = vmatpush.bf16.msra.mxu0 %v471
    %4879 = vmatpush.bf16.msra.mxu0 %v467
    %4880 = vmatpush.bf16.msra.mxu0 %v463
    %4881 = vmatmul.bf16.gmra.mxu0 %v4853
    %v4882 = vpop.f32.mrf.mxu0
    %v4883 = vadd.f32 %v4870, %v4882
    %v4884 = vpop.f32.mrf.mxu0
    %4885 = vdwg.mxu0
    %4886 = vmatpush.bf16.msra.mxu0 0
    %4887 = vmatpush.bf16.msra.mxu0 0
    %4888 = vmatpush.bf16.msra.mxu0 0
    %4889 = vmatpush.bf16.msra.mxu0 0
    %4890 = vmatpush.bf16.msra.mxu0 %v507
    %4891 = vmatpush.bf16.msra.mxu0 %v503
    %4892 = vmatpush.bf16.msra.mxu0 %v499
    %4893 = vmatpush.bf16.msra.mxu0 %v495
    %4894 = vmatmul.bf16.gmra.mxu0 %v4858
    %v4895 = vpop.f32.mrf.mxu0
    %v4896 = vadd.f32 %v4883, %v4895
    %v4897 = vpop.f32.mrf.mxu0
    %4898 = vdwg.mxu0
    %4899 = vmatpush.bf16.msra.mxu0 %v460
    %4900 = vmatpush.bf16.msra.mxu0 %v456
    %4901 = vmatpush.bf16.msra.mxu0 %v452
    %4902 = vmatpush.bf16.msra.mxu0 %v448
    %4903 = vmatpush.bf16.msra.mxu0 %v444
    %4904 = vmatpush.bf16.msra.mxu0 %v440
    %4905 = vmatpush.bf16.msra.mxu0 %v436
    %4906 = vmatpush.bf16.msra.mxu0 %v432
    %4907 = vmatmul.bf16.gmra.mxu0 %v4852
    %v4908 = vpop.f32.mrf.mxu0
    %v4909 = vadd.f32 0.0, %v4908
    %v4910 = vpop.f32.mrf.mxu0
    %4911 = vdwg.mxu0
    %4912 = vmatpush.bf16.msra.mxu0 %v492
    %4913 = vmatpush.bf16.msra.mxu0 %v488
    %4914 = vmatpush.bf16.msra.mxu0 %v484
    %4915 = vmatpush.bf16.msra.mxu0 %v480
    %4916 = vmatpush.bf16.msra.mxu0 %v476
    %4917 = vmatpush.bf16.msra.mxu0 %v472
    %4918 = vmatpush.bf16.msra.mxu0 %v468
    %4919 = vmatpush.bf16.msra.mxu0 %v464
    %4920 = vmatmul.bf16.gmra.mxu0 %v4853
    %v4921 = vpop.f32.mrf.mxu0
    %v4922 = vadd.f32 %v4909, %v4921
    %v4923 = vpop.f32.mrf.mxu0
    %4924 = vdwg.mxu0
    %4925 = vmatpush.bf16.msra.mxu0 0
    %4926 = vmatpush.bf16.msra.mxu0 0
    %4927 = vmatpush.bf16.msra.mxu0 0
    %4928 = vmatpush.bf16.msra.mxu0 0
    %4929 = vmatpush.bf16.msra.mxu0 %v508
    %4930 = vmatpush.bf16.msra.mxu0 %v504
    %4931 = vmatpush.bf16.msra.mxu0 %v500
    %4932 = vmatpush.bf16.msra.mxu0 %v496
    %4933 = vmatmul.bf16.gmra.mxu0 %v4858
    %v4934 = vpop.f32.mrf.mxu0
    %v4935 = vadd.f32 %v4922, %v4934
    %v4936 = vpop.f32.mrf.mxu0
    %4937 = vdwg.mxu0
    %4938 = vmatpush.bf16.msra.mxu0 %v461
    %4939 = vmatpush.bf16.msra.mxu0 %v457
    %4940 = vmatpush.bf16.msra.mxu0 %v453
    %4941 = vmatpush.bf16.msra.mxu0 %v449
    %4942 = vmatpush.bf16.msra.mxu0 %v445
    %4943 = vmatpush.bf16.msra.mxu0 %v441
    %4944 = vmatpush.bf16.msra.mxu0 %v437
    %4945 = vmatpush.bf16.msra.mxu0 %v433
    %4946 = vmatmul.bf16.gmra.mxu0 %v4852
    %v4947 = vpop.f32.mrf.mxu0
    %v4948 = vadd.f32 0.0, %v4947
    %v4949 = vpop.f32.mrf.mxu0
    %4950 = vdwg.mxu0
    %4951 = vmatpush.bf16.msra.mxu0 %v493
    %4952 = vmatpush.bf16.msra.mxu0 %v489
    %4953 = vmatpush.bf16.msra.mxu0 %v485
    %4954 = vmatpush.bf16.msra.mxu0 %v481
    %4955 = vmatpush.bf16.msra.mxu0 %v477
    %4956 = vmatpush.bf16.msra.mxu0 %v473
    %4957 = vmatpush.bf16.msra.mxu0 %v469
    %4958 = vmatpush.bf16.msra.mxu0 %v465
    %4959 = vmatmul.bf16.gmra.mxu0 %v4853
    %v4960 = vpop.f32.mrf.mxu0
    %v4961 = vadd.f32 %v4948, %v4960
    %v4962 = vpop.f32.mrf.mxu0
    %4963 = vdwg.mxu0
    %4964 = vmatpush.bf16.msra.mxu0 0
    %4965 = vmatpush.bf16.msra.mxu0 0
    %4966 = vmatpush.bf16.msra.mxu0 0
    %4967 = vmatpush.bf16.msra.mxu0 0
    %4968 = vmatpush.bf16.msra.mxu0 %v509
    %4969 = vmatpush.bf16.msra.mxu0 %v505
    %4970 = vmatpush.bf16.msra.mxu0 %v501
    %4971 = vmatpush.bf16.msra.mxu0 %v497
    %4972 = vmatmul.bf16.gmra.mxu0 %v4858
    %v4973 = vpop.f32.mrf.mxu0
    %v4974 = vadd.f32 %v4961, %v4973
    %v4975 = vpop.f32.mrf.mxu0
    %4976 = vdwg.mxu0
    %4977 = vmatpush.bf16.msra.mxu0 %v462
    %4978 = vmatpush.bf16.msra.mxu0 %v458
    %4979 = vmatpush.bf16.msra.mxu0 %v454
    %4980 = vmatpush.bf16.msra.mxu0 %v450
    %4981 = vmatpush.bf16.msra.mxu0 %v446
    %4982 = vmatpush.bf16.msra.mxu0 %v442
    %4983 = vmatpush.bf16.msra.mxu0 %v438
    %4984 = vmatpush.bf16.msra.mxu0 %v434
    %4985 = vmatmul.bf16.gmra.mxu0 %v4852
    %v4986 = vpop.f32.mrf.mxu0
    %v4987 = vadd.f32 0.0, %v4986
    %v4988 = vpop.f32.mrf.mxu0
    %4989 = vdwg.mxu0
    %4990 = vmatpush.bf16.msra.mxu0 %v494
    %4991 = vmatpush.bf16.msra.mxu0 %v490
    %4992 = vmatpush.bf16.msra.mxu0 %v486
    %4993 = vmatpush.bf16.msra.mxu0 %v482
    %4994 = vmatpush.bf16.msra.mxu0 %v478
    %4995 = vmatpush.bf16.msra.mxu0 %v474
    %4996 = vmatpush.bf16.msra.mxu0 %v470
    %4997 = vmatpush.bf16.msra.mxu0 %v466
    %4998 = vmatmul.bf16.gmra.mxu0 %v4853
    %v4999 = vpop.f32.mrf.mxu0
    %v5000 = vadd.f32 %v4987, %v4999
    %v5001 = vpop.f32.mrf.mxu0
    %5002 = vdwg.mxu0
    %5003 = vmatpush.bf16.msra.mxu0 0
    %5004 = vmatpush.bf16.msra.mxu0 0
    %5005 = vmatpush.bf16.msra.mxu0 0
    %5006 = vmatpush.bf16.msra.mxu0 0
    %5007 = vmatpush.bf16.msra.mxu0 %v510
    %5008 = vmatpush.bf16.msra.mxu0 %v506
    %5009 = vmatpush.bf16.msra.mxu0 %v502
    %5010 = vmatpush.bf16.msra.mxu0 %v498
    %5011 = vmatmul.bf16.gmra.mxu0 %v4858
    %v5012 = vpop.f32.mrf.mxu0
    %v5013 = vadd.f32 %v5000, %v5012
    %v5014 = vpop.f32.mrf.mxu0
    %5015 = vdwg.mxu0
    %v5016 = vmax.f32 %v4896, %v4935
    %v5017 = vmax.f32 %v4974, %v5013
    %v5018 = vmax.f32 %v5016, %v5017
    %v5019 = vadd.f32 %v5018, %v756
    %v5020 = vmax.f32 %v5019, 0.0
    %v5021 = vpack.c.bf16 %v5020, %v5020
    %s5022 = scalar_lea.vmem [#allocation6], 2560
    %v5023 = vld [vmem:[%s5022] sm:$0xff]
    %v5024 = vld [vmem:[%s5022 + $0x8] sm:$0xff]
    %v5025 = vld [vmem:[%s5022 + $0x10] sm:$0xff]
    %v5026 = vld [vmem:[%s5022 + $0x18] sm:$0xff]
    %v5027 = vld [vmem:[%s5022 + $0x20] sm:$0xff]
    %v5028 = vld [vmem:[%s5022 + $0x28] sm:$0xff]
    %v5029 = vld [vmem:[%s5022 + $0x30] sm:$0xff]
    %v5030 = vld [vmem:[%s5022 + $0x38] sm:$0xff]
    %v5031 = vld [vmem:[%s5022 + $0x40] sm:$0xff]
    %v5032 = vld [vmem:[%s5022 + $0x48] sm:$0xff]
    %v5033 = vld [vmem:[%s5022 + $0x50] sm:$0xff]
    %v5034 = vld [vmem:[%s5022 + $0x58] sm:$0xff]
    %v5035 = vld [vmem:[%s5022 + $0x60] sm:$0xff]
    %v5036 = vld [vmem:[%s5022 + $0x68] sm:$0xff]
    %v5037 = vld [vmem:[%s5022 + $0x70] sm:$0xff]
    %v5038 = vld [vmem:[%s5022 + $0x78] sm:$0xff]
    %v5039 = vld [vmem:[%s5022 + $0x80] sm:$0xff]
    %v5040 = vld [vmem:[%s5022 + $0x88] sm:$0xff]
    %v5041 = vld [vmem:[%s5022 + $0x90] sm:$0xff]
    %v5042 = vld [vmem:[%s5022 + $0x98] sm:$0xff]
    %v5043 = vld [vmem:[%s5022 + $0xa0] sm:$0xff]
    %v5044 = vld [vmem:[%s5022 + $0xa8] sm:$0xff]
    %v5045 = vld [vmem:[%s5022 + $0xb0] sm:$0xff]
    %v5046 = vld [vmem:[%s5022 + $0xb8] sm:$0xff]
    %v5047 = vld [vmem:[%s5022 + $0xc0] sm:$0xff]
    %v5048 = vld [vmem:[%s5022 + $0xc8] sm:$0xff]
    %v5049 = vld [vmem:[%s5022 + $0xd0] sm:$0xff]
    %v5050 = vld [vmem:[%s5022 + $0xd8] sm:$0xff]
    %v5051 = vld [vmem:[%s5022 + $0xe0] sm:$0xff]
    %v5052 = vld [vmem:[%s5022 + $0xe8] sm:$0xff]
    %v5053 = vld [vmem:[%s5022 + $0xf0] sm:$0xff]
    %v5054 = vld [vmem:[%s5022 + $0xf8] sm:$0xff]
    %v5087 = vunpack.c.l.b16 %v5023
    %v5088 = vunpack.c.h.b16 %v5023
    %v5089 = vunpack.c.l.b16 %v5024
    %v5090 = vunpack.c.h.b16 %v5024
    %v5091 = vunpack.c.l.b16 %v5025
    %v5092 = vunpack.c.h.b16 %v5025
    %v5093 = vunpack.c.l.b16 %v5026
    %v5094 = vunpack.c.h.b16 %v5026
    %v5095 = vunpack.c.l.b16 %v5027
    %v5096 = vunpack.c.h.b16 %v5027
    %v5097 = vunpack.c.l.b16 %v5028
    %v5098 = vunpack.c.h.b16 %v5028
    %v5099 = vunpack.c.l.b16 %v5029
    %v5100 = vunpack.c.h.b16 %v5029
    %v5101 = vunpack.c.l.b16 %v5030
    %v5102 = vunpack.c.h.b16 %v5030
    %v5103 = vunpack.c.l.b16 %v5031
    %v5104 = vunpack.c.h.b16 %v5031
    %v5105 = vunpack.c.l.b16 %v5032
    %v5106 = vunpack.c.h.b16 %v5032
    %v5107 = vunpack.c.l.b16 %v5033
    %v5108 = vunpack.c.h.b16 %v5033
    %v5109 = vunpack.c.l.b16 %v5034
    %v5110 = vunpack.c.h.b16 %v5034
    %v5111 = vunpack.c.l.b16 %v5035
    %v5112 = vunpack.c.h.b16 %v5035
    %v5113 = vunpack.c.l.b16 %v5036
    %v5114 = vunpack.c.h.b16 %v5036
    %v5115 = vunpack.c.l.b16 %v5037
    %v5116 = vunpack.c.h.b16 %v5037
    %v5117 = vunpack.c.l.b16 %v5038
    %v5118 = vunpack.c.h.b16 %v5038
    %v5119 = vunpack.c.l.b16 %v5039
    %v5120 = vunpack.c.h.b16 %v5039
    %v5121 = vunpack.c.l.b16 %v5040
    %v5122 = vunpack.c.h.b16 %v5040
    %v5123 = vunpack.c.l.b16 %v5041
    %v5124 = vunpack.c.h.b16 %v5041
    %v5125 = vunpack.c.l.b16 %v5042
    %v5126 = vunpack.c.h.b16 %v5042
    %v5127 = vunpack.c.l.b16 %v5043
    %v5128 = vunpack.c.h.b16 %v5043
    %v5129 = vunpack.c.l.b16 %v5044
    %v5130 = vunpack.c.h.b16 %v5044
    %v5131 = vunpack.c.l.b16 %v5045
    %v5132 = vunpack.c.h.b16 %v5045
    %v5133 = vunpack.c.l.b16 %v5046
    %v5134 = vunpack.c.h.b16 %v5046
    %v5135 = vunpack.c.l.b16 %v5047
    %v5136 = vunpack.c.h.b16 %v5047
    %v5137 = vunpack.c.l.b16 %v5048
    %v5138 = vunpack.c.h.b16 %v5048
    %v5139 = vunpack.c.l.b16 %v5049
    %v5140 = vunpack.c.h.b16 %v5049
    %v5141 = vunpack.c.l.b16 %v5050
    %v5142 = vunpack.c.h.b16 %v5050
    %v5143 = vunpack.c.l.b16 %v5051
    %v5144 = vunpack.c.h.b16 %v5051
    %v5145 = vunpack.c.l.b16 %v5052
    %v5146 = vunpack.c.h.b16 %v5052
    %v5147 = vunpack.c.l.b16 %v5053
    %v5148 = vunpack.c.h.b16 %v5053
    %v5149 = vunpack.c.l.b16 %v5054
    %v5150 = vunpack.c.h.b16 %v5054
    %v5151 = vpack.c.b16 %v5091, %v5087
    %v5152 = vpack.c.b16 %v5092, %v5088
    %v5153 = vpack.c.b16 %v5093, %v5089
    %v5154 = vpack.c.b16 %v5094, %v5090
    %v5155 = vpack.c.b16 %v5099, %v5095
    %v5156 = vpack.c.b16 %v5100, %v5096
    %v5157 = vpack.c.b16 %v5101, %v5097
    %v5158 = vpack.c.b16 %v5102, %v5098
    %v5159 = vpack.c.b16 %v5107, %v5103
    %v5160 = vpack.c.b16 %v5108, %v5104
    %v5161 = vpack.c.b16 %v5109, %v5105
    %v5162 = vpack.c.b16 %v5110, %v5106
    %v5163 = vpack.c.b16 %v5115, %v5111
    %v5164 = vpack.c.b16 %v5116, %v5112
    %v5165 = vpack.c.b16 %v5117, %v5113
    %v5166 = vpack.c.b16 %v5118, %v5114
    %v5167 = vpack.c.b16 %v5123, %v5119
    %v5168 = vpack.c.b16 %v5124, %v5120
    %v5169 = vpack.c.b16 %v5125, %v5121
    %v5170 = vpack.c.b16 %v5126, %v5122
    %v5171 = vpack.c.b16 %v5131, %v5127
    %v5172 = vpack.c.b16 %v5132, %v5128
    %v5173 = vpack.c.b16 %v5133, %v5129
    %v5174 = vpack.c.b16 %v5134, %v5130
    %v5175 = vpack.c.b16 %v5139, %v5135
    %v5176 = vpack.c.b16 %v5140, %v5136
    %v5177 = vpack.c.b16 %v5141, %v5137
    %v5178 = vpack.c.b16 %v5142, %v5138
    %v5179 = vpack.c.b16 %v5147, %v5143
    %v5180 = vpack.c.b16 %v5148, %v5144
    %v5181 = vpack.c.b16 %v5149, %v5145
    %v5182 = vpack.c.b16 %v5150, %v5146
    %5215 = vmatpush.bf16.msra.mxu0 %v5179
    %5216 = vmatpush.bf16.msra.mxu0 %v5175
    %5217 = vmatpush.bf16.msra.mxu0 %v5171
    %5218 = vmatpush.bf16.msra.mxu0 %v5167
    %5219 = vmatpush.bf16.msra.mxu0 %v5163
    %5220 = vmatpush.bf16.msra.mxu0 %v5159
    %5221 = vmatpush.bf16.msra.mxu0 %v5155
    %5222 = vmatpush.bf16.msra.mxu0 %v5151
    %5223 = vmatmul.bf16.gmra.mxu0 %v5021
    %v5224 = vpop.f32.mrf.mxu0
    %v5225 = vadd.f32 0.0, %v5224
    %v5226 = vpop.f32.mrf.mxu0
    %5227 = vdwg.mxu0
    %5228 = vmatpush.bf16.msra.mxu0 %v5180
    %5229 = vmatpush.bf16.msra.mxu0 %v5176
    %5230 = vmatpush.bf16.msra.mxu0 %v5172
    %5231 = vmatpush.bf16.msra.mxu0 %v5168
    %5232 = vmatpush.bf16.msra.mxu0 %v5164
    %5233 = vmatpush.bf16.msra.mxu0 %v5160
    %5234 = vmatpush.bf16.msra.mxu0 %v5156
    %5235 = vmatpush.bf16.msra.mxu0 %v5152
    %5236 = vmatmul.bf16.gmra.mxu0 %v5021
    %v5237 = vpop.f32.mrf.mxu0
    %v5238 = vadd.f32 0.0, %v5237
    %v5239 = vpop.f32.mrf.mxu0
    %5240 = vdwg.mxu0
    %5241 = vmatpush.bf16.msra.mxu0 %v5181
    %5242 = vmatpush.bf16.msra.mxu0 %v5177
    %5243 = vmatpush.bf16.msra.mxu0 %v5173
    %5244 = vmatpush.bf16.msra.mxu0 %v5169
    %5245 = vmatpush.bf16.msra.mxu0 %v5165
    %5246 = vmatpush.bf16.msra.mxu0 %v5161
    %5247 = vmatpush.bf16.msra.mxu0 %v5157
    %5248 = vmatpush.bf16.msra.mxu0 %v5153
    %5249 = vmatmul.bf16.gmra.mxu0 %v5021
    %v5250 = vpop.f32.mrf.mxu0
    %v5251 = vadd.f32 0.0, %v5250
    %v5252 = vpop.f32.mrf.mxu0
    %5253 = vdwg.mxu0
    %5254 = vmatpush.bf16.msra.mxu0 %v5182
    %5255 = vmatpush.bf16.msra.mxu0 %v5178
    %5256 = vmatpush.bf16.msra.mxu0 %v5174
    %5257 = vmatpush.bf16.msra.mxu0 %v5170
    %5258 = vmatpush.bf16.msra.mxu0 %v5166
    %5259 = vmatpush.bf16.msra.mxu0 %v5162
    %5260 = vmatpush.bf16.msra.mxu0 %v5158
    %5261 = vmatpush.bf16.msra.mxu0 %v5154
    %5262 = vmatmul.bf16.gmra.mxu0 %v5021
    %v5263 = vpop.f32.mrf.mxu0
    %v5264 = vadd.f32 0.0, %v5263
    %v5265 = vpop.f32.mrf.mxu0
    %5266 = vdwg.mxu0
    %v5267 = vadd.f32 %v4840, %v5225
    %v5268 = vadd.f32 %v4841, %v5238
    %v5269 = vadd.f32 %v4842, %v5251
    %v5270 = vadd.f32 %v4843, %v5264
    %s5271 = scalar_lea.vmem %s0, 132
    %v5272 = vld [vmem:[%s5271] sm:$0xff]
    %v5273 = vld [vmem:[%s5271 + $0x8] sm:$0xf]
    %v5276 = vunpack.c.l.b16 %v5272
    %v5277 = vunpack.c.h.b16 %v5272
    %v5278 = vunpack.c.l.b16 %v5273
    %v5279 = vpack.c.b16 %v5276, %v5276
    %v5280 = vpack.c.b16 %v5277, %v5277
    %v5281 = vpack.c.b16 %v5278, %v5278
    %v5285 = vsel %vm591, %v5281, 0
    %5287 = vmatpush.bf16.msra.mxu0 %v459
    %5288 = vmatpush.bf16.msra.mxu0 %v455
    %5289 = vmatpush.bf16.msra.mxu0 %v451
    %5290 = vmatpush.bf16.msra.mxu0 %v447
    %5291 = vmatpush.bf16.msra.mxu0 %v443
    %5292 = vmatpush.bf16.msra.mxu0 %v439
    %5293 = vmatpush.bf16.msra.mxu0 %v435
    %5294 = vmatpush.bf16.msra.mxu0 %v431
    %5295 = vmatmul.bf16.gmra.mxu0 %v5279
    %v5296 = vpop.f32.mrf.mxu0
    %v5297 = vadd.f32 0.0, %v5296
    %v5298 = vpop.f32.mrf.mxu0
    %5299 = vdwg.mxu0
    %5300 = vmatpush.bf16.msra.mxu0 %v491
    %5301 = vmatpush.bf16.msra.mxu0 %v487
    %5302 = vmatpush.bf16.msra.mxu0 %v483
    %5303 = vmatpush.bf16.msra.mxu0 %v479
    %5304 = vmatpush.bf16.msra.mxu0 %v475
    %5305 = vmatpush.bf16.msra.mxu0 %v471
    %5306 = vmatpush.bf16.msra.mxu0 %v467
    %5307 = vmatpush.bf16.msra.mxu0 %v463
    %5308 = vmatmul.bf16.gmra.mxu0 %v5280
    %v5309 = vpop.f32.mrf.mxu0
    %v5310 = vadd.f32 %v5297, %v5309
    %v5311 = vpop.f32.mrf.mxu0
    %5312 = vdwg.mxu0
    %5313 = vmatpush.bf16.msra.mxu0 0
    %5314 = vmatpush.bf16.msra.mxu0 0
    %5315 = vmatpush.bf16.msra.mxu0 0
    %5316 = vmatpush.bf16.msra.mxu0 0
    %5317 = vmatpush.bf16.msra.mxu0 %v507
    %5318 = vmatpush.bf16.msra.mxu0 %v503
    %5319 = vmatpush.bf16.msra.mxu0 %v499
    %5320 = vmatpush.bf16.msra.mxu0 %v495
    %5321 = vmatmul.bf16.gmra.mxu0 %v5285
    %v5322 = vpop.f32.mrf.mxu0
    %v5323 = vadd.f32 %v5310, %v5322
    %v5324 = vpop.f32.mrf.mxu0
    %5325 = vdwg.mxu0
    %5326 = vmatpush.bf16.msra.mxu0 %v460
    %5327 = vmatpush.bf16.msra.mxu0 %v456
    %5328 = vmatpush.bf16.msra.mxu0 %v452
    %5329 = vmatpush.bf16.msra.mxu0 %v448
    %5330 = vmatpush.bf16.msra.mxu0 %v444
    %5331 = vmatpush.bf16.msra.mxu0 %v440
    %5332 = vmatpush.bf16.msra.mxu0 %v436
    %5333 = vmatpush.bf16.msra.mxu0 %v432
    %5334 = vmatmul.bf16.gmra.mxu0 %v5279
    %v5335 = vpop.f32.mrf.mxu0
    %v5336 = vadd.f32 0.0, %v5335
    %v5337 = vpop.f32.mrf.mxu0
    %5338 = vdwg.mxu0
    %5339 = vmatpush.bf16.msra.mxu0 %v492
    %5340 = vmatpush.bf16.msra.mxu0 %v488
    %5341 = vmatpush.bf16.msra.mxu0 %v484
    %5342 = vmatpush.bf16.msra.mxu0 %v480
    %5343 = vmatpush.bf16.msra.mxu0 %v476
    %5344 = vmatpush.bf16.msra.mxu0 %v472
    %5345 = vmatpush.bf16.msra.mxu0 %v468
    %5346 = vmatpush.bf16.msra.mxu0 %v464
    %5347 = vmatmul.bf16.gmra.mxu0 %v5280
    %v5348 = vpop.f32.mrf.mxu0
    %v5349 = vadd.f32 %v5336, %v5348
    %v5350 = vpop.f32.mrf.mxu0
    %5351 = vdwg.mxu0
    %5352 = vmatpush.bf16.msra.mxu0 0
    %5353 = vmatpush.bf16.msra.mxu0 0
    %5354 = vmatpush.bf16.msra.mxu0 0
    %5355 = vmatpush.bf16.msra.mxu0 0
    %5356 = vmatpush.bf16.msra.mxu0 %v508
    %5357 = vmatpush.bf16.msra.mxu0 %v504
    %5358 = vmatpush.bf16.msra.mxu0 %v500
    %5359 = vmatpush.bf16.msra.mxu0 %v496
    %5360 = vmatmul.bf16.gmra.mxu0 %v5285
    %v5361 = vpop.f32.mrf.mxu0
    %v5362 = vadd.f32 %v5349, %v5361
    %v5363 = vpop.f32.mrf.mxu0
    %5364 = vdwg.mxu0
    %5365 = vmatpush.bf16.msra.mxu0 %v461
    %5366 = vmatpush.bf16.msra.mxu0 %v457
    %5367 = vmatpush.bf16.msra.mxu0 %v453
    %5368 = vmatpush.bf16.msra.mxu0 %v449
    %5369 = vmatpush.bf16.msra.mxu0 %v445
    %5370 = vmatpush.bf16.msra.mxu0 %v441
    %5371 = vmatpush.bf16.msra.mxu0 %v437
    %5372 = vmatpush.bf16.msra.mxu0 %v433
    %5373 = vmatmul.bf16.gmra.mxu0 %v5279
    %v5374 = vpop.f32.mrf.mxu0
    %v5375 = vadd.f32 0.0, %v5374
    %v5376 = vpop.f32.mrf.mxu0
    %5377 = vdwg.mxu0
    %5378 = vmatpush.bf16.msra.mxu0 %v493
    %5379 = vmatpush.bf16.msra.mxu0 %v489
    %5380 = vmatpush.bf16.msra.mxu0 %v485
    %5381 = vmatpush.bf16.msra.mxu0 %v481
    %5382 = vmatpush.bf16.msra.mxu0 %v477
    %5383 = vmatpush.bf16.msra.mxu0 %v473
    %5384 = vmatpush.bf16.msra.mxu0 %v469
    %5385 = vmatpush.bf16.msra.mxu0 %v465
    %5386 = vmatmul.bf16.gmra.mxu0 %v5280
    %v5387 = vpop.f32.mrf.mxu0
    %v5388 = vadd.f32 %v5375, %v5387
    %v5389 = vpop.f32.mrf.mxu0
    %5390 = vdwg.mxu0
    %5391 = vmatpush.bf16.msra.mxu0 0
    %5392 = vmatpush.bf16.msra.mxu0 0
    %5393 = vmatpush.bf16.msra.mxu0 0
    %5394 = vmatpush.bf16.msra.mxu0 0
    %5395 = vmatpush.bf16.msra.mxu0 %v509
    %5396 = vmatpush.bf16.msra.mxu0 %v505
    %5397 = vmatpush.bf16.msra.mxu0 %v501
    %5398 = vmatpush.bf16.msra.mxu0 %v497
    %5399 = vmatmul.bf16.gmra.mxu0 %v5285
    %v5400 = vpop.f32.mrf.mxu0
    %v5401 = vadd.f32 %v5388, %v5400
    %v5402 = vpop.f32.mrf.mxu0
    %5403 = vdwg.mxu0
    %5404 = vmatpush.bf16.msra.mxu0 %v462
    %5405 = vmatpush.bf16.msra.mxu0 %v458
    %5406 = vmatpush.bf16.msra.mxu0 %v454
    %5407 = vmatpush.bf16.msra.mxu0 %v450
    %5408 = vmatpush.bf16.msra.mxu0 %v446
    %5409 = vmatpush.bf16.msra.mxu0 %v442
    %5410 = vmatpush.bf16.msra.mxu0 %v438
    %5411 = vmatpush.bf16.msra.mxu0 %v434
    %5412 = vmatmul.bf16.gmra.mxu0 %v5279
    %v5413 = vpop.f32.mrf.mxu0
    %v5414 = vadd.f32 0.0, %v5413
    %v5415 = vpop.f32.mrf.mxu0
    %5416 = vdwg.mxu0
    %5417 = vmatpush.bf16.msra.mxu0 %v494
    %5418 = vmatpush.bf16.msra.mxu0 %v490
    %5419 = vmatpush.bf16.msra.mxu0 %v486
    %5420 = vmatpush.bf16.msra.mxu0 %v482
    %5421 = vmatpush.bf16.msra.mxu0 %v478
    %5422 = vmatpush.bf16.msra.mxu0 %v474
    %5423 = vmatpush.bf16.msra.mxu0 %v470
    %5424 = vmatpush.bf16.msra.mxu0 %v466
    %5425 = vmatmul.bf16.gmra.mxu0 %v5280
    %v5426 = vpop.f32.mrf.mxu0
    %v5427 = vadd.f32 %v5414, %v5426
    %v5428 = vpop.f32.mrf.mxu0
    %5429 = vdwg.mxu0
    %5430 = vmatpush.bf16.msra.mxu0 0
    %5431 = vmatpush.bf16.msra.mxu0 0
    %5432 = vmatpush.bf16.msra.mxu0 0
    %5433 = vmatpush.bf16.msra.mxu0 0
    %5434 = vmatpush.bf16.msra.mxu0 %v510
    %5435 = vmatpush.bf16.msra.mxu0 %v506
    %5436 = vmatpush.bf16.msra.mxu0 %v502
    %5437 = vmatpush.bf16.msra.mxu0 %v498
    %5438 = vmatmul.bf16.gmra.mxu0 %v5285
    %v5439 = vpop.f32.mrf.mxu0
    %v5440 = vadd.f32 %v5427, %v5439
    %v5441 = vpop.f32.mrf.mxu0
    %5442 = vdwg.mxu0
    %v5443 = vmax.f32 %v5323, %v5362
    %v5444 = vmax.f32 %v5401, %v5440
    %v5445 = vmax.f32 %v5443, %v5444
    %v5446 = vadd.f32 %v5445, %v756
    %v5447 = vmax.f32 %v5446, 0.0
    %v5448 = vpack.c.bf16 %v5447, %v5447
    %s5449 = scalar_lea.vmem [#allocation6], 2816
    %v5450 = vld [vmem:[%s5449] sm:$0xff]
    %v5451 = vld [vmem:[%s5449 + $0x8] sm:$0xff]
    %v5452 = vld [vmem:[%s5449 + $0x10] sm:$0xff]
    %v5453 = vld [vmem:[%s5449 + $0x18] sm:$0xff]
    %v5454 = vld [vmem:[%s5449 + $0x20] sm:$0xff]
    %v5455 = vld [vmem:[%s5449 + $0x28] sm:$0xff]
    %v5456 = vld [vmem:[%s5449 + $0x30] sm:$0xff]
    %v5457 = vld [vmem:[%s5449 + $0x38] sm:$0xff]
    %v5458 = vld [vmem:[%s5449 + $0x40] sm:$0xff]
    %v5459 = vld [vmem:[%s5449 + $0x48] sm:$0xff]
    %v5460 = vld [vmem:[%s5449 + $0x50] sm:$0xff]
    %v5461 = vld [vmem:[%s5449 + $0x58] sm:$0xff]
    %v5462 = vld [vmem:[%s5449 + $0x60] sm:$0xff]
    %v5463 = vld [vmem:[%s5449 + $0x68] sm:$0xff]
    %v5464 = vld [vmem:[%s5449 + $0x70] sm:$0xff]
    %v5465 = vld [vmem:[%s5449 + $0x78] sm:$0xff]
    %v5466 = vld [vmem:[%s5449 + $0x80] sm:$0xff]
    %v5467 = vld [vmem:[%s5449 + $0x88] sm:$0xff]
    %v5468 = vld [vmem:[%s5449 + $0x90] sm:$0xff]
    %v5469 = vld [vmem:[%s5449 + $0x98] sm:$0xff]
    %v5470 = vld [vmem:[%s5449 + $0xa0] sm:$0xff]
    %v5471 = vld [vmem:[%s5449 + $0xa8] sm:$0xff]
    %v5472 = vld [vmem:[%s5449 + $0xb0] sm:$0xff]
    %v5473 = vld [vmem:[%s5449 + $0xb8] sm:$0xff]
    %v5474 = vld [vmem:[%s5449 + $0xc0] sm:$0xff]
    %v5475 = vld [vmem:[%s5449 + $0xc8] sm:$0xff]
    %v5476 = vld [vmem:[%s5449 + $0xd0] sm:$0xff]
    %v5477 = vld [vmem:[%s5449 + $0xd8] sm:$0xff]
    %v5478 = vld [vmem:[%s5449 + $0xe0] sm:$0xff]
    %v5479 = vld [vmem:[%s5449 + $0xe8] sm:$0xff]
    %v5480 = vld [vmem:[%s5449 + $0xf0] sm:$0xff]
    %v5481 = vld [vmem:[%s5449 + $0xf8] sm:$0xff]
    %v5514 = vunpack.c.l.b16 %v5450
    %v5515 = vunpack.c.h.b16 %v5450
    %v5516 = vunpack.c.l.b16 %v5451
    %v5517 = vunpack.c.h.b16 %v5451
    %v5518 = vunpack.c.l.b16 %v5452
    %v5519 = vunpack.c.h.b16 %v5452
    %v5520 = vunpack.c.l.b16 %v5453
    %v5521 = vunpack.c.h.b16 %v5453
    %v5522 = vunpack.c.l.b16 %v5454
    %v5523 = vunpack.c.h.b16 %v5454
    %v5524 = vunpack.c.l.b16 %v5455
    %v5525 = vunpack.c.h.b16 %v5455
    %v5526 = vunpack.c.l.b16 %v5456
    %v5527 = vunpack.c.h.b16 %v5456
    %v5528 = vunpack.c.l.b16 %v5457
    %v5529 = vunpack.c.h.b16 %v5457
    %v5530 = vunpack.c.l.b16 %v5458
    %v5531 = vunpack.c.h.b16 %v5458
    %v5532 = vunpack.c.l.b16 %v5459
    %v5533 = vunpack.c.h.b16 %v5459
    %v5534 = vunpack.c.l.b16 %v5460
    %v5535 = vunpack.c.h.b16 %v5460
    %v5536 = vunpack.c.l.b16 %v5461
    %v5537 = vunpack.c.h.b16 %v5461
    %v5538 = vunpack.c.l.b16 %v5462
    %v5539 = vunpack.c.h.b16 %v5462
    %v5540 = vunpack.c.l.b16 %v5463
    %v5541 = vunpack.c.h.b16 %v5463
    %v5542 = vunpack.c.l.b16 %v5464
    %v5543 = vunpack.c.h.b16 %v5464
    %v5544 = vunpack.c.l.b16 %v5465
    %v5545 = vunpack.c.h.b16 %v5465
    %v5546 = vunpack.c.l.b16 %v5466
    %v5547 = vunpack.c.h.b16 %v5466
    %v5548 = vunpack.c.l.b16 %v5467
    %v5549 = vunpack.c.h.b16 %v5467
    %v5550 = vunpack.c.l.b16 %v5468
    %v5551 = vunpack.c.h.b16 %v5468
    %v5552 = vunpack.c.l.b16 %v5469
    %v5553 = vunpack.c.h.b16 %v5469
    %v5554 = vunpack.c.l.b16 %v5470
    %v5555 = vunpack.c.h.b16 %v5470
    %v5556 = vunpack.c.l.b16 %v5471
    %v5557 = vunpack.c.h.b16 %v5471
    %v5558 = vunpack.c.l.b16 %v5472
    %v5559 = vunpack.c.h.b16 %v5472
    %v5560 = vunpack.c.l.b16 %v5473
    %v5561 = vunpack.c.h.b16 %v5473
    %v5562 = vunpack.c.l.b16 %v5474
    %v5563 = vunpack.c.h.b16 %v5474
    %v5564 = vunpack.c.l.b16 %v5475
    %v5565 = vunpack.c.h.b16 %v5475
    %v5566 = vunpack.c.l.b16 %v5476
    %v5567 = vunpack.c.h.b16 %v5476
    %v5568 = vunpack.c.l.b16 %v5477
    %v5569 = vunpack.c.h.b16 %v5477
    %v5570 = vunpack.c.l.b16 %v5478
    %v5571 = vunpack.c.h.b16 %v5478
    %v5572 = vunpack.c.l.b16 %v5479
    %v5573 = vunpack.c.h.b16 %v5479
    %v5574 = vunpack.c.l.b16 %v5480
    %v5575 = vunpack.c.h.b16 %v5480
    %v5576 = vunpack.c.l.b16 %v5481
    %v5577 = vunpack.c.h.b16 %v5481
    %v5578 = vpack.c.b16 %v5518, %v5514
    %v5579 = vpack.c.b16 %v5519, %v5515
    %v5580 = vpack.c.b16 %v5520, %v5516
    %v5581 = vpack.c.b16 %v5521, %v5517
    %v5582 = vpack.c.b16 %v5526, %v5522
    %v5583 = vpack.c.b16 %v5527, %v5523
    %v5584 = vpack.c.b16 %v5528, %v5524
    %v5585 = vpack.c.b16 %v5529, %v5525
    %v5586 = vpack.c.b16 %v5534, %v5530
    %v5587 = vpack.c.b16 %v5535, %v5531
    %v5588 = vpack.c.b16 %v5536, %v5532
    %v5589 = vpack.c.b16 %v5537, %v5533
    %v5590 = vpack.c.b16 %v5542, %v5538
    %v5591 = vpack.c.b16 %v5543, %v5539
    %v5592 = vpack.c.b16 %v5544, %v5540
    %v5593 = vpack.c.b16 %v5545, %v5541
    %v5594 = vpack.c.b16 %v5550, %v5546
    %v5595 = vpack.c.b16 %v5551, %v5547
    %v5596 = vpack.c.b16 %v5552, %v5548
    %v5597 = vpack.c.b16 %v5553, %v5549
    %v5598 = vpack.c.b16 %v5558, %v5554
    %v5599 = vpack.c.b16 %v5559, %v5555
    %v5600 = vpack.c.b16 %v5560, %v5556
    %v5601 = vpack.c.b16 %v5561, %v5557
    %v5602 = vpack.c.b16 %v5566, %v5562
    %v5603 = vpack.c.b16 %v5567, %v5563
    %v5604 = vpack.c.b16 %v5568, %v5564
    %v5605 = vpack.c.b16 %v5569, %v5565
    %v5606 = vpack.c.b16 %v5574, %v5570
    %v5607 = vpack.c.b16 %v5575, %v5571
    %v5608 = vpack.c.b16 %v5576, %v5572
    %v5609 = vpack.c.b16 %v5577, %v5573
    %5642 = vmatpush.bf16.msra.mxu0 %v5606
    %5643 = vmatpush.bf16.msra.mxu0 %v5602
    %5644 = vmatpush.bf16.msra.mxu0 %v5598
    %5645 = vmatpush.bf16.msra.mxu0 %v5594
    %5646 = vmatpush.bf16.msra.mxu0 %v5590
    %5647 = vmatpush.bf16.msra.mxu0 %v5586
    %5648 = vmatpush.bf16.msra.mxu0 %v5582
    %5649 = vmatpush.bf16.msra.mxu0 %v5578
    %5650 = vmatmul.bf16.gmra.mxu0 %v5448
    %v5651 = vpop.f32.mrf.mxu0
    %v5652 = vadd.f32 0.0, %v5651
    %v5653 = vpop.f32.mrf.mxu0
    %5654 = vdwg.mxu0
    %5655 = vmatpush.bf16.msra.mxu0 %v5607
    %5656 = vmatpush.bf16.msra.mxu0 %v5603
    %5657 = vmatpush.bf16.msra.mxu0 %v5599
    %5658 = vmatpush.bf16.msra.mxu0 %v5595
    %5659 = vmatpush.bf16.msra.mxu0 %v5591
    %5660 = vmatpush.bf16.msra.mxu0 %v5587
    %5661 = vmatpush.bf16.msra.mxu0 %v5583
    %5662 = vmatpush.bf16.msra.mxu0 %v5579
    %5663 = vmatmul.bf16.gmra.mxu0 %v5448
    %v5664 = vpop.f32.mrf.mxu0
    %v5665 = vadd.f32 0.0, %v5664
    %v5666 = vpop.f32.mrf.mxu0
    %5667 = vdwg.mxu0
    %5668 = vmatpush.bf16.msra.mxu0 %v5608
    %5669 = vmatpush.bf16.msra.mxu0 %v5604
    %5670 = vmatpush.bf16.msra.mxu0 %v5600
    %5671 = vmatpush.bf16.msra.mxu0 %v5596
    %5672 = vmatpush.bf16.msra.mxu0 %v5592
    %5673 = vmatpush.bf16.msra.mxu0 %v5588
    %5674 = vmatpush.bf16.msra.mxu0 %v5584
    %5675 = vmatpush.bf16.msra.mxu0 %v5580
    %5676 = vmatmul.bf16.gmra.mxu0 %v5448
    %v5677 = vpop.f32.mrf.mxu0
    %v5678 = vadd.f32 0.0, %v5677
    %v5679 = vpop.f32.mrf.mxu0
    %5680 = vdwg.mxu0
    %5681 = vmatpush.bf16.msra.mxu0 %v5609
    %5682 = vmatpush.bf16.msra.mxu0 %v5605
    %5683 = vmatpush.bf16.msra.mxu0 %v5601
    %5684 = vmatpush.bf16.msra.mxu0 %v5597
    %5685 = vmatpush.bf16.msra.mxu0 %v5593
    %5686 = vmatpush.bf16.msra.mxu0 %v5589
    %5687 = vmatpush.bf16.msra.mxu0 %v5585
    %5688 = vmatpush.bf16.msra.mxu0 %v5581
    %5689 = vmatmul.bf16.gmra.mxu0 %v5448
    %v5690 = vpop.f32.mrf.mxu0
    %v5691 = vadd.f32 0.0, %v5690
    %v5692 = vpop.f32.mrf.mxu0
    %5693 = vdwg.mxu0
    %v5694 = vadd.f32 %v5267, %v5652
    %v5695 = vadd.f32 %v5268, %v5665
    %v5696 = vadd.f32 %v5269, %v5678
    %v5697 = vadd.f32 %v5270, %v5691
    %s5698 = scalar_lea.vmem %s0, 144
    %v5699 = vld [vmem:[%s5698] sm:$0xff]
    %v5700 = vld [vmem:[%s5698 + $0x8] sm:$0xf]
    %v5703 = vunpack.c.l.b16 %v5699
    %v5704 = vunpack.c.h.b16 %v5699
    %v5705 = vunpack.c.l.b16 %v5700
    %v5706 = vpack.c.b16 %v5703, %v5703
    %v5707 = vpack.c.b16 %v5704, %v5704
    %v5708 = vpack.c.b16 %v5705, %v5705
    %v5712 = vsel %vm591, %v5708, 0
    %5714 = vmatpush.bf16.msra.mxu0 %v459
    %5715 = vmatpush.bf16.msra.mxu0 %v455
    %5716 = vmatpush.bf16.msra.mxu0 %v451
    %5717 = vmatpush.bf16.msra.mxu0 %v447
    %5718 = vmatpush.bf16.msra.mxu0 %v443
    %5719 = vmatpush.bf16.msra.mxu0 %v439
    %5720 = vmatpush.bf16.msra.mxu0 %v435
    %5721 = vmatpush.bf16.msra.mxu0 %v431
    %5722 = vmatmul.bf16.gmra.mxu0 %v5706
    %v5723 = vpop.f32.mrf.mxu0
    %v5724 = vadd.f32 0.0, %v5723
    %v5725 = vpop.f32.mrf.mxu0
    %5726 = vdwg.mxu0
    %5727 = vmatpush.bf16.msra.mxu0 %v491
    %5728 = vmatpush.bf16.msra.mxu0 %v487
    %5729 = vmatpush.bf16.msra.mxu0 %v483
    %5730 = vmatpush.bf16.msra.mxu0 %v479
    %5731 = vmatpush.bf16.msra.mxu0 %v475
    %5732 = vmatpush.bf16.msra.mxu0 %v471
    %5733 = vmatpush.bf16.msra.mxu0 %v467
    %5734 = vmatpush.bf16.msra.mxu0 %v463
    %5735 = vmatmul.bf16.gmra.mxu0 %v5707
    %v5736 = vpop.f32.mrf.mxu0
    %v5737 = vadd.f32 %v5724, %v5736
    %v5738 = vpop.f32.mrf.mxu0
    %5739 = vdwg.mxu0
    %5740 = vmatpush.bf16.msra.mxu0 0
    %5741 = vmatpush.bf16.msra.mxu0 0
    %5742 = vmatpush.bf16.msra.mxu0 0
    %5743 = vmatpush.bf16.msra.mxu0 0
    %5744 = vmatpush.bf16.msra.mxu0 %v507
    %5745 = vmatpush.bf16.msra.mxu0 %v503
    %5746 = vmatpush.bf16.msra.mxu0 %v499
    %5747 = vmatpush.bf16.msra.mxu0 %v495
    %5748 = vmatmul.bf16.gmra.mxu0 %v5712
    %v5749 = vpop.f32.mrf.mxu0
    %v5750 = vadd.f32 %v5737, %v5749
    %v5751 = vpop.f32.mrf.mxu0
    %5752 = vdwg.mxu0
    %5753 = vmatpush.bf16.msra.mxu0 %v460
    %5754 = vmatpush.bf16.msra.mxu0 %v456
    %5755 = vmatpush.bf16.msra.mxu0 %v452
    %5756 = vmatpush.bf16.msra.mxu0 %v448
    %5757 = vmatpush.bf16.msra.mxu0 %v444
    %5758 = vmatpush.bf16.msra.mxu0 %v440
    %5759 = vmatpush.bf16.msra.mxu0 %v436
    %5760 = vmatpush.bf16.msra.mxu0 %v432
    %5761 = vmatmul.bf16.gmra.mxu0 %v5706
    %v5762 = vpop.f32.mrf.mxu0
    %v5763 = vadd.f32 0.0, %v5762
    %v5764 = vpop.f32.mrf.mxu0
    %5765 = vdwg.mxu0
    %5766 = vmatpush.bf16.msra.mxu0 %v492
    %5767 = vmatpush.bf16.msra.mxu0 %v488
    %5768 = vmatpush.bf16.msra.mxu0 %v484
    %5769 = vmatpush.bf16.msra.mxu0 %v480
    %5770 = vmatpush.bf16.msra.mxu0 %v476
    %5771 = vmatpush.bf16.msra.mxu0 %v472
    %5772 = vmatpush.bf16.msra.mxu0 %v468
    %5773 = vmatpush.bf16.msra.mxu0 %v464
    %5774 = vmatmul.bf16.gmra.mxu0 %v5707
    %v5775 = vpop.f32.mrf.mxu0
    %v5776 = vadd.f32 %v5763, %v5775
    %v5777 = vpop.f32.mrf.mxu0
    %5778 = vdwg.mxu0
    %5779 = vmatpush.bf16.msra.mxu0 0
    %5780 = vmatpush.bf16.msra.mxu0 0
    %5781 = vmatpush.bf16.msra.mxu0 0
    %5782 = vmatpush.bf16.msra.mxu0 0
    %5783 = vmatpush.bf16.msra.mxu0 %v508
    %5784 = vmatpush.bf16.msra.mxu0 %v504
    %5785 = vmatpush.bf16.msra.mxu0 %v500
    %5786 = vmatpush.bf16.msra.mxu0 %v496
    %5787 = vmatmul.bf16.gmra.mxu0 %v5712
    %v5788 = vpop.f32.mrf.mxu0
    %v5789 = vadd.f32 %v5776, %v5788
    %v5790 = vpop.f32.mrf.mxu0
    %5791 = vdwg.mxu0
    %5792 = vmatpush.bf16.msra.mxu0 %v461
    %5793 = vmatpush.bf16.msra.mxu0 %v457
    %5794 = vmatpush.bf16.msra.mxu0 %v453
    %5795 = vmatpush.bf16.msra.mxu0 %v449
    %5796 = vmatpush.bf16.msra.mxu0 %v445
    %5797 = vmatpush.bf16.msra.mxu0 %v441
    %5798 = vmatpush.bf16.msra.mxu0 %v437
    %5799 = vmatpush.bf16.msra.mxu0 %v433
    %5800 = vmatmul.bf16.gmra.mxu0 %v5706
    %v5801 = vpop.f32.mrf.mxu0
    %v5802 = vadd.f32 0.0, %v5801
    %v5803 = vpop.f32.mrf.mxu0
    %5804 = vdwg.mxu0
    %5805 = vmatpush.bf16.msra.mxu0 %v493
    %5806 = vmatpush.bf16.msra.mxu0 %v489
    %5807 = vmatpush.bf16.msra.mxu0 %v485
    %5808 = vmatpush.bf16.msra.mxu0 %v481
    %5809 = vmatpush.bf16.msra.mxu0 %v477
    %5810 = vmatpush.bf16.msra.mxu0 %v473
    %5811 = vmatpush.bf16.msra.mxu0 %v469
    %5812 = vmatpush.bf16.msra.mxu0 %v465
    %5813 = vmatmul.bf16.gmra.mxu0 %v5707
    %v5814 = vpop.f32.mrf.mxu0
    %v5815 = vadd.f32 %v5802, %v5814
    %v5816 = vpop.f32.mrf.mxu0
    %5817 = vdwg.mxu0
    %5818 = vmatpush.bf16.msra.mxu0 0
    %5819 = vmatpush.bf16.msra.mxu0 0
    %5820 = vmatpush.bf16.msra.mxu0 0
    %5821 = vmatpush.bf16.msra.mxu0 0
    %5822 = vmatpush.bf16.msra.mxu0 %v509
    %5823 = vmatpush.bf16.msra.mxu0 %v505
    %5824 = vmatpush.bf16.msra.mxu0 %v501
    %5825 = vmatpush.bf16.msra.mxu0 %v497
    %5826 = vmatmul.bf16.gmra.mxu0 %v5712
    %v5827 = vpop.f32.mrf.mxu0
    %v5828 = vadd.f32 %v5815, %v5827
    %v5829 = vpop.f32.mrf.mxu0
    %5830 = vdwg.mxu0
    %5831 = vmatpush.bf16.msra.mxu0 %v462
    %5832 = vmatpush.bf16.msra.mxu0 %v458
    %5833 = vmatpush.bf16.msra.mxu0 %v454
    %5834 = vmatpush.bf16.msra.mxu0 %v450
    %5835 = vmatpush.bf16.msra.mxu0 %v446
    %5836 = vmatpush.bf16.msra.mxu0 %v442
    %5837 = vmatpush.bf16.msra.mxu0 %v438
    %5838 = vmatpush.bf16.msra.mxu0 %v434
    %5839 = vmatmul.bf16.gmra.mxu0 %v5706
    %v5840 = vpop.f32.mrf.mxu0
    %v5841 = vadd.f32 0.0, %v5840
    %v5842 = vpop.f32.mrf.mxu0
    %5843 = vdwg.mxu0
    %5844 = vmatpush.bf16.msra.mxu0 %v494
    %5845 = vmatpush.bf16.msra.mxu0 %v490
    %5846 = vmatpush.bf16.msra.mxu0 %v486
    %5847 = vmatpush.bf16.msra.mxu0 %v482
    %5848 = vmatpush.bf16.msra.mxu0 %v478
    %5849 = vmatpush.bf16.msra.mxu0 %v474
    %5850 = vmatpush.bf16.msra.mxu0 %v470
    %5851 = vmatpush.bf16.msra.mxu0 %v466
    %5852 = vmatmul.bf16.gmra.mxu0 %v5707
    %v5853 = vpop.f32.mrf.mxu0
    %v5854 = vadd.f32 %v5841, %v5853
    %v5855 = vpop.f32.mrf.mxu0
    %5856 = vdwg.mxu0
    %5857 = vmatpush.bf16.msra.mxu0 0
    %5858 = vmatpush.bf16.msra.mxu0 0
    %5859 = vmatpush.bf16.msra.mxu0 0
    %5860 = vmatpush.bf16.msra.mxu0 0
    %5861 = vmatpush.bf16.msra.mxu0 %v510
    %5862 = vmatpush.bf16.msra.mxu0 %v506
    %5863 = vmatpush.bf16.msra.mxu0 %v502
    %5864 = vmatpush.bf16.msra.mxu0 %v498
    %5865 = vmatmul.bf16.gmra.mxu0 %v5712
    %v5866 = vpop.f32.mrf.mxu0
    %v5867 = vadd.f32 %v5854, %v5866
    %v5868 = vpop.f32.mrf.mxu0
    %5869 = vdwg.mxu0
    %v5870 = vmax.f32 %v5750, %v5789
    %v5871 = vmax.f32 %v5828, %v5867
    %v5872 = vmax.f32 %v5870, %v5871
    %v5873 = vadd.f32 %v5872, %v756
    %v5874 = vmax.f32 %v5873, 0.0
    %v5875 = vpack.c.bf16 %v5874, %v5874
    %s5876 = scalar_lea.vmem [#allocation6], 3072
    %v5877 = vld [vmem:[%s5876] sm:$0xff]
    %v5878 = vld [vmem:[%s5876 + $0x8] sm:$0xff]
    %v5879 = vld [vmem:[%s5876 + $0x10] sm:$0xff]
    %v5880 = vld [vmem:[%s5876 + $0x18] sm:$0xff]
    %v5881 = vld [vmem:[%s5876 + $0x20] sm:$0xff]
    %v5882 = vld [vmem:[%s5876 + $0x28] sm:$0xff]
    %v5883 = vld [vmem:[%s5876 + $0x30] sm:$0xff]
    %v5884 = vld [vmem:[%s5876 + $0x38] sm:$0xff]
    %v5885 = vld [vmem:[%s5876 + $0x40] sm:$0xff]
    %v5886 = vld [vmem:[%s5876 + $0x48] sm:$0xff]
    %v5887 = vld [vmem:[%s5876 + $0x50] sm:$0xff]
    %v5888 = vld [vmem:[%s5876 + $0x58] sm:$0xff]
    %v5889 = vld [vmem:[%s5876 + $0x60] sm:$0xff]
    %v5890 = vld [vmem:[%s5876 + $0x68] sm:$0xff]
    %v5891 = vld [vmem:[%s5876 + $0x70] sm:$0xff]
    %v5892 = vld [vmem:[%s5876 + $0x78] sm:$0xff]
    %v5893 = vld [vmem:[%s5876 + $0x80] sm:$0xff]
    %v5894 = vld [vmem:[%s5876 + $0x88] sm:$0xff]
    %v5895 = vld [vmem:[%s5876 + $0x90] sm:$0xff]
    %v5896 = vld [vmem:[%s5876 + $0x98] sm:$0xff]
    %v5897 = vld [vmem:[%s5876 + $0xa0] sm:$0xff]
    %v5898 = vld [vmem:[%s5876 + $0xa8] sm:$0xff]
    %v5899 = vld [vmem:[%s5876 + $0xb0] sm:$0xff]
    %v5900 = vld [vmem:[%s5876 + $0xb8] sm:$0xff]
    %v5901 = vld [vmem:[%s5876 + $0xc0] sm:$0xff]
    %v5902 = vld [vmem:[%s5876 + $0xc8] sm:$0xff]
    %v5903 = vld [vmem:[%s5876 + $0xd0] sm:$0xff]
    %v5904 = vld [vmem:[%s5876 + $0xd8] sm:$0xff]
    %v5905 = vld [vmem:[%s5876 + $0xe0] sm:$0xff]
    %v5906 = vld [vmem:[%s5876 + $0xe8] sm:$0xff]
    %v5907 = vld [vmem:[%s5876 + $0xf0] sm:$0xff]
    %v5908 = vld [vmem:[%s5876 + $0xf8] sm:$0xff]
    %v5941 = vunpack.c.l.b16 %v5877
    %v5942 = vunpack.c.h.b16 %v5877
    %v5943 = vunpack.c.l.b16 %v5878
    %v5944 = vunpack.c.h.b16 %v5878
    %v5945 = vunpack.c.l.b16 %v5879
    %v5946 = vunpack.c.h.b16 %v5879
    %v5947 = vunpack.c.l.b16 %v5880
    %v5948 = vunpack.c.h.b16 %v5880
    %v5949 = vunpack.c.l.b16 %v5881
    %v5950 = vunpack.c.h.b16 %v5881
    %v5951 = vunpack.c.l.b16 %v5882
    %v5952 = vunpack.c.h.b16 %v5882
    %v5953 = vunpack.c.l.b16 %v5883
    %v5954 = vunpack.c.h.b16 %v5883
    %v5955 = vunpack.c.l.b16 %v5884
    %v5956 = vunpack.c.h.b16 %v5884
    %v5957 = vunpack.c.l.b16 %v5885
    %v5958 = vunpack.c.h.b16 %v5885
    %v5959 = vunpack.c.l.b16 %v5886
    %v5960 = vunpack.c.h.b16 %v5886
    %v5961 = vunpack.c.l.b16 %v5887
    %v5962 = vunpack.c.h.b16 %v5887
    %v5963 = vunpack.c.l.b16 %v5888
    %v5964 = vunpack.c.h.b16 %v5888
    %v5965 = vunpack.c.l.b16 %v5889
    %v5966 = vunpack.c.h.b16 %v5889
    %v5967 = vunpack.c.l.b16 %v5890
    %v5968 = vunpack.c.h.b16 %v5890
    %v5969 = vunpack.c.l.b16 %v5891
    %v5970 = vunpack.c.h.b16 %v5891
    %v5971 = vunpack.c.l.b16 %v5892
    %v5972 = vunpack.c.h.b16 %v5892
    %v5973 = vunpack.c.l.b16 %v5893
    %v5974 = vunpack.c.h.b16 %v5893
    %v5975 = vunpack.c.l.b16 %v5894
    %v5976 = vunpack.c.h.b16 %v5894
    %v5977 = vunpack.c.l.b16 %v5895
    %v5978 = vunpack.c.h.b16 %v5895
    %v5979 = vunpack.c.l.b16 %v5896
    %v5980 = vunpack.c.h.b16 %v5896
    %v5981 = vunpack.c.l.b16 %v5897
    %v5982 = vunpack.c.h.b16 %v5897
    %v5983 = vunpack.c.l.b16 %v5898
    %v5984 = vunpack.c.h.b16 %v5898
    %v5985 = vunpack.c.l.b16 %v5899
    %v5986 = vunpack.c.h.b16 %v5899
    %v5987 = vunpack.c.l.b16 %v5900
    %v5988 = vunpack.c.h.b16 %v5900
    %v5989 = vunpack.c.l.b16 %v5901
    %v5990 = vunpack.c.h.b16 %v5901
    %v5991 = vunpack.c.l.b16 %v5902
    %v5992 = vunpack.c.h.b16 %v5902
    %v5993 = vunpack.c.l.b16 %v5903
    %v5994 = vunpack.c.h.b16 %v5903
    %v5995 = vunpack.c.l.b16 %v5904
    %v5996 = vunpack.c.h.b16 %v5904
    %v5997 = vunpack.c.l.b16 %v5905
    %v5998 = vunpack.c.h.b16 %v5905
    %v5999 = vunpack.c.l.b16 %v5906
    %v6000 = vunpack.c.h.b16 %v5906
    %v6001 = vunpack.c.l.b16 %v5907
    %v6002 = vunpack.c.h.b16 %v5907
    %v6003 = vunpack.c.l.b16 %v5908
    %v6004 = vunpack.c.h.b16 %v5908
    %v6005 = vpack.c.b16 %v5945, %v5941
    %v6006 = vpack.c.b16 %v5946, %v5942
    %v6007 = vpack.c.b16 %v5947, %v5943
    %v6008 = vpack.c.b16 %v5948, %v5944
    %v6009 = vpack.c.b16 %v5953, %v5949
    %v6010 = vpack.c.b16 %v5954, %v5950
    %v6011 = vpack.c.b16 %v5955, %v5951
    %v6012 = vpack.c.b16 %v5956, %v5952
    %v6013 = vpack.c.b16 %v5961, %v5957
    %v6014 = vpack.c.b16 %v5962, %v5958
    %v6015 = vpack.c.b16 %v5963, %v5959
    %v6016 = vpack.c.b16 %v5964, %v5960
    %v6017 = vpack.c.b16 %v5969, %v5965
    %v6018 = vpack.c.b16 %v5970, %v5966
    %v6019 = vpack.c.b16 %v5971, %v5967
    %v6020 = vpack.c.b16 %v5972, %v5968
    %v6021 = vpack.c.b16 %v5977, %v5973
    %v6022 = vpack.c.b16 %v5978, %v5974
    %v6023 = vpack.c.b16 %v5979, %v5975
    %v6024 = vpack.c.b16 %v5980, %v5976
    %v6025 = vpack.c.b16 %v5985, %v5981
    %v6026 = vpack.c.b16 %v5986, %v5982
    %v6027 = vpack.c.b16 %v5987, %v5983
    %v6028 = vpack.c.b16 %v5988, %v5984
    %v6029 = vpack.c.b16 %v5993, %v5989
    %v6030 = vpack.c.b16 %v5994, %v5990
    %v6031 = vpack.c.b16 %v5995, %v5991
    %v6032 = vpack.c.b16 %v5996, %v5992
    %v6033 = vpack.c.b16 %v6001, %v5997
    %v6034 = vpack.c.b16 %v6002, %v5998
    %v6035 = vpack.c.b16 %v6003, %v5999
    %v6036 = vpack.c.b16 %v6004, %v6000
    %6069 = vmatpush.bf16.msra.mxu0 %v6033
    %6070 = vmatpush.bf16.msra.mxu0 %v6029
    %6071 = vmatpush.bf16.msra.mxu0 %v6025
    %6072 = vmatpush.bf16.msra.mxu0 %v6021
    %6073 = vmatpush.bf16.msra.mxu0 %v6017
    %6074 = vmatpush.bf16.msra.mxu0 %v6013
    %6075 = vmatpush.bf16.msra.mxu0 %v6009
    %6076 = vmatpush.bf16.msra.mxu0 %v6005
    %6077 = vmatmul.bf16.gmra.mxu0 %v5875
    %v6078 = vpop.f32.mrf.mxu0
    %v6079 = vadd.f32 0.0, %v6078
    %v6080 = vpop.f32.mrf.mxu0
    %6081 = vdwg.mxu0
    %6082 = vmatpush.bf16.msra.mxu0 %v6034
    %6083 = vmatpush.bf16.msra.mxu0 %v6030
    %6084 = vmatpush.bf16.msra.mxu0 %v6026
    %6085 = vmatpush.bf16.msra.mxu0 %v6022
    %6086 = vmatpush.bf16.msra.mxu0 %v6018
    %6087 = vmatpush.bf16.msra.mxu0 %v6014
    %6088 = vmatpush.bf16.msra.mxu0 %v6010
    %6089 = vmatpush.bf16.msra.mxu0 %v6006
    %6090 = vmatmul.bf16.gmra.mxu0 %v5875
    %v6091 = vpop.f32.mrf.mxu0
    %v6092 = vadd.f32 0.0, %v6091
    %v6093 = vpop.f32.mrf.mxu0
    %6094 = vdwg.mxu0
    %6095 = vmatpush.bf16.msra.mxu0 %v6035
    %6096 = vmatpush.bf16.msra.mxu0 %v6031
    %6097 = vmatpush.bf16.msra.mxu0 %v6027
    %6098 = vmatpush.bf16.msra.mxu0 %v6023
    %6099 = vmatpush.bf16.msra.mxu0 %v6019
    %6100 = vmatpush.bf16.msra.mxu0 %v6015
    %6101 = vmatpush.bf16.msra.mxu0 %v6011
    %6102 = vmatpush.bf16.msra.mxu0 %v6007
    %6103 = vmatmul.bf16.gmra.mxu0 %v5875
    %v6104 = vpop.f32.mrf.mxu0
    %v6105 = vadd.f32 0.0, %v6104
    %v6106 = vpop.f32.mrf.mxu0
    %6107 = vdwg.mxu0
    %6108 = vmatpush.bf16.msra.mxu0 %v6036
    %6109 = vmatpush.bf16.msra.mxu0 %v6032
    %6110 = vmatpush.bf16.msra.mxu0 %v6028
    %6111 = vmatpush.bf16.msra.mxu0 %v6024
    %6112 = vmatpush.bf16.msra.mxu0 %v6020
    %6113 = vmatpush.bf16.msra.mxu0 %v6016
    %6114 = vmatpush.bf16.msra.mxu0 %v6012
    %6115 = vmatpush.bf16.msra.mxu0 %v6008
    %6116 = vmatmul.bf16.gmra.mxu0 %v5875
    %v6117 = vpop.f32.mrf.mxu0
    %v6118 = vadd.f32 0.0, %v6117
    %v6119 = vpop.f32.mrf.mxu0
    %6120 = vdwg.mxu0
    %v6121 = vadd.f32 %v5694, %v6079
    %v6122 = vadd.f32 %v5695, %v6092
    %v6123 = vadd.f32 %v5696, %v6105
    %v6124 = vadd.f32 %v5697, %v6118
    %s6125 = scalar_lea.vmem %s0, 156
    %v6126 = vld [vmem:[%s6125] sm:$0xff]
    %v6127 = vld [vmem:[%s6125 + $0x8] sm:$0xf]
    %v6130 = vunpack.c.l.b16 %v6126
    %v6131 = vunpack.c.h.b16 %v6126
    %v6132 = vunpack.c.l.b16 %v6127
    %v6133 = vpack.c.b16 %v6130, %v6130
    %v6134 = vpack.c.b16 %v6131, %v6131
    %v6135 = vpack.c.b16 %v6132, %v6132
    %v6139 = vsel %vm591, %v6135, 0
    %6141 = vmatpush.bf16.msra.mxu0 %v459
    %6142 = vmatpush.bf16.msra.mxu0 %v455
    %6143 = vmatpush.bf16.msra.mxu0 %v451
    %6144 = vmatpush.bf16.msra.mxu0 %v447
    %6145 = vmatpush.bf16.msra.mxu0 %v443
    %6146 = vmatpush.bf16.msra.mxu0 %v439
    %6147 = vmatpush.bf16.msra.mxu0 %v435
    %6148 = vmatpush.bf16.msra.mxu0 %v431
    %6149 = vmatmul.bf16.gmra.mxu0 %v6133
    %v6150 = vpop.f32.mrf.mxu0
    %v6151 = vadd.f32 0.0, %v6150
    %v6152 = vpop.f32.mrf.mxu0
    %6153 = vdwg.mxu0
    %6154 = vmatpush.bf16.msra.mxu0 %v491
    %6155 = vmatpush.bf16.msra.mxu0 %v487
    %6156 = vmatpush.bf16.msra.mxu0 %v483
    %6157 = vmatpush.bf16.msra.mxu0 %v479
    %6158 = vmatpush.bf16.msra.mxu0 %v475
    %6159 = vmatpush.bf16.msra.mxu0 %v471
    %6160 = vmatpush.bf16.msra.mxu0 %v467
    %6161 = vmatpush.bf16.msra.mxu0 %v463
    %6162 = vmatmul.bf16.gmra.mxu0 %v6134
    %v6163 = vpop.f32.mrf.mxu0
    %v6164 = vadd.f32 %v6151, %v6163
    %v6165 = vpop.f32.mrf.mxu0
    %6166 = vdwg.mxu0
    %6167 = vmatpush.bf16.msra.mxu0 0
    %6168 = vmatpush.bf16.msra.mxu0 0
    %6169 = vmatpush.bf16.msra.mxu0 0
    %6170 = vmatpush.bf16.msra.mxu0 0
    %6171 = vmatpush.bf16.msra.mxu0 %v507
    %6172 = vmatpush.bf16.msra.mxu0 %v503
    %6173 = vmatpush.bf16.msra.mxu0 %v499
    %6174 = vmatpush.bf16.msra.mxu0 %v495
    %6175 = vmatmul.bf16.gmra.mxu0 %v6139
    %v6176 = vpop.f32.mrf.mxu0
    %v6177 = vadd.f32 %v6164, %v6176
    %v6178 = vpop.f32.mrf.mxu0
    %6179 = vdwg.mxu0
    %6180 = vmatpush.bf16.msra.mxu0 %v460
    %6181 = vmatpush.bf16.msra.mxu0 %v456
    %6182 = vmatpush.bf16.msra.mxu0 %v452
    %6183 = vmatpush.bf16.msra.mxu0 %v448
    %6184 = vmatpush.bf16.msra.mxu0 %v444
    %6185 = vmatpush.bf16.msra.mxu0 %v440
    %6186 = vmatpush.bf16.msra.mxu0 %v436
    %6187 = vmatpush.bf16.msra.mxu0 %v432
    %6188 = vmatmul.bf16.gmra.mxu0 %v6133
    %v6189 = vpop.f32.mrf.mxu0
    %v6190 = vadd.f32 0.0, %v6189
    %v6191 = vpop.f32.mrf.mxu0
    %6192 = vdwg.mxu0
    %6193 = vmatpush.bf16.msra.mxu0 %v492
    %6194 = vmatpush.bf16.msra.mxu0 %v488
    %6195 = vmatpush.bf16.msra.mxu0 %v484
    %6196 = vmatpush.bf16.msra.mxu0 %v480
    %6197 = vmatpush.bf16.msra.mxu0 %v476
    %6198 = vmatpush.bf16.msra.mxu0 %v472
    %6199 = vmatpush.bf16.msra.mxu0 %v468
    %6200 = vmatpush.bf16.msra.mxu0 %v464
    %6201 = vmatmul.bf16.gmra.mxu0 %v6134
    %v6202 = vpop.f32.mrf.mxu0
    %v6203 = vadd.f32 %v6190, %v6202
    %v6204 = vpop.f32.mrf.mxu0
    %6205 = vdwg.mxu0
    %6206 = vmatpush.bf16.msra.mxu0 0
    %6207 = vmatpush.bf16.msra.mxu0 0
    %6208 = vmatpush.bf16.msra.mxu0 0
    %6209 = vmatpush.bf16.msra.mxu0 0
    %6210 = vmatpush.bf16.msra.mxu0 %v508
    %6211 = vmatpush.bf16.msra.mxu0 %v504
    %6212 = vmatpush.bf16.msra.mxu0 %v500
    %6213 = vmatpush.bf16.msra.mxu0 %v496
    %6214 = vmatmul.bf16.gmra.mxu0 %v6139
    %v6215 = vpop.f32.mrf.mxu0
    %v6216 = vadd.f32 %v6203, %v6215
    %v6217 = vpop.f32.mrf.mxu0
    %6218 = vdwg.mxu0
    %6219 = vmatpush.bf16.msra.mxu0 %v461
    %6220 = vmatpush.bf16.msra.mxu0 %v457
    %6221 = vmatpush.bf16.msra.mxu0 %v453
    %6222 = vmatpush.bf16.msra.mxu0 %v449
    %6223 = vmatpush.bf16.msra.mxu0 %v445
    %6224 = vmatpush.bf16.msra.mxu0 %v441
    %6225 = vmatpush.bf16.msra.mxu0 %v437
    %6226 = vmatpush.bf16.msra.mxu0 %v433
    %6227 = vmatmul.bf16.gmra.mxu0 %v6133
    %v6228 = vpop.f32.mrf.mxu0
    %v6229 = vadd.f32 0.0, %v6228
    %v6230 = vpop.f32.mrf.mxu0
    %6231 = vdwg.mxu0
    %6232 = vmatpush.bf16.msra.mxu0 %v493
    %6233 = vmatpush.bf16.msra.mxu0 %v489
    %6234 = vmatpush.bf16.msra.mxu0 %v485
    %6235 = vmatpush.bf16.msra.mxu0 %v481
    %6236 = vmatpush.bf16.msra.mxu0 %v477
    %6237 = vmatpush.bf16.msra.mxu0 %v473
    %6238 = vmatpush.bf16.msra.mxu0 %v469
    %6239 = vmatpush.bf16.msra.mxu0 %v465
    %6240 = vmatmul.bf16.gmra.mxu0 %v6134
    %v6241 = vpop.f32.mrf.mxu0
    %v6242 = vadd.f32 %v6229, %v6241
    %v6243 = vpop.f32.mrf.mxu0
    %6244 = vdwg.mxu0
    %6245 = vmatpush.bf16.msra.mxu0 0
    %6246 = vmatpush.bf16.msra.mxu0 0
    %6247 = vmatpush.bf16.msra.mxu0 0
    %6248 = vmatpush.bf16.msra.mxu0 0
    %6249 = vmatpush.bf16.msra.mxu0 %v509
    %6250 = vmatpush.bf16.msra.mxu0 %v505
    %6251 = vmatpush.bf16.msra.mxu0 %v501
    %6252 = vmatpush.bf16.msra.mxu0 %v497
    %6253 = vmatmul.bf16.gmra.mxu0 %v6139
    %v6254 = vpop.f32.mrf.mxu0
    %v6255 = vadd.f32 %v6242, %v6254
    %v6256 = vpop.f32.mrf.mxu0
    %6257 = vdwg.mxu0
    %6258 = vmatpush.bf16.msra.mxu0 %v462
    %6259 = vmatpush.bf16.msra.mxu0 %v458
    %6260 = vmatpush.bf16.msra.mxu0 %v454
    %6261 = vmatpush.bf16.msra.mxu0 %v450
    %6262 = vmatpush.bf16.msra.mxu0 %v446
    %6263 = vmatpush.bf16.msra.mxu0 %v442
    %6264 = vmatpush.bf16.msra.mxu0 %v438
    %6265 = vmatpush.bf16.msra.mxu0 %v434
    %6266 = vmatmul.bf16.gmra.mxu0 %v6133
    %v6267 = vpop.f32.mrf.mxu0
    %v6268 = vadd.f32 0.0, %v6267
    %v6269 = vpop.f32.mrf.mxu0
    %6270 = vdwg.mxu0
    %6271 = vmatpush.bf16.msra.mxu0 %v494
    %6272 = vmatpush.bf16.msra.mxu0 %v490
    %6273 = vmatpush.bf16.msra.mxu0 %v486
    %6274 = vmatpush.bf16.msra.mxu0 %v482
    %6275 = vmatpush.bf16.msra.mxu0 %v478
    %6276 = vmatpush.bf16.msra.mxu0 %v474
    %6277 = vmatpush.bf16.msra.mxu0 %v470
    %6278 = vmatpush.bf16.msra.mxu0 %v466
    %6279 = vmatmul.bf16.gmra.mxu0 %v6134
    %v6280 = vpop.f32.mrf.mxu0
    %v6281 = vadd.f32 %v6268, %v6280
    %v6282 = vpop.f32.mrf.mxu0
    %6283 = vdwg.mxu0
    %6284 = vmatpush.bf16.msra.mxu0 0
    %6285 = vmatpush.bf16.msra.mxu0 0
    %6286 = vmatpush.bf16.msra.mxu0 0
    %6287 = vmatpush.bf16.msra.mxu0 0
    %6288 = vmatpush.bf16.msra.mxu0 %v510
    %6289 = vmatpush.bf16.msra.mxu0 %v506
    %6290 = vmatpush.bf16.msra.mxu0 %v502
    %6291 = vmatpush.bf16.msra.mxu0 %v498
    %6292 = vmatmul.bf16.gmra.mxu0 %v6139
    %v6293 = vpop.f32.mrf.mxu0
    %v6294 = vadd.f32 %v6281, %v6293
    %v6295 = vpop.f32.mrf.mxu0
    %6296 = vdwg.mxu0
    %v6297 = vmax.f32 %v6177, %v6216
    %v6298 = vmax.f32 %v6255, %v6294
    %v6299 = vmax.f32 %v6297, %v6298
    %v6300 = vadd.f32 %v6299, %v756
    %v6301 = vmax.f32 %v6300, 0.0
    %v6302 = vpack.c.bf16 %v6301, %v6301
    %s6303 = scalar_lea.vmem [#allocation6], 3328
    %v6304 = vld [vmem:[%s6303] sm:$0xff]
    %v6305 = vld [vmem:[%s6303 + $0x8] sm:$0xff]
    %v6306 = vld [vmem:[%s6303 + $0x10] sm:$0xff]
    %v6307 = vld [vmem:[%s6303 + $0x18] sm:$0xff]
    %v6308 = vld [vmem:[%s6303 + $0x20] sm:$0xff]
    %v6309 = vld [vmem:[%s6303 + $0x28] sm:$0xff]
    %v6310 = vld [vmem:[%s6303 + $0x30] sm:$0xff]
    %v6311 = vld [vmem:[%s6303 + $0x38] sm:$0xff]
    %v6312 = vld [vmem:[%s6303 + $0x40] sm:$0xff]
    %v6313 = vld [vmem:[%s6303 + $0x48] sm:$0xff]
    %v6314 = vld [vmem:[%s6303 + $0x50] sm:$0xff]
    %v6315 = vld [vmem:[%s6303 + $0x58] sm:$0xff]
    %v6316 = vld [vmem:[%s6303 + $0x60] sm:$0xff]
    %v6317 = vld [vmem:[%s6303 + $0x68] sm:$0xff]
    %v6318 = vld [vmem:[%s6303 + $0x70] sm:$0xff]
    %v6319 = vld [vmem:[%s6303 + $0x78] sm:$0xff]
    %v6320 = vld [vmem:[%s6303 + $0x80] sm:$0xff]
    %v6321 = vld [vmem:[%s6303 + $0x88] sm:$0xff]
    %v6322 = vld [vmem:[%s6303 + $0x90] sm:$0xff]
    %v6323 = vld [vmem:[%s6303 + $0x98] sm:$0xff]
    %v6324 = vld [vmem:[%s6303 + $0xa0] sm:$0xff]
    %v6325 = vld [vmem:[%s6303 + $0xa8] sm:$0xff]
    %v6326 = vld [vmem:[%s6303 + $0xb0] sm:$0xff]
    %v6327 = vld [vmem:[%s6303 + $0xb8] sm:$0xff]
    %v6328 = vld [vmem:[%s6303 + $0xc0] sm:$0xff]
    %v6329 = vld [vmem:[%s6303 + $0xc8] sm:$0xff]
    %v6330 = vld [vmem:[%s6303 + $0xd0] sm:$0xff]
    %v6331 = vld [vmem:[%s6303 + $0xd8] sm:$0xff]
    %v6332 = vld [vmem:[%s6303 + $0xe0] sm:$0xff]
    %v6333 = vld [vmem:[%s6303 + $0xe8] sm:$0xff]
    %v6334 = vld [vmem:[%s6303 + $0xf0] sm:$0xff]
    %v6335 = vld [vmem:[%s6303 + $0xf8] sm:$0xff]
    %v6368 = vunpack.c.l.b16 %v6304
    %v6369 = vunpack.c.h.b16 %v6304
    %v6370 = vunpack.c.l.b16 %v6305
    %v6371 = vunpack.c.h.b16 %v6305
    %v6372 = vunpack.c.l.b16 %v6306
    %v6373 = vunpack.c.h.b16 %v6306
    %v6374 = vunpack.c.l.b16 %v6307
    %v6375 = vunpack.c.h.b16 %v6307
    %v6376 = vunpack.c.l.b16 %v6308
    %v6377 = vunpack.c.h.b16 %v6308
    %v6378 = vunpack.c.l.b16 %v6309
    %v6379 = vunpack.c.h.b16 %v6309
    %v6380 = vunpack.c.l.b16 %v6310
    %v6381 = vunpack.c.h.b16 %v6310
    %v6382 = vunpack.c.l.b16 %v6311
    %v6383 = vunpack.c.h.b16 %v6311
    %v6384 = vunpack.c.l.b16 %v6312
    %v6385 = vunpack.c.h.b16 %v6312
    %v6386 = vunpack.c.l.b16 %v6313
    %v6387 = vunpack.c.h.b16 %v6313
    %v6388 = vunpack.c.l.b16 %v6314
    %v6389 = vunpack.c.h.b16 %v6314
    %v6390 = vunpack.c.l.b16 %v6315
    %v6391 = vunpack.c.h.b16 %v6315
    %v6392 = vunpack.c.l.b16 %v6316
    %v6393 = vunpack.c.h.b16 %v6316
    %v6394 = vunpack.c.l.b16 %v6317
    %v6395 = vunpack.c.h.b16 %v6317
    %v6396 = vunpack.c.l.b16 %v6318
    %v6397 = vunpack.c.h.b16 %v6318
    %v6398 = vunpack.c.l.b16 %v6319
    %v6399 = vunpack.c.h.b16 %v6319
    %v6400 = vunpack.c.l.b16 %v6320
    %v6401 = vunpack.c.h.b16 %v6320
    %v6402 = vunpack.c.l.b16 %v6321
    %v6403 = vunpack.c.h.b16 %v6321
    %v6404 = vunpack.c.l.b16 %v6322
    %v6405 = vunpack.c.h.b16 %v6322
    %v6406 = vunpack.c.l.b16 %v6323
    %v6407 = vunpack.c.h.b16 %v6323
    %v6408 = vunpack.c.l.b16 %v6324
    %v6409 = vunpack.c.h.b16 %v6324
    %v6410 = vunpack.c.l.b16 %v6325
    %v6411 = vunpack.c.h.b16 %v6325
    %v6412 = vunpack.c.l.b16 %v6326
    %v6413 = vunpack.c.h.b16 %v6326
    %v6414 = vunpack.c.l.b16 %v6327
    %v6415 = vunpack.c.h.b16 %v6327
    %v6416 = vunpack.c.l.b16 %v6328
    %v6417 = vunpack.c.h.b16 %v6328
    %v6418 = vunpack.c.l.b16 %v6329
    %v6419 = vunpack.c.h.b16 %v6329
    %v6420 = vunpack.c.l.b16 %v6330
    %v6421 = vunpack.c.h.b16 %v6330
    %v6422 = vunpack.c.l.b16 %v6331
    %v6423 = vunpack.c.h.b16 %v6331
    %v6424 = vunpack.c.l.b16 %v6332
    %v6425 = vunpack.c.h.b16 %v6332
    %v6426 = vunpack.c.l.b16 %v6333
    %v6427 = vunpack.c.h.b16 %v6333
    %v6428 = vunpack.c.l.b16 %v6334
    %v6429 = vunpack.c.h.b16 %v6334
    %v6430 = vunpack.c.l.b16 %v6335
    %v6431 = vunpack.c.h.b16 %v6335
    %v6432 = vpack.c.b16 %v6372, %v6368
    %v6433 = vpack.c.b16 %v6373, %v6369
    %v6434 = vpack.c.b16 %v6374, %v6370
    %v6435 = vpack.c.b16 %v6375, %v6371
    %v6436 = vpack.c.b16 %v6380, %v6376
    %v6437 = vpack.c.b16 %v6381, %v6377
    %v6438 = vpack.c.b16 %v6382, %v6378
    %v6439 = vpack.c.b16 %v6383, %v6379
    %v6440 = vpack.c.b16 %v6388, %v6384
    %v6441 = vpack.c.b16 %v6389, %v6385
    %v6442 = vpack.c.b16 %v6390, %v6386
    %v6443 = vpack.c.b16 %v6391, %v6387
    %v6444 = vpack.c.b16 %v6396, %v6392
    %v6445 = vpack.c.b16 %v6397, %v6393
    %v6446 = vpack.c.b16 %v6398, %v6394
    %v6447 = vpack.c.b16 %v6399, %v6395
    %v6448 = vpack.c.b16 %v6404, %v6400
    %v6449 = vpack.c.b16 %v6405, %v6401
    %v6450 = vpack.c.b16 %v6406, %v6402
    %v6451 = vpack.c.b16 %v6407, %v6403
    %v6452 = vpack.c.b16 %v6412, %v6408
    %v6453 = vpack.c.b16 %v6413, %v6409
    %v6454 = vpack.c.b16 %v6414, %v6410
    %v6455 = vpack.c.b16 %v6415, %v6411
    %v6456 = vpack.c.b16 %v6420, %v6416
    %v6457 = vpack.c.b16 %v6421, %v6417
    %v6458 = vpack.c.b16 %v6422, %v6418
    %v6459 = vpack.c.b16 %v6423, %v6419
    %v6460 = vpack.c.b16 %v6428, %v6424
    %v6461 = vpack.c.b16 %v6429, %v6425
    %v6462 = vpack.c.b16 %v6430, %v6426
    %v6463 = vpack.c.b16 %v6431, %v6427
    %6496 = vmatpush.bf16.msra.mxu0 %v6460
    %6497 = vmatpush.bf16.msra.mxu0 %v6456
    %6498 = vmatpush.bf16.msra.mxu0 %v6452
    %6499 = vmatpush.bf16.msra.mxu0 %v6448
    %6500 = vmatpush.bf16.msra.mxu0 %v6444
    %6501 = vmatpush.bf16.msra.mxu0 %v6440
    %6502 = vmatpush.bf16.msra.mxu0 %v6436
    %6503 = vmatpush.bf16.msra.mxu0 %v6432
    %6504 = vmatmul.bf16.gmra.mxu0 %v6302
    %v6505 = vpop.f32.mrf.mxu0
    %v6506 = vadd.f32 0.0, %v6505
    %v6507 = vpop.f32.mrf.mxu0
    %6508 = vdwg.mxu0
    %6509 = vmatpush.bf16.msra.mxu0 %v6461
    %6510 = vmatpush.bf16.msra.mxu0 %v6457
    %6511 = vmatpush.bf16.msra.mxu0 %v6453
    %6512 = vmatpush.bf16.msra.mxu0 %v6449
    %6513 = vmatpush.bf16.msra.mxu0 %v6445
    %6514 = vmatpush.bf16.msra.mxu0 %v6441
    %6515 = vmatpush.bf16.msra.mxu0 %v6437
    %6516 = vmatpush.bf16.msra.mxu0 %v6433
    %6517 = vmatmul.bf16.gmra.mxu0 %v6302
    %v6518 = vpop.f32.mrf.mxu0
    %v6519 = vadd.f32 0.0, %v6518
    %v6520 = vpop.f32.mrf.mxu0
    %6521 = vdwg.mxu0
    %6522 = vmatpush.bf16.msra.mxu0 %v6462
    %6523 = vmatpush.bf16.msra.mxu0 %v6458
    %6524 = vmatpush.bf16.msra.mxu0 %v6454
    %6525 = vmatpush.bf16.msra.mxu0 %v6450
    %6526 = vmatpush.bf16.msra.mxu0 %v6446
    %6527 = vmatpush.bf16.msra.mxu0 %v6442
    %6528 = vmatpush.bf16.msra.mxu0 %v6438
    %6529 = vmatpush.bf16.msra.mxu0 %v6434
    %6530 = vmatmul.bf16.gmra.mxu0 %v6302
    %v6531 = vpop.f32.mrf.mxu0
    %v6532 = vadd.f32 0.0, %v6531
    %v6533 = vpop.f32.mrf.mxu0
    %6534 = vdwg.mxu0
    %6535 = vmatpush.bf16.msra.mxu0 %v6463
    %6536 = vmatpush.bf16.msra.mxu0 %v6459
    %6537 = vmatpush.bf16.msra.mxu0 %v6455
    %6538 = vmatpush.bf16.msra.mxu0 %v6451
    %6539 = vmatpush.bf16.msra.mxu0 %v6447
    %6540 = vmatpush.bf16.msra.mxu0 %v6443
    %6541 = vmatpush.bf16.msra.mxu0 %v6439
    %6542 = vmatpush.bf16.msra.mxu0 %v6435
    %6543 = vmatmul.bf16.gmra.mxu0 %v6302
    %v6544 = vpop.f32.mrf.mxu0
    %v6545 = vadd.f32 0.0, %v6544
    %v6546 = vpop.f32.mrf.mxu0
    %6547 = vdwg.mxu0
    %v6548 = vadd.f32 %v6121, %v6506
    %v6549 = vadd.f32 %v6122, %v6519
    %v6550 = vadd.f32 %v6123, %v6532
    %v6551 = vadd.f32 %v6124, %v6545
    %s6552 = scalar_lea.vmem %s0, 168
    %v6553 = vld [vmem:[%s6552] sm:$0xff]
    %v6554 = vld [vmem:[%s6552 + $0x8] sm:$0xf]
    %v6557 = vunpack.c.l.b16 %v6553
    %v6558 = vunpack.c.h.b16 %v6553
    %v6559 = vunpack.c.l.b16 %v6554
    %v6560 = vpack.c.b16 %v6557, %v6557
    %v6561 = vpack.c.b16 %v6558, %v6558
    %v6562 = vpack.c.b16 %v6559, %v6559
    %v6566 = vsel %vm591, %v6562, 0
    %6568 = vmatpush.bf16.msra.mxu0 %v459
    %6569 = vmatpush.bf16.msra.mxu0 %v455
    %6570 = vmatpush.bf16.msra.mxu0 %v451
    %6571 = vmatpush.bf16.msra.mxu0 %v447
    %6572 = vmatpush.bf16.msra.mxu0 %v443
    %6573 = vmatpush.bf16.msra.mxu0 %v439
    %6574 = vmatpush.bf16.msra.mxu0 %v435
    %6575 = vmatpush.bf16.msra.mxu0 %v431
    %6576 = vmatmul.bf16.gmra.mxu0 %v6560
    %v6577 = vpop.f32.mrf.mxu0
    %v6578 = vadd.f32 0.0, %v6577
    %v6579 = vpop.f32.mrf.mxu0
    %6580 = vdwg.mxu0
    %6581 = vmatpush.bf16.msra.mxu0 %v491
    %6582 = vmatpush.bf16.msra.mxu0 %v487
    %6583 = vmatpush.bf16.msra.mxu0 %v483
    %6584 = vmatpush.bf16.msra.mxu0 %v479
    %6585 = vmatpush.bf16.msra.mxu0 %v475
    %6586 = vmatpush.bf16.msra.mxu0 %v471
    %6587 = vmatpush.bf16.msra.mxu0 %v467
    %6588 = vmatpush.bf16.msra.mxu0 %v463
    %6589 = vmatmul.bf16.gmra.mxu0 %v6561
    %v6590 = vpop.f32.mrf.mxu0
    %v6591 = vadd.f32 %v6578, %v6590
    %v6592 = vpop.f32.mrf.mxu0
    %6593 = vdwg.mxu0
    %6594 = vmatpush.bf16.msra.mxu0 0
    %6595 = vmatpush.bf16.msra.mxu0 0
    %6596 = vmatpush.bf16.msra.mxu0 0
    %6597 = vmatpush.bf16.msra.mxu0 0
    %6598 = vmatpush.bf16.msra.mxu0 %v507
    %6599 = vmatpush.bf16.msra.mxu0 %v503
    %6600 = vmatpush.bf16.msra.mxu0 %v499
    %6601 = vmatpush.bf16.msra.mxu0 %v495
    %6602 = vmatmul.bf16.gmra.mxu0 %v6566
    %v6603 = vpop.f32.mrf.mxu0
    %v6604 = vadd.f32 %v6591, %v6603
    %v6605 = vpop.f32.mrf.mxu0
    %6606 = vdwg.mxu0
    %6607 = vmatpush.bf16.msra.mxu0 %v460
    %6608 = vmatpush.bf16.msra.mxu0 %v456
    %6609 = vmatpush.bf16.msra.mxu0 %v452
    %6610 = vmatpush.bf16.msra.mxu0 %v448
    %6611 = vmatpush.bf16.msra.mxu0 %v444
    %6612 = vmatpush.bf16.msra.mxu0 %v440
    %6613 = vmatpush.bf16.msra.mxu0 %v436
    %6614 = vmatpush.bf16.msra.mxu0 %v432
    %6615 = vmatmul.bf16.gmra.mxu0 %v6560
    %v6616 = vpop.f32.mrf.mxu0
    %v6617 = vadd.f32 0.0, %v6616
    %v6618 = vpop.f32.mrf.mxu0
    %6619 = vdwg.mxu0
    %6620 = vmatpush.bf16.msra.mxu0 %v492
    %6621 = vmatpush.bf16.msra.mxu0 %v488
    %6622 = vmatpush.bf16.msra.mxu0 %v484
    %6623 = vmatpush.bf16.msra.mxu0 %v480
    %6624 = vmatpush.bf16.msra.mxu0 %v476
    %6625 = vmatpush.bf16.msra.mxu0 %v472
    %6626 = vmatpush.bf16.msra.mxu0 %v468
    %6627 = vmatpush.bf16.msra.mxu0 %v464
    %6628 = vmatmul.bf16.gmra.mxu0 %v6561
    %v6629 = vpop.f32.mrf.mxu0
    %v6630 = vadd.f32 %v6617, %v6629
    %v6631 = vpop.f32.mrf.mxu0
    %6632 = vdwg.mxu0
    %6633 = vmatpush.bf16.msra.mxu0 0
    %6634 = vmatpush.bf16.msra.mxu0 0
    %6635 = vmatpush.bf16.msra.mxu0 0
    %6636 = vmatpush.bf16.msra.mxu0 0
    %6637 = vmatpush.bf16.msra.mxu0 %v508
    %6638 = vmatpush.bf16.msra.mxu0 %v504
    %6639 = vmatpush.bf16.msra.mxu0 %v500
    %6640 = vmatpush.bf16.msra.mxu0 %v496
    %6641 = vmatmul.bf16.gmra.mxu0 %v6566
    %v6642 = vpop.f32.mrf.mxu0
    %v6643 = vadd.f32 %v6630, %v6642
    %v6644 = vpop.f32.mrf.mxu0
    %6645 = vdwg.mxu0
    %6646 = vmatpush.bf16.msra.mxu0 %v461
    %6647 = vmatpush.bf16.msra.mxu0 %v457
    %6648 = vmatpush.bf16.msra.mxu0 %v453
    %6649 = vmatpush.bf16.msra.mxu0 %v449
    %6650 = vmatpush.bf16.msra.mxu0 %v445
    %6651 = vmatpush.bf16.msra.mxu0 %v441
    %6652 = vmatpush.bf16.msra.mxu0 %v437
    %6653 = vmatpush.bf16.msra.mxu0 %v433
    %6654 = vmatmul.bf16.gmra.mxu0 %v6560
    %v6655 = vpop.f32.mrf.mxu0
    %v6656 = vadd.f32 0.0, %v6655
    %v6657 = vpop.f32.mrf.mxu0
    %6658 = vdwg.mxu0
    %6659 = vmatpush.bf16.msra.mxu0 %v493
    %6660 = vmatpush.bf16.msra.mxu0 %v489
    %6661 = vmatpush.bf16.msra.mxu0 %v485
    %6662 = vmatpush.bf16.msra.mxu0 %v481
    %6663 = vmatpush.bf16.msra.mxu0 %v477
    %6664 = vmatpush.bf16.msra.mxu0 %v473
    %6665 = vmatpush.bf16.msra.mxu0 %v469
    %6666 = vmatpush.bf16.msra.mxu0 %v465
    %6667 = vmatmul.bf16.gmra.mxu0 %v6561
    %v6668 = vpop.f32.mrf.mxu0
    %v6669 = vadd.f32 %v6656, %v6668
    %v6670 = vpop.f32.mrf.mxu0
    %6671 = vdwg.mxu0
    %6672 = vmatpush.bf16.msra.mxu0 0
    %6673 = vmatpush.bf16.msra.mxu0 0
    %6674 = vmatpush.bf16.msra.mxu0 0
    %6675 = vmatpush.bf16.msra.mxu0 0
    %6676 = vmatpush.bf16.msra.mxu0 %v509
    %6677 = vmatpush.bf16.msra.mxu0 %v505
    %6678 = vmatpush.bf16.msra.mxu0 %v501
    %6679 = vmatpush.bf16.msra.mxu0 %v497
    %6680 = vmatmul.bf16.gmra.mxu0 %v6566
    %v6681 = vpop.f32.mrf.mxu0
    %v6682 = vadd.f32 %v6669, %v6681
    %v6683 = vpop.f32.mrf.mxu0
    %6684 = vdwg.mxu0
    %6685 = vmatpush.bf16.msra.mxu0 %v462
    %6686 = vmatpush.bf16.msra.mxu0 %v458
    %6687 = vmatpush.bf16.msra.mxu0 %v454
    %6688 = vmatpush.bf16.msra.mxu0 %v450
    %6689 = vmatpush.bf16.msra.mxu0 %v446
    %6690 = vmatpush.bf16.msra.mxu0 %v442
    %6691 = vmatpush.bf16.msra.mxu0 %v438
    %6692 = vmatpush.bf16.msra.mxu0 %v434
    %6693 = vmatmul.bf16.gmra.mxu0 %v6560
    %v6694 = vpop.f32.mrf.mxu0
    %v6695 = vadd.f32 0.0, %v6694
    %v6696 = vpop.f32.mrf.mxu0
    %6697 = vdwg.mxu0
    %6698 = vmatpush.bf16.msra.mxu0 %v494
    %6699 = vmatpush.bf16.msra.mxu0 %v490
    %6700 = vmatpush.bf16.msra.mxu0 %v486
    %6701 = vmatpush.bf16.msra.mxu0 %v482
    %6702 = vmatpush.bf16.msra.mxu0 %v478
    %6703 = vmatpush.bf16.msra.mxu0 %v474
    %6704 = vmatpush.bf16.msra.mxu0 %v470
    %6705 = vmatpush.bf16.msra.mxu0 %v466
    %6706 = vmatmul.bf16.gmra.mxu0 %v6561
    %v6707 = vpop.f32.mrf.mxu0
    %v6708 = vadd.f32 %v6695, %v6707
    %v6709 = vpop.f32.mrf.mxu0
    %6710 = vdwg.mxu0
    %6711 = vmatpush.bf16.msra.mxu0 0
    %6712 = vmatpush.bf16.msra.mxu0 0
    %6713 = vmatpush.bf16.msra.mxu0 0
    %6714 = vmatpush.bf16.msra.mxu0 0
    %6715 = vmatpush.bf16.msra.mxu0 %v510
    %6716 = vmatpush.bf16.msra.mxu0 %v506
    %6717 = vmatpush.bf16.msra.mxu0 %v502
    %6718 = vmatpush.bf16.msra.mxu0 %v498
    %6719 = vmatmul.bf16.gmra.mxu0 %v6566
    %v6720 = vpop.f32.mrf.mxu0
    %v6721 = vadd.f32 %v6708, %v6720
    %v6722 = vpop.f32.mrf.mxu0
    %6723 = vdwg.mxu0
    %v6724 = vmax.f32 %v6604, %v6643
    %v6725 = vmax.f32 %v6682, %v6721
    %v6726 = vmax.f32 %v6724, %v6725
    %v6727 = vadd.f32 %v6726, %v756
    %v6728 = vmax.f32 %v6727, 0.0
    %v6729 = vpack.c.bf16 %v6728, %v6728
    %s6730 = scalar_lea.vmem [#allocation6], 3584
    %v6731 = vld [vmem:[%s6730] sm:$0xff]
    %v6732 = vld [vmem:[%s6730 + $0x8] sm:$0xff]
    %v6733 = vld [vmem:[%s6730 + $0x10] sm:$0xff]
    %v6734 = vld [vmem:[%s6730 + $0x18] sm:$0xff]
    %v6735 = vld [vmem:[%s6730 + $0x20] sm:$0xff]
    %v6736 = vld [vmem:[%s6730 + $0x28] sm:$0xff]
    %v6737 = vld [vmem:[%s6730 + $0x30] sm:$0xff]
    %v6738 = vld [vmem:[%s6730 + $0x38] sm:$0xff]
    %v6739 = vld [vmem:[%s6730 + $0x40] sm:$0xff]
    %v6740 = vld [vmem:[%s6730 + $0x48] sm:$0xff]
    %v6741 = vld [vmem:[%s6730 + $0x50] sm:$0xff]
    %v6742 = vld [vmem:[%s6730 + $0x58] sm:$0xff]
    %v6743 = vld [vmem:[%s6730 + $0x60] sm:$0xff]
    %v6744 = vld [vmem:[%s6730 + $0x68] sm:$0xff]
    %v6745 = vld [vmem:[%s6730 + $0x70] sm:$0xff]
    %v6746 = vld [vmem:[%s6730 + $0x78] sm:$0xff]
    %v6747 = vld [vmem:[%s6730 + $0x80] sm:$0xff]
    %v6748 = vld [vmem:[%s6730 + $0x88] sm:$0xff]
    %v6749 = vld [vmem:[%s6730 + $0x90] sm:$0xff]
    %v6750 = vld [vmem:[%s6730 + $0x98] sm:$0xff]
    %v6751 = vld [vmem:[%s6730 + $0xa0] sm:$0xff]
    %v6752 = vld [vmem:[%s6730 + $0xa8] sm:$0xff]
    %v6753 = vld [vmem:[%s6730 + $0xb0] sm:$0xff]
    %v6754 = vld [vmem:[%s6730 + $0xb8] sm:$0xff]
    %v6755 = vld [vmem:[%s6730 + $0xc0] sm:$0xff]
    %v6756 = vld [vmem:[%s6730 + $0xc8] sm:$0xff]
    %v6757 = vld [vmem:[%s6730 + $0xd0] sm:$0xff]
    %v6758 = vld [vmem:[%s6730 + $0xd8] sm:$0xff]
    %v6759 = vld [vmem:[%s6730 + $0xe0] sm:$0xff]
    %v6760 = vld [vmem:[%s6730 + $0xe8] sm:$0xff]
    %v6761 = vld [vmem:[%s6730 + $0xf0] sm:$0xff]
    %v6762 = vld [vmem:[%s6730 + $0xf8] sm:$0xff]
    %v6795 = vunpack.c.l.b16 %v6731
    %v6796 = vunpack.c.h.b16 %v6731
    %v6797 = vunpack.c.l.b16 %v6732
    %v6798 = vunpack.c.h.b16 %v6732
    %v6799 = vunpack.c.l.b16 %v6733
    %v6800 = vunpack.c.h.b16 %v6733
    %v6801 = vunpack.c.l.b16 %v6734
    %v6802 = vunpack.c.h.b16 %v6734
    %v6803 = vunpack.c.l.b16 %v6735
    %v6804 = vunpack.c.h.b16 %v6735
    %v6805 = vunpack.c.l.b16 %v6736
    %v6806 = vunpack.c.h.b16 %v6736
    %v6807 = vunpack.c.l.b16 %v6737
    %v6808 = vunpack.c.h.b16 %v6737
    %v6809 = vunpack.c.l.b16 %v6738
    %v6810 = vunpack.c.h.b16 %v6738
    %v6811 = vunpack.c.l.b16 %v6739
    %v6812 = vunpack.c.h.b16 %v6739
    %v6813 = vunpack.c.l.b16 %v6740
    %v6814 = vunpack.c.h.b16 %v6740
    %v6815 = vunpack.c.l.b16 %v6741
    %v6816 = vunpack.c.h.b16 %v6741
    %v6817 = vunpack.c.l.b16 %v6742
    %v6818 = vunpack.c.h.b16 %v6742
    %v6819 = vunpack.c.l.b16 %v6743
    %v6820 = vunpack.c.h.b16 %v6743
    %v6821 = vunpack.c.l.b16 %v6744
    %v6822 = vunpack.c.h.b16 %v6744
    %v6823 = vunpack.c.l.b16 %v6745
    %v6824 = vunpack.c.h.b16 %v6745
    %v6825 = vunpack.c.l.b16 %v6746
    %v6826 = vunpack.c.h.b16 %v6746
    %v6827 = vunpack.c.l.b16 %v6747
    %v6828 = vunpack.c.h.b16 %v6747
    %v6829 = vunpack.c.l.b16 %v6748
    %v6830 = vunpack.c.h.b16 %v6748
    %v6831 = vunpack.c.l.b16 %v6749
    %v6832 = vunpack.c.h.b16 %v6749
    %v6833 = vunpack.c.l.b16 %v6750
    %v6834 = vunpack.c.h.b16 %v6750
    %v6835 = vunpack.c.l.b16 %v6751
    %v6836 = vunpack.c.h.b16 %v6751
    %v6837 = vunpack.c.l.b16 %v6752
    %v6838 = vunpack.c.h.b16 %v6752
    %v6839 = vunpack.c.l.b16 %v6753
    %v6840 = vunpack.c.h.b16 %v6753
    %v6841 = vunpack.c.l.b16 %v6754
    %v6842 = vunpack.c.h.b16 %v6754
    %v6843 = vunpack.c.l.b16 %v6755
    %v6844 = vunpack.c.h.b16 %v6755
    %v6845 = vunpack.c.l.b16 %v6756
    %v6846 = vunpack.c.h.b16 %v6756
    %v6847 = vunpack.c.l.b16 %v6757
    %v6848 = vunpack.c.h.b16 %v6757
    %v6849 = vunpack.c.l.b16 %v6758
    %v6850 = vunpack.c.h.b16 %v6758
    %v6851 = vunpack.c.l.b16 %v6759
    %v6852 = vunpack.c.h.b16 %v6759
    %v6853 = vunpack.c.l.b16 %v6760
    %v6854 = vunpack.c.h.b16 %v6760
    %v6855 = vunpack.c.l.b16 %v6761
    %v6856 = vunpack.c.h.b16 %v6761
    %v6857 = vunpack.c.l.b16 %v6762
    %v6858 = vunpack.c.h.b16 %v6762
    %v6859 = vpack.c.b16 %v6799, %v6795
    %v6860 = vpack.c.b16 %v6800, %v6796
    %v6861 = vpack.c.b16 %v6801, %v6797
    %v6862 = vpack.c.b16 %v6802, %v6798
    %v6863 = vpack.c.b16 %v6807, %v6803
    %v6864 = vpack.c.b16 %v6808, %v6804
    %v6865 = vpack.c.b16 %v6809, %v6805
    %v6866 = vpack.c.b16 %v6810, %v6806
    %v6867 = vpack.c.b16 %v6815, %v6811
    %v6868 = vpack.c.b16 %v6816, %v6812
    %v6869 = vpack.c.b16 %v6817, %v6813
    %v6870 = vpack.c.b16 %v6818, %v6814
    %v6871 = vpack.c.b16 %v6823, %v6819
    %v6872 = vpack.c.b16 %v6824, %v6820
    %v6873 = vpack.c.b16 %v6825, %v6821
    %v6874 = vpack.c.b16 %v6826, %v6822
    %v6875 = vpack.c.b16 %v6831, %v6827
    %v6876 = vpack.c.b16 %v6832, %v6828
    %v6877 = vpack.c.b16 %v6833, %v6829
    %v6878 = vpack.c.b16 %v6834, %v6830
    %v6879 = vpack.c.b16 %v6839, %v6835
    %v6880 = vpack.c.b16 %v6840, %v6836
    %v6881 = vpack.c.b16 %v6841, %v6837
    %v6882 = vpack.c.b16 %v6842, %v6838
    %v6883 = vpack.c.b16 %v6847, %v6843
    %v6884 = vpack.c.b16 %v6848, %v6844
    %v6885 = vpack.c.b16 %v6849, %v6845
    %v6886 = vpack.c.b16 %v6850, %v6846
    %v6887 = vpack.c.b16 %v6855, %v6851
    %v6888 = vpack.c.b16 %v6856, %v6852
    %v6889 = vpack.c.b16 %v6857, %v6853
    %v6890 = vpack.c.b16 %v6858, %v6854
    %6923 = vmatpush.bf16.msra.mxu0 %v6887
    %6924 = vmatpush.bf16.msra.mxu0 %v6883
    %6925 = vmatpush.bf16.msra.mxu0 %v6879
    %6926 = vmatpush.bf16.msra.mxu0 %v6875
    %6927 = vmatpush.bf16.msra.mxu0 %v6871
    %6928 = vmatpush.bf16.msra.mxu0 %v6867
    %6929 = vmatpush.bf16.msra.mxu0 %v6863
    %6930 = vmatpush.bf16.msra.mxu0 %v6859
    %6931 = vmatmul.bf16.gmra.mxu0 %v6729
    %v6932 = vpop.f32.mrf.mxu0
    %v6933 = vadd.f32 0.0, %v6932
    %v6934 = vpop.f32.mrf.mxu0
    %6935 = vdwg.mxu0
    %6936 = vmatpush.bf16.msra.mxu0 %v6888
    %6937 = vmatpush.bf16.msra.mxu0 %v6884
    %6938 = vmatpush.bf16.msra.mxu0 %v6880
    %6939 = vmatpush.bf16.msra.mxu0 %v6876
    %6940 = vmatpush.bf16.msra.mxu0 %v6872
    %6941 = vmatpush.bf16.msra.mxu0 %v6868
    %6942 = vmatpush.bf16.msra.mxu0 %v6864
    %6943 = vmatpush.bf16.msra.mxu0 %v6860
    %6944 = vmatmul.bf16.gmra.mxu0 %v6729
    %v6945 = vpop.f32.mrf.mxu0
    %v6946 = vadd.f32 0.0, %v6945
    %v6947 = vpop.f32.mrf.mxu0
    %6948 = vdwg.mxu0
    %6949 = vmatpush.bf16.msra.mxu0 %v6889
    %6950 = vmatpush.bf16.msra.mxu0 %v6885
    %6951 = vmatpush.bf16.msra.mxu0 %v6881
    %6952 = vmatpush.bf16.msra.mxu0 %v6877
    %6953 = vmatpush.bf16.msra.mxu0 %v6873
    %6954 = vmatpush.bf16.msra.mxu0 %v6869
    %6955 = vmatpush.bf16.msra.mxu0 %v6865
    %6956 = vmatpush.bf16.msra.mxu0 %v6861
    %6957 = vmatmul.bf16.gmra.mxu0 %v6729
    %v6958 = vpop.f32.mrf.mxu0
    %v6959 = vadd.f32 0.0, %v6958
    %v6960 = vpop.f32.mrf.mxu0
    %6961 = vdwg.mxu0
    %6962 = vmatpush.bf16.msra.mxu0 %v6890
    %6963 = vmatpush.bf16.msra.mxu0 %v6886
    %6964 = vmatpush.bf16.msra.mxu0 %v6882
    %6965 = vmatpush.bf16.msra.mxu0 %v6878
    %6966 = vmatpush.bf16.msra.mxu0 %v6874
    %6967 = vmatpush.bf16.msra.mxu0 %v6870
    %6968 = vmatpush.bf16.msra.mxu0 %v6866
    %6969 = vmatpush.bf16.msra.mxu0 %v6862
    %6970 = vmatmul.bf16.gmra.mxu0 %v6729
    %v6971 = vpop.f32.mrf.mxu0
    %v6972 = vadd.f32 0.0, %v6971
    %v6973 = vpop.f32.mrf.mxu0
    %6974 = vdwg.mxu0
    %v6975 = vadd.f32 %v6548, %v6933
    %v6976 = vadd.f32 %v6549, %v6946
    %v6977 = vadd.f32 %v6550, %v6959
    %v6978 = vadd.f32 %v6551, %v6972
    %v6979 = vmax.f32 %v6975, %v6976
    %v6980 = vmax.f32 %v6977, %v6978
    %v6981 = vmax.f32 %v6979, %v6980
    %v6982 = vld [vmem:[#allocation7] sm:$0x1]
    %v6984 = vperm.slane %v6982, 0
    %v6986 = vadd.f32 %v6981, %v6984
    %v6987 = vmax.f32 %v6986, 0.0
    %v6988 = vpack.c.bf16 %v6987, %v6987
    %v6989 = vld [vmem:[%s5] sm:$0xf]
    %v6990 = vld [vmem:[%s5 + $0x4] sm:$0xf]
    %v6991 = vld [vmem:[%s5 + $0x8] sm:$0xf]
    %v6992 = vld [vmem:[%s5 + $0xc] sm:$0xf]
    %v6993 = vld [vmem:[%s5 + $0x10] sm:$0xf]
    %v6994 = vld [vmem:[%s5 + $0x14] sm:$0xf]
    %v6995 = vld [vmem:[%s5 + $0x18] sm:$0xf]
    %v6996 = vld [vmem:[%s5 + $0x1c] sm:$0xf]
    %v6997 = vld [vmem:[%s5 + $0x20] sm:$0xf]
    %v6998 = vld [vmem:[%s5 + $0x24] sm:$0xf]
    %v6999 = vld [vmem:[%s5 + $0x28] sm:$0xf]
    %v7000 = vld [vmem:[%s5 + $0x2c] sm:$0xf]
    %v7001 = vld [vmem:[%s5 + $0x30] sm:$0xf]
    %v7002 = vld [vmem:[%s5 + $0x34] sm:$0xf]
    %v7003 = vld [vmem:[%s5 + $0x38] sm:$0xf]
    %v7004 = vld [vmem:[%s5 + $0x3c] sm:$0xf]
    %v7005 = vld [vmem:[#allocation9] sm:$0x1]
    %v7007 = vperm.slane %v7005, 0
    %v7025 = vunpack.c.l.b16 %v6989
    %v7026 = vunpack.c.l.b16 %v6990
    %v7027 = vunpack.c.l.b16 %v6991
    %v7028 = vunpack.c.l.b16 %v6992
    %v7029 = vunpack.c.l.b16 %v6993
    %v7030 = vunpack.c.l.b16 %v6994
    %v7031 = vunpack.c.l.b16 %v6995
    %v7032 = vunpack.c.l.b16 %v6996
    %v7033 = vunpack.c.l.b16 %v6997
    %v7034 = vunpack.c.l.b16 %v6998
    %v7035 = vunpack.c.l.b16 %v6999
    %v7036 = vunpack.c.l.b16 %v7000
    %v7037 = vunpack.c.l.b16 %v7001
    %v7038 = vunpack.c.l.b16 %v7002
    %v7039 = vunpack.c.l.b16 %v7003
    %v7040 = vunpack.c.l.b16 %v7004
    %v7041 = vpack.c.b16 %v7026, %v7025
    %v7042 = vpack.c.b16 %v7028, %v7027
    %v7043 = vpack.c.b16 %v7030, %v7029
    %v7044 = vpack.c.b16 %v7032, %v7031
    %v7045 = vpack.c.b16 %v7034, %v7033
    %v7046 = vpack.c.b16 %v7036, %v7035
    %v7047 = vpack.c.b16 %v7038, %v7037
    %v7048 = vpack.c.b16 %v7040, %v7039
    %7057 = vmatpush.bf16.msra.mxu0 %v7048
    %7058 = vmatpush.bf16.msra.mxu0 %v7047
    %7059 = vmatpush.bf16.msra.mxu0 %v7046
    %7060 = vmatpush.bf16.msra.mxu0 %v7045
    %7061 = vmatpush.bf16.msra.mxu0 %v7044
    %7062 = vmatpush.bf16.msra.mxu0 %v7043
    %7063 = vmatpush.bf16.msra.mxu0 %v7042
    %7064 = vmatpush.bf16.msra.mxu0 %v7041
    %7065 = vmatmul.bf16.gmra.mxu0 %v6988
    %v7066 = vpop.f32.mrf.mxu0
    %v7067 = vadd.f32 %v7007, %v7066
    %v7068 = vpop.f32.mrf.mxu0
    %7069 = vdwg.mxu0
    %vm7070 = vcmask 130048
    %7071 = vst.msk [vmem:[%s7] sm:$0xff] %vm7070, %v7067
    // Predicated region
    $region50: #{cnn_forward.1} parent=1 // pred_check
      _
    $region51: #{cnn_forward.1} parent=1 // pred_check_branch
      %7073 = sbr.rel (0) target = $region53
    $region52: #{cnn_forward.1} parent=1 // pred_region
      _
    $region53: #{cnn_forward.1} parent=1 // pred_fallthru
      _
    // Predicated region
    $region54: #{cnn_forward.1} parent=1 // pred_check
      _
    $region55: #{cnn_forward.1} parent=1 // pred_check_branch
      %7075 = sbr.rel (0) target = $region57
    $region56: #{cnn_forward.1} parent=1 // pred_region
      _
    $region57: #{cnn_forward.1} parent=1 // pred_fallthru
      _
    %7076 = vsyncpa [#allocation3], 1
    %7077 = vsyncpa [#allocation5], 1
    %7078 = vsyncpa [#allocation8], 1

</llo_original>
